<compile_context>
chip_gen: v7x
topology: tpu7x:2x2x1
jax: 0.10.0
libtpu: 0.0.40
codegen_flags: <defaults>
</compile_context>

<pallas_src>
import functools

import jax
import jax.numpy as jnp
from jax.experimental import pallas as pl
from jax.experimental.pallas import tpu as pltpu


# ------------------------------- helpers -------------------------------

def _tile(dim, pref, align):
    """Largest tile <= pref that divides `dim` and is a multiple of `align`;
    falls back to the full dim (always legal for BlockSpec)."""
    if dim <= pref:
        return dim
    t = (pref // align) * align
    while t >= align:
        if dim % t == 0:
            return t
        t -= align
    return dim


def _default_vmem_limit():
    """Per-generation scoped-VMEM budget: ~60% of physical VMEM, capped at 80 MiB.
    v5e/v6e (128 MiB phys) -> ~76 MiB; v7x (64 MiB phys) -> ~38 MiB."""
    try:
        cap = int(pltpu.get_tpu_info().vmem_capacity_bytes)
    except Exception:  # pragma: no cover - conservative fallback
        cap = 64 * 1024 * 1024
    return max(32 * 1024 * 1024, min((cap * 3) // 5, 80 * 1024 * 1024))


_VMEM_LIMIT = _default_vmem_limit()


# ---------------------- tiled matmul (+bias, +residual) ----------------------

def _mm_bias_kernel(x_ref, w_ref, b_ref, o_ref, acc_ref):
    @pl.when(pl.program_id(2) == 0)
    def _():
        acc_ref[...] = jnp.zeros(acc_ref.shape, jnp.float32)

    acc_ref[...] += jnp.dot(x_ref[...].astype(jnp.bfloat16),
                            w_ref[...].astype(jnp.bfloat16),
                            preferred_element_type=jnp.float32)

    @pl.when(pl.program_id(2) == pl.num_programs(2) - 1)
    def _():
        o_ref[...] = (acc_ref[...] + b_ref[...].astype(jnp.float32)
                      ).astype(o_ref.dtype)


def _mm_bias_res_kernel(x_ref, w_ref, b_ref, r_ref, o_ref, acc_ref):
    @pl.when(pl.program_id(2) == 0)
    def _():
        acc_ref[...] = jnp.zeros(acc_ref.shape, jnp.float32)

    acc_ref[...] += jnp.dot(x_ref[...].astype(jnp.bfloat16),
                            w_ref[...].astype(jnp.bfloat16),
                            preferred_element_type=jnp.float32)

    @pl.when(pl.program_id(2) == pl.num_programs(2) - 1)
    def _():
        o_ref[...] = (acc_ref[...] + b_ref[...].astype(jnp.float32)
                      + r_ref[...].astype(jnp.float32)).astype(o_ref.dtype)


def matmul_bias(x, w, b, residual=None, *, out_dtype=jnp.bfloat16,
                tm=512, tn=512, tk=512):
    """(M,K) @ (K,N) + b [+ residual], tiled for the MXU with fp32 accumulation.

    `residual` may have fewer rows than x (e.g. the (L, D) positional embedding
    vs. the (B*L, D) patch-embed output); it is then applied with a modular row
    index_map (broadcast over the batch)."""
    M, K = x.shape
    _, N = w.shape
    tm = _tile(M, tm, 8)
    tn = _tile(N, tn, 128)
    tk = _tile(K, tk, 128)

    if residual is not None and residual.shape[0] != M:
        Mr = residual.shape[0]
        assert M % Mr == 0, "broadcast residual rows must divide M"
        tm = _tile(Mr, tm, 8)          # ensure row tiles do not straddle the period
    grid = (M // tm, N // tn, K // tk)

    x_spec = pl.BlockSpec((tm, tk), lambda i, j, k: (i, k))
    w_spec = pl.BlockSpec((tk, tn), lambda i, j, k: (k, j))
    b_spec = pl.BlockSpec((1, tn), lambda i, j, k: (0, j))
    o_spec = pl.BlockSpec((tm, tn), lambda i, j, k: (i, j))
    params = pltpu.CompilerParams(
        dimension_semantics=("parallel", "parallel", "arbitrary"),
        vmem_limit_bytes=_VMEM_LIMIT)
    scratch = [pltpu.VMEM((tm, tn), jnp.float32)]
    b2 = b.reshape(1, N)

    if residual is None:
        return pl.pallas_call(
            _mm_bias_kernel,
            out_shape=jax.ShapeDtypeStruct((M, N), out_dtype),
            grid=grid,
            in_specs=[x_spec, w_spec, b_spec],
            out_specs=o_spec,
            scratch_shapes=scratch,
            compiler_params=params,
        )(x, w, b2)

    Mr = residual.shape[0]
    if Mr == M:
        r_spec = pl.BlockSpec((tm, tn), lambda i, j, k: (i, j))
    else:
        rb = Mr // tm
        r_spec = pl.BlockSpec((tm, tn), lambda i, j, k, rb=rb: (i % rb, j))
    return pl.pallas_call(
        _mm_bias_res_kernel,
        out_shape=jax.ShapeDtypeStruct((M, N), out_dtype),
        grid=grid,
        in_specs=[x_spec, w_spec, b_spec, r_spec],
        out_specs=o_spec,
        scratch_shapes=scratch,
        compiler_params=params,
    )(x, w, b2, residual)


# ------------------ fused LayerNorm + matmul (+bias, +GELU) ------------------
# Grid over M only: LN stats are computed once per row tile, and the (K, N)
# weight block (constant index_map) is not re-streamed across row tiles.

def _ln_mm_kernel(x_ref, g_ref, be_ref, w_ref, b_ref, o_ref, *, eps, gelu):
    x = x_ref[...].astype(jnp.float32)
    mean = jnp.mean(x, axis=-1, keepdims=True)
    xc = x - mean
    var = jnp.mean(xc * xc, axis=-1, keepdims=True)
    xn = xc * jax.lax.rsqrt(var + eps)
    xn = xn * g_ref[...].astype(jnp.float32) + be_ref[...].astype(jnp.float32)
    acc = jnp.dot(xn.astype(jnp.bfloat16), w_ref[...].astype(jnp.bfloat16),
                  preferred_element_type=jnp.float32)
    acc = acc + b_ref[...].astype(jnp.float32)
    if gelu:
        acc = jax.nn.gelu(acc, approximate=True)   # TODO(synk): erf GELU in timm
    o_ref[...] = acc.astype(o_ref.dtype)


def ln_matmul_bias(x, gamma, beta, w, b, *, gelu=False, eps=1e-6,
                   out_dtype=jnp.bfloat16, tm=512):
    """LayerNorm(x) @ w + b [then GELU], full K and N per row tile."""
    M, K = x.shape
    _, N = w.shape
    tm = _tile(M, tm, 8)
    grid = (M // tm,)

    return pl.pallas_call(
        functools.partial(_ln_mm_kernel, eps=eps, gelu=gelu),
        out_shape=jax.ShapeDtypeStruct((M, N), out_dtype),
        grid=grid,
        in_specs=[
            pl.BlockSpec((tm, K), lambda i: (i, 0)),
            pl.BlockSpec((1, K), lambda i: (0, 0)),
            pl.BlockSpec((1, K), lambda i: (0, 0)),
            pl.BlockSpec((K, N), lambda i: (0, 0)),   # weight resident in VMEM
            pl.BlockSpec((1, N), lambda i: (0, 0)),
        ],
        out_specs=pl.BlockSpec((tm, N), lambda i: (i, 0)),
        compiler_params=pltpu.CompilerParams(
            dimension_semantics=("parallel",),
            vmem_limit_bytes=_VMEM_LIMIT),
    )(x, gamma.reshape(1, K), beta.reshape(1, K), w, b.reshape(1, N))


# --------- fused LayerNorm + qkv matmul with head-major scatter output --------
# Writes (3, heads, M, dh) directly from the kernel so no host-side transpose of
# the qkv tensor is needed before attention (only a free reshape of M -> (B, L)).

def _ln_qkv_kernel(x_ref, g_ref, be_ref, w_ref, b_ref, o_ref, *,
                   eps, heads, dh, d):
    x = x_ref[...].astype(jnp.float32)
    mean = jnp.mean(x, axis=-1, keepdims=True)
    xc = x - mean
    var = jnp.mean(xc * xc, axis=-1, keepdims=True)
    xn = xc * jax.lax.rsqrt(var + eps)
    xn = xn * g_ref[...].astype(jnp.float32) + be_ref[...].astype(jnp.float32)
    acc = jnp.dot(xn.astype(jnp.bfloat16), w_ref[...].astype(jnp.bfloat16),
                  preferred_element_type=jnp.float32)
    acc = (acc + b_ref[...].astype(jnp.float32)).astype(o_ref.dtype)
    # Static lane-slice scatter into head-major layout (q/k/v x head planes).
    for s3 in range(3):
        for h in range(heads):
            c0 = s3 * d + h * dh
            o_ref[s3, h] = acc[:, c0:c0 + dh]


def ln_qkv(x, gamma, beta, w, b, *, heads, dh, eps=1e-6,
           out_dtype=jnp.bfloat16, tm=512):
    M, K = x.shape
    N = w.shape[1]
    D = heads * dh
    assert N == 3 * D
    tm = _tile(M, tm, 8)
    grid = (M // tm,)

    return pl.pallas_call(
        functools.partial(_ln_qkv_kernel, eps=eps, heads=heads, dh=dh, d=D),
        out_shape=jax.ShapeDtypeStruct((3, heads, M, dh), out_dtype),
        grid=grid,
        in_specs=[
            pl.BlockSpec((tm, K), lambda i: (i, 0)),
            pl.BlockSpec((1, K), lambda i: (0, 0)),
            pl.BlockSpec((1, K), lambda i: (0, 0)),
            pl.BlockSpec((K, N), lambda i: (0, 0)),
            pl.BlockSpec((1, N), lambda i: (0, 0)),
        ],
        out_specs=pl.BlockSpec((3, heads, tm, dh), lambda i: (0, 0, i, 0)),
        compiler_params=pltpu.CompilerParams(
            dimension_semantics=("parallel",),
            vmem_limit_bytes=_VMEM_LIMIT),
    )(x, gamma.reshape(1, K), beta.reshape(1, K), w, b.reshape(1, N))


# -------------------- flash attention (head-batched dots) --------------------

def _attn_kernel(q_ref, k_ref, v_ref, o_ref, m_ref, l_ref, acc_ref, *, heads, dh):
    ki = pl.program_id(2)

    @pl.when(ki == 0)
    def _():
        m_ref[...] = jnp.full(m_ref.shape, -jnp.inf, jnp.float32)
        l_ref[...] = jnp.zeros(l_ref.shape, jnp.float32)
        acc_ref[...] = jnp.zeros(acc_ref.shape, jnp.float32)

    q = q_ref[0, :, 0]        # (heads, tq, dh)  bf16, scale pre-folded into W_q
    k = k_ref[0, :, 0]        # (heads, tkv, dh) bf16
    v = v_ref[0, :, 0]        # (heads, tkv, dh) bf16

    # One batched MXU dot over all heads (heads is the leading batch dim).
    s = jnp.einsum('hqd,hkd->hqk', q, k,
                   preferred_element_type=jnp.float32)          # (heads, tq, tkv)
    m_prev = m_ref[...]                                          # (heads, tq, 1)
    m_new = jnp.maximum(m_prev, jnp.max(s, axis=-1, keepdims=True))
    alpha = jnp.exp(m_prev - m_new)
    p = jnp.exp(s - m_new)
    l_ref[...] = alpha * l_ref[...] + jnp.sum(p, axis=-1, keepdims=True)
    acc_ref[...] = alpha * acc_ref[...] + jnp.einsum(
        'hqk,hkd->hqd', p.astype(jnp.bfloat16), v,
        preferred_element_type=jnp.float32)                      # (heads, tq, dh)
    m_ref[...] = m_new

    @pl.when(ki == pl.num_programs(2) - 1)
    def _():
        inv = pl.reciprocal(l_ref[...], approx=False)            # exact denom
        out = acc_ref[...] * inv                                 # (heads, tq, dh)
        for h in range(heads):                                   # lane slices -> (tq, D)
            o_ref[0, :, h * dh:(h + 1) * dh] = out[h].astype(o_ref.dtype)


def attention(qkv5, *, heads, dh, out_dtype=jnp.bfloat16, tq=256, tkv=512):
    """qkv5: (3, heads, B, L, dh) head-major, no host transpose needed.
    Returns (B, L, heads*dh) lane-dense, flash-style online softmax over the KV
    grid axis, all heads per grid step via one batched dot_general."""
    _, _, B, L, _ = qkv5.shape
    D = heads * dh
    tq = _tile(L, tq, 8)
    tkv = _tile(L, tkv, 8)
    grid = (B, L // tq, L // tkv)

    q_spec = pl.BlockSpec((1, heads, 1, tq, dh), lambda b, qi, ki: (0, 0, b, qi, 0))
    k_spec = pl.BlockSpec((1, heads, 1, tkv, dh), lambda b, qi, ki: (1, 0, b, ki, 0))
    v_spec = pl.BlockSpec((1, heads, 1, tkv, dh), lambda b, qi, ki: (2, 0, b, ki, 0))
    o_spec = pl.BlockSpec((1, tq, D), lambda b, qi, ki: (b, qi, 0))

    return pl.pallas_call(
        functools.partial(_attn_kernel, heads=heads, dh=dh),
        out_shape=jax.ShapeDtypeStruct((B, L, D), out_dtype),
        grid=grid,
        in_specs=[q_spec, k_spec, v_spec],
        out_specs=o_spec,
        scratch_shapes=[
            pltpu.VMEM((heads, tq, 1), jnp.float32),    # running max (all heads)
            pltpu.VMEM((heads, tq, 1), jnp.float32),    # running sum (all heads)
            pltpu.VMEM((heads, tq, dh), jnp.float32),   # head-batched accumulator
        ],
        compiler_params=pltpu.CompilerParams(
            dimension_semantics=("parallel", "parallel", "arbitrary"),
            vmem_limit_bytes=_VMEM_LIMIT),
    )(qkv5, qkv5, qkv5)


# ---------------------------- model (glue in JAX) ----------------------------

def init_params(key, *, in_chans, patch, embed_dim, depth, heads, mlp_hidden,
                num_patches):
    D, Hm = embed_dim, mlp_hidden
    dh = D // heads
    scale = dh ** -0.5

    def nrm(k, shape, std=0.02):
        return std * jax.random.normal(k, shape, dtype=jnp.float32)

    keys = iter(jax.random.split(key, 4 + depth * 6))
    patch_dim = in_chans * patch * patch
    params = {
        "patch_w": nrm(next(keys), (patch_dim, D)).astype(jnp.bfloat16),
        "patch_b": jnp.zeros((D,), jnp.float32),
        "pos": 0.02 * jax.random.normal(next(keys), (num_patches, D),
                                        dtype=jnp.float32),
        "blocks": [],
    }
    for _ in range(depth):
        qkv_w = nrm(next(keys), (D, 3 * D))
        qkv_w = qkv_w.at[:, :D].multiply(scale)          # fold attn scale into Q
        qkv_b = jnp.zeros((3 * D,), jnp.float32)
        qkv_b = qkv_b.at[:D].multiply(scale)             # (no-op on zeros; kept for
                                                         #  fidelity with real ckpts)
        params["blocks"].append({
            "ln1_g": jnp.ones((D,), jnp.float32),
            "ln1_b": jnp.zeros((D,), jnp.float32),
            "qkv_w": qkv_w.astype(jnp.bfloat16),
            "qkv_b": qkv_b,
            "proj_w": nrm(next(keys), (D, D)).astype(jnp.bfloat16),
            "proj_b": jnp.zeros((D,), jnp.float32),
            "ln2_g": jnp.ones((D,), jnp.float32),
            "ln2_b": jnp.zeros((D,), jnp.float32),
            "fc1_w": nrm(next(keys), (D, Hm)).astype(jnp.bfloat16),
            "fc1_b": jnp.zeros((Hm,), jnp.float32),
            "fc2_w": nrm(next(keys), (Hm, D)).astype(jnp.bfloat16),
            "fc2_b": jnp.zeros((D,), jnp.float32),
        })
    return params


def sam_forward(x_nchw, params, *, patch, heads, dlayers):
    """Equivalent of sam.forward: concat of raw block-output intermediates
    (norm=False, intermediates_only=True) rearranged to (B, L, C)."""
    B, C, H, W = x_nchw.shape
    gh, gw = H // patch, W // patch
    L = gh * gw
    D = params["patch_w"].shape[1]
    dh = D // heads

    # Patch embed: Conv2d(kernel=stride=patch) as a tiled matmul over patches,
    # with the positional-embedding add fused into the epilogue (modular residual).
    xp = x_nchw.reshape(B, C, gh, patch, gw, patch)
    xp = xp.transpose(0, 2, 4, 1, 3, 5).reshape(B * L, C * patch * patch)
    tm_pe = _tile(L, 512, 8)
    x = matmul_bias(xp, params["patch_w"], params["patch_b"],
                    residual=params["pos"], tm=tm_pe,
                    out_dtype=jnp.bfloat16)                      # (B*L, D) bf16

    outs = []
    for bi, blk in enumerate(params["blocks"]):
        # --- attention sub-block: LN1 fused into qkv (head-major output, no
        #     host transpose); residual fused into proj epilogue ---
        qkv = ln_qkv(x, blk["ln1_g"], blk["ln1_b"],
                     blk["qkv_w"], blk["qkv_b"],
                     heads=heads, dh=dh)                         # (3, heads, B*L, dh)
        qkv5 = qkv.reshape(3, heads, B, L, dh)                   # free reshape
        attn = attention(qkv5, heads=heads, dh=dh)               # (B, L, D) bf16
        x = matmul_bias(attn.reshape(B * L, D), blk["proj_w"], blk["proj_b"],
                        residual=x)                              # bf16 residual stream

        # --- MLP sub-block: LN2 + fc1 + GELU fused; fc2 + residual fused ---
        h1 = ln_matmul_bias(x, blk["ln2_g"], blk["ln2_b"],
                            blk["fc1_w"], blk["fc1_b"], gelu=True)   # (B*L, Hm)
        x = matmul_bias(h1, blk["fc2_w"], blk["fc2_b"], residual=x)

        if bi in dlayers:
            outs.append(x.reshape(B, L, D))

    # timm forward_intermediates(norm=False) returns raw block outputs (BCHW);
    # the sam wrapper rearranges to (B, L, C) and concatenates on channels.
    return jnp.concatenate(outs, axis=-1).astype(jnp.float32)    # (B, L, 4*D)


# --------------------------------- driver ---------------------------------

if __name__ == "__main__":
    # Small-shape configuration consistent with samvit_base_patch16:
    #   patch=16; img (64, 128) keeps the 1:2 aspect of the original (448, 896);
    #   depth=12, dlayers=[2,5,8,11]; embed_dim kept lane-dense (128).
    PATCH = 16
    IN_CHANS = 3
    IMG = (64, 128)
    EMBED_DIM = 128
    HEADS = 4
    DEPTH = 12
    MLP_HIDDEN = 4 * EMBED_DIM
    DLAYERS = (2, 5, 8, 11)
    B = 2

    gh, gw = IMG[0] // PATCH, IMG[1] // PATCH
    num_patches = gh * gw

    root = jax.random.PRNGKey(0)
    kx, kp = jax.random.split(root)
    x = jax.random.normal(kx, (B, IN_CHANS, IMG[0], IMG[1]), dtype=jnp.float32)
    params = init_params(kp, in_chans=IN_CHANS, patch=PATCH, embed_dim=EMBED_DIM,
                         depth=DEPTH, heads=HEADS, mlp_hidden=MLP_HIDDEN,
                         num_patches=num_patches)

    fwd = jax.jit(functools.partial(sam_forward, patch=PATCH, heads=HEADS,
                                    dlayers=DLAYERS))
    out = fwd(x, params)
    jax.block_until_ready(out)

    assert out.shape == (B, num_patches, EMBED_DIM * len(DLAYERS)), out.shape
    assert bool(jnp.all(jnp.isfinite(out)))
    print("KERNEL_OK")
</pallas_src>

<mosaic_0001>
module attributes {stable_mosaic.version = 11 : i64} {
  func.func @_mm_bias_res_kernel(%arg0: i32, %arg1: i32, %arg2: i32, %arg3: memref<32x384xf32, #tpu.memory_space<vmem>>, %arg4: memref<384x128xbf16, #tpu.memory_space<vmem>>, %arg5: memref<1x128xf32, #tpu.memory_space<vmem>>, %arg6: memref<32x128xf32, #tpu.memory_space<vmem>>, %arg7: memref<32x128xbf16, #tpu.memory_space<vmem>>, %arg8: memref<32x128xf32, #tpu.memory_space<vmem>>) attributes {dimension_semantics = [#tpu.dimension_semantics<parallel>, #tpu.dimension_semantics<parallel>, #tpu.dimension_semantics<arbitrary>], iteration_bounds = array<i64: 2, 1, 2>, scalar_prefetch = 0 : i64, scratch_operands = 1 : i64, tpu.core_type = #tpu.core_type<tc>, window_params = [{transform_indices = @transform_0, window_bounds = array<i64: 32, 384>}, {transform_indices = @transform_1, window_bounds = array<i64: 384, 128>}, {transform_indices = @transform_2, window_bounds = array<i64: 1, 128>}, {transform_indices = @transform_3, window_bounds = array<i64: 32, 128>}, {transform_indices = @transform_4, window_bounds = array<i64: 32, 128>}]} {
    %c0_i32 = arith.constant 0 : i32
    %0 = arith.cmpi eq, %arg2, %c0_i32 : i32
    %1 = arith.extui %0 : i1 to i32
    %c0_i32_0 = arith.constant 0 : i32
    %2 = arith.cmpi ne, %1, %c0_i32_0 : i32
    scf.if %2 {
      %cst_9 = arith.constant 0.000000e+00 : f32
      %13 = vector.broadcast %cst_9 : f32 to vector<32x128xf32>
      %c0_10 = arith.constant 0 : index
      %c0_11 = arith.constant 0 : index
      %14 = vector.load %arg8[%c0_10, %c0_11] : memref<32x128xf32, #tpu.memory_space<vmem>>, vector<32x128xf32>
      tpu.vector_store %arg8[%c0_10, %c0_11], %13 {strides = array<i32>} : memref<32x128xf32, #tpu.memory_space<vmem>>, vector<32x128xf32>,
    } else {
    }
    %c0 = arith.constant 0 : index
    %c0_1 = arith.constant 0 : index
    %3 = vector.load %arg8[%c0, %c0_1] : memref<32x128xf32, #tpu.memory_space<vmem>>, vector<32x128xf32>
    %c0_2 = arith.constant 0 : index
    %c0_3 = arith.constant 0 : index
    %4 = vector.load %arg3[%c0_2, %c0_3] : memref<32x384xf32, #tpu.memory_space<vmem>>, vector<32x384xf32>
    %5 = arith.truncf %4 : vector<32x384xf32> to vector<32x384xbf16>
    %c0_4 = arith.constant 0 : index
    %c0_5 = arith.constant 0 : index
    %6 = vector.load %arg4[%c0_4, %c0_5] : memref<384x128xbf16, #tpu.memory_space<vmem>>, vector<384x128xbf16>
    %cst = arith.constant dense<0.000000e+00> : vector<32x128xf32>
    %7 = tpu.matmul %5, %6, %cst {dimension_numbers = #tpu.dot_dimension_numbers<[1], [0], [0], [1], [0, 0, 1, 1], [], []>} : vector<32x384xbf16>, vector<384x128xbf16>, vector<32x128xf32> -> vector<32x128xf32>
    %8 = arith.addf %3, %7 : vector<32x128xf32>
    %c0_6 = arith.constant 0 : index
    %c0_7 = arith.constant 0 : index
    %9 = vector.load %arg8[%c0_6, %c0_7] : memref<32x128xf32, #tpu.memory_space<vmem>>, vector<32x128xf32>
    tpu.vector_store %arg8[%c0_6, %c0_7], %8 {strides = array<i32>} : memref<32x128xf32, #tpu.memory_space<vmem>>, vector<32x128xf32>,
    %c1_i32 = arith.constant 1 : i32
    %10 = arith.cmpi eq, %arg2, %c1_i32 : i32
    %11 = arith.extui %10 : i1 to i32
    %c0_i32_8 = arith.constant 0 : i32
    %12 = arith.cmpi ne, %11, %c0_i32_8 : i32
    scf.if %12 {
      %c0_9 = arith.constant 0 : index
      %c0_10 = arith.constant 0 : index
      %13 = vector.load %arg8[%c0_9, %c0_10] : memref<32x128xf32, #tpu.memory_space<vmem>>, vector<32x128xf32>
      %c0_11 = arith.constant 0 : index
      %c0_12 = arith.constant 0 : index
      %14 = vector.load %arg5[%c0_11, %c0_12] : memref<1x128xf32, #tpu.memory_space<vmem>>, vector<1x128xf32>
      %15 = vector.broadcast %14 : vector<1x128xf32> to vector<32x128xf32>
      %16 = arith.addf %13, %15 : vector<32x128xf32>
      %c0_13 = arith.constant 0 : index
      %c0_14 = arith.constant 0 : index
      %17 = vector.load %arg6[%c0_13, %c0_14] : memref<32x128xf32, #tpu.memory_space<vmem>>, vector<32x128xf32>
      %18 = arith.addf %16, %17 : vector<32x128xf32>
      %19 = arith.truncf %18 : vector<32x128xf32> to vector<32x128xbf16>
      %c0_15 = arith.constant 0 : index
      %c0_16 = arith.constant 0 : index
      %20 = vector.load %arg7[%c0_15, %c0_16] : memref<32x128xbf16, #tpu.memory_space<vmem>>, vector<32x128xbf16>
      tpu.vector_store %arg7[%c0_15, %c0_16], %19 {strides = array<i32>} : memref<32x128xbf16, #tpu.memory_space<vmem>>, vector<32x128xbf16>,
    } else {
    }
    return
  }
  func.func @transform_0(%arg0: i32, %arg1: i32, %arg2: i32) -> (i32, i32) {
    %c0_i32 = arith.constant 0 : i32
    return %arg0, %arg2 : i32, i32
  }
  func.func @transform_1(%arg0: i32, %arg1: i32, %arg2: i32) -> (i32, i32) {
    %c0_i32 = arith.constant 0 : i32
    return %arg2, %arg1 : i32, i32
  }
  func.func @transform_2(%arg0: i32, %arg1: i32, %arg2: i32) -> (i32, i32) {
    %c0_i32 = arith.constant 0 : i32
    %c0_i32_0 = arith.constant 0 : i32
    return %c0_i32, %arg1 : i32, i32
  }
  func.func @transform_3(%arg0: i32, %arg1: i32, %arg2: i32) -> (i32, i32) {
    %c1_i32 = arith.constant 1 : i32
    %c0_i32 = arith.constant 0 : i32
    %0 = arith.cmpi eq, %c1_i32, %c0_i32 : i32
    %c1_i32_0 = arith.constant 1 : i32
    %1 = arith.select %0, %c1_i32_0, %c1_i32 : i32
    %2 = arith.remsi %arg0, %1 : i32
    %c0_i32_1 = arith.constant 0 : i32
    %3 = arith.cmpi ne, %2, %c0_i32_1 : i32
    %c0_i32_2 = arith.constant 0 : i32
    %4 = arith.cmpi slt, %2, %c0_i32_2 : i32
    %c0_i32_3 = arith.constant 0 : i32
    %5 = arith.cmpi slt, %1, %c0_i32_3 : i32
    %6 = arith.xori %4, %5 : i1
    %7 = arith.andi %6, %3 : i1
    %8 = arith.addi %2, %1 : i32
    %9 = arith.select %7, %8, %2 : i32
    %c0_i32_4 = arith.constant 0 : i32
    return %9, %arg1 : i32, i32
  }
  func.func @transform_4(%arg0: i32, %arg1: i32, %arg2: i32) -> (i32, i32) {
    %c0_i32 = arith.constant 0 : i32
    return %arg0, %arg1 : i32, i32
  }
}

module attributes {stable_mosaic.version = 11 : i64} {
  func.func @_ln_qkv_kernel(%arg0: i32, %arg1: memref<64x128xbf16, #tpu.memory_space<vmem>>, %arg2: memref<1x128xf32, #tpu.memory_space<vmem>>, %arg3: memref<1x128xf32, #tpu.memory_space<vmem>>, %arg4: memref<128x384xbf16, #tpu.memory_space<vmem>>, %arg5: memref<1x384xf32, #tpu.memory_space<vmem>>, %arg6: memref<3x4x64x32xbf16, #tpu.memory_space<vmem>>) attributes {dimension_semantics = [#tpu.dimension_semantics<parallel>], iteration_bounds = array<i64: 1>, scalar_prefetch = 0 : i64, scratch_operands = 0 : i64, tpu.core_type = #tpu.core_type<tc>, window_params = [{transform_indices = @transform_0, window_bounds = array<i64: 64, 128>}, {pipeline_mode = #tpu.pipeline_mode<synchronous>, transform_indices = @transform_1, window_bounds = array<i64: 1, 128>}, {pipeline_mode = #tpu.pipeline_mode<synchronous>, transform_indices = @transform_2, window_bounds = array<i64: 1, 128>}, {pipeline_mode = #tpu.pipeline_mode<synchronous>, transform_indices = @transform_3, window_bounds = array<i64: 128, 384>}, {pipeline_mode = #tpu.pipeline_mode<synchronous>, transform_indices = @transform_4, window_bounds = array<i64: 1, 384>}, {transform_indices = @transform_5, window_bounds = array<i64: 3, 4, 64, 32>}]} {
    %c0 = arith.constant 0 : index
    %c0_0 = arith.constant 0 : index
    %0 = vector.load %arg1[%c0, %c0_0] : memref<64x128xbf16, #tpu.memory_space<vmem>>, vector<64x128xbf16>
    %1 = arith.extf %0 : vector<64x128xbf16> to vector<64x128xf32>
    %cst = arith.constant dense<0.000000e+00> : vector<64xf32>
    %2 = vector.multi_reduction <add>, %1, %cst [1] : vector<64x128xf32> to vector<64xf32>
    %3 = vector.shape_cast %2 : vector<64xf32> to vector<64x1xf32>
    %cst_1 = arith.constant 1.280000e+02 : f32
    %4 = vector.broadcast %cst_1 : f32 to vector<64x1xf32>
    %5 = arith.divf %3, %4 : vector<64x1xf32>
    %6 = vector.broadcast %5 : vector<64x1xf32> to vector<64x128xf32>
    %7 = arith.subf %1, %6 : vector<64x128xf32>
    %8 = arith.mulf %7, %7 : vector<64x128xf32>
    %cst_2 = arith.constant dense<0.000000e+00> : vector<64xf32>
    %9 = vector.multi_reduction <add>, %8, %cst_2 [1] : vector<64x128xf32> to vector<64xf32>
    %10 = vector.shape_cast %9 : vector<64xf32> to vector<64x1xf32>
    %cst_3 = arith.constant 1.280000e+02 : f32
    %11 = vector.broadcast %cst_3 : f32 to vector<64x1xf32>
    %12 = arith.divf %10, %11 : vector<64x1xf32>
    %cst_4 = arith.constant 9.99999997E-7 : f32
    %13 = vector.broadcast %cst_4 : f32 to vector<64x1xf32>
    %14 = arith.addf %12, %13 : vector<64x1xf32>
    %15 = math.rsqrt %14 : vector<64x1xf32>
    %16 = vector.broadcast %15 : vector<64x1xf32> to vector<64x128xf32>
    %17 = arith.mulf %7, %16 : vector<64x128xf32>
    %c0_5 = arith.constant 0 : index
    %c0_6 = arith.constant 0 : index
    %18 = vector.load %arg2[%c0_5, %c0_6] : memref<1x128xf32, #tpu.memory_space<vmem>>, vector<1x128xf32>
    %19 = vector.broadcast %18 : vector<1x128xf32> to vector<64x128xf32>
    %20 = arith.mulf %17, %19 : vector<64x128xf32>
    %c0_7 = arith.constant 0 : index
    %c0_8 = arith.constant 0 : index
    %21 = vector.load %arg3[%c0_7, %c0_8] : memref<1x128xf32, #tpu.memory_space<vmem>>, vector<1x128xf32>
    %22 = vector.broadcast %21 : vector<1x128xf32> to vector<64x128xf32>
    %23 = arith.addf %20, %22 : vector<64x128xf32>
    %24 = arith.truncf %23 : vector<64x128xf32> to vector<64x128xbf16>
    %c0_9 = arith.constant 0 : index
    %c0_10 = arith.constant 0 : index
    %25 = vector.load %arg4[%c0_9, %c0_10] : memref<128x384xbf16, #tpu.memory_space<vmem>>, vector<128x384xbf16>
    %cst_11 = arith.constant dense<0.000000e+00> : vector<64x384xf32>
    %26 = tpu.matmul %24, %25, %cst_11 {dimension_numbers = #tpu.dot_dimension_numbers<[1], [0], [0], [1], [0, 0, 1, 1], [], []>} : vector<64x128xbf16>, vector<128x384xbf16>, vector<64x384xf32> -> vector<64x384xf32>
    %c0_12 = arith.constant 0 : index
    %c0_13 = arith.constant 0 : index
    %27 = vector.load %arg5[%c0_12, %c0_13] : memref<1x384xf32, #tpu.memory_space<vmem>>, vector<1x384xf32>
    %28 = vector.broadcast %27 : vector<1x384xf32> to vector<64x384xf32>
    %29 = arith.addf %26, %28 : vector<64x384xf32>
    %30 = arith.truncf %29 : vector<64x384xf32> to vector<64x384xbf16>
    %31 = vector.extract_strided_slice %30 {offsets = [0, 0], sizes = [64, 32], strides = [1, 1]} : vector<64x384xbf16> to vector<64x32xbf16>
    %c0_14 = arith.constant 0 : index
    %c0_15 = arith.constant 0 : index
    %c0_16 = arith.constant 0 : index
    %c0_17 = arith.constant 0 : index
    %32 = vector.load %arg6[%c0_14, %c0_15, %c0_16, %c0_17] : memref<3x4x64x32xbf16, #tpu.memory_space<vmem>>, vector<1x1x64x32xbf16>
    %33 = vector.shape_cast %32 : vector<1x1x64x32xbf16> to vector<64x32xbf16>
    %34 = vector.shape_cast %31 : vector<64x32xbf16> to vector<1x1x64x32xbf16>
    tpu.vector_store %arg6[%c0_14, %c0_15, %c0_16, %c0_17], %34 {strides = array<i32>} : memref<3x4x64x32xbf16, #tpu.memory_space<vmem>>, vector<1x1x64x32xbf16>,
    %35 = vector.extract_strided_slice %30 {offsets = [0, 32], sizes = [64, 32], strides = [1, 1]} : vector<64x384xbf16> to vector<64x32xbf16>
    %c0_18 = arith.constant 0 : index
    %c1 = arith.constant 1 : index
    %c0_19 = arith.constant 0 : index
    %c0_20 = arith.constant 0 : index
    %36 = vector.load %arg6[%c0_18, %c1, %c0_19, %c0_20] : memref<3x4x64x32xbf16, #tpu.memory_space<vmem>>, vector<1x1x64x32xbf16>
    %37 = vector.shape_cast %36 : vector<1x1x64x32xbf16> to vector<64x32xbf16>
    %38 = vector.shape_cast %35 : vector<64x32xbf16> to vector<1x1x64x32xbf16>
    tpu.vector_store %arg6[%c0_18, %c1, %c0_19, %c0_20], %38 {strides = array<i32>} : memref<3x4x64x32xbf16, #tpu.memory_space<vmem>>, vector<1x1x64x32xbf16>,
    %39 = vector.extract_strided_slice %30 {offsets = [0, 64], sizes = [64, 32], strides = [1, 1]} : vector<64x384xbf16> to vector<64x32xbf16>
    %c0_21 = arith.constant 0 : index
    %c2 = arith.constant 2 : index
    %c0_22 = arith.constant 0 : index
    %c0_23 = arith.constant 0 : index
    %40 = vector.load %arg6[%c0_21, %c2, %c0_22, %c0_23] : memref<3x4x64x32xbf16, #tpu.memory_space<vmem>>, vector<1x1x64x32xbf16>
    %41 = vector.shape_cast %40 : vector<1x1x64x32xbf16> to vector<64x32xbf16>
    %42 = vector.shape_cast %39 : vector<64x32xbf16> to vector<1x1x64x32xbf16>
    tpu.vector_store %arg6[%c0_21, %c2, %c0_22, %c0_23], %42 {strides = array<i32>} : memref<3x4x64x32xbf16, #tpu.memory_space<vmem>>, vector<1x1x64x32xbf16>,
    %43 = vector.extract_strided_slice %30 {offsets = [0, 96], sizes = [64, 32], strides = [1, 1]} : vector<64x384xbf16> to vector<64x32xbf16>
    %c0_24 = arith.constant 0 : index
    %c3 = arith.constant 3 : index
    %c0_25 = arith.constant 0 : index
    %c0_26 = arith.constant 0 : index
    %44 = vector.load %arg6[%c0_24, %c3, %c0_25, %c0_26] : memref<3x4x64x32xbf16, #tpu.memory_space<vmem>>, vector<1x1x64x32xbf16>
    %45 = vector.shape_cast %44 : vector<1x1x64x32xbf16> to vector<64x32xbf16>
    %46 = vector.shape_cast %43 : vector<64x32xbf16> to vector<1x1x64x32xbf16>
    tpu.vector_store %arg6[%c0_24, %c3, %c0_25, %c0_26], %46 {strides = array<i32>} : memref<3x4x64x32xbf16, #tpu.memory_space<vmem>>, vector<1x1x64x32xbf16>,
    %47 = vector.extract_strided_slice %30 {offsets = [0, 128], sizes = [64, 32], strides = [1, 1]} : vector<64x384xbf16> to vector<64x32xbf16>
    %c1_27 = arith.constant 1 : index
    %c0_28 = arith.constant 0 : index
    %c0_29 = arith.constant 0 : index
    %c0_30 = arith.constant 0 : index
    %48 = vector.load %arg6[%c1_27, %c0_28, %c0_29, %c0_30] : memref<3x4x64x32xbf16, #tpu.memory_space<vmem>>, vector<1x1x64x32xbf16>
    %49 = vector.shape_cast %48 : vector<1x1x64x32xbf16> to vector<64x32xbf16>
    %50 = vector.shape_cast %47 : vector<64x32xbf16> to vector<1x1x64x32xbf16>
    tpu.vector_store %arg6[%c1_27, %c0_28, %c0_29, %c0_30], %50 {strides = array<i32>} : memref<3x4x64x32xbf16, #tpu.memory_space<vmem>>, vector<1x1x64x32xbf16>,
    %51 = vector.extract_strided_slice %30 {offsets = [0, 160], sizes = [64, 32], strides = [1, 1]} : vector<64x384xbf16> to vector<64x32xbf16>
    %c1_31 = arith.constant 1 : index
    %c1_32 = arith.constant 1 : index
    %c0_33 = arith.constant 0 : index
    %c0_34 = arith.constant 0 : index
    %52 = vector.load %arg6[%c1_31, %c1_32, %c0_33, %c0_34] : memref<3x4x64x32xbf16, #tpu.memory_space<vmem>>, vector<1x1x64x32xbf16>
    %53 = vector.shape_cast %52 : vector<1x1x64x32xbf16> to vector<64x32xbf16>
    %54 = vector.shape_cast %51 : vector<64x32xbf16> to vector<1x1x64x32xbf16>
    tpu.vector_store %arg6[%c1_31, %c1_32, %c0_33, %c0_34], %54 {strides = array<i32>} : memref<3x4x64x32xbf16, #tpu.memory_space<vmem>>, vector<1x1x64x32xbf16>,
    %55 = vector.extract_strided_slice %30 {offsets = [0, 192], sizes = [64, 32], strides = [1, 1]} : vector<64x384xbf16> to vector<64x32xbf16>
    %c1_35 = arith.constant 1 : index
    %c2_36 = arith.constant 2 : index
    %c0_37 = arith.constant 0 : index
    %c0_38 = arith.constant 0 : index
    %56 = vector.load %arg6[%c1_35, %c2_36, %c0_37, %c0_38] : memref<3x4x64x32xbf16, #tpu.memory_space<vmem>>, vector<1x1x64x32xbf16>
    %57 = vector.shape_cast %56 : vector<1x1x64x32xbf16> to vector<64x32xbf16>
    %58 = vector.shape_cast %55 : vector<64x32xbf16> to vector<1x1x64x32xbf16>
    tpu.vector_store %arg6[%c1_35, %c2_36, %c0_37, %c0_38], %58 {strides = array<i32>} : memref<3x4x64x32xbf16, #tpu.memory_space<vmem>>, vector<1x1x64x32xbf16>,
    %59 = vector.extract_strided_slice %30 {offsets = [0, 224], sizes = [64, 32], strides = [1, 1]} : vector<64x384xbf16> to vector<64x32xbf16>
    %c1_39 = arith.constant 1 : index
    %c3_40 = arith.constant 3 : index
    %c0_41 = arith.constant 0 : index
    %c0_42 = arith.constant 0 : index
    %60 = vector.load %arg6[%c1_39, %c3_40, %c0_41, %c0_42] : memref<3x4x64x32xbf16, #tpu.memory_space<vmem>>, vector<1x1x64x32xbf16>
    %61 = vector.shape_cast %60 : vector<1x1x64x32xbf16> to vector<64x32xbf16>
    %62 = vector.shape_cast %59 : vector<64x32xbf16> to vector<1x1x64x32xbf16>
    tpu.vector_store %arg6[%c1_39, %c3_40, %c0_41, %c0_42], %62 {strides = array<i32>} : memref<3x4x64x32xbf16, #tpu.memory_space<vmem>>, vector<1x1x64x32xbf16>,
    %63 = vector.extract_strided_slice %30 {offsets = [0, 256], sizes = [64, 32], strides = [1, 1]} : vector<64x384xbf16> to vector<64x32xbf16>
    %c2_43 = arith.constant 2 : index
    %c0_44 = arith.constant 0 : index
    %c0_45 = arith.constant 0 : index
    %c0_46 = arith.constant 0 : index
    %64 = vector.load %arg6[%c2_43, %c0_44, %c0_45, %c0_46] : memref<3x4x64x32xbf16, #tpu.memory_space<vmem>>, vector<1x1x64x32xbf16>
    %65 = vector.shape_cast %64 : vector<1x1x64x32xbf16> to vector<64x32xbf16>
    %66 = vector.shape_cast %63 : vector<64x32xbf16> to vector<1x1x64x32xbf16>
    tpu.vector_store %arg6[%c2_43, %c0_44, %c0_45, %c0_46], %66 {strides = array<i32>} : memref<3x4x64x32xbf16, #tpu.memory_space<vmem>>, vector<1x1x64x32xbf16>,
    %67 = vector.extract_strided_slice %30 {offsets = [0, 288], sizes = [64, 32], strides = [1, 1]} : vector<64x384xbf16> to vector<64x32xbf16>
    %c2_47 = arith.constant 2 : index
    %c1_48 = arith.constant 1 : index
    %c0_49 = arith.constant 0 : index
    %c0_50 = arith.constant 0 : index
    %68 = vector.load %arg6[%c2_47, %c1_48, %c0_49, %c0_50] : memref<3x4x64x32xbf16, #tpu.memory_space<vmem>>, vector<1x1x64x32xbf16>
    %69 = vector.shape_cast %68 : vector<1x1x64x32xbf16> to vector<64x32xbf16>
    %70 = vector.shape_cast %67 : vector<64x32xbf16> to vector<1x1x64x32xbf16>
    tpu.vector_store %arg6[%c2_47, %c1_48, %c0_49, %c0_50], %70 {strides = array<i32>} : memref<3x4x64x32xbf16, #tpu.memory_space<vmem>>, vector<1x1x64x32xbf16>,
    %71 = vector.extract_strided_slice %30 {offsets = [0, 320], sizes = [64, 32], strides = [1, 1]} : vector<64x384xbf16> to vector<64x32xbf16>
    %c2_51 = arith.constant 2 : index
    %c2_52 = arith.constant 2 : index
    %c0_53 = arith.constant 0 : index
    %c0_54 = arith.constant 0 : index
    %72 = vector.load %arg6[%c2_51, %c2_52, %c0_53, %c0_54] : memref<3x4x64x32xbf16, #tpu.memory_space<vmem>>, vector<1x1x64x32xbf16>
    %73 = vector.shape_cast %72 : vector<1x1x64x32xbf16> to vector<64x32xbf16>
    %74 = vector.shape_cast %71 : vector<64x32xbf16> to vector<1x1x64x32xbf16>
    tpu.vector_store %arg6[%c2_51, %c2_52, %c0_53, %c0_54], %74 {strides = array<i32>} : memref<3x4x64x32xbf16, #tpu.memory_space<vmem>>, vector<1x1x64x32xbf16>,
    %75 = vector.extract_strided_slice %30 {offsets = [0, 352], sizes = [64, 32], strides = [1, 1]} : vector<64x384xbf16> to vector<64x32xbf16>
    %c2_55 = arith.constant 2 : index
    %c3_56 = arith.constant 3 : index
    %c0_57 = arith.constant 0 : index
    %c0_58 = arith.constant 0 : index
    %76 = vector.load %arg6[%c2_55, %c3_56, %c0_57, %c0_58] : memref<3x4x64x32xbf16, #tpu.memory_space<vmem>>, vector<1x1x64x32xbf16>
    %77 = vector.shape_cast %76 : vector<1x1x64x32xbf16> to vector<64x32xbf16>
    %78 = vector.shape_cast %75 : vector<64x32xbf16> to vector<1x1x64x32xbf16>
    tpu.vector_store %arg6[%c2_55, %c3_56, %c0_57, %c0_58], %78 {strides = array<i32>} : memref<3x4x64x32xbf16, #tpu.memory_space<vmem>>, vector<1x1x64x32xbf16>,
    return
  }
  func.func @transform_0(%arg0: i32) -> (i32, i32) {
    %c0_i32 = arith.constant 0 : i32
    %c0_i32_0 = arith.constant 0 : i32
    return %arg0, %c0_i32 : i32, i32
  }
  func.func @transform_1(%arg0: i32) -> (i32, i32) {
    %c0_i32 = arith.constant 0 : i32
    %c0_i32_0 = arith.constant 0 : i32
    %c0_i32_1 = arith.constant 0 : i32
    return %c0_i32, %c0_i32_0 : i32, i32
  }
  func.func @transform_2(%arg0: i32) -> (i32, i32) {
    %c0_i32 = arith.constant 0 : i32
    %c0_i32_0 = arith.constant 0 : i32
    %c0_i32_1 = arith.constant 0 : i32
    return %c0_i32, %c0_i32_0 : i32, i32
  }
  func.func @transform_3(%arg0: i32) -> (i32, i32) {
    %c0_i32 = arith.constant 0 : i32
    %c0_i32_0 = arith.constant 0 : i32
    %c0_i32_1 = arith.constant 0 : i32
    return %c0_i32, %c0_i32_0 : i32, i32
  }
  func.func @transform_4(%arg0: i32) -> (i32, i32) {
    %c0_i32 = arith.constant 0 : i32
    %c0_i32_0 = arith.constant 0 : i32
    %c0_i32_1 = arith.constant 0 : i32
    return %c0_i32, %c0_i32_0 : i32, i32
  }
  func.func @transform_5(%arg0: i32) -> (i32, i32, i32, i32) {
    %c0_i32 = arith.constant 0 : i32
    %c0_i32_0 = arith.constant 0 : i32
    %c0_i32_1 = arith.constant 0 : i32
    %c0_i32_2 = arith.constant 0 : i32
    return %c0_i32, %c0_i32_0, %arg0, %c0_i32_1 : i32, i32, i32, i32
  }
}

module attributes {stable_mosaic.version = 11 : i64} {
  func.func @_attn_kernel(%arg0: i32, %arg1: i32, %arg2: i32, %arg3: memref<1x4x1x32x32xbf16, #tpu.memory_space<vmem>>, %arg4: memref<1x4x1x32x32xbf16, #tpu.memory_space<vmem>>, %arg5: memref<1x4x1x32x32xbf16, #tpu.memory_space<vmem>>, %arg6: memref<1x32x128xbf16, #tpu.memory_space<vmem>>, %arg7: memref<4x32x1xf32, #tpu.memory_space<vmem>>, %arg8: memref<4x32x1xf32, #tpu.memory_space<vmem>>, %arg9: memref<4x32x32xf32, #tpu.memory_space<vmem>>) attributes {dimension_semantics = [#tpu.dimension_semantics<parallel>, #tpu.dimension_semantics<parallel>, #tpu.dimension_semantics<arbitrary>], iteration_bounds = array<i64: 2, 1, 1>, scalar_prefetch = 0 : i64, scratch_operands = 3 : i64, tpu.core_type = #tpu.core_type<tc>, window_params = [{transform_indices = @transform_0, window_bounds = array<i64: 1, 4, 1, 32, 32>}, {transform_indices = @transform_1, window_bounds = array<i64: 1, 4, 1, 32, 32>}, {transform_indices = @transform_2, window_bounds = array<i64: 1, 4, 1, 32, 32>}, {transform_indices = @transform_3, window_bounds = array<i64: 1, 32, 128>}]} {
    %c0_i32 = arith.constant 0 : i32
    %0 = arith.cmpi eq, %arg2, %c0_i32 : i32
    %1 = arith.extui %0 : i1 to i32
    %c0_i32_0 = arith.constant 0 : i32
    %2 = arith.cmpi ne, %1, %c0_i32_0 : i32
    scf.if %2 {
      %cst_38 = arith.constant 0xFF800000 : f32
      %36 = vector.broadcast %cst_38 : f32 to vector<4x32x1xf32>
      %c0_39 = arith.constant 0 : index
      %c0_40 = arith.constant 0 : index
      %c0_41 = arith.constant 0 : index
      %37 = vector.load %arg7[%c0_39, %c0_40, %c0_41] : memref<4x32x1xf32, #tpu.memory_space<vmem>>, vector<4x32x1xf32>
      tpu.vector_store %arg7[%c0_39, %c0_40, %c0_41], %36 {strides = array<i32>} : memref<4x32x1xf32, #tpu.memory_space<vmem>>, vector<4x32x1xf32>,
      %cst_42 = arith.constant 0.000000e+00 : f32
      %38 = vector.broadcast %cst_42 : f32 to vector<4x32x1xf32>
      %c0_43 = arith.constant 0 : index
      %c0_44 = arith.constant 0 : index
      %c0_45 = arith.constant 0 : index
      %39 = vector.load %arg8[%c0_43, %c0_44, %c0_45] : memref<4x32x1xf32, #tpu.memory_space<vmem>>, vector<4x32x1xf32>
      tpu.vector_store %arg8[%c0_43, %c0_44, %c0_45], %38 {strides = array<i32>} : memref<4x32x1xf32, #tpu.memory_space<vmem>>, vector<4x32x1xf32>,
      %cst_46 = arith.constant 0.000000e+00 : f32
      %40 = vector.broadcast %cst_46 : f32 to vector<4x32x32xf32>
      %c0_47 = arith.constant 0 : index
      %c0_48 = arith.constant 0 : index
      %c0_49 = arith.constant 0 : index
      %41 = vector.load %arg9[%c0_47, %c0_48, %c0_49] : memref<4x32x32xf32, #tpu.memory_space<vmem>>, vector<4x32x32xf32>
      tpu.vector_store %arg9[%c0_47, %c0_48, %c0_49], %40 {strides = array<i32>} : memref<4x32x32xf32, #tpu.memory_space<vmem>>, vector<4x32x32xf32>,
    } else {
    }
    %c0 = arith.constant 0 : index
    %c0_1 = arith.constant 0 : index
    %c0_2 = arith.constant 0 : index
    %c0_3 = arith.constant 0 : index
    %c0_4 = arith.constant 0 : index
    %3 = vector.load %arg3[%c0, %c0_1, %c0_2, %c0_3, %c0_4] : memref<1x4x1x32x32xbf16, #tpu.memory_space<vmem>>, vector<1x4x1x32x32xbf16>
    %4 = vector.shape_cast %3 : vector<1x4x1x32x32xbf16> to vector<4x32x32xbf16>
    %c0_5 = arith.constant 0 : index
    %c0_6 = arith.constant 0 : index
    %c0_7 = arith.constant 0 : index
    %c0_8 = arith.constant 0 : index
    %c0_9 = arith.constant 0 : index
    %5 = vector.load %arg4[%c0_5, %c0_6, %c0_7, %c0_8, %c0_9] : memref<1x4x1x32x32xbf16, #tpu.memory_space<vmem>>, vector<1x4x1x32x32xbf16>
    %6 = vector.shape_cast %5 : vector<1x4x1x32x32xbf16> to vector<4x32x32xbf16>
    %c0_10 = arith.constant 0 : index
    %c0_11 = arith.constant 0 : index
    %c0_12 = arith.constant 0 : index
    %c0_13 = arith.constant 0 : index
    %c0_14 = arith.constant 0 : index
    %7 = vector.load %arg5[%c0_10, %c0_11, %c0_12, %c0_13, %c0_14] : memref<1x4x1x32x32xbf16, #tpu.memory_space<vmem>>, vector<1x4x1x32x32xbf16>
    %8 = vector.shape_cast %7 : vector<1x4x1x32x32xbf16> to vector<4x32x32xbf16>
    "tpu.trace_start"() <{level = 10 : i32, message = "hqd,hkd->hqk"}> : () -> ()
    %cst = arith.constant dense<0.000000e+00> : vector<4x32x32xf32>
    %9 = tpu.matmul %4, %6, %cst {dimension_numbers = #tpu.dot_dimension_numbers<[2], [2], [1], [1], [0, 0, 0, 1, 1, 1], [0], [0]>} : vector<4x32x32xbf16>, vector<4x32x32xbf16>, vector<4x32x32xf32> -> vector<4x32x32xf32>
    "tpu.trace_stop"() : () -> ()
    %c0_15 = arith.constant 0 : index
    %c0_16 = arith.constant 0 : index
    %c0_17 = arith.constant 0 : index
    %10 = vector.load %arg7[%c0_15, %c0_16, %c0_17] : memref<4x32x1xf32, #tpu.memory_space<vmem>>, vector<4x32x1xf32>
    %cst_18 = arith.constant dense<0xFF800000> : vector<4x32xf32>
    %11 = vector.multi_reduction <maximumf>, %9, %cst_18 [2] : vector<4x32x32xf32> to vector<4x32xf32>
    %12 = vector.shape_cast %11 : vector<4x32xf32> to vector<4x32x1xf32>
    %13 = arith.maximumf %10, %12 : vector<4x32x1xf32>
    %14 = arith.subf %10, %13 : vector<4x32x1xf32>
    %15 = math.exp %14 : vector<4x32x1xf32>
    %16 = vector.broadcast %13 : vector<4x32x1xf32> to vector<4x32x32xf32>
    %17 = arith.subf %9, %16 : vector<4x32x32xf32>
    %18 = math.exp %17 : vector<4x32x32xf32>
    %c0_19 = arith.constant 0 : index
    %c0_20 = arith.constant 0 : index
    %c0_21 = arith.constant 0 : index
    %19 = vector.load %arg8[%c0_19, %c0_20, %c0_21] : memref<4x32x1xf32, #tpu.memory_space<vmem>>, vector<4x32x1xf32>
    %20 = arith.mulf %15, %19 : vector<4x32x1xf32>
    %cst_22 = arith.constant dense<0.000000e+00> : vector<4x32xf32>
    %21 = vector.multi_reduction <add>, %18, %cst_22 [2] : vector<4x32x32xf32> to vector<4x32xf32>
    %22 = vector.shape_cast %21 : vector<4x32xf32> to vector<4x32x1xf32>
    %23 = arith.addf %20, %22 : vector<4x32x1xf32>
    %c0_23 = arith.constant 0 : index
    %c0_24 = arith.constant 0 : index
    %c0_25 = arith.constant 0 : index
    %24 = vector.load %arg8[%c0_23, %c0_24, %c0_25] : memref<4x32x1xf32, #tpu.memory_space<vmem>>, vector<4x32x1xf32>
    tpu.vector_store %arg8[%c0_23, %c0_24, %c0_25], %23 {strides = array<i32>} : memref<4x32x1xf32, #tpu.memory_space<vmem>>, vector<4x32x1xf32>,
    %c0_26 = arith.constant 0 : index
    %c0_27 = arith.constant 0 : index
    %c0_28 = arith.constant 0 : index
    %25 = vector.load %arg9[%c0_26, %c0_27, %c0_28] : memref<4x32x32xf32, #tpu.memory_space<vmem>>, vector<4x32x32xf32>
    %26 = vector.broadcast %15 : vector<4x32x1xf32> to vector<4x32x32xf32>
    %27 = arith.mulf %26, %25 : vector<4x32x32xf32>
    %28 = arith.truncf %18 : vector<4x32x32xf32> to vector<4x32x32xbf16>
    "tpu.trace_start"() <{level = 10 : i32, message = "hqk,hkd->hqd"}> : () -> ()
    %cst_29 = arith.constant dense<0.000000e+00> : vector<4x32x32xf32>
    %29 = tpu.matmul %28, %8, %cst_29 {dimension_numbers = #tpu.dot_dimension_numbers<[2], [1], [1], [2], [0, 0, 0, 1, 1, 2], [0], [0]>} : vector<4x32x32xbf16>, vector<4x32x32xbf16>, vector<4x32x32xf32> -> vector<4x32x32xf32>
    "tpu.trace_stop"() : () -> ()
    %30 = arith.addf %27, %29 : vector<4x32x32xf32>
    %c0_30 = arith.constant 0 : index
    %c0_31 = arith.constant 0 : index
    %c0_32 = arith.constant 0 : index
    %31 = vector.load %arg9[%c0_30, %c0_31, %c0_32] : memref<4x32x32xf32, #tpu.memory_space<vmem>>, vector<4x32x32xf32>
    tpu.vector_store %arg9[%c0_30, %c0_31, %c0_32], %30 {strides = array<i32>} : memref<4x32x32xf32, #tpu.memory_space<vmem>>, vector<4x32x32xf32>,
    %c0_33 = arith.constant 0 : index
    %c0_34 = arith.constant 0 : index
    %c0_35 = arith.constant 0 : index
    %32 = vector.load %arg7[%c0_33, %c0_34, %c0_35] : memref<4x32x1xf32, #tpu.memory_space<vmem>>, vector<4x32x1xf32>
    tpu.vector_store %arg7[%c0_33, %c0_34, %c0_35], %13 {strides = array<i32>} : memref<4x32x1xf32, #tpu.memory_space<vmem>>, vector<4x32x1xf32>,
    %c0_i32_36 = arith.constant 0 : i32
    %33 = arith.cmpi eq, %arg2, %c0_i32_36 : i32
    %34 = arith.extui %33 : i1 to i32
    %c0_i32_37 = arith.constant 0 : i32
    %35 = arith.cmpi ne, %34, %c0_i32_37 : i32
    scf.if %35 {
      %c0_38 = arith.constant 0 : index
      %c0_39 = arith.constant 0 : index
      %c0_40 = arith.constant 0 : index
      %36 = vector.load %arg8[%c0_38, %c0_39, %c0_40] : memref<4x32x1xf32, #tpu.memory_space<vmem>>, vector<4x32x1xf32>
      %37 = tpu.reciprocal %36 : vector<4x32x1xf32> -> vector<4x32x1xf32>
      %c0_41 = arith.constant 0 : index
      %c0_42 = arith.constant 0 : index
      %c0_43 = arith.constant 0 : index
      %38 = vector.load %arg9[%c0_41, %c0_42, %c0_43] : memref<4x32x32xf32, #tpu.memory_space<vmem>>, vector<4x32x32xf32>
      %39 = vector.broadcast %37 : vector<4x32x1xf32> to vector<4x32x32xf32>
      %40 = arith.mulf %38, %39 : vector<4x32x32xf32>
      %41 = vector.extract_strided_slice %40 {offsets = [0, 0, 0], sizes = [1, 32, 32], strides = [1, 1, 1]} : vector<4x32x32xf32> to vector<1x32x32xf32>
      %42 = vector.shape_cast %41 : vector<1x32x32xf32> to vector<32x32xf32>
      %43 = arith.truncf %42 : vector<32x32xf32> to vector<32x32xbf16>
      %c0_44 = arith.constant 0 : index
      %c0_45 = arith.constant 0 : index
      %c0_46 = arith.constant 0 : index
      %44 = vector.load %arg6[%c0_44, %c0_45, %c0_46] : memref<1x32x128xbf16, #tpu.memory_space<vmem>>, vector<1x32x32xbf16>
      %45 = vector.shape_cast %44 : vector<1x32x32xbf16> to vector<32x32xbf16>
      %46 = vector.shape_cast %43 : vector<32x32xbf16> to vector<1x32x32xbf16>
      tpu.vector_store %arg6[%c0_44, %c0_45, %c0_46], %46 {strides = array<i32>} : memref<1x32x128xbf16, #tpu.memory_space<vmem>>, vector<1x32x32xbf16>,
      %47 = vector.extract_strided_slice %40 {offsets = [1, 0, 0], sizes = [1, 32, 32], strides = [1, 1, 1]} : vector<4x32x32xf32> to vector<1x32x32xf32>
      %48 = vector.shape_cast %47 : vector<1x32x32xf32> to vector<32x32xf32>
      %49 = arith.truncf %48 : vector<32x32xf32> to vector<32x32xbf16>
      %c0_47 = arith.constant 0 : index
      %c0_48 = arith.constant 0 : index
      %c32 = arith.constant 32 : index
      %50 = vector.load %arg6[%c0_47, %c0_48, %c32] : memref<1x32x128xbf16, #tpu.memory_space<vmem>>, vector<1x32x32xbf16>
      %51 = vector.shape_cast %50 : vector<1x32x32xbf16> to vector<32x32xbf16>
      %52 = vector.shape_cast %49 : vector<32x32xbf16> to vector<1x32x32xbf16>
      tpu.vector_store %arg6[%c0_47, %c0_48, %c32], %52 {strides = array<i32>} : memref<1x32x128xbf16, #tpu.memory_space<vmem>>, vector<1x32x32xbf16>,
      %53 = vector.extract_strided_slice %40 {offsets = [2, 0, 0], sizes = [1, 32, 32], strides = [1, 1, 1]} : vector<4x32x32xf32> to vector<1x32x32xf32>
      %54 = vector.shape_cast %53 : vector<1x32x32xf32> to vector<32x32xf32>
      %55 = arith.truncf %54 : vector<32x32xf32> to vector<32x32xbf16>
      %c0_49 = arith.constant 0 : index
      %c0_50 = arith.constant 0 : index
      %c64 = arith.constant 64 : index
      %56 = vector.load %arg6[%c0_49, %c0_50, %c64] : memref<1x32x128xbf16, #tpu.memory_space<vmem>>, vector<1x32x32xbf16>
      %57 = vector.shape_cast %56 : vector<1x32x32xbf16> to vector<32x32xbf16>
      %58 = vector.shape_cast %55 : vector<32x32xbf16> to vector<1x32x32xbf16>
      tpu.vector_store %arg6[%c0_49, %c0_50, %c64], %58 {strides = array<i32>} : memref<1x32x128xbf16, #tpu.memory_space<vmem>>, vector<1x32x32xbf16>,
      %59 = vector.extract_strided_slice %40 {offsets = [3, 0, 0], sizes = [1, 32, 32], strides = [1, 1, 1]} : vector<4x32x32xf32> to vector<1x32x32xf32>
      %60 = vector.shape_cast %59 : vector<1x32x32xf32> to vector<32x32xf32>
      %61 = arith.truncf %60 : vector<32x32xf32> to vector<32x32xbf16>
      %c0_51 = arith.constant 0 : index
      %c0_52 = arith.constant 0 : index
      %c96 = arith.constant 96 : index
      %62 = vector.load %arg6[%c0_51, %c0_52, %c96] : memref<1x32x128xbf16, #tpu.memory_space<vmem>>, vector<1x32x32xbf16>
      %63 = vector.shape_cast %62 : vector<1x32x32xbf16> to vector<32x32xbf16>
      %64 = vector.shape_cast %61 : vector<32x32xbf16> to vector<1x32x32xbf16>
      tpu.vector_store %arg6[%c0_51, %c0_52, %c96], %64 {strides = array<i32>} : memref<1x32x128xbf16, #tpu.memory_space<vmem>>, vector<1x32x32xbf16>,
    } else {
    }
    return
  }
  func.func @transform_0(%arg0: i32, %arg1: i32, %arg2: i32) -> (i32, i32, i32, i32, i32) {
    %c0_i32 = arith.constant 0 : i32
    %c0_i32_0 = arith.constant 0 : i32
    %c0_i32_1 = arith.constant 0 : i32
    %c0_i32_2 = arith.constant 0 : i32
    return %c0_i32, %c0_i32_0, %arg0, %arg1, %c0_i32_1 : i32, i32, i32, i32, i32
  }
  func.func @transform_1(%arg0: i32, %arg1: i32, %arg2: i32) -> (i32, i32, i32, i32, i32) {
    %c1_i32 = arith.constant 1 : i32
    %c0_i32 = arith.constant 0 : i32
    %c0_i32_0 = arith.constant 0 : i32
    %c0_i32_1 = arith.constant 0 : i32
    return %c1_i32, %c0_i32, %arg0, %arg2, %c0_i32_0 : i32, i32, i32, i32, i32
  }
  func.func @transform_2(%arg0: i32, %arg1: i32, %arg2: i32) -> (i32, i32, i32, i32, i32) {
    %c2_i32 = arith.constant 2 : i32
    %c0_i32 = arith.constant 0 : i32
    %c0_i32_0 = arith.constant 0 : i32
    %c0_i32_1 = arith.constant 0 : i32
    return %c2_i32, %c0_i32, %arg0, %arg2, %c0_i32_0 : i32, i32, i32, i32, i32
  }
  func.func @transform_3(%arg0: i32, %arg1: i32, %arg2: i32) -> (i32, i32, i32) {
    %c0_i32 = arith.constant 0 : i32
    %c0_i32_0 = arith.constant 0 : i32
    return %arg0, %arg1, %c0_i32 : i32, i32, i32
  }
}

module attributes {stable_mosaic.version = 11 : i64} {
  func.func @_mm_bias_res_kernel(%arg0: i32, %arg1: i32, %arg2: i32, %arg3: memref<64x128xbf16, #tpu.memory_space<vmem>>, %arg4: memref<128x128xbf16, #tpu.memory_space<vmem>>, %arg5: memref<1x128xf32, #tpu.memory_space<vmem>>, %arg6: memref<64x128xbf16, #tpu.memory_space<vmem>>, %arg7: memref<64x128xbf16, #tpu.memory_space<vmem>>, %arg8: memref<64x128xf32, #tpu.memory_space<vmem>>) attributes {dimension_semantics = [#tpu.dimension_semantics<parallel>, #tpu.dimension_semantics<parallel>, #tpu.dimension_semantics<arbitrary>], iteration_bounds = array<i64: 1, 1, 1>, scalar_prefetch = 0 : i64, scratch_operands = 1 : i64, tpu.core_type = #tpu.core_type<tc>, window_params = [{transform_indices = @transform_0, window_bounds = array<i64: 64, 128>}, {transform_indices = @transform_1, window_bounds = array<i64: 128, 128>}, {transform_indices = @transform_2, window_bounds = array<i64: 1, 128>}, {transform_indices = @transform_3, window_bounds = array<i64: 64, 128>}, {transform_indices = @transform_4, window_bounds = array<i64: 64, 128>}]} {
    %c0_i32 = arith.constant 0 : i32
    %0 = arith.cmpi eq, %arg2, %c0_i32 : i32
    %1 = arith.extui %0 : i1 to i32
    %c0_i32_0 = arith.constant 0 : i32
    %2 = arith.cmpi ne, %1, %c0_i32_0 : i32
    scf.if %2 {
      %cst_10 = arith.constant 0.000000e+00 : f32
      %12 = vector.broadcast %cst_10 : f32 to vector<64x128xf32>
      %c0_11 = arith.constant 0 : index
      %c0_12 = arith.constant 0 : index
      %13 = vector.load %arg8[%c0_11, %c0_12] : memref<64x128xf32, #tpu.memory_space<vmem>>, vector<64x128xf32>
      tpu.vector_store %arg8[%c0_11, %c0_12], %12 {strides = array<i32>} : memref<64x128xf32, #tpu.memory_space<vmem>>, vector<64x128xf32>,
    } else {
    }
    %c0 = arith.constant 0 : index
    %c0_1 = arith.constant 0 : index
    %3 = vector.load %arg8[%c0, %c0_1] : memref<64x128xf32, #tpu.memory_space<vmem>>, vector<64x128xf32>
    %c0_2 = arith.constant 0 : index
    %c0_3 = arith.constant 0 : index
    %4 = vector.load %arg3[%c0_2, %c0_3] : memref<64x128xbf16, #tpu.memory_space<vmem>>, vector<64x128xbf16>
    %c0_4 = arith.constant 0 : index
    %c0_5 = arith.constant 0 : index
    %5 = vector.load %arg4[%c0_4, %c0_5] : memref<128x128xbf16, #tpu.memory_space<vmem>>, vector<128x128xbf16>
    %cst = arith.constant dense<0.000000e+00> : vector<64x128xf32>
    %6 = tpu.matmul %4, %5, %cst {dimension_numbers = #tpu.dot_dimension_numbers<[1], [0], [0], [1], [0, 0, 1, 1], [], []>} : vector<64x128xbf16>, vector<128x128xbf16>, vector<64x128xf32> -> vector<64x128xf32>
    %7 = arith.addf %3, %6 : vector<64x128xf32>
    %c0_6 = arith.constant 0 : index
    %c0_7 = arith.constant 0 : index
    %8 = vector.load %arg8[%c0_6, %c0_7] : memref<64x128xf32, #tpu.memory_space<vmem>>, vector<64x128xf32>
    tpu.vector_store %arg8[%c0_6, %c0_7], %7 {strides = array<i32>} : memref<64x128xf32, #tpu.memory_space<vmem>>, vector<64x128xf32>,
    %c0_i32_8 = arith.constant 0 : i32
    %9 = arith.cmpi eq, %arg2, %c0_i32_8 : i32
    %10 = arith.extui %9 : i1 to i32
    %c0_i32_9 = arith.constant 0 : i32
    %11 = arith.cmpi ne, %10, %c0_i32_9 : i32
    scf.if %11 {
      %c0_10 = arith.constant 0 : index
      %c0_11 = arith.constant 0 : index
      %12 = vector.load %arg8[%c0_10, %c0_11] : memref<64x128xf32, #tpu.memory_space<vmem>>, vector<64x128xf32>
      %c0_12 = arith.constant 0 : index
      %c0_13 = arith.constant 0 : index
      %13 = vector.load %arg5[%c0_12, %c0_13] : memref<1x128xf32, #tpu.memory_space<vmem>>, vector<1x128xf32>
      %14 = vector.broadcast %13 : vector<1x128xf32> to vector<64x128xf32>
      %15 = arith.addf %12, %14 : vector<64x128xf32>
      %c0_14 = arith.constant 0 : index
      %c0_15 = arith.constant 0 : index
      %16 = vector.load %arg6[%c0_14, %c0_15] : memref<64x128xbf16, #tpu.memory_space<vmem>>, vector<64x128xbf16>
      %17 = arith.extf %16 : vector<64x128xbf16> to vector<64x128xf32>
      %18 = arith.addf %15, %17 : vector<64x128xf32>
      %19 = arith.truncf %18 : vector<64x128xf32> to vector<64x128xbf16>
      %c0_16 = arith.constant 0 : index
      %c0_17 = arith.constant 0 : index
      %20 = vector.load %arg7[%c0_16, %c0_17] : memref<64x128xbf16, #tpu.memory_space<vmem>>, vector<64x128xbf16>
      tpu.vector_store %arg7[%c0_16, %c0_17], %19 {strides = array<i32>} : memref<64x128xbf16, #tpu.memory_space<vmem>>, vector<64x128xbf16>,
    } else {
    }
    return
  }
  func.func @transform_0(%arg0: i32, %arg1: i32, %arg2: i32) -> (i32, i32) {
    %c0_i32 = arith.constant 0 : i32
    return %arg0, %arg2 : i32, i32
  }
  func.func @transform_1(%arg0: i32, %arg1: i32, %arg2: i32) -> (i32, i32) {
    %c0_i32 = arith.constant 0 : i32
    return %arg2, %arg1 : i32, i32
  }
  func.func @transform_2(%arg0: i32, %arg1: i32, %arg2: i32) -> (i32, i32) {
    %c0_i32 = arith.constant 0 : i32
    %c0_i32_0 = arith.constant 0 : i32
    return %c0_i32, %arg1 : i32, i32
  }
  func.func @transform_3(%arg0: i32, %arg1: i32, %arg2: i32) -> (i32, i32) {
    %c0_i32 = arith.constant 0 : i32
    return %arg0, %arg1 : i32, i32
  }
  func.func @transform_4(%arg0: i32, %arg1: i32, %arg2: i32) -> (i32, i32) {
    %c0_i32 = arith.constant 0 : i32
    return %arg0, %arg1 : i32, i32
  }
}

module attributes {stable_mosaic.version = 11 : i64} {
  func.func @_ln_mm_kernel(%arg0: i32, %arg1: memref<64x128xbf16, #tpu.memory_space<vmem>>, %arg2: memref<1x128xf32, #tpu.memory_space<vmem>>, %arg3: memref<1x128xf32, #tpu.memory_space<vmem>>, %arg4: memref<128x512xbf16, #tpu.memory_space<vmem>>, %arg5: memref<1x512xf32, #tpu.memory_space<vmem>>, %arg6: memref<64x512xbf16, #tpu.memory_space<vmem>>) attributes {dimension_semantics = [#tpu.dimension_semantics<parallel>], iteration_bounds = array<i64: 1>, scalar_prefetch = 0 : i64, scratch_operands = 0 : i64, tpu.core_type = #tpu.core_type<tc>, window_params = [{transform_indices = @transform_0, window_bounds = array<i64: 64, 128>}, {pipeline_mode = #tpu.pipeline_mode<synchronous>, transform_indices = @transform_1, window_bounds = array<i64: 1, 128>}, {pipeline_mode = #tpu.pipeline_mode<synchronous>, transform_indices = @transform_2, window_bounds = array<i64: 1, 128>}, {pipeline_mode = #tpu.pipeline_mode<synchronous>, transform_indices = @transform_3, window_bounds = array<i64: 128, 512>}, {pipeline_mode = #tpu.pipeline_mode<synchronous>, transform_indices = @transform_4, window_bounds = array<i64: 1, 512>}, {transform_indices = @transform_5, window_bounds = array<i64: 64, 512>}]} {
    %c0 = arith.constant 0 : index
    %c0_0 = arith.constant 0 : index
    %0 = vector.load %arg1[%c0, %c0_0] : memref<64x128xbf16, #tpu.memory_space<vmem>>, vector<64x128xbf16>
    %1 = arith.extf %0 : vector<64x128xbf16> to vector<64x128xf32>
    %cst = arith.constant dense<0.000000e+00> : vector<64xf32>
    %2 = vector.multi_reduction <add>, %1, %cst [1] : vector<64x128xf32> to vector<64xf32>
    %3 = vector.shape_cast %2 : vector<64xf32> to vector<64x1xf32>
    %cst_1 = arith.constant 1.280000e+02 : f32
    %4 = vector.broadcast %cst_1 : f32 to vector<64x1xf32>
    %5 = arith.divf %3, %4 : vector<64x1xf32>
    %6 = vector.broadcast %5 : vector<64x1xf32> to vector<64x128xf32>
    %7 = arith.subf %1, %6 : vector<64x128xf32>
    %8 = arith.mulf %7, %7 : vector<64x128xf32>
    %cst_2 = arith.constant dense<0.000000e+00> : vector<64xf32>
    %9 = vector.multi_reduction <add>, %8, %cst_2 [1] : vector<64x128xf32> to vector<64xf32>
    %10 = vector.shape_cast %9 : vector<64xf32> to vector<64x1xf32>
    %cst_3 = arith.constant 1.280000e+02 : f32
    %11 = vector.broadcast %cst_3 : f32 to vector<64x1xf32>
    %12 = arith.divf %10, %11 : vector<64x1xf32>
    %cst_4 = arith.constant 9.99999997E-7 : f32
    %13 = vector.broadcast %cst_4 : f32 to vector<64x1xf32>
    %14 = arith.addf %12, %13 : vector<64x1xf32>
    %15 = math.rsqrt %14 : vector<64x1xf32>
    %16 = vector.broadcast %15 : vector<64x1xf32> to vector<64x128xf32>
    %17 = arith.mulf %7, %16 : vector<64x128xf32>
    %c0_5 = arith.constant 0 : index
    %c0_6 = arith.constant 0 : index
    %18 = vector.load %arg2[%c0_5, %c0_6] : memref<1x128xf32, #tpu.memory_space<vmem>>, vector<1x128xf32>
    %19 = vector.broadcast %18 : vector<1x128xf32> to vector<64x128xf32>
    %20 = arith.mulf %17, %19 : vector<64x128xf32>
    %c0_7 = arith.constant 0 : index
    %c0_8 = arith.constant 0 : index
    %21 = vector.load %arg3[%c0_7, %c0_8] : memref<1x128xf32, #tpu.memory_space<vmem>>, vector<1x128xf32>
    %22 = vector.broadcast %21 : vector<1x128xf32> to vector<64x128xf32>
    %23 = arith.addf %20, %22 : vector<64x128xf32>
    %24 = arith.truncf %23 : vector<64x128xf32> to vector<64x128xbf16>
    %c0_9 = arith.constant 0 : index
    %c0_10 = arith.constant 0 : index
    %25 = vector.load %arg4[%c0_9, %c0_10] : memref<128x512xbf16, #tpu.memory_space<vmem>>, vector<128x512xbf16>
    %cst_11 = arith.constant dense<0.000000e+00> : vector<64x512xf32>
    %26 = tpu.matmul %24, %25, %cst_11 {dimension_numbers = #tpu.dot_dimension_numbers<[1], [0], [0], [1], [0, 0, 1, 1], [], []>} : vector<64x128xbf16>, vector<128x512xbf16>, vector<64x512xf32> -> vector<64x512xf32>
    %c0_12 = arith.constant 0 : index
    %c0_13 = arith.constant 0 : index
    %27 = vector.load %arg5[%c0_12, %c0_13] : memref<1x512xf32, #tpu.memory_space<vmem>>, vector<1x512xf32>
    %28 = vector.broadcast %27 : vector<1x512xf32> to vector<64x512xf32>
    %29 = arith.addf %26, %28 : vector<64x512xf32>
    %30 = arith.mulf %29, %29 : vector<64x512xf32>
    %31 = arith.mulf %29, %30 : vector<64x512xf32>
    %cst_14 = arith.constant 4.471500e-02 : f32
    %32 = vector.broadcast %cst_14 : f32 to vector<64x512xf32>
    %33 = arith.mulf %32, %31 : vector<64x512xf32>
    %34 = arith.addf %29, %33 : vector<64x512xf32>
    %cst_15 = arith.constant 0.797884583 : f32
    %35 = vector.broadcast %cst_15 : f32 to vector<64x512xf32>
    %36 = arith.mulf %35, %34 : vector<64x512xf32>
    %37 = math.tanh %36 : vector<64x512xf32>
    %cst_16 = arith.constant 1.000000e+00 : f32
    %38 = vector.broadcast %cst_16 : f32 to vector<64x512xf32>
    %39 = arith.addf %38, %37 : vector<64x512xf32>
    %cst_17 = arith.constant 5.000000e-01 : f32
    %40 = vector.broadcast %cst_17 : f32 to vector<64x512xf32>
    %41 = arith.mulf %40, %39 : vector<64x512xf32>
    %42 = arith.mulf %29, %41 : vector<64x512xf32>
    %43 = arith.truncf %42 : vector<64x512xf32> to vector<64x512xbf16>
    %c0_18 = arith.constant 0 : index
    %c0_19 = arith.constant 0 : index
    %44 = vector.load %arg6[%c0_18, %c0_19] : memref<64x512xbf16, #tpu.memory_space<vmem>>, vector<64x512xbf16>
    tpu.vector_store %arg6[%c0_18, %c0_19], %43 {strides = array<i32>} : memref<64x512xbf16, #tpu.memory_space<vmem>>, vector<64x512xbf16>,
    return
  }
  func.func @transform_0(%arg0: i32) -> (i32, i32) {
    %c0_i32 = arith.constant 0 : i32
    %c0_i32_0 = arith.constant 0 : i32
    return %arg0, %c0_i32 : i32, i32
  }
  func.func @transform_1(%arg0: i32) -> (i32, i32) {
    %c0_i32 = arith.constant 0 : i32
    %c0_i32_0 = arith.constant 0 : i32
    %c0_i32_1 = arith.constant 0 : i32
    return %c0_i32, %c0_i32_0 : i32, i32
  }
  func.func @transform_2(%arg0: i32) -> (i32, i32) {
    %c0_i32 = arith.constant 0 : i32
    %c0_i32_0 = arith.constant 0 : i32
    %c0_i32_1 = arith.constant 0 : i32
    return %c0_i32, %c0_i32_0 : i32, i32
  }
  func.func @transform_3(%arg0: i32) -> (i32, i32) {
    %c0_i32 = arith.constant 0 : i32
    %c0_i32_0 = arith.constant 0 : i32
    %c0_i32_1 = arith.constant 0 : i32
    return %c0_i32, %c0_i32_0 : i32, i32
  }
  func.func @transform_4(%arg0: i32) -> (i32, i32) {
    %c0_i32 = arith.constant 0 : i32
    %c0_i32_0 = arith.constant 0 : i32
    %c0_i32_1 = arith.constant 0 : i32
    return %c0_i32, %c0_i32_0 : i32, i32
  }
  func.func @transform_5(%arg0: i32) -> (i32, i32) {
    %c0_i32 = arith.constant 0 : i32
    %c0_i32_0 = arith.constant 0 : i32
    return %arg0, %c0_i32 : i32, i32
  }
}

module attributes {stable_mosaic.version = 11 : i64} {
  func.func @_mm_bias_res_kernel(%arg0: i32, %arg1: i32, %arg2: i32, %arg3: memref<64x512xbf16, #tpu.memory_space<vmem>>, %arg4: memref<512x128xbf16, #tpu.memory_space<vmem>>, %arg5: memref<1x128xf32, #tpu.memory_space<vmem>>, %arg6: memref<64x128xbf16, #tpu.memory_space<vmem>>, %arg7: memref<64x128xbf16, #tpu.memory_space<vmem>>, %arg8: memref<64x128xf32, #tpu.memory_space<vmem>>) attributes {dimension_semantics = [#tpu.dimension_semantics<parallel>, #tpu.dimension_semantics<parallel>, #tpu.dimension_semantics<arbitrary>], iteration_bounds = array<i64: 1, 1, 1>, scalar_prefetch = 0 : i64, scratch_operands = 1 : i64, tpu.core_type = #tpu.core_type<tc>, window_params = [{transform_indices = @transform_0, window_bounds = array<i64: 64, 512>}, {transform_indices = @transform_1, window_bounds = array<i64: 512, 128>}, {transform_indices = @transform_2, window_bounds = array<i64: 1, 128>}, {transform_indices = @transform_3, window_bounds = array<i64: 64, 128>}, {transform_indices = @transform_4, window_bounds = array<i64: 64, 128>}]} {
    %c0_i32 = arith.constant 0 : i32
    %0 = arith.cmpi eq, %arg2, %c0_i32 : i32
    %1 = arith.extui %0 : i1 to i32
    %c0_i32_0 = arith.constant 0 : i32
    %2 = arith.cmpi ne, %1, %c0_i32_0 : i32
    scf.if %2 {
      %cst_10 = arith.constant 0.000000e+00 : f32
      %12 = vector.broadcast %cst_10 : f32 to vector<64x128xf32>
      %c0_11 = arith.constant 0 : index
      %c0_12 = arith.constant 0 : index
      %13 = vector.load %arg8[%c0_11, %c0_12] : memref<64x128xf32, #tpu.memory_space<vmem>>, vector<64x128xf32>
      tpu.vector_store %arg8[%c0_11, %c0_12], %12 {strides = array<i32>} : memref<64x128xf32, #tpu.memory_space<vmem>>, vector<64x128xf32>,
    } else {
    }
    %c0 = arith.constant 0 : index
    %c0_1 = arith.constant 0 : index
    %3 = vector.load %arg8[%c0, %c0_1] : memref<64x128xf32, #tpu.memory_space<vmem>>, vector<64x128xf32>
    %c0_2 = arith.constant 0 : index
    %c0_3 = arith.constant 0 : index
    %4 = vector.load %arg3[%c0_2, %c0_3] : memref<64x512xbf16, #tpu.memory_space<vmem>>, vector<64x512xbf16>
    %c0_4 = arith.constant 0 : index
    %c0_5 = arith.constant 0 : index
    %5 = vector.load %arg4[%c0_4, %c0_5] : memref<512x128xbf16, #tpu.memory_space<vmem>>, vector<512x128xbf16>
    %cst = arith.constant dense<0.000000e+00> : vector<64x128xf32>
    %6 = tpu.matmul %4, %5, %cst {dimension_numbers = #tpu.dot_dimension_numbers<[1], [0], [0], [1], [0, 0, 1, 1], [], []>} : vector<64x512xbf16>, vector<512x128xbf16>, vector<64x128xf32> -> vector<64x128xf32>
    %7 = arith.addf %3, %6 : vector<64x128xf32>
    %c0_6 = arith.constant 0 : index
    %c0_7 = arith.constant 0 : index
    %8 = vector.load %arg8[%c0_6, %c0_7] : memref<64x128xf32, #tpu.memory_space<vmem>>, vector<64x128xf32>
    tpu.vector_store %arg8[%c0_6, %c0_7], %7 {strides = array<i32>} : memref<64x128xf32, #tpu.memory_space<vmem>>, vector<64x128xf32>,
    %c0_i32_8 = arith.constant 0 : i32
    %9 = arith.cmpi eq, %arg2, %c0_i32_8 : i32
    %10 = arith.extui %9 : i1 to i32
    %c0_i32_9 = arith.constant 0 : i32
    %11 = arith.cmpi ne, %10, %c0_i32_9 : i32
    scf.if %11 {
      %c0_10 = arith.constant 0 : index
      %c0_11 = arith.constant 0 : index
      %12 = vector.load %arg8[%c0_10, %c0_11] : memref<64x128xf32, #tpu.memory_space<vmem>>, vector<64x128xf32>
      %c0_12 = arith.constant 0 : index
      %c0_13 = arith.constant 0 : index
      %13 = vector.load %arg5[%c0_12, %c0_13] : memref<1x128xf32, #tpu.memory_space<vmem>>, vector<1x128xf32>
      %14 = vector.broadcast %13 : vector<1x128xf32> to vector<64x128xf32>
      %15 = arith.addf %12, %14 : vector<64x128xf32>
      %c0_14 = arith.constant 0 : index
      %c0_15 = arith.constant 0 : index
      %16 = vector.load %arg6[%c0_14, %c0_15] : memref<64x128xbf16, #tpu.memory_space<vmem>>, vector<64x128xbf16>
      %17 = arith.extf %16 : vector<64x128xbf16> to vector<64x128xf32>
      %18 = arith.addf %15, %17 : vector<64x128xf32>
      %19 = arith.truncf %18 : vector<64x128xf32> to vector<64x128xbf16>
      %c0_16 = arith.constant 0 : index
      %c0_17 = arith.constant 0 : index
      %20 = vector.load %arg7[%c0_16, %c0_17] : memref<64x128xbf16, #tpu.memory_space<vmem>>, vector<64x128xbf16>
      tpu.vector_store %arg7[%c0_16, %c0_17], %19 {strides = array<i32>} : memref<64x128xbf16, #tpu.memory_space<vmem>>, vector<64x128xbf16>,
    } else {
    }
    return
  }
  func.func @transform_0(%arg0: i32, %arg1: i32, %arg2: i32) -> (i32, i32) {
    %c0_i32 = arith.constant 0 : i32
    return %arg0, %arg2 : i32, i32
  }
  func.func @transform_1(%arg0: i32, %arg1: i32, %arg2: i32) -> (i32, i32) {
    %c0_i32 = arith.constant 0 : i32
    return %arg2, %arg1 : i32, i32
  }
  func.func @transform_2(%arg0: i32, %arg1: i32, %arg2: i32) -> (i32, i32) {
    %c0_i32 = arith.constant 0 : i32
    %c0_i32_0 = arith.constant 0 : i32
    return %c0_i32, %arg1 : i32, i32
  }
  func.func @transform_3(%arg0: i32, %arg1: i32, %arg2: i32) -> (i32, i32) {
    %c0_i32 = arith.constant 0 : i32
    return %arg0, %arg1 : i32, i32
  }
  func.func @transform_4(%arg0: i32, %arg1: i32, %arg2: i32) -> (i32, i32) {
    %c0_i32 = arith.constant 0 : i32
    return %arg0, %arg1 : i32, i32
  }
}

</mosaic_0001>

<llo_original>
// kernel: sam_forward.61
$region0: #{sam_forward.61}
  #allocation0 [shape = 'u32[]', space=smem, size = 0x4, offset = 0x4, fixed_abs, tag = 'smem constant byte address 0x4 - core index']
  #allocation1 [shape = 'u32[144,128]{1,0:T(1,128)}', space=vmem, size = 0x12000, scoped, tag = 'internal scratch']
  #allocation2 [shape = 'f32[32,128]{1,0:T(8,128)}', space=vmem, size = 0x4000, scoped, tag = 'scratch operand']
  %s0 = inlined_call_operand.vmem [shape: f32[64,768], index: 0, kind: input, shape index: {}]
  %s1 = inlined_call_operand.vmem [shape: bf16[768,128], index: 1, kind: input, shape index: {}]
  %s2 = inlined_call_operand.vmem [shape: f32[1,128], index: 2, kind: input, shape index: {}]
  %s3 = inlined_call_operand.vmem [shape: f32[32,128], index: 3, kind: input, shape index: {}]
  %s4 = inlined_call_operand.vmem [shape: bf16[64,128], index: 4, kind: output, shape index: {}]
  %s5 = sld [smem:[#allocation0]]
  $region80: #{sam_forward.61} parent=0
    _
  %s7 = ssub.s32 1, %s5
  %s8 = scalar_select 0, %s7, %s5
  $region1: #{sam_forward.61} parent=0
    #allocation3 [shape = 'u8[98304]{0}', space=vmem, size = 0x18000, scoped, tag = 'input window, operand 0']
    loop: start=0, step=1, limit=6
    $region2: #{sam_forward.61} parent=1 // loop_pre_header
      _
    $region3: #{sam_forward.61} parent=1 // loop_header
      %s10 = sphi 0, %s14
      %p11 = scmp.ge.s32.totalorder %s10, 6
      %s17 = sphi 0, %s36
      %s18 = sphi 0, %s32
      %s19 = sphi 0, %s28
      %s20 = sphi 0, %s17
      %s21 = sphi 0, %s18
      %s22 = sphi 0, %s19
      %s23 = sphi 0, %s20
      %s24 = sphi 0, %s21
      %s25 = sphi 0, %s22
      %s41 = sphi 0, %s43
      %s44 = sphi 0, %s41
      %s45 = sphi 0, %s44
      %s61 = sphi 0, %s45
      %s69 = sphi 0, %s71
      %s72 = sphi 0, %s69
      %s73 = sphi 0, %s72
      %s89 = sphi 0, %s73
      %s95 = sphi 0, %s97
      %s98 = sphi 0, %s95
      %s99 = sphi 0, %s98
      %s115 = sphi 0, %s99
      %s121 = sphi 0, %s123
      %s124 = sphi 0, %s121
      %s125 = sphi 0, %s124
      %s141 = sphi 0, %s125
      %s149 = sphi 0, %s151
      %s152 = sphi 0, %s149
      %s153 = sphi 0, %s152
      %s169 = sphi 0, %s153
    $region4: #{sam_forward.61} parent=1 // loop_header_branch
      %13 = sbr.rel (%p11) target = $region8
    $region5: #{sam_forward.61} parent=1 // loop_body
      %s15 = ssub.s32 %s10, 1
      %s16 = ssub.s32 %s10, 2
      %s26 = sadd.s32 1, %s19
      %p27 = scmp.ge.s32.totalorder %s26, 2
      %s28 = scalar_select %p27, 0, %s26
      %s29 = sadd.s32 1, %s18
      %s30 = scalar_select %p27, %s29, %s18
      %p31 = scmp.ge.s32.totalorder %s30, 1
      %s32 = scalar_select %p31, 0, %s30
      %s33 = sadd.s32 1, %s17
      %s34 = scalar_select %p31, %s33, %s17
      %p35 = scmp.ge.s32.totalorder %s34, 2
      %s36 = scalar_select %p35, 0, %s34
      %s37 = ssub.s32 %s17, %s36
      %s38 = ssub.s32 %s19, %s28
      %s39 = sor.u32 %s37, %s38
      %p40 = scmp.eq.s32.totalorder %s39, 0
      %s42 = sadd.s32 %s41, 1
      %s43 = scalar_select %p40, %s41, %s42
      %p46 = pneg %p40
      %p47 = scmp.eq.s32.totalorder %s10, 3
      %p48 = por %p46, %p47
      %p49 = scmp.ne.s32.totalorder %s41, %s44
      %p50 = scmp.eq.s32.totalorder %s10, 0
      %p51 = por %p49, %p50
      %p52 = scmp.ne.s32.totalorder %s41, %s44
      %p53 = scmp.eq.s32.totalorder %s15, 3
      %p54 = por %p52, %p53
      %p55 = scmp.ne.s32.totalorder %s44, %s45
      %p56 = scmp.eq.s32.totalorder %s15, 0
      %p57 = por %p55, %p56
      %p58 = scmp.ne.s32.totalorder %s44, %s45
      %p59 = scmp.eq.s32.totalorder %s16, 3
      %p60 = por %p58, %p59
      %p62 = scmp.ne.s32.totalorder %s45, %s61
      %p63 = scmp.eq.s32.totalorder %s16, 0
      %p64 = por %p62, %p63
      %s65 = ssub.s32 %s19, %s28
      %s66 = ssub.s32 %s18, %s32
      %s67 = sor.u32 %s65, %s66
      %p68 = scmp.eq.s32.totalorder %s67, 0
      %s70 = sadd.s32 %s69, 1
      %s71 = scalar_select %p68, %s69, %s70
      %p74 = pneg %p68
      %p75 = scmp.eq.s32.totalorder %s10, 3
      %p76 = por %p74, %p75
      %p77 = scmp.ne.s32.totalorder %s69, %s72
      %p78 = scmp.eq.s32.totalorder %s10, 0
      %p79 = por %p77, %p78
      %p80 = scmp.ne.s32.totalorder %s69, %s72
      %p81 = scmp.eq.s32.totalorder %s15, 3
      %p82 = por %p80, %p81
      %p83 = scmp.ne.s32.totalorder %s72, %s73
      %p84 = scmp.eq.s32.totalorder %s15, 0
      %p85 = por %p83, %p84
      %p86 = scmp.ne.s32.totalorder %s72, %s73
      %p87 = scmp.eq.s32.totalorder %s16, 3
      %p88 = por %p86, %p87
      %p90 = scmp.ne.s32.totalorder %s73, %s89
      %p91 = scmp.eq.s32.totalorder %s16, 0
      %p92 = por %p90, %p91
      %s93 = ssub.s32 %s18, %s32
      %p94 = scmp.eq.s32.totalorder %s93, 0
      %s96 = sadd.s32 %s95, 1
      %s97 = scalar_select %p94, %s95, %s96
      %p100 = pneg %p94
      %p101 = scmp.eq.s32.totalorder %s10, 3
      %p102 = por %p100, %p101
      %p103 = scmp.ne.s32.totalorder %s95, %s98
      %p104 = scmp.eq.s32.totalorder %s10, 0
      %p105 = por %p103, %p104
      %p106 = scmp.ne.s32.totalorder %s95, %s98
      %p107 = scmp.eq.s32.totalorder %s15, 3
      %p108 = por %p106, %p107
      %p109 = scmp.ne.s32.totalorder %s98, %s99
      %p110 = scmp.eq.s32.totalorder %s15, 0
      %p111 = por %p109, %p110
      %p112 = scmp.ne.s32.totalorder %s98, %s99
      %p113 = scmp.eq.s32.totalorder %s16, 3
      %p114 = por %p112, %p113
      %p116 = scmp.ne.s32.totalorder %s99, %s115
      %p117 = scmp.eq.s32.totalorder %s16, 0
      %p118 = por %p116, %p117
      %s119 = ssub.s32 %s18, %s32
      %p120 = scmp.eq.s32.totalorder %s119, 0
      %s122 = sadd.s32 %s121, 1
      %s123 = scalar_select %p120, %s121, %s122
      %p126 = pneg %p120
      %p127 = scmp.eq.s32.totalorder %s10, 3
      %p128 = por %p126, %p127
      %p129 = scmp.ne.s32.totalorder %s121, %s124
      %p130 = scmp.eq.s32.totalorder %s10, 0
      %p131 = por %p129, %p130
      %p132 = scmp.ne.s32.totalorder %s121, %s124
      %p133 = scmp.eq.s32.totalorder %s15, 3
      %p134 = por %p132, %p133
      %p135 = scmp.ne.s32.totalorder %s124, %s125
      %p136 = scmp.eq.s32.totalorder %s15, 0
      %p137 = por %p135, %p136
      %p138 = scmp.ne.s32.totalorder %s124, %s125
      %p139 = scmp.eq.s32.totalorder %s16, 3
      %p140 = por %p138, %p139
      %p142 = scmp.ne.s32.totalorder %s125, %s141
      %p143 = scmp.eq.s32.totalorder %s16, 0
      %p144 = por %p142, %p143
      %s145 = ssub.s32 %s17, %s36
      %s146 = ssub.s32 %s18, %s32
      %s147 = sor.u32 %s145, %s146
      %p148 = scmp.eq.s32.totalorder %s147, 0
      %s150 = sadd.s32 %s149, 1
      %s151 = scalar_select %p148, %s149, %s150
      %p154 = pneg %p148
      %p155 = scmp.eq.s32.totalorder %s10, 3
      %p156 = por %p154, %p155
      %p157 = scmp.ne.s32.totalorder %s149, %s152
      %p158 = scmp.eq.s32.totalorder %s10, 0
      %p159 = por %p157, %p158
      %p160 = scmp.ne.s32.totalorder %s149, %s152
      %p161 = scmp.eq.s32.totalorder %s15, 3
      %p162 = por %p160, %p161
      %p163 = scmp.ne.s32.totalorder %s152, %s153
      %p164 = scmp.eq.s32.totalorder %s15, 0
      %p165 = por %p163, %p164
      %p166 = scmp.ne.s32.totalorder %s152, %s153
      %p167 = scmp.eq.s32.totalorder %s16, 3
      %p168 = por %p166, %p167
      %p170 = scmp.ne.s32.totalorder %s153, %s169
      %p171 = scmp.eq.s32.totalorder %s16, 0
      %p172 = por %p170, %p171
      %p173 = scmp.le.s32.totalorder 1, %s10
      %p174 = scmp.lt.s32.totalorder %s10, 5
      %p175 = pnand %p173, %p174
      %p176 = pneg %p175
      // Predicated region
      $region9: #{sam_forward.61} parent=5 // pred_check
        _
      $region10: #{sam_forward.61} parent=5 // pred_check_branch
        %178 = sbr.rel (%p175) target = $region12
      $region11: #{sam_forward.61} parent=5 // pred_region
        %s179 = ssub.s32 %s10, 1
        // Predicated region
        $region13: #{sam_forward.61} parent=11 // pred_check
          %p180 = pneg %p111
        $region14: #{sam_forward.61} parent=11 // pred_check_branch
          %182 = sbr.rel (%p180) target = $region16
        $region15: #{sam_forward.61} parent=11 // pred_region
          %p183 = scmp.lt.s32.totalorder %s21, 0
          %s184 = scalar_select %p183, %s21, 0
          %s185 = scalar_lea.vmem %s2, %s184
        $region16: #{sam_forward.61} parent=11 // pred_fallthru
          _
        // Predicated region
        $region17: #{sam_forward.61} parent=11 // pred_check
          %p186 = pneg %p137
        $region18: #{sam_forward.61} parent=11 // pred_check_branch
          %188 = sbr.rel (%p186) target = $region20
        $region19: #{sam_forward.61} parent=11 // pred_region
          %p189 = scmp.lt.s32.totalorder %s21, 0
          %s190 = scalar_select %p189, %s21, 0
          %s191 = smul.addr %s190, 8
          %s192 = scalar_lea.vmem %s3, %s191
        $region20: #{sam_forward.61} parent=11 // pred_fallthru
          _
      $region12: #{sam_forward.61} parent=5 // pred_fallthru
        _
      %p193 = scmp.lt.s32.totalorder %s10, 4
      // Predicated region
      $region21: #{sam_forward.61} parent=5 // pred_check
        %p194 = pneg %p193
      $region22: #{sam_forward.61} parent=5 // pred_check_branch
        %196 = sbr.rel (%p194) target = $region24
      $region23: #{sam_forward.61} parent=5 // pred_region
        // Predicated region
        $region25: #{sam_forward.61} parent=23 // pred_check
          %p197 = pneg %p51
        $region26: #{sam_forward.61} parent=23 // pred_check_branch
          %199 = sbr.rel (%p197) target = $region28
        $region27: #{sam_forward.61} parent=23 // pred_region
          %s200 = sand.u32 %s41, 1
          %s201 = sand.u32 %s41, 1
          %s202 = smul.addr %s201, 96
          %s203 = scalar_lea.vmem [#allocation3], %s202
          %s204 = smul.u32 4, %s17
          %s205 = smul.u32 3, %s19
          %s206 = smul.addr %s204, 6
          %s207 = sadd.s32 %s205, %s206
          %s208 = smul.addr %s207, 8
          %s209 = scalar_lea.vmem %s0, %s208
          // Predicated region
          $region29: #{sam_forward.61} parent=27 // pred_check
            _
          $region30: #{sam_forward.61} parent=27 // pred_check_branch
            %211 = sbr.rel (0) target = $region32
          $region31: #{sam_forward.61} parent=27 // pred_region
            // Predicated region
            $region33: #{sam_forward.61} parent=31 // pred_check
              _
            $region34: #{sam_forward.61} parent=31 // pred_check_branch
              %213 = sbr.rel (0) target = $region36
            $region35: #{sam_forward.61} parent=31 // pred_region
              loop: start=0, step=1, limit=1
              $region37: #{sam_forward.61} parent=35 // loop_pre_header
                _
              $region38: #{sam_forward.61} parent=35 // loop_header
                %s215 = sphi 0, %s219
                %p216 = scmp.ge.s32.totalorder %s215, 1
                %s220 = sphi %s209, %s209
                %s221 = sphi %s203, %s203
              $region39: #{sam_forward.61} parent=35 // loop_header_branch
                %218 = sbr.rel (%p216) target = $region43
              $region40: #{sam_forward.61} parent=35 // loop_body
                %v222 = vld [vmem:[%s220] sm:$0xff]
                %223 = vst [vmem:[%s221] sm:$0xff] %v222
                %v224 = vld [vmem:[%s220 + $0x8] sm:$0xff]
                %225 = vst [vmem:[%s221 + $0x8] sm:$0xff] %v224
                %v226 = vld [vmem:[%s220 + $0x10] sm:$0xff]
                %227 = vst [vmem:[%s221 + $0x10] sm:$0xff] %v226
                %v228 = vld [vmem:[%s220 + $0x30] sm:$0xff]
                %229 = vst [vmem:[%s221 + $0x18] sm:$0xff] %v228
                %v230 = vld [vmem:[%s220 + $0x38] sm:$0xff]
                %231 = vst [vmem:[%s221 + $0x20] sm:$0xff] %v230
                %v232 = vld [vmem:[%s220 + $0x40] sm:$0xff]
                %233 = vst [vmem:[%s221 + $0x28] sm:$0xff] %v232
                %v234 = vld [vmem:[%s220 + $0x60] sm:$0xff]
                %235 = vst [vmem:[%s221 + $0x30] sm:$0xff] %v234
                %v236 = vld [vmem:[%s220 + $0x68] sm:$0xff]
                %237 = vst [vmem:[%s221 + $0x38] sm:$0xff] %v236
                %v238 = vld [vmem:[%s220 + $0x70] sm:$0xff]
                %239 = vst [vmem:[%s221 + $0x40] sm:$0xff] %v238
                %v240 = vld [vmem:[%s220 + $0x90] sm:$0xff]
                %241 = vst [vmem:[%s221 + $0x48] sm:$0xff] %v240
                %v242 = vld [vmem:[%s220 + $0x98] sm:$0xff]
                %243 = vst [vmem:[%s221 + $0x50] sm:$0xff] %v242
                %v244 = vld [vmem:[%s220 + $0xa0] sm:$0xff]
                %245 = vst [vmem:[%s221 + $0x58] sm:$0xff] %v244
              $region41: #{sam_forward.61} parent=35 // loop_footer
                %s219 = sadd.s32 1, %s215
              $region42: #{sam_forward.61} parent=35 // loop_footer_branch
                %214 = sbr.rel target = $region38
              $region43: #{sam_forward.61} parent=35 // loop_exit
                _
            $region36: #{sam_forward.61} parent=31 // pred_fallthru
              _
            // Predicated region
            $region44: #{sam_forward.61} parent=31 // pred_check
              _
            $region45: #{sam_forward.61} parent=31 // pred_check_branch
              %247 = sbr.rel target = $region47
            $region46: #{sam_forward.61} parent=31 // pred_region
              _
            $region47: #{sam_forward.61} parent=31 // pred_fallthru
              _
          $region32: #{sam_forward.61} parent=27 // pred_fallthru
            _
          %248 = vnop
        $region28: #{sam_forward.61} parent=23 // pred_fallthru
          _
        // Predicated region
        $region48: #{sam_forward.61} parent=23 // pred_check
          %p249 = pneg %p79
        $region49: #{sam_forward.61} parent=23 // pred_check_branch
          %251 = sbr.rel (%p249) target = $region51
        $region50: #{sam_forward.61} parent=23 // pred_region
          %s252 = smul.u32 48, %s19
          %p253 = scmp.lt.s32.totalorder %s252, 95
          %s254 = scalar_select %p253, %s252, 95
          %p255 = scmp.lt.s32.totalorder %s18, 0
          %s256 = scalar_select %p255, %s18, 0
          %s257 = sadd.s32 %s256, %s254
          %s258 = smul.addr %s257, 4
          %s259 = scalar_lea.vmem %s1, %s258
          %s260 = smul.u32 48, %s19
        $region51: #{sam_forward.61} parent=23 // pred_fallthru
          _
      $region24: #{sam_forward.61} parent=5 // pred_fallthru
        _
      %p261 = scmp.le.s32.totalorder 1, %s10
      %p262 = scmp.lt.s32.totalorder %s10, 5
      %p263 = pnand %p261, %p262
      %p264 = pneg %p263
      // Predicated region
      $region52: #{sam_forward.61} parent=5 // pred_check
        _
      $region53: #{sam_forward.61} parent=5 // pred_check_branch
        %266 = sbr.rel (%p263) target = $region55
      $region54: #{sam_forward.61} parent=5 // pred_region
        %s267 = ssub.s32 %s10, 1
        %s268 = sand.u32 %s44, 1
        %s269 = sand.u32 %s44, 1
        %s270 = smul.addr %s269, 96
        %s271 = scalar_lea.vmem [#allocation3], %s270
        // Predicated region
        $region56: #{sam_forward.61} parent=54 // pred_check
          %p272 = pneg %p57
        $region57: #{sam_forward.61} parent=54 // pred_check_branch
          %274 = sbr.rel (%p272) target = $region59
        $region58: #{sam_forward.61} parent=54 // pred_region
          _
        $region59: #{sam_forward.61} parent=54 // pred_fallthru
          _
        %s275 = sand.u32 %s44, 1
        %s276 = sand.u32 %s44, 1
        %s277 = smul.addr %s276, 96
        %s278 = scalar_lea.vmem [#allocation3], %s277
        %p279 = pneg %p57
        %p280 = pneg %p54
        %s281 = smul.u32 48, %s22
        %p282 = scmp.lt.s32.totalorder %s281, 95
        %s283 = scalar_select %p282, %s281, 95
        %p284 = scmp.lt.s32.totalorder %s21, 0
        %s285 = scalar_select %p284, %s21, 0
        %s286 = sadd.s32 %s285, %s283
        %s287 = smul.addr %s286, 4
        %s288 = scalar_lea.vmem %s1, %s287
        %p289 = pneg %p85
        %p290 = pneg %p82
        %p291 = scmp.lt.s32.totalorder %s21, 0
        %s292 = scalar_select %p291, %s21, 0
        %s293 = scalar_lea.vmem %s2, %s292
        %p294 = pneg %p111
        %p295 = pneg %p108
        %p296 = scmp.lt.s32.totalorder %s21, 0
        %s297 = scalar_select %p296, %s21, 0
        %s298 = smul.addr %s297, 8
        %s299 = scalar_lea.vmem %s3, %s298
        %p300 = pneg %p137
        %p301 = pneg %p134
        %p302 = pneg %p165
        %p303 = pneg %p162
        %s304 = smul.u32 4, %s20
        %p305 = scmp.lt.s32.totalorder %s304, 7
        %s306 = scalar_select %p305, %s304, 7
        %p307 = scmp.lt.s32.totalorder %s21, 0
        %s308 = scalar_select %p307, %s21, 0
        %s309 = sadd.s32 %s308, %s306
        %s310 = smul.addr %s309, 4
        %s311 = scalar_lea.vmem %s4, %s310
        %s312 = smul.u32 4, %s20
        %s313 = smul.u32 3, %s22
        %s314 = smul.u32 48, %s22
        %p315 = scmp.lt.s32.totalorder %s314, 95
        %s316 = scalar_select %p315, %s314, 95
        %p317 = scmp.lt.s32.totalorder %s21, 0
        %s318 = scalar_select %p317, %s21, 0
        %s319 = sadd.s32 %s318, %s316
        %s320 = smul.addr %s319, 4
        %s321 = scalar_lea.vmem %s1, %s320
        %s322 = smul.u32 48, %s22
        %p323 = scmp.lt.s32.totalorder %s21, 0
        %s324 = scalar_select %p323, %s21, 0
        %s325 = scalar_lea.vmem %s2, %s324
        %p326 = scmp.lt.s32.totalorder %s21, 0
        %s327 = scalar_select %p326, %s21, 0
        %s328 = smul.addr %s327, 8
        %s329 = scalar_lea.vmem %s3, %s328
        %s330 = smul.u32 4, %s20
        %p331 = scmp.lt.s32.totalorder %s330, 7
        %s332 = scalar_select %p331, %s330, 7
        %p333 = scmp.lt.s32.totalorder %s21, 0
        %s334 = scalar_select %p333, %s21, 0
        %s335 = sadd.s32 %s334, %s332
        %s336 = smul.addr %s335, 4
        %s337 = scalar_lea.vmem %s4, %s336
        %s338 = smul.u32 4, %s20
        %p340 = scmp.eq.s32.totalorder %s22, 0
        // Predicated region
        $region60: #{sam_forward.61} parent=54 // pred_check
          %p341 = pneg %p340
        $region61: #{sam_forward.61} parent=54 // pred_check_branch
          %343 = sbr.rel (%p341) target = $region63
        $region62: #{sam_forward.61} parent=54 // pred_region
          %344 = vst [vmem:[#allocation2] sm:$0xff] 0.0
          %345 = vst [vmem:[#allocation2 + $0x8] sm:$0xff] 0.0
          %346 = vst [vmem:[#allocation2 + $0x10] sm:$0xff] 0.0
          %347 = vst [vmem:[#allocation2 + $0x18] sm:$0xff] 0.0
        $region63: #{sam_forward.61} parent=54 // pred_fallthru
          _
        %v348 = vld [vmem:[#allocation2] sm:$0xff]
        %v349 = vld [vmem:[#allocation2 + $0x8] sm:$0xff]
        %v350 = vld [vmem:[#allocation2 + $0x10] sm:$0xff]
        %v351 = vld [vmem:[#allocation2 + $0x18] sm:$0xff]
        %v352 = vld [vmem:[%s271] sm:$0xff]
        %v353 = vld [vmem:[%s271 + $0x8] sm:$0xff]
        %v354 = vld [vmem:[%s271 + $0x10] sm:$0xff]
        %v355 = vld [vmem:[%s271 + $0x18] sm:$0xff]
        %v356 = vld [vmem:[%s271 + $0x20] sm:$0xff]
        %v357 = vld [vmem:[%s271 + $0x28] sm:$0xff]
        %v358 = vld [vmem:[%s271 + $0x30] sm:$0xff]
        %v359 = vld [vmem:[%s271 + $0x38] sm:$0xff]
        %v360 = vld [vmem:[%s271 + $0x40] sm:$0xff]
        %v361 = vld [vmem:[%s271 + $0x48] sm:$0xff]
        %v362 = vld [vmem:[%s271 + $0x50] sm:$0xff]
        %v363 = vld [vmem:[%s271 + $0x58] sm:$0xff]
        %v364 = vpack.c.bf16 %v355, %v352
        %v365 = vpack.c.bf16 %v356, %v353
        %v366 = vpack.c.bf16 %v357, %v354
        %v367 = vpack.c.bf16 %v361, %v358
        %v368 = vpack.c.bf16 %v362, %v359
        %v369 = vpack.c.bf16 %v363, %v360
        %v370 = vld [vmem:[%s321] sm:$0xf]
        %v371 = vld [vmem:[%s321 + $0x4] sm:$0xf]
        %v372 = vld [vmem:[%s321 + $0x8] sm:$0xf]
        %v373 = vld [vmem:[%s321 + $0xc] sm:$0xf]
        %v374 = vld [vmem:[%s321 + $0x10] sm:$0xf]
        %v375 = vld [vmem:[%s321 + $0x14] sm:$0xf]
        %v376 = vld [vmem:[%s321 + $0x18] sm:$0xf]
        %v377 = vld [vmem:[%s321 + $0x1c] sm:$0xf]
        %v378 = vld [vmem:[%s321 + $0x20] sm:$0xf]
        %v379 = vld [vmem:[%s321 + $0x24] sm:$0xf]
        %v380 = vld [vmem:[%s321 + $0x28] sm:$0xf]
        %v381 = vld [vmem:[%s321 + $0x2c] sm:$0xf]
        %v382 = vld [vmem:[%s321 + $0x30] sm:$0xf]
        %v383 = vld [vmem:[%s321 + $0x34] sm:$0xf]
        %v384 = vld [vmem:[%s321 + $0x38] sm:$0xf]
        %v385 = vld [vmem:[%s321 + $0x3c] sm:$0xf]
        %v386 = vld [vmem:[%s321 + $0x40] sm:$0xf]
        %v387 = vld [vmem:[%s321 + $0x44] sm:$0xf]
        %v388 = vld [vmem:[%s321 + $0x48] sm:$0xf]
        %v389 = vld [vmem:[%s321 + $0x4c] sm:$0xf]
        %v390 = vld [vmem:[%s321 + $0x50] sm:$0xf]
        %v391 = vld [vmem:[%s321 + $0x54] sm:$0xf]
        %v392 = vld [vmem:[%s321 + $0x58] sm:$0xf]
        %v393 = vld [vmem:[%s321 + $0x5c] sm:$0xf]
        %v394 = vld [vmem:[%s321 + $0x60] sm:$0xf]
        %v395 = vld [vmem:[%s321 + $0x64] sm:$0xf]
        %v396 = vld [vmem:[%s321 + $0x68] sm:$0xf]
        %v397 = vld [vmem:[%s321 + $0x6c] sm:$0xf]
        %v398 = vld [vmem:[%s321 + $0x70] sm:$0xf]
        %v399 = vld [vmem:[%s321 + $0x74] sm:$0xf]
        %v400 = vld [vmem:[%s321 + $0x78] sm:$0xf]
        %v401 = vld [vmem:[%s321 + $0x7c] sm:$0xf]
        %v402 = vld [vmem:[%s321 + $0x80] sm:$0xf]
        %v403 = vld [vmem:[%s321 + $0x84] sm:$0xf]
        %v404 = vld [vmem:[%s321 + $0x88] sm:$0xf]
        %v405 = vld [vmem:[%s321 + $0x8c] sm:$0xf]
        %v406 = vld [vmem:[%s321 + $0x90] sm:$0xf]
        %v407 = vld [vmem:[%s321 + $0x94] sm:$0xf]
        %v408 = vld [vmem:[%s321 + $0x98] sm:$0xf]
        %v409 = vld [vmem:[%s321 + $0x9c] sm:$0xf]
        %v410 = vld [vmem:[%s321 + $0xa0] sm:$0xf]
        %v411 = vld [vmem:[%s321 + $0xa4] sm:$0xf]
        %v412 = vld [vmem:[%s321 + $0xa8] sm:$0xf]
        %v413 = vld [vmem:[%s321 + $0xac] sm:$0xf]
        %v414 = vld [vmem:[%s321 + $0xb0] sm:$0xf]
        %v415 = vld [vmem:[%s321 + $0xb4] sm:$0xf]
        %v416 = vld [vmem:[%s321 + $0xb8] sm:$0xf]
        %v417 = vld [vmem:[%s321 + $0xbc] sm:$0xf]
        %v466 = vunpack.c.l.b16 %v370
        %v467 = vunpack.c.l.b16 %v371
        %v468 = vunpack.c.l.b16 %v372
        %v469 = vunpack.c.l.b16 %v373
        %v470 = vunpack.c.l.b16 %v374
        %v471 = vunpack.c.l.b16 %v375
        %v472 = vunpack.c.l.b16 %v376
        %v473 = vunpack.c.l.b16 %v377
        %v474 = vunpack.c.l.b16 %v378
        %v475 = vunpack.c.l.b16 %v379
        %v476 = vunpack.c.l.b16 %v380
        %v477 = vunpack.c.l.b16 %v381
        %v478 = vunpack.c.l.b16 %v382
        %v479 = vunpack.c.l.b16 %v383
        %v480 = vunpack.c.l.b16 %v384
        %v481 = vunpack.c.l.b16 %v385
        %v482 = vunpack.c.l.b16 %v386
        %v483 = vunpack.c.l.b16 %v387
        %v484 = vunpack.c.l.b16 %v388
        %v485 = vunpack.c.l.b16 %v389
        %v486 = vunpack.c.l.b16 %v390
        %v487 = vunpack.c.l.b16 %v391
        %v488 = vunpack.c.l.b16 %v392
        %v489 = vunpack.c.l.b16 %v393
        %v490 = vunpack.c.l.b16 %v394
        %v491 = vunpack.c.l.b16 %v395
        %v492 = vunpack.c.l.b16 %v396
        %v493 = vunpack.c.l.b16 %v397
        %v494 = vunpack.c.l.b16 %v398
        %v495 = vunpack.c.l.b16 %v399
        %v496 = vunpack.c.l.b16 %v400
        %v497 = vunpack.c.l.b16 %v401
        %v498 = vunpack.c.l.b16 %v402
        %v499 = vunpack.c.l.b16 %v403
        %v500 = vunpack.c.l.b16 %v404
        %v501 = vunpack.c.l.b16 %v405
        %v502 = vunpack.c.l.b16 %v406
        %v503 = vunpack.c.l.b16 %v407
        %v504 = vunpack.c.l.b16 %v408
        %v505 = vunpack.c.l.b16 %v409
        %v506 = vunpack.c.l.b16 %v410
        %v507 = vunpack.c.l.b16 %v411
        %v508 = vunpack.c.l.b16 %v412
        %v509 = vunpack.c.l.b16 %v413
        %v510 = vunpack.c.l.b16 %v414
        %v511 = vunpack.c.l.b16 %v415
        %v512 = vunpack.c.l.b16 %v416
        %v513 = vunpack.c.l.b16 %v417
        %v514 = vpack.c.b16 %v467, %v466
        %v515 = vpack.c.b16 %v469, %v468
        %v516 = vpack.c.b16 %v471, %v470
        %v517 = vpack.c.b16 %v473, %v472
        %v518 = vpack.c.b16 %v475, %v474
        %v519 = vpack.c.b16 %v477, %v476
        %v520 = vpack.c.b16 %v479, %v478
        %v521 = vpack.c.b16 %v481, %v480
        %v522 = vpack.c.b16 %v483, %v482
        %v523 = vpack.c.b16 %v485, %v484
        %v524 = vpack.c.b16 %v487, %v486
        %v525 = vpack.c.b16 %v489, %v488
        %v526 = vpack.c.b16 %v491, %v490
        %v527 = vpack.c.b16 %v493, %v492
        %v528 = vpack.c.b16 %v495, %v494
        %v529 = vpack.c.b16 %v497, %v496
        %v530 = vpack.c.b16 %v499, %v498
        %v531 = vpack.c.b16 %v501, %v500
        %v532 = vpack.c.b16 %v503, %v502
        %v533 = vpack.c.b16 %v505, %v504
        %v534 = vpack.c.b16 %v507, %v506
        %v535 = vpack.c.b16 %v509, %v508
        %v536 = vpack.c.b16 %v511, %v510
        %v537 = vpack.c.b16 %v513, %v512
        %562 = vmatprep.subr.bf16.mxu0 0
        %563 = vmatpush1.bf16.msra.mxu0 %v514
        %564 = vmatprep.subr.bf16.mxu0 0
        %565 = vmatpush1.bf16.msra.mxu0 %v515
        %566 = vmatprep.subr.bf16.mxu0 0
        %567 = vmatpush1.bf16.msra.mxu0 %v516
        %568 = vmatprep.subr.bf16.mxu0 0
        %569 = vmatpush1.bf16.msra.mxu0 %v517
        %570 = vmatprep.subr.bf16.mxu0 0
        %571 = vmatpush1.bf16.msra.mxu0 %v518
        %572 = vmatprep.subr.bf16.mxu0 0
        %573 = vmatpush1.bf16.msra.mxu0 %v519
        %574 = vmatprep.subr.bf16.mxu0 0
        %575 = vmatpush1.bf16.msra.mxu0 %v520
        %576 = vmatprep.subr.bf16.mxu0 0
        %577 = vmatpush1.bf16.msra.mxu0 %v521
        %578 = vmatprep.subr.bf16.mxu0 0
        %579 = vmatpush1.bf16.msra.mxu0 %v522
        %580 = vmatprep.subr.bf16.mxu0 0
        %581 = vmatpush1.bf16.msra.mxu0 %v523
        %582 = vmatprep.subr.bf16.mxu0 0
        %583 = vmatpush1.bf16.msra.mxu0 %v524
        %584 = vmatprep.subr.bf16.mxu0 0
        %585 = vmatpush1.bf16.msra.mxu0 %v525
        %586 = vmatprep.subr.bf16.mxu0 0
        %587 = vmatpush1.bf16.msra.mxu0 %v526
        %588 = vmatprep.subr.bf16.mxu0 0
        %589 = vmatpush1.bf16.msra.mxu0 %v527
        %590 = vmatprep.subr.bf16.mxu0 0
        %591 = vmatpush1.bf16.msra.mxu0 %v528
        %592 = vmatprep.subr.bf16.mxu0 0
        %593 = vmatpush1.bf16.msra.mxu0 %v529
        %594 = vmatprep.mubr.bf16.mxu0 %v365
        %595 = vmatmul.mubr.bf16.gmra.mrb[0].mxu0 %v364
        %v596 = vpop.f32.mrb[0].mxu0
        %v597 = vadd.f32 0.0, %v596
        %v598 = vpop.f32.mrb[0].mxu0
        %v599 = vpop.f32.mrb[0].mxu0
        %v600 = vadd.f32 0.0, %v599
        %v601 = vpop.f32.mrb[0].mxu0
        %602 = vmatprep.mubr.bf16.mxu0 %v368
        %603 = vmatmul.mubr.bf16.gmra.mrb[0].mxu0 %v367
        %v604 = vpop.f32.mrb[0].mxu0
        %v605 = vadd.f32 0.0, %v604
        %v606 = vpop.f32.mrb[0].mxu0
        %v607 = vpop.f32.mrb[0].mxu0
        %v608 = vadd.f32 0.0, %v607
        %v609 = vpop.f32.mrb[0].mxu0
        %610 = vdwg.mxu0
        %611 = vmatprep.subr.bf16.mxu0 0
        %612 = vmatpush1.bf16.msra.mxu0 %v530
        %613 = vmatprep.subr.bf16.mxu0 0
        %614 = vmatpush1.bf16.msra.mxu0 %v531
        %615 = vmatprep.subr.bf16.mxu0 0
        %616 = vmatpush1.bf16.msra.mxu0 %v532
        %617 = vmatprep.subr.bf16.mxu0 0
        %618 = vmatpush1.bf16.msra.mxu0 %v533
        %619 = vmatprep.subr.bf16.mxu0 0
        %620 = vmatpush1.bf16.msra.mxu0 %v534
        %621 = vmatprep.subr.bf16.mxu0 0
        %622 = vmatpush1.bf16.msra.mxu0 %v535
        %623 = vmatprep.subr.bf16.mxu0 0
        %624 = vmatpush1.bf16.msra.mxu0 %v536
        %625 = vmatprep.subr.bf16.mxu0 0
        %626 = vmatpush1.bf16.msra.mxu0 %v537
        %627 = vmatprep.subr.bf16.mxu0 0
        %628 = vmatpush1.bf16.msra.mxu0 0
        %629 = vmatprep.subr.bf16.mxu0 0
        %630 = vmatpush1.bf16.msra.mxu0 0
        %631 = vmatprep.subr.bf16.mxu0 0
        %632 = vmatpush1.bf16.msra.mxu0 0
        %633 = vmatprep.subr.bf16.mxu0 0
        %634 = vmatpush1.bf16.msra.mxu0 0
        %635 = vmatprep.subr.bf16.mxu0 0
        %636 = vmatpush1.bf16.msra.mxu0 0
        %637 = vmatprep.subr.bf16.mxu0 0
        %638 = vmatpush1.bf16.msra.mxu0 0
        %639 = vmatprep.subr.bf16.mxu0 0
        %640 = vmatpush1.bf16.msra.mxu0 0
        %641 = vmatprep.subr.bf16.mxu0 0
        %642 = vmatpush1.bf16.msra.mxu0 0
        %643 = vmatprep.mubr.bf16.mxu0 0
        %644 = vmatmul.mubr.bf16.gmra.mrb[0].mxu0 %v366
        %v645 = vpop.f32.mrb[0].mxu0
        %v646 = vadd.f32 %v597, %v645
        %v647 = vpop.f32.mrb[0].mxu0
        %v648 = vpop.f32.mrb[0].mxu0
        %v649 = vadd.f32 %v600, %v648
        %v650 = vpop.f32.mrb[0].mxu0
        %651 = vmatprep.mubr.bf16.mxu0 0
        %652 = vmatmul.mubr.bf16.gmra.mrb[0].mxu0 %v369
        %v653 = vpop.f32.mrb[0].mxu0
        %v654 = vadd.f32 %v605, %v653
        %v655 = vpop.f32.mrb[0].mxu0
        %v656 = vpop.f32.mrb[0].mxu0
        %v657 = vadd.f32 %v608, %v656
        %v658 = vpop.f32.mrb[0].mxu0
        %659 = vdwg.mxu0
        %v660 = vadd.f32 %v348, %v646
        %v661 = vadd.f32 %v349, %v649
        %v662 = vadd.f32 %v350, %v654
        %v663 = vadd.f32 %v351, %v657
        %664 = vst [vmem:[#allocation2] sm:$0xff] %v660
        %665 = vst [vmem:[#allocation2 + $0x8] sm:$0xff] %v661
        %666 = vst [vmem:[#allocation2 + $0x10] sm:$0xff] %v662
        %667 = vst [vmem:[#allocation2 + $0x18] sm:$0xff] %v663
        %p668 = scmp.eq.s32.totalorder %s22, 1
        // Predicated region
        $region64: #{sam_forward.61} parent=54 // pred_check
          %p669 = pneg %p668
        $region65: #{sam_forward.61} parent=54 // pred_check_branch
          %671 = sbr.rel (%p669) target = $region67
        $region66: #{sam_forward.61} parent=54 // pred_region
          %v672 = vld [vmem:[#allocation2] sm:$0xff]
          %v673 = vld [vmem:[#allocation2 + $0x8] sm:$0xff]
          %v674 = vld [vmem:[#allocation2 + $0x10] sm:$0xff]
          %v675 = vld [vmem:[#allocation2 + $0x18] sm:$0xff]
          %v676 = vld [vmem:[%s325] sm:$0x1]
          %v678 = vlaneseq
          %v679 = vshrl.u32 %v678, 7
          %v680 = vsub.s32 0, %v679
          %v681 = vrot.slane %v676, %v680
          %v683 = vadd.f32 %v672, %v681
          %v684 = vadd.f32 %v673, %v681
          %v685 = vadd.f32 %v674, %v681
          %v686 = vadd.f32 %v675, %v681
          %v687 = vld [vmem:[%s329] sm:$0xff]
          %v688 = vld [vmem:[%s329 + $0x8] sm:$0xff]
          %v689 = vld [vmem:[%s329 + $0x10] sm:$0xff]
          %v690 = vld [vmem:[%s329 + $0x18] sm:$0xff]
          %v691 = vadd.f32 %v683, %v687
          %v692 = vadd.f32 %v684, %v688
          %v693 = vadd.f32 %v685, %v689
          %v694 = vadd.f32 %v686, %v690
          %v695 = vpack.c.bf16 %v692, %v691
          %v696 = vpack.c.bf16 %v694, %v693
          %v699 = vunpack.c.l.b16 %v695
          %v700 = vunpack.c.h.b16 %v695
          %v701 = vunpack.c.l.b16 %v696
          %v702 = vunpack.c.h.b16 %v696
          %v703 = vpack.c.b16 %v699, %v699
          %v704 = vpack.c.b16 %v700, %v700
          %v705 = vpack.c.b16 %v701, %v701
          %v706 = vpack.c.b16 %v702, %v702
          %711 = vst [vmem:[%s337] sm:$0xf] %v703
          %712 = vst [vmem:[%s337 + $0x4] sm:$0xf] %v704
          %713 = vst [vmem:[%s337 + $0x8] sm:$0xf] %v705
          %714 = vst [vmem:[%s337 + $0xc] sm:$0xf] %v706
        $region67: #{sam_forward.61} parent=54 // pred_fallthru
          _
        %s715 = smul.u32 4, %s20
        %p716 = scmp.lt.s32.totalorder %s715, 7
        %s717 = scalar_select %p716, %s715, 7
        %p718 = scmp.lt.s32.totalorder %s21, 0
        %s719 = scalar_select %p718, %s21, 0
        %s720 = sadd.s32 %s719, %s717
        %s721 = smul.addr %s720, 4
        %s722 = scalar_lea.vmem %s4, %s721
        // Predicated region
        $region68: #{sam_forward.61} parent=54 // pred_check
          %p723 = pneg %p162
        $region69: #{sam_forward.61} parent=54 // pred_check_branch
          %725 = sbr.rel (%p723) target = $region71
        $region70: #{sam_forward.61} parent=54 // pred_region
          %s726 = smul.u32 4, %s20
        $region71: #{sam_forward.61} parent=54 // pred_fallthru
          _
      $region55: #{sam_forward.61} parent=5 // pred_fallthru
        _
      %p727 = scmp.le.s32.totalorder 2, %s10
      // Predicated region
      $region72: #{sam_forward.61} parent=5 // pred_check
        %p728 = pneg %p727
      $region73: #{sam_forward.61} parent=5 // pred_check_branch
        %730 = sbr.rel (%p728) target = $region75
      $region74: #{sam_forward.61} parent=5 // pred_region
        %s731 = ssub.s32 %s10, 2
        // Predicated region
        $region76: #{sam_forward.61} parent=74 // pred_check
          %p732 = pneg %p168
        $region77: #{sam_forward.61} parent=74 // pred_check_branch
          %734 = sbr.rel (%p732) target = $region79
        $region78: #{sam_forward.61} parent=74 // pred_region
          %s735 = smul.u32 4, %s23
          %p736 = scmp.lt.s32.totalorder %s735, 7
          %s737 = scalar_select %p736, %s735, 7
          %p738 = scmp.lt.s32.totalorder %s24, 0
          %s739 = scalar_select %p738, %s24, 0
          %s740 = sadd.s32 %s739, %s737
          %s741 = smul.addr %s740, 4
          %s742 = scalar_lea.vmem %s4, %s741
        $region79: #{sam_forward.61} parent=74 // pred_fallthru
          _
      $region75: #{sam_forward.61} parent=5 // pred_fallthru
        _
    $region6: #{sam_forward.61} parent=1 // loop_footer
      %s14 = sadd.s32 1, %s10
    $region7: #{sam_forward.61} parent=1 // loop_footer_branch
      %9 = sbr.rel target = $region3
    $region8: #{sam_forward.61} parent=1 // loop_exit
      _

// kernel: sam_forward.64
$region0: #{sam_forward.64}
  #allocation0 [shape = 'u32[]', space=smem, size = 0x4, offset = 0x4, fixed_abs, tag = 'smem constant byte address 0x4 - core index']
  #allocation1 [shape = 'u32[144,128]{1,0:T(1,128)}', space=vmem, size = 0x12000, scoped, tag = 'internal scratch']
  #allocation2 [shape = 'f32[64,128]{1,0:T(8,128)}', space=vmem, size = 0x8000, scoped, tag = 'scratch operand']
  %s0 = inlined_call_operand.vmem [shape: bf16[64,128], index: 0, kind: input, shape index: {}]
  %s1 = inlined_call_operand.vmem [shape: bf16[128,128], index: 1, kind: input, shape index: {}]
  %s2 = inlined_call_operand.vmem [shape: f32[1,128], index: 2, kind: input, shape index: {}]
  %s3 = inlined_call_operand.vmem [shape: bf16[64,128], index: 3, kind: input, shape index: {}]
  %s4 = inlined_call_operand.vmem [shape: bf16[64,128], index: 4, kind: output, shape index: {}]
  %s5 = sld [smem:[#allocation0]]
  $region34: #{sam_forward.64} parent=0
    _
  %s7 = ssub.s32 1, %s5
  %s8 = scalar_select 0, %s7, %s5
  // Predicated region
  $region2: #{sam_forward.64} parent=0 // pred_check
    _
  $region3: #{sam_forward.64} parent=0 // pred_check_branch
    %10 = sbr.rel (0) target = $region5
  $region4: #{sam_forward.64} parent=0 // pred_region
    _
  $region5: #{sam_forward.64} parent=0 // pred_fallthru
    _
  // Predicated region
  $region6: #{sam_forward.64} parent=0 // pred_check
    _
  $region7: #{sam_forward.64} parent=0 // pred_check_branch
    %12 = sbr.rel (0) target = $region9
  $region8: #{sam_forward.64} parent=0 // pred_region
    _
  $region9: #{sam_forward.64} parent=0 // pred_fallthru
    _
  // Predicated region
  $region10: #{sam_forward.64} parent=0 // pred_check
    _
  $region11: #{sam_forward.64} parent=0 // pred_check_branch
    %14 = sbr.rel (0) target = $region13
  $region12: #{sam_forward.64} parent=0 // pred_region
    _
  $region13: #{sam_forward.64} parent=0 // pred_fallthru
    _
  // Predicated region
  $region14: #{sam_forward.64} parent=0 // pred_check
    _
  $region15: #{sam_forward.64} parent=0 // pred_check_branch
    %16 = sbr.rel (0) target = $region17
  $region16: #{sam_forward.64} parent=0 // pred_region
    _
  $region17: #{sam_forward.64} parent=0 // pred_fallthru
    _
  %p18 = scmp.eq.s32.totalorder 0, 0
  // Predicated region
  $region18: #{sam_forward.64} parent=0 // pred_check
    %p19 = pneg %p18
  $region19: #{sam_forward.64} parent=0 // pred_check_branch
    %21 = sbr.rel (%p19) target = $region21
  $region20: #{sam_forward.64} parent=0 // pred_region
    %22 = vst [vmem:[#allocation2] sm:$0xff] 0.0
    %23 = vst [vmem:[#allocation2 + $0x8] sm:$0xff] 0.0
    %24 = vst [vmem:[#allocation2 + $0x10] sm:$0xff] 0.0
    %25 = vst [vmem:[#allocation2 + $0x18] sm:$0xff] 0.0
    %26 = vst [vmem:[#allocation2 + $0x20] sm:$0xff] 0.0
    %27 = vst [vmem:[#allocation2 + $0x28] sm:$0xff] 0.0
    %28 = vst [vmem:[#allocation2 + $0x30] sm:$0xff] 0.0
    %29 = vst [vmem:[#allocation2 + $0x38] sm:$0xff] 0.0
  $region21: #{sam_forward.64} parent=0 // pred_fallthru
    _
  %v30 = vld [vmem:[#allocation2] sm:$0xff]
  %v31 = vld [vmem:[#allocation2 + $0x8] sm:$0xff]
  %v32 = vld [vmem:[#allocation2 + $0x10] sm:$0xff]
  %v33 = vld [vmem:[#allocation2 + $0x18] sm:$0xff]
  %v34 = vld [vmem:[#allocation2 + $0x20] sm:$0xff]
  %v35 = vld [vmem:[#allocation2 + $0x28] sm:$0xff]
  %v36 = vld [vmem:[#allocation2 + $0x30] sm:$0xff]
  %v37 = vld [vmem:[#allocation2 + $0x38] sm:$0xff]
  %v38 = vld [vmem:[%s0] sm:$0xf]
  %v39 = vld [vmem:[%s0 + $0x4] sm:$0xf]
  %v40 = vld [vmem:[%s0 + $0x8] sm:$0xf]
  %v41 = vld [vmem:[%s0 + $0xc] sm:$0xf]
  %v42 = vld [vmem:[%s0 + $0x10] sm:$0xf]
  %v43 = vld [vmem:[%s0 + $0x14] sm:$0xf]
  %v44 = vld [vmem:[%s0 + $0x18] sm:$0xf]
  %v45 = vld [vmem:[%s0 + $0x1c] sm:$0xf]
  %v46 = vld [vmem:[%s1] sm:$0xf]
  %v47 = vld [vmem:[%s1 + $0x4] sm:$0xf]
  %v48 = vld [vmem:[%s1 + $0x8] sm:$0xf]
  %v49 = vld [vmem:[%s1 + $0xc] sm:$0xf]
  %v50 = vld [vmem:[%s1 + $0x10] sm:$0xf]
  %v51 = vld [vmem:[%s1 + $0x14] sm:$0xf]
  %v52 = vld [vmem:[%s1 + $0x18] sm:$0xf]
  %v53 = vld [vmem:[%s1 + $0x1c] sm:$0xf]
  %v54 = vld [vmem:[%s1 + $0x20] sm:$0xf]
  %v55 = vld [vmem:[%s1 + $0x24] sm:$0xf]
  %v56 = vld [vmem:[%s1 + $0x28] sm:$0xf]
  %v57 = vld [vmem:[%s1 + $0x2c] sm:$0xf]
  %v58 = vld [vmem:[%s1 + $0x30] sm:$0xf]
  %v59 = vld [vmem:[%s1 + $0x34] sm:$0xf]
  %v60 = vld [vmem:[%s1 + $0x38] sm:$0xf]
  %v61 = vld [vmem:[%s1 + $0x3c] sm:$0xf]
  %v70 = vunpack.c.l.b16 %v38
  %v71 = vunpack.c.l.b16 %v39
  %v72 = vunpack.c.l.b16 %v40
  %v73 = vunpack.c.l.b16 %v41
  %v74 = vunpack.c.l.b16 %v42
  %v75 = vunpack.c.l.b16 %v43
  %v76 = vunpack.c.l.b16 %v44
  %v77 = vunpack.c.l.b16 %v45
  %v78 = vpack.c.b16 %v71, %v70
  %v79 = vpack.c.b16 %v73, %v72
  %v80 = vpack.c.b16 %v75, %v74
  %v81 = vpack.c.b16 %v77, %v76
  %v102 = vunpack.c.l.b16 %v46
  %v103 = vunpack.c.l.b16 %v47
  %v104 = vunpack.c.l.b16 %v48
  %v105 = vunpack.c.l.b16 %v49
  %v106 = vunpack.c.l.b16 %v50
  %v107 = vunpack.c.l.b16 %v51
  %v108 = vunpack.c.l.b16 %v52
  %v109 = vunpack.c.l.b16 %v53
  %v110 = vunpack.c.l.b16 %v54
  %v111 = vunpack.c.l.b16 %v55
  %v112 = vunpack.c.l.b16 %v56
  %v113 = vunpack.c.l.b16 %v57
  %v114 = vunpack.c.l.b16 %v58
  %v115 = vunpack.c.l.b16 %v59
  %v116 = vunpack.c.l.b16 %v60
  %v117 = vunpack.c.l.b16 %v61
  %v118 = vpack.c.b16 %v103, %v102
  %v119 = vpack.c.b16 %v105, %v104
  %v120 = vpack.c.b16 %v107, %v106
  %v121 = vpack.c.b16 %v109, %v108
  %v122 = vpack.c.b16 %v111, %v110
  %v123 = vpack.c.b16 %v113, %v112
  %v124 = vpack.c.b16 %v115, %v114
  %v125 = vpack.c.b16 %v117, %v116
  %134 = vmatprep.subr.bf16.mxu0 0
  %135 = vmatpush1.bf16.msra.mxu0 %v118
  %136 = vmatprep.subr.bf16.mxu0 0
  %137 = vmatpush1.bf16.msra.mxu0 %v119
  %138 = vmatprep.subr.bf16.mxu0 0
  %139 = vmatpush1.bf16.msra.mxu0 %v120
  %140 = vmatprep.subr.bf16.mxu0 0
  %141 = vmatpush1.bf16.msra.mxu0 %v121
  %142 = vmatprep.subr.bf16.mxu0 0
  %143 = vmatpush1.bf16.msra.mxu0 %v122
  %144 = vmatprep.subr.bf16.mxu0 0
  %145 = vmatpush1.bf16.msra.mxu0 %v123
  %146 = vmatprep.subr.bf16.mxu0 0
  %147 = vmatpush1.bf16.msra.mxu0 %v124
  %148 = vmatprep.subr.bf16.mxu0 0
  %149 = vmatpush1.bf16.msra.mxu0 %v125
  %150 = vmatprep.subr.bf16.mxu0 0
  %151 = vmatpush1.bf16.msra.mxu0 0
  %152 = vmatprep.subr.bf16.mxu0 0
  %153 = vmatpush1.bf16.msra.mxu0 0
  %154 = vmatprep.subr.bf16.mxu0 0
  %155 = vmatpush1.bf16.msra.mxu0 0
  %156 = vmatprep.subr.bf16.mxu0 0
  %157 = vmatpush1.bf16.msra.mxu0 0
  %158 = vmatprep.subr.bf16.mxu0 0
  %159 = vmatpush1.bf16.msra.mxu0 0
  %160 = vmatprep.subr.bf16.mxu0 0
  %161 = vmatpush1.bf16.msra.mxu0 0
  %162 = vmatprep.subr.bf16.mxu0 0
  %163 = vmatpush1.bf16.msra.mxu0 0
  %164 = vmatprep.subr.bf16.mxu0 0
  %165 = vmatpush1.bf16.msra.mxu0 0
  %166 = vmatprep.mubr.bf16.mxu0 0
  %167 = vmatmul.mubr.bf16.gmra.mrb[0].mxu0 %v78
  %v168 = vpop.f32.mrb[0].mxu0
  %v169 = vadd.f32 0.0, %v168
  %v170 = vpop.f32.mrb[0].mxu0
  %v171 = vpop.f32.mrb[0].mxu0
  %v172 = vadd.f32 0.0, %v171
  %v173 = vpop.f32.mrb[0].mxu0
  %174 = vmatprep.mubr.bf16.mxu0 0
  %175 = vmatmul.mubr.bf16.gmra.mrb[0].mxu0 %v79
  %v176 = vpop.f32.mrb[0].mxu0
  %v177 = vadd.f32 0.0, %v176
  %v178 = vpop.f32.mrb[0].mxu0
  %v179 = vpop.f32.mrb[0].mxu0
  %v180 = vadd.f32 0.0, %v179
  %v181 = vpop.f32.mrb[0].mxu0
  %182 = vmatprep.mubr.bf16.mxu0 0
  %183 = vmatmul.mubr.bf16.gmra.mrb[0].mxu0 %v80
  %v184 = vpop.f32.mrb[0].mxu0
  %v185 = vadd.f32 0.0, %v184
  %v186 = vpop.f32.mrb[0].mxu0
  %v187 = vpop.f32.mrb[0].mxu0
  %v188 = vadd.f32 0.0, %v187
  %v189 = vpop.f32.mrb[0].mxu0
  %190 = vmatprep.mubr.bf16.mxu0 0
  %191 = vmatmul.mubr.bf16.gmra.mrb[0].mxu0 %v81
  %v192 = vpop.f32.mrb[0].mxu0
  %v193 = vadd.f32 0.0, %v192
  %v194 = vpop.f32.mrb[0].mxu0
  %v195 = vpop.f32.mrb[0].mxu0
  %v196 = vadd.f32 0.0, %v195
  %v197 = vpop.f32.mrb[0].mxu0
  %198 = vdwg.mxu0
  %v199 = vadd.f32 %v30, %v169
  %v200 = vadd.f32 %v31, %v172
  %v201 = vadd.f32 %v32, %v177
  %v202 = vadd.f32 %v33, %v180
  %v203 = vadd.f32 %v34, %v185
  %v204 = vadd.f32 %v35, %v188
  %v205 = vadd.f32 %v36, %v193
  %v206 = vadd.f32 %v37, %v196
  %207 = vst [vmem:[#allocation2] sm:$0xff] %v199
  %208 = vst [vmem:[#allocation2 + $0x8] sm:$0xff] %v200
  %209 = vst [vmem:[#allocation2 + $0x10] sm:$0xff] %v201
  %210 = vst [vmem:[#allocation2 + $0x18] sm:$0xff] %v202
  %211 = vst [vmem:[#allocation2 + $0x20] sm:$0xff] %v203
  %212 = vst [vmem:[#allocation2 + $0x28] sm:$0xff] %v204
  %213 = vst [vmem:[#allocation2 + $0x30] sm:$0xff] %v205
  %214 = vst [vmem:[#allocation2 + $0x38] sm:$0xff] %v206
  // Predicated region
  $region22: #{sam_forward.64} parent=0 // pred_check
    %p215 = pneg %p18
  $region23: #{sam_forward.64} parent=0 // pred_check_branch
    %217 = sbr.rel (%p215) target = $region25
  $region24: #{sam_forward.64} parent=0 // pred_region
    %v218 = vld [vmem:[#allocation2] sm:$0xff]
    %v219 = vld [vmem:[#allocation2 + $0x8] sm:$0xff]
    %v220 = vld [vmem:[#allocation2 + $0x10] sm:$0xff]
    %v221 = vld [vmem:[#allocation2 + $0x18] sm:$0xff]
    %v222 = vld [vmem:[#allocation2 + $0x20] sm:$0xff]
    %v223 = vld [vmem:[#allocation2 + $0x28] sm:$0xff]
    %v224 = vld [vmem:[#allocation2 + $0x30] sm:$0xff]
    %v225 = vld [vmem:[#allocation2 + $0x38] sm:$0xff]
    %v226 = vld [vmem:[%s2] sm:$0x1]
    %v228 = vlaneseq
    %v229 = vshrl.u32 %v228, 7
    %v230 = vsub.s32 0, %v229
    %v231 = vrot.slane %v226, %v230
    %v233 = vadd.f32 %v218, %v231
    %v234 = vadd.f32 %v219, %v231
    %v235 = vadd.f32 %v220, %v231
    %v236 = vadd.f32 %v221, %v231
    %v237 = vadd.f32 %v222, %v231
    %v238 = vadd.f32 %v223, %v231
    %v239 = vadd.f32 %v224, %v231
    %v240 = vadd.f32 %v225, %v231
    %v241 = vld [vmem:[%s3] sm:$0xf]
    %v242 = vld [vmem:[%s3 + $0x4] sm:$0xf]
    %v243 = vld [vmem:[%s3 + $0x8] sm:$0xf]
    %v244 = vld [vmem:[%s3 + $0xc] sm:$0xf]
    %v245 = vld [vmem:[%s3 + $0x10] sm:$0xf]
    %v246 = vld [vmem:[%s3 + $0x14] sm:$0xf]
    %v247 = vld [vmem:[%s3 + $0x18] sm:$0xf]
    %v248 = vld [vmem:[%s3 + $0x1c] sm:$0xf]
    %v249 = vunpack.c.l.bf16 %v241
    %v250 = vunpack.c.l.bf16 %v242
    %v251 = vunpack.c.l.bf16 %v243
    %v252 = vunpack.c.l.bf16 %v244
    %v253 = vunpack.c.l.bf16 %v245
    %v254 = vunpack.c.l.bf16 %v246
    %v255 = vunpack.c.l.bf16 %v247
    %v256 = vunpack.c.l.bf16 %v248
    %v257 = vadd.f32 %v233, %v249
    %v258 = vadd.f32 %v234, %v250
    %v259 = vadd.f32 %v235, %v251
    %v260 = vadd.f32 %v236, %v252
    %v261 = vadd.f32 %v237, %v253
    %v262 = vadd.f32 %v238, %v254
    %v263 = vadd.f32 %v239, %v255
    %v264 = vadd.f32 %v240, %v256
    %v265 = vpack.c.bf16 %v258, %v257
    %v266 = vpack.c.bf16 %v260, %v259
    %v267 = vpack.c.bf16 %v262, %v261
    %v268 = vpack.c.bf16 %v264, %v263
    %v273 = vunpack.c.l.b16 %v265
    %v274 = vunpack.c.h.b16 %v265
    %v275 = vunpack.c.l.b16 %v266
    %v276 = vunpack.c.h.b16 %v266
    %v277 = vunpack.c.l.b16 %v267
    %v278 = vunpack.c.h.b16 %v267
    %v279 = vunpack.c.l.b16 %v268
    %v280 = vunpack.c.h.b16 %v268
    %v281 = vpack.c.b16 %v273, %v273
    %v282 = vpack.c.b16 %v274, %v274
    %v283 = vpack.c.b16 %v275, %v275
    %v284 = vpack.c.b16 %v276, %v276
    %v285 = vpack.c.b16 %v277, %v277
    %v286 = vpack.c.b16 %v278, %v278
    %v287 = vpack.c.b16 %v279, %v279
    %v288 = vpack.c.b16 %v280, %v280
    %297 = vst [vmem:[%s4] sm:$0xf] %v281
    %298 = vst [vmem:[%s4 + $0x4] sm:$0xf] %v282
    %299 = vst [vmem:[%s4 + $0x8] sm:$0xf] %v283
    %300 = vst [vmem:[%s4 + $0xc] sm:$0xf] %v284
    %301 = vst [vmem:[%s4 + $0x10] sm:$0xf] %v285
    %302 = vst [vmem:[%s4 + $0x14] sm:$0xf] %v286
    %303 = vst [vmem:[%s4 + $0x18] sm:$0xf] %v287
    %304 = vst [vmem:[%s4 + $0x1c] sm:$0xf] %v288
  $region25: #{sam_forward.64} parent=0 // pred_fallthru
    _
  // Predicated region
  $region26: #{sam_forward.64} parent=0 // pred_check
    _
  $region27: #{sam_forward.64} parent=0 // pred_check_branch
    %306 = sbr.rel (0) target = $region29
  $region28: #{sam_forward.64} parent=0 // pred_region
    _
  $region29: #{sam_forward.64} parent=0 // pred_fallthru
    _
  // Predicated region
  $region30: #{sam_forward.64} parent=0 // pred_check
    _
  $region31: #{sam_forward.64} parent=0 // pred_check_branch
    %308 = sbr.rel (0) target = $region33
  $region32: #{sam_forward.64} parent=0 // pred_region
    _
  $region33: #{sam_forward.64} parent=0 // pred_fallthru
    _

// kernel: sam_forward.62
$region0: #{sam_forward.62}
  #allocation0 [shape = 'u32[]', space=smem, size = 0x4, offset = 0x4, fixed_abs, tag = 'smem constant byte address 0x4 - core index']
  #allocation1 [shape = 'u32[144,128]{1,0:T(1,128)}', space=vmem, size = 0x12000, scoped, tag = 'internal scratch']
  %s0 = inlined_call_operand.vmem [shape: bf16[64,128], index: 0, kind: input, shape index: {}]
  %s1 = inlined_call_operand.vmem [shape: f32[1,128], index: 1, kind: input, shape index: {}]
  %s2 = inlined_call_operand.vmem [shape: f32[1,128], index: 2, kind: input, shape index: {}]
  %s3 = inlined_call_operand.vmem [shape: bf16[128,384], index: 3, kind: input, shape index: {}]
  %s4 = inlined_call_operand.vmem [shape: f32[1,384], index: 4, kind: input, shape index: {}]
  %s5 = inlined_call_operand.vmem [shape: bf16[3,4,64,32], index: 5, kind: output, shape index: {}]
  %s6 = sld [smem:[#allocation0]]
  $region30: #{sam_forward.62} parent=0
    _
  %s8 = ssub.s32 1, %s6
  %s9 = scalar_select 0, %s8, %s6
  // Predicated region
  $region2: #{sam_forward.62} parent=0 // pred_check
    _
  $region3: #{sam_forward.62} parent=0 // pred_check_branch
    %11 = sbr.rel (0) target = $region5
  $region4: #{sam_forward.62} parent=0 // pred_region
    _
  $region5: #{sam_forward.62} parent=0 // pred_fallthru
    _
  // Predicated region
  $region6: #{sam_forward.62} parent=0 // pred_check
    _
  $region7: #{sam_forward.62} parent=0 // pred_check_branch
    %13 = sbr.rel (0) target = $region9
  $region8: #{sam_forward.62} parent=0 // pred_region
    _
  $region9: #{sam_forward.62} parent=0 // pred_fallthru
    _
  // Predicated region
  $region10: #{sam_forward.62} parent=0 // pred_check
    _
  $region11: #{sam_forward.62} parent=0 // pred_check_branch
    %15 = sbr.rel (0) target = $region13
  $region12: #{sam_forward.62} parent=0 // pred_region
    _
  $region13: #{sam_forward.62} parent=0 // pred_fallthru
    _
  // Predicated region
  $region14: #{sam_forward.62} parent=0 // pred_check
    _
  $region15: #{sam_forward.62} parent=0 // pred_check_branch
    %17 = sbr.rel (0) target = $region17
  $region16: #{sam_forward.62} parent=0 // pred_region
    _
  $region17: #{sam_forward.62} parent=0 // pred_fallthru
    _
  // Predicated region
  $region18: #{sam_forward.62} parent=0 // pred_check
    _
  $region19: #{sam_forward.62} parent=0 // pred_check_branch
    %19 = sbr.rel (0) target = $region21
  $region20: #{sam_forward.62} parent=0 // pred_region
    _
  $region21: #{sam_forward.62} parent=0 // pred_fallthru
    _
  %v21 = vld [vmem:[%s0] sm:$0xf]
  %v22 = vld [vmem:[%s0 + $0x4] sm:$0xf]
  %v23 = vld [vmem:[%s0 + $0x8] sm:$0xf]
  %v24 = vld [vmem:[%s0 + $0xc] sm:$0xf]
  %v25 = vld [vmem:[%s0 + $0x10] sm:$0xf]
  %v26 = vld [vmem:[%s0 + $0x14] sm:$0xf]
  %v27 = vld [vmem:[%s0 + $0x18] sm:$0xf]
  %v28 = vld [vmem:[%s0 + $0x1c] sm:$0xf]
  %v29 = vunpack.c.l.bf16 %v21
  %v30 = vunpack.c.l.bf16 %v22
  %v31 = vunpack.c.l.bf16 %v23
  %v32 = vunpack.c.l.bf16 %v24
  %v33 = vunpack.c.l.bf16 %v25
  %v34 = vunpack.c.l.bf16 %v26
  %v35 = vunpack.c.l.bf16 %v27
  %v36 = vunpack.c.l.bf16 %v28
  %37 = vadd.xlane.f32.xlu0 %v29
  %v38 = vpop.xlane.xlu0 %37
  %39 = vadd.xlane.f32.xlu0 %v30
  %v40 = vpop.xlane.xlu0 %39
  %41 = vadd.xlane.f32.xlu0 %v31
  %v42 = vpop.xlane.xlu0 %41
  %43 = vadd.xlane.f32.xlu0 %v32
  %v44 = vpop.xlane.xlu0 %43
  %45 = vadd.xlane.f32.xlu0 %v33
  %v46 = vpop.xlane.xlu0 %45
  %47 = vadd.xlane.f32.xlu0 %v34
  %v48 = vpop.xlane.xlu0 %47
  %49 = vadd.xlane.f32.xlu0 %v35
  %v50 = vpop.xlane.xlu0 %49
  %51 = vadd.xlane.f32.xlu0 %v36
  %v52 = vpop.xlane.xlu0 %51
  %v53 = vrcp.pop 128.0
  %v54 = vmul.f32 %v38, %v53
  %v55 = vmul.f32 %v40, %v53
  %v56 = vmul.f32 %v42, %v53
  %v57 = vmul.f32 %v44, %v53
  %v58 = vmul.f32 %v46, %v53
  %v59 = vmul.f32 %v48, %v53
  %v60 = vmul.f32 %v50, %v53
  %v61 = vmul.f32 %v52, %v53
  %v62 = vsub.f32 %v29, %v54
  %v63 = vsub.f32 %v30, %v55
  %v64 = vsub.f32 %v31, %v56
  %v65 = vsub.f32 %v32, %v57
  %v66 = vsub.f32 %v33, %v58
  %v67 = vsub.f32 %v34, %v59
  %v68 = vsub.f32 %v35, %v60
  %v69 = vsub.f32 %v36, %v61
  %v70 = vmul.f32 %v62, %v62
  %v71 = vmul.f32 %v63, %v63
  %v72 = vmul.f32 %v64, %v64
  %v73 = vmul.f32 %v65, %v65
  %v74 = vmul.f32 %v66, %v66
  %v75 = vmul.f32 %v67, %v67
  %v76 = vmul.f32 %v68, %v68
  %v77 = vmul.f32 %v69, %v69
  %78 = vadd.xlane.f32.xlu0 %v70
  %v79 = vpop.xlane.xlu0 %78
  %80 = vadd.xlane.f32.xlu0 %v71
  %v81 = vpop.xlane.xlu0 %80
  %82 = vadd.xlane.f32.xlu0 %v72
  %v83 = vpop.xlane.xlu0 %82
  %84 = vadd.xlane.f32.xlu0 %v73
  %v85 = vpop.xlane.xlu0 %84
  %86 = vadd.xlane.f32.xlu0 %v74
  %v87 = vpop.xlane.xlu0 %86
  %88 = vadd.xlane.f32.xlu0 %v75
  %v89 = vpop.xlane.xlu0 %88
  %90 = vadd.xlane.f32.xlu0 %v76
  %v91 = vpop.xlane.xlu0 %90
  %92 = vadd.xlane.f32.xlu0 %v77
  %v93 = vpop.xlane.xlu0 %92
  %v94 = vmul.f32 %v79, %v53
  %v95 = vmul.f32 %v81, %v53
  %v96 = vmul.f32 %v83, %v53
  %v97 = vmul.f32 %v85, %v53
  %v98 = vmul.f32 %v87, %v53
  %v99 = vmul.f32 %v89, %v53
  %v100 = vmul.f32 %v91, %v53
  %v101 = vmul.f32 %v93, %v53
  %v102 = vadd.f32 %v94, 1e-06
  %v103 = vadd.f32 %v95, 1e-06
  %v104 = vadd.f32 %v96, 1e-06
  %v105 = vadd.f32 %v97, 1e-06
  %v106 = vadd.f32 %v98, 1e-06
  %v107 = vadd.f32 %v99, 1e-06
  %v108 = vadd.f32 %v100, 1e-06
  %v109 = vadd.f32 %v101, 1e-06
  %v110 = vrsqrt.pop %v102
  %v111 = vrsqrt.pop %v103
  %v112 = vrsqrt.pop %v104
  %v113 = vrsqrt.pop %v105
  %v114 = vrsqrt.pop %v106
  %v115 = vrsqrt.pop %v107
  %v116 = vrsqrt.pop %v108
  %v117 = vrsqrt.pop %v109
  %v118 = vmul.f32 %v62, %v110
  %v119 = vmul.f32 %v63, %v111
  %v120 = vmul.f32 %v64, %v112
  %v121 = vmul.f32 %v65, %v113
  %v122 = vmul.f32 %v66, %v114
  %v123 = vmul.f32 %v67, %v115
  %v124 = vmul.f32 %v68, %v116
  %v125 = vmul.f32 %v69, %v117
  %v126 = vld [vmem:[%s1] sm:$0x1]
  %v128 = vlaneseq
  %v129 = vshrl.u32 %v128, 7
  %v130 = vsub.s32 0, %v129
  %v131 = vrot.slane %v126, %v130
  %v133 = vmul.f32 %v118, %v131
  %v134 = vmul.f32 %v119, %v131
  %v135 = vmul.f32 %v120, %v131
  %v136 = vmul.f32 %v121, %v131
  %v137 = vmul.f32 %v122, %v131
  %v138 = vmul.f32 %v123, %v131
  %v139 = vmul.f32 %v124, %v131
  %v140 = vmul.f32 %v125, %v131
  %v141 = vld [vmem:[%s2] sm:$0x1]
  %v143 = vlaneseq
  %v144 = vshrl.u32 %v143, 7
  %v145 = vsub.s32 0, %v144
  %v146 = vrot.slane %v141, %v145
  %v148 = vadd.f32 %v133, %v146
  %v149 = vadd.f32 %v134, %v146
  %v150 = vadd.f32 %v135, %v146
  %v151 = vadd.f32 %v136, %v146
  %v152 = vadd.f32 %v137, %v146
  %v153 = vadd.f32 %v138, %v146
  %v154 = vadd.f32 %v139, %v146
  %v155 = vadd.f32 %v140, %v146
  %v156 = vpack.c.bf16 %v149, %v148
  %v157 = vpack.c.bf16 %v151, %v150
  %v158 = vpack.c.bf16 %v153, %v152
  %v159 = vpack.c.bf16 %v155, %v154
  %v160 = vld [vmem:[%s3] sm:$0xff]
  %v161 = vld [vmem:[%s3 + $0x8] sm:$0xf]
  %v162 = vld [vmem:[%s3 + $0xc] sm:$0xff]
  %v163 = vld [vmem:[%s3 + $0x14] sm:$0xf]
  %v164 = vld [vmem:[%s3 + $0x18] sm:$0xff]
  %v165 = vld [vmem:[%s3 + $0x20] sm:$0xf]
  %v166 = vld [vmem:[%s3 + $0x24] sm:$0xff]
  %v167 = vld [vmem:[%s3 + $0x2c] sm:$0xf]
  %v168 = vld [vmem:[%s3 + $0x30] sm:$0xff]
  %v169 = vld [vmem:[%s3 + $0x38] sm:$0xf]
  %v170 = vld [vmem:[%s3 + $0x3c] sm:$0xff]
  %v171 = vld [vmem:[%s3 + $0x44] sm:$0xf]
  %v172 = vld [vmem:[%s3 + $0x48] sm:$0xff]
  %v173 = vld [vmem:[%s3 + $0x50] sm:$0xf]
  %v174 = vld [vmem:[%s3 + $0x54] sm:$0xff]
  %v175 = vld [vmem:[%s3 + $0x5c] sm:$0xf]
  %v176 = vld [vmem:[%s3 + $0x60] sm:$0xff]
  %v177 = vld [vmem:[%s3 + $0x68] sm:$0xf]
  %v178 = vld [vmem:[%s3 + $0x6c] sm:$0xff]
  %v179 = vld [vmem:[%s3 + $0x74] sm:$0xf]
  %v180 = vld [vmem:[%s3 + $0x78] sm:$0xff]
  %v181 = vld [vmem:[%s3 + $0x80] sm:$0xf]
  %v182 = vld [vmem:[%s3 + $0x84] sm:$0xff]
  %v183 = vld [vmem:[%s3 + $0x8c] sm:$0xf]
  %v184 = vld [vmem:[%s3 + $0x90] sm:$0xff]
  %v185 = vld [vmem:[%s3 + $0x98] sm:$0xf]
  %v186 = vld [vmem:[%s3 + $0x9c] sm:$0xff]
  %v187 = vld [vmem:[%s3 + $0xa4] sm:$0xf]
  %v188 = vld [vmem:[%s3 + $0xa8] sm:$0xff]
  %v189 = vld [vmem:[%s3 + $0xb0] sm:$0xf]
  %v190 = vld [vmem:[%s3 + $0xb4] sm:$0xff]
  %v191 = vld [vmem:[%s3 + $0xbc] sm:$0xf]
  %v192 = vld [vmem:[%s4] sm:$0x7]
  %v194 = vlaneseq
  %v195 = vshrl.u32 %v194, 7
  %v196 = vsub.s32 0, %v195
  %v197 = vrot.slane %v192, %v196
  %v198 = vlaneseq
  %v199 = vshrl.u32 %v198, 7
  %v200 = vsub.s32 1, %v199
  %v201 = vrot.slane %v192, %v200
  %v202 = vlaneseq
  %v203 = vshrl.u32 %v202, 7
  %v204 = vsub.s32 2, %v203
  %v205 = vrot.slane %v192, %v204
  %v241 = vunpack.c.l.b16 %v160
  %v242 = vunpack.c.h.b16 %v160
  %v243 = vunpack.c.l.b16 %v161
  %v244 = vunpack.c.l.b16 %v162
  %v245 = vunpack.c.h.b16 %v162
  %v246 = vunpack.c.l.b16 %v163
  %v247 = vunpack.c.l.b16 %v164
  %v248 = vunpack.c.h.b16 %v164
  %v249 = vunpack.c.l.b16 %v165
  %v250 = vunpack.c.l.b16 %v166
  %v251 = vunpack.c.h.b16 %v166
  %v252 = vunpack.c.l.b16 %v167
  %v253 = vunpack.c.l.b16 %v168
  %v254 = vunpack.c.h.b16 %v168
  %v255 = vunpack.c.l.b16 %v169
  %v256 = vunpack.c.l.b16 %v170
  %v257 = vunpack.c.h.b16 %v170
  %v258 = vunpack.c.l.b16 %v171
  %v259 = vunpack.c.l.b16 %v172
  %v260 = vunpack.c.h.b16 %v172
  %v261 = vunpack.c.l.b16 %v173
  %v262 = vunpack.c.l.b16 %v174
  %v263 = vunpack.c.h.b16 %v174
  %v264 = vunpack.c.l.b16 %v175
  %v265 = vunpack.c.l.b16 %v176
  %v266 = vunpack.c.h.b16 %v176
  %v267 = vunpack.c.l.b16 %v177
  %v268 = vunpack.c.l.b16 %v178
  %v269 = vunpack.c.h.b16 %v178
  %v270 = vunpack.c.l.b16 %v179
  %v271 = vunpack.c.l.b16 %v180
  %v272 = vunpack.c.h.b16 %v180
  %v273 = vunpack.c.l.b16 %v181
  %v274 = vunpack.c.l.b16 %v182
  %v275 = vunpack.c.h.b16 %v182
  %v276 = vunpack.c.l.b16 %v183
  %v277 = vunpack.c.l.b16 %v184
  %v278 = vunpack.c.h.b16 %v184
  %v279 = vunpack.c.l.b16 %v185
  %v280 = vunpack.c.l.b16 %v186
  %v281 = vunpack.c.h.b16 %v186
  %v282 = vunpack.c.l.b16 %v187
  %v283 = vunpack.c.l.b16 %v188
  %v284 = vunpack.c.h.b16 %v188
  %v285 = vunpack.c.l.b16 %v189
  %v286 = vunpack.c.l.b16 %v190
  %v287 = vunpack.c.h.b16 %v190
  %v288 = vunpack.c.l.b16 %v191
  %v289 = vpack.c.b16 %v244, %v241
  %v290 = vpack.c.b16 %v245, %v242
  %v291 = vpack.c.b16 %v246, %v243
  %v292 = vpack.c.b16 %v250, %v247
  %v293 = vpack.c.b16 %v251, %v248
  %v294 = vpack.c.b16 %v252, %v249
  %v295 = vpack.c.b16 %v256, %v253
  %v296 = vpack.c.b16 %v257, %v254
  %v297 = vpack.c.b16 %v258, %v255
  %v298 = vpack.c.b16 %v262, %v259
  %v299 = vpack.c.b16 %v263, %v260
  %v300 = vpack.c.b16 %v264, %v261
  %v301 = vpack.c.b16 %v268, %v265
  %v302 = vpack.c.b16 %v269, %v266
  %v303 = vpack.c.b16 %v270, %v267
  %v304 = vpack.c.b16 %v274, %v271
  %v305 = vpack.c.b16 %v275, %v272
  %v306 = vpack.c.b16 %v276, %v273
  %v307 = vpack.c.b16 %v280, %v277
  %v308 = vpack.c.b16 %v281, %v278
  %v309 = vpack.c.b16 %v282, %v279
  %v310 = vpack.c.b16 %v286, %v283
  %v311 = vpack.c.b16 %v287, %v284
  %v312 = vpack.c.b16 %v288, %v285
  %337 = vmatprep.subr.bf16.mxu0 %v290
  %338 = vmatpush1.bf16.msra.mxu0 %v289
  %339 = vmatprep.subr.bf16.mxu0 %v293
  %340 = vmatpush1.bf16.msra.mxu0 %v292
  %341 = vmatprep.subr.bf16.mxu0 %v296
  %342 = vmatpush1.bf16.msra.mxu0 %v295
  %343 = vmatprep.subr.bf16.mxu0 %v299
  %344 = vmatpush1.bf16.msra.mxu0 %v298
  %345 = vmatprep.subr.bf16.mxu0 %v302
  %346 = vmatpush1.bf16.msra.mxu0 %v301
  %347 = vmatprep.subr.bf16.mxu0 %v305
  %348 = vmatpush1.bf16.msra.mxu0 %v304
  %349 = vmatprep.subr.bf16.mxu0 %v308
  %350 = vmatpush1.bf16.msra.mxu0 %v307
  %351 = vmatprep.subr.bf16.mxu0 %v311
  %352 = vmatpush1.bf16.msra.mxu0 %v310
  %353 = vmatprep.subr.bf16.mxu0 0
  %354 = vmatpush1.bf16.msra.mxu0 0
  %355 = vmatprep.subr.bf16.mxu0 0
  %356 = vmatpush1.bf16.msra.mxu0 0
  %357 = vmatprep.subr.bf16.mxu0 0
  %358 = vmatpush1.bf16.msra.mxu0 0
  %359 = vmatprep.subr.bf16.mxu0 0
  %360 = vmatpush1.bf16.msra.mxu0 0
  %361 = vmatprep.subr.bf16.mxu0 0
  %362 = vmatpush1.bf16.msra.mxu0 0
  %363 = vmatprep.subr.bf16.mxu0 0
  %364 = vmatpush1.bf16.msra.mxu0 0
  %365 = vmatprep.subr.bf16.mxu0 0
  %366 = vmatpush1.bf16.msra.mxu0 0
  %367 = vmatprep.subr.bf16.mxu0 0
  %368 = vmatpush1.bf16.msra.mxu0 0
  %369 = vmatprep.mubr.bf16.mxu0 0
  %370 = vmatmul.mubr.bf16.gmra.mrb[0].mxu0 %v156
  %v371 = vpop.f32.mrb[0].mxu0
  %v372 = vadd.f32 %v197, %v371
  %v373 = vpop.f32.mrb[0].mxu0
  %v374 = vadd.f32 %v201, %v373
  %v375 = vpop.f32.mrb[0].mxu0
  %v376 = vadd.f32 %v197, %v375
  %v377 = vpop.f32.mrb[0].mxu0
  %v378 = vadd.f32 %v201, %v377
  %379 = vmatprep.mubr.bf16.mxu0 0
  %380 = vmatmul.mubr.bf16.gmra.mrb[0].mxu0 %v157
  %v381 = vpop.f32.mrb[0].mxu0
  %v382 = vadd.f32 %v197, %v381
  %v383 = vpop.f32.mrb[0].mxu0
  %v384 = vadd.f32 %v201, %v383
  %v385 = vpop.f32.mrb[0].mxu0
  %v386 = vadd.f32 %v197, %v385
  %v387 = vpop.f32.mrb[0].mxu0
  %v388 = vadd.f32 %v201, %v387
  %389 = vmatprep.mubr.bf16.mxu0 0
  %390 = vmatmul.mubr.bf16.gmra.mrb[0].mxu0 %v158
  %v391 = vpop.f32.mrb[0].mxu0
  %v392 = vadd.f32 %v197, %v391
  %v393 = vpop.f32.mrb[0].mxu0
  %v394 = vadd.f32 %v201, %v393
  %v395 = vpop.f32.mrb[0].mxu0
  %v396 = vadd.f32 %v197, %v395
  %v397 = vpop.f32.mrb[0].mxu0
  %v398 = vadd.f32 %v201, %v397
  %399 = vmatprep.mubr.bf16.mxu0 0
  %400 = vmatmul.mubr.bf16.gmra.mrb[0].mxu0 %v159
  %v401 = vpop.f32.mrb[0].mxu0
  %v402 = vadd.f32 %v197, %v401
  %v403 = vpop.f32.mrb[0].mxu0
  %v404 = vadd.f32 %v201, %v403
  %v405 = vpop.f32.mrb[0].mxu0
  %v406 = vadd.f32 %v197, %v405
  %v407 = vpop.f32.mrb[0].mxu0
  %v408 = vadd.f32 %v201, %v407
  %409 = vdwg.mxu0
  %410 = vmatprep.subr.bf16.mxu0 0
  %411 = vmatpush1.bf16.msra.mxu0 %v291
  %412 = vmatprep.subr.bf16.mxu0 0
  %413 = vmatpush1.bf16.msra.mxu0 %v294
  %414 = vmatprep.subr.bf16.mxu0 0
  %415 = vmatpush1.bf16.msra.mxu0 %v297
  %416 = vmatprep.subr.bf16.mxu0 0
  %417 = vmatpush1.bf16.msra.mxu0 %v300
  %418 = vmatprep.subr.bf16.mxu0 0
  %419 = vmatpush1.bf16.msra.mxu0 %v303
  %420 = vmatprep.subr.bf16.mxu0 0
  %421 = vmatpush1.bf16.msra.mxu0 %v306
  %422 = vmatprep.subr.bf16.mxu0 0
  %423 = vmatpush1.bf16.msra.mxu0 %v309
  %424 = vmatprep.subr.bf16.mxu0 0
  %425 = vmatpush1.bf16.msra.mxu0 %v312
  %426 = vmatprep.subr.bf16.mxu0 0
  %427 = vmatpush1.bf16.msra.mxu0 0
  %428 = vmatprep.subr.bf16.mxu0 0
  %429 = vmatpush1.bf16.msra.mxu0 0
  %430 = vmatprep.subr.bf16.mxu0 0
  %431 = vmatpush1.bf16.msra.mxu0 0
  %432 = vmatprep.subr.bf16.mxu0 0
  %433 = vmatpush1.bf16.msra.mxu0 0
  %434 = vmatprep.subr.bf16.mxu0 0
  %435 = vmatpush1.bf16.msra.mxu0 0
  %436 = vmatprep.subr.bf16.mxu0 0
  %437 = vmatpush1.bf16.msra.mxu0 0
  %438 = vmatprep.subr.bf16.mxu0 0
  %439 = vmatpush1.bf16.msra.mxu0 0
  %440 = vmatprep.subr.bf16.mxu0 0
  %441 = vmatpush1.bf16.msra.mxu0 0
  %442 = vmatprep.mubr.bf16.mxu0 0
  %443 = vmatmul.mubr.bf16.gmra.mrb[0].mxu0 %v156
  %v444 = vpop.f32.mrb[0].mxu0
  %v445 = vadd.f32 %v205, %v444
  %v446 = vpop.f32.mrb[0].mxu0
  %v447 = vpop.f32.mrb[0].mxu0
  %v448 = vadd.f32 %v205, %v447
  %v449 = vpop.f32.mrb[0].mxu0
  %450 = vmatprep.mubr.bf16.mxu0 0
  %451 = vmatmul.mubr.bf16.gmra.mrb[0].mxu0 %v157
  %v452 = vpop.f32.mrb[0].mxu0
  %v453 = vadd.f32 %v205, %v452
  %v454 = vpop.f32.mrb[0].mxu0
  %v455 = vpop.f32.mrb[0].mxu0
  %v456 = vadd.f32 %v205, %v455
  %v457 = vpop.f32.mrb[0].mxu0
  %458 = vmatprep.mubr.bf16.mxu0 0
  %459 = vmatmul.mubr.bf16.gmra.mrb[0].mxu0 %v158
  %v460 = vpop.f32.mrb[0].mxu0
  %v461 = vadd.f32 %v205, %v460
  %v462 = vpop.f32.mrb[0].mxu0
  %v463 = vpop.f32.mrb[0].mxu0
  %v464 = vadd.f32 %v205, %v463
  %v465 = vpop.f32.mrb[0].mxu0
  %466 = vmatprep.mubr.bf16.mxu0 0
  %467 = vmatmul.mubr.bf16.gmra.mrb[0].mxu0 %v159
  %v468 = vpop.f32.mrb[0].mxu0
  %v469 = vadd.f32 %v205, %v468
  %v470 = vpop.f32.mrb[0].mxu0
  %v471 = vpop.f32.mrb[0].mxu0
  %v472 = vadd.f32 %v205, %v471
  %v473 = vpop.f32.mrb[0].mxu0
  %474 = vdwg.mxu0
  %v475 = vpack.c.bf16 %v376, %v372
  %v476 = vpack.c.bf16 %v378, %v374
  %v477 = vpack.c.bf16 %v448, %v445
  %v478 = vpack.c.bf16 %v386, %v382
  %v479 = vpack.c.bf16 %v388, %v384
  %v480 = vpack.c.bf16 %v456, %v453
  %v481 = vpack.c.bf16 %v396, %v392
  %v482 = vpack.c.bf16 %v398, %v394
  %v483 = vpack.c.bf16 %v464, %v461
  %v484 = vpack.c.bf16 %v406, %v402
  %v485 = vpack.c.bf16 %v408, %v404
  %v486 = vpack.c.bf16 %v472, %v469
  %v491 = vunpack.c.l.b16 %v475
  %v492 = vunpack.c.h.b16 %v475
  %v493 = vunpack.c.l.b16 %v478
  %v494 = vunpack.c.h.b16 %v478
  %v495 = vunpack.c.l.b16 %v481
  %v496 = vunpack.c.h.b16 %v481
  %v497 = vunpack.c.l.b16 %v484
  %v498 = vunpack.c.h.b16 %v484
  %v499 = vpack.c.b16 %v491, %v491
  %v500 = vpack.c.b16 %v492, %v492
  %v501 = vpack.c.b16 %v493, %v493
  %v502 = vpack.c.b16 %v494, %v494
  %v503 = vpack.c.b16 %v495, %v495
  %v504 = vpack.c.b16 %v496, %v496
  %v505 = vpack.c.b16 %v497, %v497
  %v506 = vpack.c.b16 %v498, %v498
  %vm515 = vcmask 257024
  %516 = vst.msk [vmem:[%s5] sm:$0xf] %vm515, %v499
  %517 = vst.msk [vmem:[%s5 + $0x4] sm:$0xf] %vm515, %v500
  %518 = vst.msk [vmem:[%s5 + $0x8] sm:$0xf] %vm515, %v501
  %519 = vst.msk [vmem:[%s5 + $0xc] sm:$0xf] %vm515, %v502
  %520 = vst.msk [vmem:[%s5 + $0x10] sm:$0xf] %vm515, %v503
  %521 = vst.msk [vmem:[%s5 + $0x14] sm:$0xf] %vm515, %v504
  %522 = vst.msk [vmem:[%s5 + $0x18] sm:$0xf] %vm515, %v505
  %523 = vst.msk [vmem:[%s5 + $0x1c] sm:$0xf] %vm515, %v506
  %524 = vrot.lane.b32.xlu0 %v499, 96
  %v525 = vpop.permute.xlu0 %524
  %526 = vrot.lane.b32.xlu0 %v500, 96
  %v527 = vpop.permute.xlu0 %526
  %528 = vrot.lane.b32.xlu0 %v501, 96
  %v529 = vpop.permute.xlu0 %528
  %530 = vrot.lane.b32.xlu0 %v502, 96
  %v531 = vpop.permute.xlu0 %530
  %532 = vrot.lane.b32.xlu0 %v503, 96
  %v533 = vpop.permute.xlu0 %532
  %534 = vrot.lane.b32.xlu0 %v504, 96
  %v535 = vpop.permute.xlu0 %534
  %536 = vrot.lane.b32.xlu0 %v505, 96
  %v537 = vpop.permute.xlu0 %536
  %538 = vrot.lane.b32.xlu0 %v506, 96
  %v539 = vpop.permute.xlu0 %538
  %s548 = scalar_lea.vmem %s5, 32
  %549 = vst.msk [vmem:[%s548] sm:$0xf] %vm515, %v525
  %550 = vst.msk [vmem:[%s548 + $0x4] sm:$0xf] %vm515, %v527
  %551 = vst.msk [vmem:[%s548 + $0x8] sm:$0xf] %vm515, %v529
  %552 = vst.msk [vmem:[%s548 + $0xc] sm:$0xf] %vm515, %v531
  %553 = vst.msk [vmem:[%s548 + $0x10] sm:$0xf] %vm515, %v533
  %554 = vst.msk [vmem:[%s548 + $0x14] sm:$0xf] %vm515, %v535
  %555 = vst.msk [vmem:[%s548 + $0x18] sm:$0xf] %vm515, %v537
  %556 = vst.msk [vmem:[%s548 + $0x1c] sm:$0xf] %vm515, %v539
  %557 = vrot.lane.b32.xlu0 %v499, 64
  %v558 = vpop.permute.xlu0 %557
  %559 = vrot.lane.b32.xlu0 %v500, 64
  %v560 = vpop.permute.xlu0 %559
  %561 = vrot.lane.b32.xlu0 %v501, 64
  %v562 = vpop.permute.xlu0 %561
  %563 = vrot.lane.b32.xlu0 %v502, 64
  %v564 = vpop.permute.xlu0 %563
  %565 = vrot.lane.b32.xlu0 %v503, 64
  %v566 = vpop.permute.xlu0 %565
  %567 = vrot.lane.b32.xlu0 %v504, 64
  %v568 = vpop.permute.xlu0 %567
  %569 = vrot.lane.b32.xlu0 %v505, 64
  %v570 = vpop.permute.xlu0 %569
  %571 = vrot.lane.b32.xlu0 %v506, 64
  %v572 = vpop.permute.xlu0 %571
  %s581 = scalar_lea.vmem %s5, 64
  %582 = vst.msk [vmem:[%s581] sm:$0xf] %vm515, %v558
  %583 = vst.msk [vmem:[%s581 + $0x4] sm:$0xf] %vm515, %v560
  %584 = vst.msk [vmem:[%s581 + $0x8] sm:$0xf] %vm515, %v562
  %585 = vst.msk [vmem:[%s581 + $0xc] sm:$0xf] %vm515, %v564
  %586 = vst.msk [vmem:[%s581 + $0x10] sm:$0xf] %vm515, %v566
  %587 = vst.msk [vmem:[%s581 + $0x14] sm:$0xf] %vm515, %v568
  %588 = vst.msk [vmem:[%s581 + $0x18] sm:$0xf] %vm515, %v570
  %589 = vst.msk [vmem:[%s581 + $0x1c] sm:$0xf] %vm515, %v572
  %590 = vrot.lane.b32.xlu0 %v499, 32
  %v591 = vpop.permute.xlu0 %590
  %592 = vrot.lane.b32.xlu0 %v500, 32
  %v593 = vpop.permute.xlu0 %592
  %594 = vrot.lane.b32.xlu0 %v501, 32
  %v595 = vpop.permute.xlu0 %594
  %596 = vrot.lane.b32.xlu0 %v502, 32
  %v597 = vpop.permute.xlu0 %596
  %598 = vrot.lane.b32.xlu0 %v503, 32
  %v599 = vpop.permute.xlu0 %598
  %600 = vrot.lane.b32.xlu0 %v504, 32
  %v601 = vpop.permute.xlu0 %600
  %602 = vrot.lane.b32.xlu0 %v505, 32
  %v603 = vpop.permute.xlu0 %602
  %604 = vrot.lane.b32.xlu0 %v506, 32
  %v605 = vpop.permute.xlu0 %604
  %s614 = scalar_lea.vmem %s5, 96
  %615 = vst.msk [vmem:[%s614] sm:$0xf] %vm515, %v591
  %616 = vst.msk [vmem:[%s614 + $0x4] sm:$0xf] %vm515, %v593
  %617 = vst.msk [vmem:[%s614 + $0x8] sm:$0xf] %vm515, %v595
  %618 = vst.msk [vmem:[%s614 + $0xc] sm:$0xf] %vm515, %v597
  %619 = vst.msk [vmem:[%s614 + $0x10] sm:$0xf] %vm515, %v599
  %620 = vst.msk [vmem:[%s614 + $0x14] sm:$0xf] %vm515, %v601
  %621 = vst.msk [vmem:[%s614 + $0x18] sm:$0xf] %vm515, %v603
  %622 = vst.msk [vmem:[%s614 + $0x1c] sm:$0xf] %vm515, %v605
  %v627 = vunpack.c.l.b16 %v476
  %v628 = vunpack.c.h.b16 %v476
  %v629 = vunpack.c.l.b16 %v479
  %v630 = vunpack.c.h.b16 %v479
  %v631 = vunpack.c.l.b16 %v482
  %v632 = vunpack.c.h.b16 %v482
  %v633 = vunpack.c.l.b16 %v485
  %v634 = vunpack.c.h.b16 %v485
  %v635 = vpack.c.b16 %v627, %v627
  %v636 = vpack.c.b16 %v628, %v628
  %v637 = vpack.c.b16 %v629, %v629
  %v638 = vpack.c.b16 %v630, %v630
  %v639 = vpack.c.b16 %v631, %v631
  %v640 = vpack.c.b16 %v632, %v632
  %v641 = vpack.c.b16 %v633, %v633
  %v642 = vpack.c.b16 %v634, %v634
  %s651 = scalar_lea.vmem %s5, 128
  %652 = vst.msk [vmem:[%s651] sm:$0xf] %vm515, %v635
  %653 = vst.msk [vmem:[%s651 + $0x4] sm:$0xf] %vm515, %v636
  %654 = vst.msk [vmem:[%s651 + $0x8] sm:$0xf] %vm515, %v637
  %655 = vst.msk [vmem:[%s651 + $0xc] sm:$0xf] %vm515, %v638
  %656 = vst.msk [vmem:[%s651 + $0x10] sm:$0xf] %vm515, %v639
  %657 = vst.msk [vmem:[%s651 + $0x14] sm:$0xf] %vm515, %v640
  %658 = vst.msk [vmem:[%s651 + $0x18] sm:$0xf] %vm515, %v641
  %659 = vst.msk [vmem:[%s651 + $0x1c] sm:$0xf] %vm515, %v642
  %660 = vrot.lane.b32.xlu0 %v635, 96
  %v661 = vpop.permute.xlu0 %660
  %662 = vrot.lane.b32.xlu0 %v636, 96
  %v663 = vpop.permute.xlu0 %662
  %664 = vrot.lane.b32.xlu0 %v637, 96
  %v665 = vpop.permute.xlu0 %664
  %666 = vrot.lane.b32.xlu0 %v638, 96
  %v667 = vpop.permute.xlu0 %666
  %668 = vrot.lane.b32.xlu0 %v639, 96
  %v669 = vpop.permute.xlu0 %668
  %670 = vrot.lane.b32.xlu0 %v640, 96
  %v671 = vpop.permute.xlu0 %670
  %672 = vrot.lane.b32.xlu0 %v641, 96
  %v673 = vpop.permute.xlu0 %672
  %674 = vrot.lane.b32.xlu0 %v642, 96
  %v675 = vpop.permute.xlu0 %674
  %s684 = scalar_lea.vmem %s5, 160
  %685 = vst.msk [vmem:[%s684] sm:$0xf] %vm515, %v661
  %686 = vst.msk [vmem:[%s684 + $0x4] sm:$0xf] %vm515, %v663
  %687 = vst.msk [vmem:[%s684 + $0x8] sm:$0xf] %vm515, %v665
  %688 = vst.msk [vmem:[%s684 + $0xc] sm:$0xf] %vm515, %v667
  %689 = vst.msk [vmem:[%s684 + $0x10] sm:$0xf] %vm515, %v669
  %690 = vst.msk [vmem:[%s684 + $0x14] sm:$0xf] %vm515, %v671
  %691 = vst.msk [vmem:[%s684 + $0x18] sm:$0xf] %vm515, %v673
  %692 = vst.msk [vmem:[%s684 + $0x1c] sm:$0xf] %vm515, %v675
  %693 = vrot.lane.b32.xlu0 %v635, 64
  %v694 = vpop.permute.xlu0 %693
  %695 = vrot.lane.b32.xlu0 %v636, 64
  %v696 = vpop.permute.xlu0 %695
  %697 = vrot.lane.b32.xlu0 %v637, 64
  %v698 = vpop.permute.xlu0 %697
  %699 = vrot.lane.b32.xlu0 %v638, 64
  %v700 = vpop.permute.xlu0 %699
  %701 = vrot.lane.b32.xlu0 %v639, 64
  %v702 = vpop.permute.xlu0 %701
  %703 = vrot.lane.b32.xlu0 %v640, 64
  %v704 = vpop.permute.xlu0 %703
  %705 = vrot.lane.b32.xlu0 %v641, 64
  %v706 = vpop.permute.xlu0 %705
  %707 = vrot.lane.b32.xlu0 %v642, 64
  %v708 = vpop.permute.xlu0 %707
  %s717 = scalar_lea.vmem %s5, 192
  %718 = vst.msk [vmem:[%s717] sm:$0xf] %vm515, %v694
  %719 = vst.msk [vmem:[%s717 + $0x4] sm:$0xf] %vm515, %v696
  %720 = vst.msk [vmem:[%s717 + $0x8] sm:$0xf] %vm515, %v698
  %721 = vst.msk [vmem:[%s717 + $0xc] sm:$0xf] %vm515, %v700
  %722 = vst.msk [vmem:[%s717 + $0x10] sm:$0xf] %vm515, %v702
  %723 = vst.msk [vmem:[%s717 + $0x14] sm:$0xf] %vm515, %v704
  %724 = vst.msk [vmem:[%s717 + $0x18] sm:$0xf] %vm515, %v706
  %725 = vst.msk [vmem:[%s717 + $0x1c] sm:$0xf] %vm515, %v708
  %726 = vrot.lane.b32.xlu0 %v635, 32
  %v727 = vpop.permute.xlu0 %726
  %728 = vrot.lane.b32.xlu0 %v636, 32
  %v729 = vpop.permute.xlu0 %728
  %730 = vrot.lane.b32.xlu0 %v637, 32
  %v731 = vpop.permute.xlu0 %730
  %732 = vrot.lane.b32.xlu0 %v638, 32
  %v733 = vpop.permute.xlu0 %732
  %734 = vrot.lane.b32.xlu0 %v639, 32
  %v735 = vpop.permute.xlu0 %734
  %736 = vrot.lane.b32.xlu0 %v640, 32
  %v737 = vpop.permute.xlu0 %736
  %738 = vrot.lane.b32.xlu0 %v641, 32
  %v739 = vpop.permute.xlu0 %738
  %740 = vrot.lane.b32.xlu0 %v642, 32
  %v741 = vpop.permute.xlu0 %740
  %s750 = scalar_lea.vmem %s5, 224
  %751 = vst.msk [vmem:[%s750] sm:$0xf] %vm515, %v727
  %752 = vst.msk [vmem:[%s750 + $0x4] sm:$0xf] %vm515, %v729
  %753 = vst.msk [vmem:[%s750 + $0x8] sm:$0xf] %vm515, %v731
  %754 = vst.msk [vmem:[%s750 + $0xc] sm:$0xf] %vm515, %v733
  %755 = vst.msk [vmem:[%s750 + $0x10] sm:$0xf] %vm515, %v735
  %756 = vst.msk [vmem:[%s750 + $0x14] sm:$0xf] %vm515, %v737
  %757 = vst.msk [vmem:[%s750 + $0x18] sm:$0xf] %vm515, %v739
  %758 = vst.msk [vmem:[%s750 + $0x1c] sm:$0xf] %vm515, %v741
  %v763 = vunpack.c.l.b16 %v477
  %v764 = vunpack.c.h.b16 %v477
  %v765 = vunpack.c.l.b16 %v480
  %v766 = vunpack.c.h.b16 %v480
  %v767 = vunpack.c.l.b16 %v483
  %v768 = vunpack.c.h.b16 %v483
  %v769 = vunpack.c.l.b16 %v486
  %v770 = vunpack.c.h.b16 %v486
  %v771 = vpack.c.b16 %v763, %v763
  %v772 = vpack.c.b16 %v764, %v764
  %v773 = vpack.c.b16 %v765, %v765
  %v774 = vpack.c.b16 %v766, %v766
  %v775 = vpack.c.b16 %v767, %v767
  %v776 = vpack.c.b16 %v768, %v768
  %v777 = vpack.c.b16 %v769, %v769
  %v778 = vpack.c.b16 %v770, %v770
  %s787 = scalar_lea.vmem %s5, 256
  %788 = vst.msk [vmem:[%s787] sm:$0xf] %vm515, %v771
  %789 = vst.msk [vmem:[%s787 + $0x4] sm:$0xf] %vm515, %v772
  %790 = vst.msk [vmem:[%s787 + $0x8] sm:$0xf] %vm515, %v773
  %791 = vst.msk [vmem:[%s787 + $0xc] sm:$0xf] %vm515, %v774
  %792 = vst.msk [vmem:[%s787 + $0x10] sm:$0xf] %vm515, %v775
  %793 = vst.msk [vmem:[%s787 + $0x14] sm:$0xf] %vm515, %v776
  %794 = vst.msk [vmem:[%s787 + $0x18] sm:$0xf] %vm515, %v777
  %795 = vst.msk [vmem:[%s787 + $0x1c] sm:$0xf] %vm515, %v778
  %796 = vrot.lane.b32.xlu0 %v771, 96
  %v797 = vpop.permute.xlu0 %796
  %798 = vrot.lane.b32.xlu0 %v772, 96
  %v799 = vpop.permute.xlu0 %798
  %800 = vrot.lane.b32.xlu0 %v773, 96
  %v801 = vpop.permute.xlu0 %800
  %802 = vrot.lane.b32.xlu0 %v774, 96
  %v803 = vpop.permute.xlu0 %802
  %804 = vrot.lane.b32.xlu0 %v775, 96
  %v805 = vpop.permute.xlu0 %804
  %806 = vrot.lane.b32.xlu0 %v776, 96
  %v807 = vpop.permute.xlu0 %806
  %808 = vrot.lane.b32.xlu0 %v777, 96
  %v809 = vpop.permute.xlu0 %808
  %810 = vrot.lane.b32.xlu0 %v778, 96
  %v811 = vpop.permute.xlu0 %810
  %s820 = scalar_lea.vmem %s5, 288
  %821 = vst.msk [vmem:[%s820] sm:$0xf] %vm515, %v797
  %822 = vst.msk [vmem:[%s820 + $0x4] sm:$0xf] %vm515, %v799
  %823 = vst.msk [vmem:[%s820 + $0x8] sm:$0xf] %vm515, %v801
  %824 = vst.msk [vmem:[%s820 + $0xc] sm:$0xf] %vm515, %v803
  %825 = vst.msk [vmem:[%s820 + $0x10] sm:$0xf] %vm515, %v805
  %826 = vst.msk [vmem:[%s820 + $0x14] sm:$0xf] %vm515, %v807
  %827 = vst.msk [vmem:[%s820 + $0x18] sm:$0xf] %vm515, %v809
  %828 = vst.msk [vmem:[%s820 + $0x1c] sm:$0xf] %vm515, %v811
  %829 = vrot.lane.b32.xlu0 %v771, 64
  %v830 = vpop.permute.xlu0 %829
  %831 = vrot.lane.b32.xlu0 %v772, 64
  %v832 = vpop.permute.xlu0 %831
  %833 = vrot.lane.b32.xlu0 %v773, 64
  %v834 = vpop.permute.xlu0 %833
  %835 = vrot.lane.b32.xlu0 %v774, 64
  %v836 = vpop.permute.xlu0 %835
  %837 = vrot.lane.b32.xlu0 %v775, 64
  %v838 = vpop.permute.xlu0 %837
  %839 = vrot.lane.b32.xlu0 %v776, 64
  %v840 = vpop.permute.xlu0 %839
  %841 = vrot.lane.b32.xlu0 %v777, 64
  %v842 = vpop.permute.xlu0 %841
  %843 = vrot.lane.b32.xlu0 %v778, 64
  %v844 = vpop.permute.xlu0 %843
  %s853 = scalar_lea.vmem %s5, 320
  %854 = vst.msk [vmem:[%s853] sm:$0xf] %vm515, %v830
  %855 = vst.msk [vmem:[%s853 + $0x4] sm:$0xf] %vm515, %v832
  %856 = vst.msk [vmem:[%s853 + $0x8] sm:$0xf] %vm515, %v834
  %857 = vst.msk [vmem:[%s853 + $0xc] sm:$0xf] %vm515, %v836
  %858 = vst.msk [vmem:[%s853 + $0x10] sm:$0xf] %vm515, %v838
  %859 = vst.msk [vmem:[%s853 + $0x14] sm:$0xf] %vm515, %v840
  %860 = vst.msk [vmem:[%s853 + $0x18] sm:$0xf] %vm515, %v842
  %861 = vst.msk [vmem:[%s853 + $0x1c] sm:$0xf] %vm515, %v844
  %862 = vrot.lane.b32.xlu0 %v771, 32
  %v863 = vpop.permute.xlu0 %862
  %864 = vrot.lane.b32.xlu0 %v772, 32
  %v865 = vpop.permute.xlu0 %864
  %866 = vrot.lane.b32.xlu0 %v773, 32
  %v867 = vpop.permute.xlu0 %866
  %868 = vrot.lane.b32.xlu0 %v774, 32
  %v869 = vpop.permute.xlu0 %868
  %870 = vrot.lane.b32.xlu0 %v775, 32
  %v871 = vpop.permute.xlu0 %870
  %872 = vrot.lane.b32.xlu0 %v776, 32
  %v873 = vpop.permute.xlu0 %872
  %874 = vrot.lane.b32.xlu0 %v777, 32
  %v875 = vpop.permute.xlu0 %874
  %876 = vrot.lane.b32.xlu0 %v778, 32
  %v877 = vpop.permute.xlu0 %876
  %s886 = scalar_lea.vmem %s5, 352
  %887 = vst.msk [vmem:[%s886] sm:$0xf] %vm515, %v863
  %888 = vst.msk [vmem:[%s886 + $0x4] sm:$0xf] %vm515, %v865
  %889 = vst.msk [vmem:[%s886 + $0x8] sm:$0xf] %vm515, %v867
  %890 = vst.msk [vmem:[%s886 + $0xc] sm:$0xf] %vm515, %v869
  %891 = vst.msk [vmem:[%s886 + $0x10] sm:$0xf] %vm515, %v871
  %892 = vst.msk [vmem:[%s886 + $0x14] sm:$0xf] %vm515, %v873
  %893 = vst.msk [vmem:[%s886 + $0x18] sm:$0xf] %vm515, %v875
  %894 = vst.msk [vmem:[%s886 + $0x1c] sm:$0xf] %vm515, %v877
  // Predicated region
  $region22: #{sam_forward.62} parent=0 // pred_check
    _
  $region23: #{sam_forward.62} parent=0 // pred_check_branch
    %896 = sbr.rel (0) target = $region25
  $region24: #{sam_forward.62} parent=0 // pred_region
    _
  $region25: #{sam_forward.62} parent=0 // pred_fallthru
    _
  // Predicated region
  $region26: #{sam_forward.62} parent=0 // pred_check
    _
  $region27: #{sam_forward.62} parent=0 // pred_check_branch
    %898 = sbr.rel (0) target = $region29
  $region28: #{sam_forward.62} parent=0 // pred_region
    _
  $region29: #{sam_forward.62} parent=0 // pred_fallthru
    _

// kernel: sam_forward.63
$region0: #{sam_forward.63}
  #allocation0 [shape = 'u32[]', space=smem, size = 0x4, offset = 0x4, fixed_abs, tag = 'smem constant byte address 0x4 - core index']
  #allocation1 [shape = 'u32[144,128]{1,0:T(1,128)}', space=vmem, size = 0x12000, scoped, tag = 'internal scratch']
  #allocation2 [shape = 'f32[4,32,1]{2,1,0:T(8,128)}', space=vmem, size = 0x10000, scoped, tag = 'scratch operand']
  #allocation3 [shape = 'f32[4,32,1]{2,1,0:T(8,128)}', space=vmem, size = 0x10000, scoped, tag = 'scratch operand']
  #allocation4 [shape = 'f32[4,32,32]{2,1,0:T(8,128)}', space=vmem, size = 0x10000, scoped, tag = 'scratch operand']
  %s0 = inlined_call_operand.vmem [shape: bf16[3,4,2,32,32], index: 0, kind: input, shape index: {}, may-alias: {0,1,2}]
  %s1 = inlined_call_operand.vmem [shape: bf16[3,4,2,32,32], index: 1, kind: input, shape index: {}, may-alias: {0,1,2}]
  %s2 = inlined_call_operand.vmem [shape: bf16[3,4,2,32,32], index: 2, kind: input, shape index: {}, may-alias: {0,1,2}]
  %s3 = inlined_call_operand.vmem [shape: bf16[2,32,128], index: 3, kind: output, shape index: {}]
  %s4 = sld [smem:[#allocation0]]
  $region176: #{sam_forward.63} parent=0
    _
  %s6 = ssub.s32 1, %s4
  %s7 = scalar_select 0, %s6, %s4
  $region1: #{sam_forward.63} parent=0
    #allocation5 [shape = 'u8[65536]{0}', space=vmem, size = 0x10000, scoped, tag = 'input window, operand 0']
    #allocation6 [shape = 'u8[65536]{0}', space=vmem, size = 0x10000, scoped, tag = 'input window, operand 1']
    #allocation7 [shape = 'u8[65536]{0}', space=vmem, size = 0x10000, scoped, tag = 'input window, operand 2']
    loop: start=0, step=1, limit=4
    $region2: #{sam_forward.63} parent=1 // loop_pre_header
      _
    $region3: #{sam_forward.63} parent=1 // loop_header
      %s9 = sphi 0, %s13
      %p10 = scmp.ge.s32.totalorder %s9, 4
      %s16 = sphi 0, %s35
      %s17 = sphi 0, %s31
      %s18 = sphi 0, %s27
      %s19 = sphi 0, %s16
      %s20 = sphi 0, %s17
      %s21 = sphi 0, %s18
      %s22 = sphi 0, %s19
      %s23 = sphi 0, %s20
      %s24 = sphi 0, %s21
      %s40 = sphi 0, %s42
      %s43 = sphi 0, %s40
      %s44 = sphi 0, %s43
      %s60 = sphi 0, %s44
      %s68 = sphi 0, %s70
      %s71 = sphi 0, %s68
      %s72 = sphi 0, %s71
      %s88 = sphi 0, %s72
      %s96 = sphi 0, %s98
      %s99 = sphi 0, %s96
      %s100 = sphi 0, %s99
      %s116 = sphi 0, %s100
      %s124 = sphi 0, %s126
      %s127 = sphi 0, %s124
      %s128 = sphi 0, %s127
      %s144 = sphi 0, %s128
    $region4: #{sam_forward.63} parent=1 // loop_header_branch
      %12 = sbr.rel (%p10) target = $region8
    $region5: #{sam_forward.63} parent=1 // loop_body
      %s14 = ssub.s32 %s9, 1
      %s15 = ssub.s32 %s9, 2
      %s25 = sadd.s32 1, %s18
      %p26 = scmp.ge.s32.totalorder %s25, 1
      %s27 = scalar_select %p26, 0, %s25
      %s28 = sadd.s32 1, %s17
      %s29 = scalar_select %p26, %s28, %s17
      %p30 = scmp.ge.s32.totalorder %s29, 1
      %s31 = scalar_select %p30, 0, %s29
      %s32 = sadd.s32 1, %s16
      %s33 = scalar_select %p30, %s32, %s16
      %p34 = scmp.ge.s32.totalorder %s33, 2
      %s35 = scalar_select %p34, 0, %s33
      %s36 = ssub.s32 %s16, %s35
      %s37 = ssub.s32 %s17, %s31
      %s38 = sor.u32 %s36, %s37
      %p39 = scmp.eq.s32.totalorder %s38, 0
      %s41 = sadd.s32 %s40, 1
      %s42 = scalar_select %p39, %s40, %s41
      %p45 = pneg %p39
      %p46 = scmp.eq.s32.totalorder %s9, 1
      %p47 = por %p45, %p46
      %p48 = scmp.ne.s32.totalorder %s40, %s43
      %p49 = scmp.eq.s32.totalorder %s9, 0
      %p50 = por %p48, %p49
      %p51 = scmp.ne.s32.totalorder %s40, %s43
      %p52 = scmp.eq.s32.totalorder %s14, 1
      %p53 = por %p51, %p52
      %p54 = scmp.ne.s32.totalorder %s43, %s44
      %p55 = scmp.eq.s32.totalorder %s14, 0
      %p56 = por %p54, %p55
      %p57 = scmp.ne.s32.totalorder %s43, %s44
      %p58 = scmp.eq.s32.totalorder %s15, 1
      %p59 = por %p57, %p58
      %p61 = scmp.ne.s32.totalorder %s44, %s60
      %p62 = scmp.eq.s32.totalorder %s15, 0
      %p63 = por %p61, %p62
      %s64 = ssub.s32 %s16, %s35
      %s65 = ssub.s32 %s18, %s27
      %s66 = sor.u32 %s64, %s65
      %p67 = scmp.eq.s32.totalorder %s66, 0
      %s69 = sadd.s32 %s68, 1
      %s70 = scalar_select %p67, %s68, %s69
      %p73 = pneg %p67
      %p74 = scmp.eq.s32.totalorder %s9, 1
      %p75 = por %p73, %p74
      %p76 = scmp.ne.s32.totalorder %s68, %s71
      %p77 = scmp.eq.s32.totalorder %s9, 0
      %p78 = por %p76, %p77
      %p79 = scmp.ne.s32.totalorder %s68, %s71
      %p80 = scmp.eq.s32.totalorder %s14, 1
      %p81 = por %p79, %p80
      %p82 = scmp.ne.s32.totalorder %s71, %s72
      %p83 = scmp.eq.s32.totalorder %s14, 0
      %p84 = por %p82, %p83
      %p85 = scmp.ne.s32.totalorder %s71, %s72
      %p86 = scmp.eq.s32.totalorder %s15, 1
      %p87 = por %p85, %p86
      %p89 = scmp.ne.s32.totalorder %s72, %s88
      %p90 = scmp.eq.s32.totalorder %s15, 0
      %p91 = por %p89, %p90
      %s92 = ssub.s32 %s16, %s35
      %s93 = ssub.s32 %s18, %s27
      %s94 = sor.u32 %s92, %s93
      %p95 = scmp.eq.s32.totalorder %s94, 0
      %s97 = sadd.s32 %s96, 1
      %s98 = scalar_select %p95, %s96, %s97
      %p101 = pneg %p95
      %p102 = scmp.eq.s32.totalorder %s9, 1
      %p103 = por %p101, %p102
      %p104 = scmp.ne.s32.totalorder %s96, %s99
      %p105 = scmp.eq.s32.totalorder %s9, 0
      %p106 = por %p104, %p105
      %p107 = scmp.ne.s32.totalorder %s96, %s99
      %p108 = scmp.eq.s32.totalorder %s14, 1
      %p109 = por %p107, %p108
      %p110 = scmp.ne.s32.totalorder %s99, %s100
      %p111 = scmp.eq.s32.totalorder %s14, 0
      %p112 = por %p110, %p111
      %p113 = scmp.ne.s32.totalorder %s99, %s100
      %p114 = scmp.eq.s32.totalorder %s15, 1
      %p115 = por %p113, %p114
      %p117 = scmp.ne.s32.totalorder %s100, %s116
      %p118 = scmp.eq.s32.totalorder %s15, 0
      %p119 = por %p117, %p118
      %s120 = ssub.s32 %s16, %s35
      %s121 = ssub.s32 %s17, %s31
      %s122 = sor.u32 %s120, %s121
      %p123 = scmp.eq.s32.totalorder %s122, 0
      %s125 = sadd.s32 %s124, 1
      %s126 = scalar_select %p123, %s124, %s125
      %p129 = pneg %p123
      %p130 = scmp.eq.s32.totalorder %s9, 1
      %p131 = por %p129, %p130
      %p132 = scmp.ne.s32.totalorder %s124, %s127
      %p133 = scmp.eq.s32.totalorder %s9, 0
      %p134 = por %p132, %p133
      %p135 = scmp.ne.s32.totalorder %s124, %s127
      %p136 = scmp.eq.s32.totalorder %s14, 1
      %p137 = por %p135, %p136
      %p138 = scmp.ne.s32.totalorder %s127, %s128
      %p139 = scmp.eq.s32.totalorder %s14, 0
      %p140 = por %p138, %p139
      %p141 = scmp.ne.s32.totalorder %s127, %s128
      %p142 = scmp.eq.s32.totalorder %s15, 1
      %p143 = por %p141, %p142
      %p145 = scmp.ne.s32.totalorder %s128, %s144
      %p146 = scmp.eq.s32.totalorder %s15, 0
      %p147 = por %p145, %p146
      %p148 = scmp.le.s32.totalorder 1, %s9
      %p149 = scmp.lt.s32.totalorder %s9, 3
      %p150 = pnand %p148, %p149
      %p151 = pneg %p150
      // Predicated region
      $region9: #{sam_forward.63} parent=5 // pred_check
        _
      $region10: #{sam_forward.63} parent=5 // pred_check_branch
        %153 = sbr.rel (%p150) target = $region12
      $region11: #{sam_forward.63} parent=5 // pred_region
        %s154 = ssub.s32 %s9, 1
      $region12: #{sam_forward.63} parent=5 // pred_fallthru
        _
      %p155 = scmp.lt.s32.totalorder %s9, 2
      // Predicated region
      $region13: #{sam_forward.63} parent=5 // pred_check
        %p156 = pneg %p155
      $region14: #{sam_forward.63} parent=5 // pred_check_branch
        %158 = sbr.rel (%p156) target = $region16
      $region15: #{sam_forward.63} parent=5 // pred_region
        // Predicated region
        $region17: #{sam_forward.63} parent=15 // pred_check
          %p159 = pneg %p50
        $region18: #{sam_forward.63} parent=15 // pred_check_branch
          %161 = sbr.rel (%p159) target = $region20
        $region19: #{sam_forward.63} parent=15 // pred_region
          %s162 = sand.u32 %s40, 1
          %s163 = sand.u32 %s40, 1
          %s164 = smul.addr %s163, 64
          %s165 = scalar_lea.vmem [#allocation5], %s164
          %s166 = smul.u32 4, %s17
          %s167 = smul.addr %s16, 4
          %s168 = sadd.s32 %s166, %s167
          %s169 = smul.addr %s168, 4
          %s170 = scalar_lea.vmem %s0, %s169
          // Predicated region
          $region21: #{sam_forward.63} parent=19 // pred_check
            _
          $region22: #{sam_forward.63} parent=19 // pred_check_branch
            %172 = sbr.rel (0) target = $region24
          $region23: #{sam_forward.63} parent=19 // pred_region
            // Predicated region
            $region25: #{sam_forward.63} parent=23 // pred_check
              _
            $region26: #{sam_forward.63} parent=23 // pred_check_branch
              %174 = sbr.rel target = $region28
            $region27: #{sam_forward.63} parent=23 // pred_region
              // Predicated region
              $region40: #{sam_forward.63} parent=27 // pred_check
                _
              $region41: #{sam_forward.63} parent=27 // pred_check_branch
                %219 = sbr.rel (0) target = $region43
              $region42: #{sam_forward.63} parent=27 // pred_region
                loop: start=0, step=1, limit=1
                $region44: #{sam_forward.63} parent=42 // loop_pre_header
                  _
                $region45: #{sam_forward.63} parent=42 // loop_header
                  %s221 = sphi 0, %s225
                  %p222 = scmp.ge.s32.totalorder %s221, 1
                  %s226 = sphi %s170, %s170
                  %s227 = sphi %s165, %s165
                $region46: #{sam_forward.63} parent=42 // loop_header_branch
                  %224 = sbr.rel (%p222) target = $region50
                $region47: #{sam_forward.63} parent=42 // loop_body
                  _
                $region48: #{sam_forward.63} parent=42 // loop_footer
                  %s225 = sadd.s32 1, %s221
                $region49: #{sam_forward.63} parent=42 // loop_footer_branch
                  %220 = sbr.rel target = $region45
                $region50: #{sam_forward.63} parent=42 // loop_exit
                  _
                loop: start=0, step=1, limit=1
                $region51: #{sam_forward.63} parent=42 // loop_pre_header
                  _
                $region52: #{sam_forward.63} parent=42 // loop_header
                  %s230 = sphi 0, %s234
                  %p231 = scmp.ge.s32.totalorder %s230, 1
                  %s235 = sphi %s170, %s170
                  %s236 = sphi %s165, %s165
                $region53: #{sam_forward.63} parent=42 // loop_header_branch
                  %233 = sbr.rel (%p231) target = $region57
                $region54: #{sam_forward.63} parent=42 // loop_body
                  %v237 = vld [vmem:[%s235] sm:$0xf]
                  %238 = vst [vmem:[%s236] sm:$0xf] %v237
                  %v239 = vld [vmem:[%s235 + $0x4] sm:$0xf]
                  %240 = vst [vmem:[%s236 + $0x4] sm:$0xf] %v239
                  %v241 = vld [vmem:[%s235 + $0x8] sm:$0xf]
                  %242 = vst [vmem:[%s236 + $0x8] sm:$0xf] %v241
                  %v243 = vld [vmem:[%s235 + $0xc] sm:$0xf]
                  %244 = vst [vmem:[%s236 + $0xc] sm:$0xf] %v243
                  %v245 = vld [vmem:[%s235 + $0x20] sm:$0xf]
                  %246 = vst [vmem:[%s236 + $0x10] sm:$0xf] %v245
                  %v247 = vld [vmem:[%s235 + $0x24] sm:$0xf]
                  %248 = vst [vmem:[%s236 + $0x14] sm:$0xf] %v247
                  %v249 = vld [vmem:[%s235 + $0x28] sm:$0xf]
                  %250 = vst [vmem:[%s236 + $0x18] sm:$0xf] %v249
                  %v251 = vld [vmem:[%s235 + $0x2c] sm:$0xf]
                  %252 = vst [vmem:[%s236 + $0x1c] sm:$0xf] %v251
                  %v253 = vld [vmem:[%s235 + $0x40] sm:$0xf]
                  %254 = vst [vmem:[%s236 + $0x20] sm:$0xf] %v253
                  %v255 = vld [vmem:[%s235 + $0x44] sm:$0xf]
                  %256 = vst [vmem:[%s236 + $0x24] sm:$0xf] %v255
                  %v257 = vld [vmem:[%s235 + $0x48] sm:$0xf]
                  %258 = vst [vmem:[%s236 + $0x28] sm:$0xf] %v257
                  %v259 = vld [vmem:[%s235 + $0x4c] sm:$0xf]
                  %260 = vst [vmem:[%s236 + $0x2c] sm:$0xf] %v259
                  %v261 = vld [vmem:[%s235 + $0x60] sm:$0xf]
                  %262 = vst [vmem:[%s236 + $0x30] sm:$0xf] %v261
                  %v263 = vld [vmem:[%s235 + $0x64] sm:$0xf]
                  %264 = vst [vmem:[%s236 + $0x34] sm:$0xf] %v263
                  %v265 = vld [vmem:[%s235 + $0x68] sm:$0xf]
                  %266 = vst [vmem:[%s236 + $0x38] sm:$0xf] %v265
                  %v267 = vld [vmem:[%s235 + $0x6c] sm:$0xf]
                  %268 = vst [vmem:[%s236 + $0x3c] sm:$0xf] %v267
                $region55: #{sam_forward.63} parent=42 // loop_footer
                  %s234 = sadd.s32 1, %s230
                $region56: #{sam_forward.63} parent=42 // loop_footer_branch
                  %229 = sbr.rel target = $region52
                $region57: #{sam_forward.63} parent=42 // loop_exit
                  _
              $region43: #{sam_forward.63} parent=27 // pred_fallthru
                _
            $region28: #{sam_forward.63} parent=23 // pred_fallthru
              _
            // Predicated region
            $region29: #{sam_forward.63} parent=23 // pred_check
              _
            $region30: #{sam_forward.63} parent=23 // pred_check_branch
              %176 = sbr.rel (0) target = $region32
            $region31: #{sam_forward.63} parent=23 // pred_region
              loop: start=0, step=1, limit=1
              $region33: #{sam_forward.63} parent=31 // loop_pre_header
                _
              $region34: #{sam_forward.63} parent=31 // loop_header
                %s179 = sphi 0, %s183
                %p180 = scmp.ge.s32.totalorder %s179, 1
                %s184 = sphi %s170, %s170
                %s185 = sphi %s165, %s165
              $region35: #{sam_forward.63} parent=31 // loop_header_branch
                %182 = sbr.rel (%p180) target = $region39
              $region36: #{sam_forward.63} parent=31 // loop_body
                %v186 = vld [vmem:[%s184] sm:$0xf]
                %187 = vst [vmem:[%s185] sm:$0xf] %v186
                %v188 = vld [vmem:[%s184 + $0x4] sm:$0xf]
                %189 = vst [vmem:[%s185 + $0x4] sm:$0xf] %v188
                %v190 = vld [vmem:[%s184 + $0x8] sm:$0xf]
                %191 = vst [vmem:[%s185 + $0x8] sm:$0xf] %v190
                %v192 = vld [vmem:[%s184 + $0xc] sm:$0xf]
                %193 = vst [vmem:[%s185 + $0xc] sm:$0xf] %v192
                %v194 = vld [vmem:[%s184 + $0x20] sm:$0xf]
                %195 = vst [vmem:[%s185 + $0x10] sm:$0xf] %v194
                %v196 = vld [vmem:[%s184 + $0x24] sm:$0xf]
                %197 = vst [vmem:[%s185 + $0x14] sm:$0xf] %v196
                %v198 = vld [vmem:[%s184 + $0x28] sm:$0xf]
                %199 = vst [vmem:[%s185 + $0x18] sm:$0xf] %v198
                %v200 = vld [vmem:[%s184 + $0x2c] sm:$0xf]
                %201 = vst [vmem:[%s185 + $0x1c] sm:$0xf] %v200
                %v202 = vld [vmem:[%s184 + $0x40] sm:$0xf]
                %203 = vst [vmem:[%s185 + $0x20] sm:$0xf] %v202
                %v204 = vld [vmem:[%s184 + $0x44] sm:$0xf]
                %205 = vst [vmem:[%s185 + $0x24] sm:$0xf] %v204
                %v206 = vld [vmem:[%s184 + $0x48] sm:$0xf]
                %207 = vst [vmem:[%s185 + $0x28] sm:$0xf] %v206
                %v208 = vld [vmem:[%s184 + $0x4c] sm:$0xf]
                %209 = vst [vmem:[%s185 + $0x2c] sm:$0xf] %v208
                %v210 = vld [vmem:[%s184 + $0x60] sm:$0xf]
                %211 = vst [vmem:[%s185 + $0x30] sm:$0xf] %v210
                %v212 = vld [vmem:[%s184 + $0x64] sm:$0xf]
                %213 = vst [vmem:[%s185 + $0x34] sm:$0xf] %v212
                %v214 = vld [vmem:[%s184 + $0x68] sm:$0xf]
                %215 = vst [vmem:[%s185 + $0x38] sm:$0xf] %v214
                %v216 = vld [vmem:[%s184 + $0x6c] sm:$0xf]
                %217 = vst [vmem:[%s185 + $0x3c] sm:$0xf] %v216
              $region37: #{sam_forward.63} parent=31 // loop_footer
                %s183 = sadd.s32 1, %s179
              $region38: #{sam_forward.63} parent=31 // loop_footer_branch
                %178 = sbr.rel target = $region34
              $region39: #{sam_forward.63} parent=31 // loop_exit
                _
            $region32: #{sam_forward.63} parent=23 // pred_fallthru
              _
          $region24: #{sam_forward.63} parent=19 // pred_fallthru
            _
          %269 = vnop
        $region20: #{sam_forward.63} parent=15 // pred_fallthru
          _
        // Predicated region
        $region58: #{sam_forward.63} parent=15 // pred_check
          %p270 = pneg %p78
        $region59: #{sam_forward.63} parent=15 // pred_check_branch
          %272 = sbr.rel (%p270) target = $region61
        $region60: #{sam_forward.63} parent=15 // pred_region
          %s273 = sand.u32 %s68, 1
          %s274 = sand.u32 %s68, 1
          %s275 = smul.addr %s274, 64
          %s276 = scalar_lea.vmem [#allocation6], %s275
          %s277 = smul.u32 4, %s18
          %s278 = smul.addr %s16, 4
          %s279 = sadd.s32 %s277, %s278
          %s280 = sadd.s32 %s279, 32
          %s281 = smul.addr %s280, 4
          %s282 = scalar_lea.vmem %s1, %s281
          // Predicated region
          $region62: #{sam_forward.63} parent=60 // pred_check
            _
          $region63: #{sam_forward.63} parent=60 // pred_check_branch
            %284 = sbr.rel (0) target = $region65
          $region64: #{sam_forward.63} parent=60 // pred_region
            // Predicated region
            $region66: #{sam_forward.63} parent=64 // pred_check
              _
            $region67: #{sam_forward.63} parent=64 // pred_check_branch
              %286 = sbr.rel target = $region69
            $region68: #{sam_forward.63} parent=64 // pred_region
              // Predicated region
              $region81: #{sam_forward.63} parent=68 // pred_check
                _
              $region82: #{sam_forward.63} parent=68 // pred_check_branch
                %331 = sbr.rel (0) target = $region84
              $region83: #{sam_forward.63} parent=68 // pred_region
                loop: start=0, step=1, limit=1
                $region85: #{sam_forward.63} parent=83 // loop_pre_header
                  _
                $region86: #{sam_forward.63} parent=83 // loop_header
                  %s333 = sphi 0, %s337
                  %p334 = scmp.ge.s32.totalorder %s333, 1
                  %s338 = sphi %s282, %s282
                  %s339 = sphi %s276, %s276
                $region87: #{sam_forward.63} parent=83 // loop_header_branch
                  %336 = sbr.rel (%p334) target = $region91
                $region88: #{sam_forward.63} parent=83 // loop_body
                  _
                $region89: #{sam_forward.63} parent=83 // loop_footer
                  %s337 = sadd.s32 1, %s333
                $region90: #{sam_forward.63} parent=83 // loop_footer_branch
                  %332 = sbr.rel target = $region86
                $region91: #{sam_forward.63} parent=83 // loop_exit
                  _
                loop: start=0, step=1, limit=1
                $region92: #{sam_forward.63} parent=83 // loop_pre_header
                  _
                $region93: #{sam_forward.63} parent=83 // loop_header
                  %s342 = sphi 0, %s346
                  %p343 = scmp.ge.s32.totalorder %s342, 1
                  %s347 = sphi %s282, %s282
                  %s348 = sphi %s276, %s276
                $region94: #{sam_forward.63} parent=83 // loop_header_branch
                  %345 = sbr.rel (%p343) target = $region98
                $region95: #{sam_forward.63} parent=83 // loop_body
                  %v349 = vld [vmem:[%s347] sm:$0xf]
                  %350 = vst [vmem:[%s348] sm:$0xf] %v349
                  %v351 = vld [vmem:[%s347 + $0x4] sm:$0xf]
                  %352 = vst [vmem:[%s348 + $0x4] sm:$0xf] %v351
                  %v353 = vld [vmem:[%s347 + $0x8] sm:$0xf]
                  %354 = vst [vmem:[%s348 + $0x8] sm:$0xf] %v353
                  %v355 = vld [vmem:[%s347 + $0xc] sm:$0xf]
                  %356 = vst [vmem:[%s348 + $0xc] sm:$0xf] %v355
                  %v357 = vld [vmem:[%s347 + $0x20] sm:$0xf]
                  %358 = vst [vmem:[%s348 + $0x10] sm:$0xf] %v357
                  %v359 = vld [vmem:[%s347 + $0x24] sm:$0xf]
                  %360 = vst [vmem:[%s348 + $0x14] sm:$0xf] %v359
                  %v361 = vld [vmem:[%s347 + $0x28] sm:$0xf]
                  %362 = vst [vmem:[%s348 + $0x18] sm:$0xf] %v361
                  %v363 = vld [vmem:[%s347 + $0x2c] sm:$0xf]
                  %364 = vst [vmem:[%s348 + $0x1c] sm:$0xf] %v363
                  %v365 = vld [vmem:[%s347 + $0x40] sm:$0xf]
                  %366 = vst [vmem:[%s348 + $0x20] sm:$0xf] %v365
                  %v367 = vld [vmem:[%s347 + $0x44] sm:$0xf]
                  %368 = vst [vmem:[%s348 + $0x24] sm:$0xf] %v367
                  %v369 = vld [vmem:[%s347 + $0x48] sm:$0xf]
                  %370 = vst [vmem:[%s348 + $0x28] sm:$0xf] %v369
                  %v371 = vld [vmem:[%s347 + $0x4c] sm:$0xf]
                  %372 = vst [vmem:[%s348 + $0x2c] sm:$0xf] %v371
                  %v373 = vld [vmem:[%s347 + $0x60] sm:$0xf]
                  %374 = vst [vmem:[%s348 + $0x30] sm:$0xf] %v373
                  %v375 = vld [vmem:[%s347 + $0x64] sm:$0xf]
                  %376 = vst [vmem:[%s348 + $0x34] sm:$0xf] %v375
                  %v377 = vld [vmem:[%s347 + $0x68] sm:$0xf]
                  %378 = vst [vmem:[%s348 + $0x38] sm:$0xf] %v377
                  %v379 = vld [vmem:[%s347 + $0x6c] sm:$0xf]
                  %380 = vst [vmem:[%s348 + $0x3c] sm:$0xf] %v379
                $region96: #{sam_forward.63} parent=83 // loop_footer
                  %s346 = sadd.s32 1, %s342
                $region97: #{sam_forward.63} parent=83 // loop_footer_branch
                  %341 = sbr.rel target = $region93
                $region98: #{sam_forward.63} parent=83 // loop_exit
                  _
              $region84: #{sam_forward.63} parent=68 // pred_fallthru
                _
            $region69: #{sam_forward.63} parent=64 // pred_fallthru
              _
            // Predicated region
            $region70: #{sam_forward.63} parent=64 // pred_check
              _
            $region71: #{sam_forward.63} parent=64 // pred_check_branch
              %288 = sbr.rel (0) target = $region73
            $region72: #{sam_forward.63} parent=64 // pred_region
              loop: start=0, step=1, limit=1
              $region74: #{sam_forward.63} parent=72 // loop_pre_header
                _
              $region75: #{sam_forward.63} parent=72 // loop_header
                %s291 = sphi 0, %s295
                %p292 = scmp.ge.s32.totalorder %s291, 1
                %s296 = sphi %s282, %s282
                %s297 = sphi %s276, %s276
              $region76: #{sam_forward.63} parent=72 // loop_header_branch
                %294 = sbr.rel (%p292) target = $region80
              $region77: #{sam_forward.63} parent=72 // loop_body
                %v298 = vld [vmem:[%s296] sm:$0xf]
                %299 = vst [vmem:[%s297] sm:$0xf] %v298
                %v300 = vld [vmem:[%s296 + $0x4] sm:$0xf]
                %301 = vst [vmem:[%s297 + $0x4] sm:$0xf] %v300
                %v302 = vld [vmem:[%s296 + $0x8] sm:$0xf]
                %303 = vst [vmem:[%s297 + $0x8] sm:$0xf] %v302
                %v304 = vld [vmem:[%s296 + $0xc] sm:$0xf]
                %305 = vst [vmem:[%s297 + $0xc] sm:$0xf] %v304
                %v306 = vld [vmem:[%s296 + $0x20] sm:$0xf]
                %307 = vst [vmem:[%s297 + $0x10] sm:$0xf] %v306
                %v308 = vld [vmem:[%s296 + $0x24] sm:$0xf]
                %309 = vst [vmem:[%s297 + $0x14] sm:$0xf] %v308
                %v310 = vld [vmem:[%s296 + $0x28] sm:$0xf]
                %311 = vst [vmem:[%s297 + $0x18] sm:$0xf] %v310
                %v312 = vld [vmem:[%s296 + $0x2c] sm:$0xf]
                %313 = vst [vmem:[%s297 + $0x1c] sm:$0xf] %v312
                %v314 = vld [vmem:[%s296 + $0x40] sm:$0xf]
                %315 = vst [vmem:[%s297 + $0x20] sm:$0xf] %v314
                %v316 = vld [vmem:[%s296 + $0x44] sm:$0xf]
                %317 = vst [vmem:[%s297 + $0x24] sm:$0xf] %v316
                %v318 = vld [vmem:[%s296 + $0x48] sm:$0xf]
                %319 = vst [vmem:[%s297 + $0x28] sm:$0xf] %v318
                %v320 = vld [vmem:[%s296 + $0x4c] sm:$0xf]
                %321 = vst [vmem:[%s297 + $0x2c] sm:$0xf] %v320
                %v322 = vld [vmem:[%s296 + $0x60] sm:$0xf]
                %323 = vst [vmem:[%s297 + $0x30] sm:$0xf] %v322
                %v324 = vld [vmem:[%s296 + $0x64] sm:$0xf]
                %325 = vst [vmem:[%s297 + $0x34] sm:$0xf] %v324
                %v326 = vld [vmem:[%s296 + $0x68] sm:$0xf]
                %327 = vst [vmem:[%s297 + $0x38] sm:$0xf] %v326
                %v328 = vld [vmem:[%s296 + $0x6c] sm:$0xf]
                %329 = vst [vmem:[%s297 + $0x3c] sm:$0xf] %v328
              $region78: #{sam_forward.63} parent=72 // loop_footer
                %s295 = sadd.s32 1, %s291
              $region79: #{sam_forward.63} parent=72 // loop_footer_branch
                %290 = sbr.rel target = $region75
              $region80: #{sam_forward.63} parent=72 // loop_exit
                _
            $region73: #{sam_forward.63} parent=64 // pred_fallthru
              _
          $region65: #{sam_forward.63} parent=60 // pred_fallthru
            _
          %381 = vnop
        $region61: #{sam_forward.63} parent=15 // pred_fallthru
          _
        // Predicated region
        $region99: #{sam_forward.63} parent=15 // pred_check
          %p382 = pneg %p106
        $region100: #{sam_forward.63} parent=15 // pred_check_branch
          %384 = sbr.rel (%p382) target = $region102
        $region101: #{sam_forward.63} parent=15 // pred_region
          %s385 = sand.u32 %s96, 1
          %s386 = sand.u32 %s96, 1
          %s387 = smul.addr %s386, 64
          %s388 = scalar_lea.vmem [#allocation7], %s387
          %s389 = smul.u32 4, %s18
          %s390 = smul.addr %s16, 4
          %s391 = sadd.s32 %s389, %s390
          %s392 = sadd.s32 %s391, 64
          %s393 = smul.addr %s392, 4
          %s394 = scalar_lea.vmem %s2, %s393
          // Predicated region
          $region103: #{sam_forward.63} parent=101 // pred_check
            _
          $region104: #{sam_forward.63} parent=101 // pred_check_branch
            %396 = sbr.rel (0) target = $region106
          $region105: #{sam_forward.63} parent=101 // pred_region
            // Predicated region
            $region107: #{sam_forward.63} parent=105 // pred_check
              _
            $region108: #{sam_forward.63} parent=105 // pred_check_branch
              %398 = sbr.rel target = $region110
            $region109: #{sam_forward.63} parent=105 // pred_region
              // Predicated region
              $region122: #{sam_forward.63} parent=109 // pred_check
                _
              $region123: #{sam_forward.63} parent=109 // pred_check_branch
                %443 = sbr.rel (0) target = $region125
              $region124: #{sam_forward.63} parent=109 // pred_region
                loop: start=0, step=1, limit=1
                $region126: #{sam_forward.63} parent=124 // loop_pre_header
                  _
                $region127: #{sam_forward.63} parent=124 // loop_header
                  %s445 = sphi 0, %s449
                  %p446 = scmp.ge.s32.totalorder %s445, 1
                  %s450 = sphi %s394, %s394
                  %s451 = sphi %s388, %s388
                $region128: #{sam_forward.63} parent=124 // loop_header_branch
                  %448 = sbr.rel (%p446) target = $region132
                $region129: #{sam_forward.63} parent=124 // loop_body
                  _
                $region130: #{sam_forward.63} parent=124 // loop_footer
                  %s449 = sadd.s32 1, %s445
                $region131: #{sam_forward.63} parent=124 // loop_footer_branch
                  %444 = sbr.rel target = $region127
                $region132: #{sam_forward.63} parent=124 // loop_exit
                  _
                loop: start=0, step=1, limit=1
                $region133: #{sam_forward.63} parent=124 // loop_pre_header
                  _
                $region134: #{sam_forward.63} parent=124 // loop_header
                  %s454 = sphi 0, %s458
                  %p455 = scmp.ge.s32.totalorder %s454, 1
                  %s459 = sphi %s394, %s394
                  %s460 = sphi %s388, %s388
                $region135: #{sam_forward.63} parent=124 // loop_header_branch
                  %457 = sbr.rel (%p455) target = $region139
                $region136: #{sam_forward.63} parent=124 // loop_body
                  %v461 = vld [vmem:[%s459] sm:$0xf]
                  %462 = vst [vmem:[%s460] sm:$0xf] %v461
                  %v463 = vld [vmem:[%s459 + $0x4] sm:$0xf]
                  %464 = vst [vmem:[%s460 + $0x4] sm:$0xf] %v463
                  %v465 = vld [vmem:[%s459 + $0x8] sm:$0xf]
                  %466 = vst [vmem:[%s460 + $0x8] sm:$0xf] %v465
                  %v467 = vld [vmem:[%s459 + $0xc] sm:$0xf]
                  %468 = vst [vmem:[%s460 + $0xc] sm:$0xf] %v467
                  %v469 = vld [vmem:[%s459 + $0x20] sm:$0xf]
                  %470 = vst [vmem:[%s460 + $0x10] sm:$0xf] %v469
                  %v471 = vld [vmem:[%s459 + $0x24] sm:$0xf]
                  %472 = vst [vmem:[%s460 + $0x14] sm:$0xf] %v471
                  %v473 = vld [vmem:[%s459 + $0x28] sm:$0xf]
                  %474 = vst [vmem:[%s460 + $0x18] sm:$0xf] %v473
                  %v475 = vld [vmem:[%s459 + $0x2c] sm:$0xf]
                  %476 = vst [vmem:[%s460 + $0x1c] sm:$0xf] %v475
                  %v477 = vld [vmem:[%s459 + $0x40] sm:$0xf]
                  %478 = vst [vmem:[%s460 + $0x20] sm:$0xf] %v477
                  %v479 = vld [vmem:[%s459 + $0x44] sm:$0xf]
                  %480 = vst [vmem:[%s460 + $0x24] sm:$0xf] %v479
                  %v481 = vld [vmem:[%s459 + $0x48] sm:$0xf]
                  %482 = vst [vmem:[%s460 + $0x28] sm:$0xf] %v481
                  %v483 = vld [vmem:[%s459 + $0x4c] sm:$0xf]
                  %484 = vst [vmem:[%s460 + $0x2c] sm:$0xf] %v483
                  %v485 = vld [vmem:[%s459 + $0x60] sm:$0xf]
                  %486 = vst [vmem:[%s460 + $0x30] sm:$0xf] %v485
                  %v487 = vld [vmem:[%s459 + $0x64] sm:$0xf]
                  %488 = vst [vmem:[%s460 + $0x34] sm:$0xf] %v487
                  %v489 = vld [vmem:[%s459 + $0x68] sm:$0xf]
                  %490 = vst [vmem:[%s460 + $0x38] sm:$0xf] %v489
                  %v491 = vld [vmem:[%s459 + $0x6c] sm:$0xf]
                  %492 = vst [vmem:[%s460 + $0x3c] sm:$0xf] %v491
                $region137: #{sam_forward.63} parent=124 // loop_footer
                  %s458 = sadd.s32 1, %s454
                $region138: #{sam_forward.63} parent=124 // loop_footer_branch
                  %453 = sbr.rel target = $region134
                $region139: #{sam_forward.63} parent=124 // loop_exit
                  _
              $region125: #{sam_forward.63} parent=109 // pred_fallthru
                _
            $region110: #{sam_forward.63} parent=105 // pred_fallthru
              _
            // Predicated region
            $region111: #{sam_forward.63} parent=105 // pred_check
              _
            $region112: #{sam_forward.63} parent=105 // pred_check_branch
              %400 = sbr.rel (0) target = $region114
            $region113: #{sam_forward.63} parent=105 // pred_region
              loop: start=0, step=1, limit=1
              $region115: #{sam_forward.63} parent=113 // loop_pre_header
                _
              $region116: #{sam_forward.63} parent=113 // loop_header
                %s403 = sphi 0, %s407
                %p404 = scmp.ge.s32.totalorder %s403, 1
                %s408 = sphi %s394, %s394
                %s409 = sphi %s388, %s388
              $region117: #{sam_forward.63} parent=113 // loop_header_branch
                %406 = sbr.rel (%p404) target = $region121
              $region118: #{sam_forward.63} parent=113 // loop_body
                %v410 = vld [vmem:[%s408] sm:$0xf]
                %411 = vst [vmem:[%s409] sm:$0xf] %v410
                %v412 = vld [vmem:[%s408 + $0x4] sm:$0xf]
                %413 = vst [vmem:[%s409 + $0x4] sm:$0xf] %v412
                %v414 = vld [vmem:[%s408 + $0x8] sm:$0xf]
                %415 = vst [vmem:[%s409 + $0x8] sm:$0xf] %v414
                %v416 = vld [vmem:[%s408 + $0xc] sm:$0xf]
                %417 = vst [vmem:[%s409 + $0xc] sm:$0xf] %v416
                %v418 = vld [vmem:[%s408 + $0x20] sm:$0xf]
                %419 = vst [vmem:[%s409 + $0x10] sm:$0xf] %v418
                %v420 = vld [vmem:[%s408 + $0x24] sm:$0xf]
                %421 = vst [vmem:[%s409 + $0x14] sm:$0xf] %v420
                %v422 = vld [vmem:[%s408 + $0x28] sm:$0xf]
                %423 = vst [vmem:[%s409 + $0x18] sm:$0xf] %v422
                %v424 = vld [vmem:[%s408 + $0x2c] sm:$0xf]
                %425 = vst [vmem:[%s409 + $0x1c] sm:$0xf] %v424
                %v426 = vld [vmem:[%s408 + $0x40] sm:$0xf]
                %427 = vst [vmem:[%s409 + $0x20] sm:$0xf] %v426
                %v428 = vld [vmem:[%s408 + $0x44] sm:$0xf]
                %429 = vst [vmem:[%s409 + $0x24] sm:$0xf] %v428
                %v430 = vld [vmem:[%s408 + $0x48] sm:$0xf]
                %431 = vst [vmem:[%s409 + $0x28] sm:$0xf] %v430
                %v432 = vld [vmem:[%s408 + $0x4c] sm:$0xf]
                %433 = vst [vmem:[%s409 + $0x2c] sm:$0xf] %v432
                %v434 = vld [vmem:[%s408 + $0x60] sm:$0xf]
                %435 = vst [vmem:[%s409 + $0x30] sm:$0xf] %v434
                %v436 = vld [vmem:[%s408 + $0x64] sm:$0xf]
                %437 = vst [vmem:[%s409 + $0x34] sm:$0xf] %v436
                %v438 = vld [vmem:[%s408 + $0x68] sm:$0xf]
                %439 = vst [vmem:[%s409 + $0x38] sm:$0xf] %v438
                %v440 = vld [vmem:[%s408 + $0x6c] sm:$0xf]
                %441 = vst [vmem:[%s409 + $0x3c] sm:$0xf] %v440
              $region119: #{sam_forward.63} parent=113 // loop_footer
                %s407 = sadd.s32 1, %s403
              $region120: #{sam_forward.63} parent=113 // loop_footer_branch
                %402 = sbr.rel target = $region116
              $region121: #{sam_forward.63} parent=113 // loop_exit
                _
            $region114: #{sam_forward.63} parent=105 // pred_fallthru
              _
          $region106: #{sam_forward.63} parent=101 // pred_fallthru
            _
          %493 = vnop
        $region102: #{sam_forward.63} parent=15 // pred_fallthru
          _
      $region16: #{sam_forward.63} parent=5 // pred_fallthru
        _
      %p494 = scmp.le.s32.totalorder 1, %s9
      %p495 = scmp.lt.s32.totalorder %s9, 3
      %p496 = pnand %p494, %p495
      %p497 = pneg %p496
      // Predicated region
      $region140: #{sam_forward.63} parent=5 // pred_check
        _
      $region141: #{sam_forward.63} parent=5 // pred_check_branch
        %499 = sbr.rel (%p496) target = $region143
      $region142: #{sam_forward.63} parent=5 // pred_region
        %s500 = ssub.s32 %s9, 1
        %s501 = sand.u32 %s43, 1
        %s502 = sand.u32 %s43, 1
        %s503 = smul.addr %s502, 64
        %s504 = scalar_lea.vmem [#allocation5], %s503
        // Predicated region
        $region144: #{sam_forward.63} parent=142 // pred_check
          %p505 = pneg %p56
        $region145: #{sam_forward.63} parent=142 // pred_check_branch
          %507 = sbr.rel (%p505) target = $region147
        $region146: #{sam_forward.63} parent=142 // pred_region
          _
        $region147: #{sam_forward.63} parent=142 // pred_fallthru
          _
        %s508 = sand.u32 %s71, 1
        %s509 = sand.u32 %s71, 1
        %s510 = smul.addr %s509, 64
        %s511 = scalar_lea.vmem [#allocation6], %s510
        // Predicated region
        $region148: #{sam_forward.63} parent=142 // pred_check
          %p512 = pneg %p84
        $region149: #{sam_forward.63} parent=142 // pred_check_branch
          %514 = sbr.rel (%p512) target = $region151
        $region150: #{sam_forward.63} parent=142 // pred_region
          _
        $region151: #{sam_forward.63} parent=142 // pred_fallthru
          _
        %s515 = sand.u32 %s99, 1
        %s516 = sand.u32 %s99, 1
        %s517 = smul.addr %s516, 64
        %s518 = scalar_lea.vmem [#allocation7], %s517
        // Predicated region
        $region152: #{sam_forward.63} parent=142 // pred_check
          %p519 = pneg %p112
        $region153: #{sam_forward.63} parent=142 // pred_check_branch
          %521 = sbr.rel (%p519) target = $region155
        $region154: #{sam_forward.63} parent=142 // pred_region
          _
        $region155: #{sam_forward.63} parent=142 // pred_fallthru
          _
        %s522 = sand.u32 %s43, 1
        %s523 = sand.u32 %s43, 1
        %s524 = smul.addr %s523, 64
        %s525 = scalar_lea.vmem [#allocation5], %s524
        %p526 = pneg %p56
        %p527 = pneg %p53
        %s528 = sand.u32 %s71, 1
        %s529 = sand.u32 %s71, 1
        %s530 = smul.addr %s529, 64
        %s531 = scalar_lea.vmem [#allocation6], %s530
        %p532 = pneg %p84
        %p533 = pneg %p81
        %s534 = sand.u32 %s99, 1
        %s535 = sand.u32 %s99, 1
        %s536 = smul.addr %s535, 64
        %s537 = scalar_lea.vmem [#allocation7], %s536
        %p538 = pneg %p112
        %p539 = pneg %p109
        %p540 = pneg %p140
        %p541 = pneg %p137
        %s542 = smul.u32 4, %s20
        %p543 = scmp.lt.s32.totalorder %s19, 1
        %s544 = scalar_select %p543, %s19, 1
        %p545 = scmp.lt.s32.totalorder %s542, 3
        %s546 = scalar_select %p545, %s542, 3
        %s547 = smul.addr %s544, 4
        %s548 = sadd.s32 %s546, %s547
        %s549 = smul.addr %s548, 4
        %s550 = scalar_lea.vmem %s3, %s549
        %s551 = smul.u32 4, %s20
        %s552 = smul.u32 4, %s21
        %s553 = smul.u32 4, %s21
        %s554 = smul.u32 4, %s20
        %p555 = scmp.lt.s32.totalorder %s19, 1
        %s556 = scalar_select %p555, %s19, 1
        %p557 = scmp.lt.s32.totalorder %s554, 3
        %s558 = scalar_select %p557, %s554, 3
        %s559 = smul.addr %s556, 4
        %s560 = sadd.s32 %s558, %s559
        %s561 = smul.addr %s560, 4
        %s562 = scalar_lea.vmem %s3, %s561
        %s563 = smul.u32 4, %s20
        %p565 = scmp.eq.s32.totalorder %s21, 0
        // Predicated region
        $region156: #{sam_forward.63} parent=142 // pred_check
          %p566 = pneg %p565
        $region157: #{sam_forward.63} parent=142 // pred_check_branch
          %568 = sbr.rel (%p566) target = $region159
        $region158: #{sam_forward.63} parent=142 // pred_region
          %vm569 = vcmask 7168
          %570 = vst.msk [vmem:[#allocation2] sm:$0xff] %vm569, -inf
          %571 = vst.msk [vmem:[#allocation2 + $0x8] sm:$0xff] %vm569, -inf
          %572 = vst.msk [vmem:[#allocation2 + $0x10] sm:$0xff] %vm569, -inf
          %573 = vst.msk [vmem:[#allocation2 + $0x18] sm:$0xff] %vm569, -inf
          %574 = vst.msk [vmem:[#allocation2 + $0x20] sm:$0xff] %vm569, -inf
          %575 = vst.msk [vmem:[#allocation2 + $0x28] sm:$0xff] %vm569, -inf
          %576 = vst.msk [vmem:[#allocation2 + $0x30] sm:$0xff] %vm569, -inf
          %577 = vst.msk [vmem:[#allocation2 + $0x38] sm:$0xff] %vm569, -inf
          %578 = vst.msk [vmem:[#allocation2 + $0x40] sm:$0xff] %vm569, -inf
          %579 = vst.msk [vmem:[#allocation2 + $0x48] sm:$0xff] %vm569, -inf
          %580 = vst.msk [vmem:[#allocation2 + $0x50] sm:$0xff] %vm569, -inf
          %581 = vst.msk [vmem:[#allocation2 + $0x58] sm:$0xff] %vm569, -inf
          %582 = vst.msk [vmem:[#allocation2 + $0x60] sm:$0xff] %vm569, -inf
          %583 = vst.msk [vmem:[#allocation2 + $0x68] sm:$0xff] %vm569, -inf
          %584 = vst.msk [vmem:[#allocation2 + $0x70] sm:$0xff] %vm569, -inf
          %585 = vst.msk [vmem:[#allocation2 + $0x78] sm:$0xff] %vm569, -inf
          %586 = vst.msk [vmem:[#allocation3] sm:$0xff] %vm569, 0.0
          %587 = vst.msk [vmem:[#allocation3 + $0x8] sm:$0xff] %vm569, 0.0
          %588 = vst.msk [vmem:[#allocation3 + $0x10] sm:$0xff] %vm569, 0.0
          %589 = vst.msk [vmem:[#allocation3 + $0x18] sm:$0xff] %vm569, 0.0
          %590 = vst.msk [vmem:[#allocation3 + $0x20] sm:$0xff] %vm569, 0.0
          %591 = vst.msk [vmem:[#allocation3 + $0x28] sm:$0xff] %vm569, 0.0
          %592 = vst.msk [vmem:[#allocation3 + $0x30] sm:$0xff] %vm569, 0.0
          %593 = vst.msk [vmem:[#allocation3 + $0x38] sm:$0xff] %vm569, 0.0
          %594 = vst.msk [vmem:[#allocation3 + $0x40] sm:$0xff] %vm569, 0.0
          %595 = vst.msk [vmem:[#allocation3 + $0x48] sm:$0xff] %vm569, 0.0
          %596 = vst.msk [vmem:[#allocation3 + $0x50] sm:$0xff] %vm569, 0.0
          %597 = vst.msk [vmem:[#allocation3 + $0x58] sm:$0xff] %vm569, 0.0
          %598 = vst.msk [vmem:[#allocation3 + $0x60] sm:$0xff] %vm569, 0.0
          %599 = vst.msk [vmem:[#allocation3 + $0x68] sm:$0xff] %vm569, 0.0
          %600 = vst.msk [vmem:[#allocation3 + $0x70] sm:$0xff] %vm569, 0.0
          %601 = vst.msk [vmem:[#allocation3 + $0x78] sm:$0xff] %vm569, 0.0
          %vm602 = vcmask 261120
          %603 = vst.msk [vmem:[#allocation4] sm:$0xff] %vm602, 0.0
          %604 = vst.msk [vmem:[#allocation4 + $0x8] sm:$0xff] %vm602, 0.0
          %605 = vst.msk [vmem:[#allocation4 + $0x10] sm:$0xff] %vm602, 0.0
          %606 = vst.msk [vmem:[#allocation4 + $0x18] sm:$0xff] %vm602, 0.0
          %607 = vst.msk [vmem:[#allocation4 + $0x20] sm:$0xff] %vm602, 0.0
          %608 = vst.msk [vmem:[#allocation4 + $0x28] sm:$0xff] %vm602, 0.0
          %609 = vst.msk [vmem:[#allocation4 + $0x30] sm:$0xff] %vm602, 0.0
          %610 = vst.msk [vmem:[#allocation4 + $0x38] sm:$0xff] %vm602, 0.0
          %611 = vst.msk [vmem:[#allocation4 + $0x40] sm:$0xff] %vm602, 0.0
          %612 = vst.msk [vmem:[#allocation4 + $0x48] sm:$0xff] %vm602, 0.0
          %613 = vst.msk [vmem:[#allocation4 + $0x50] sm:$0xff] %vm602, 0.0
          %614 = vst.msk [vmem:[#allocation4 + $0x58] sm:$0xff] %vm602, 0.0
          %615 = vst.msk [vmem:[#allocation4 + $0x60] sm:$0xff] %vm602, 0.0
          %616 = vst.msk [vmem:[#allocation4 + $0x68] sm:$0xff] %vm602, 0.0
          %617 = vst.msk [vmem:[#allocation4 + $0x70] sm:$0xff] %vm602, 0.0
          %618 = vst.msk [vmem:[#allocation4 + $0x78] sm:$0xff] %vm602, 0.0
        $region159: #{sam_forward.63} parent=142 // pred_fallthru
          _
        %v619 = vld [vmem:[%s504] sm:$0xf]
        %v620 = vld [vmem:[%s504 + $0x4] sm:$0xf]
        %v621 = vld [vmem:[%s504 + $0x8] sm:$0xf]
        %v622 = vld [vmem:[%s504 + $0xc] sm:$0xf]
        %v623 = vld [vmem:[%s504 + $0x10] sm:$0xf]
        %v624 = vld [vmem:[%s504 + $0x14] sm:$0xf]
        %v625 = vld [vmem:[%s504 + $0x18] sm:$0xf]
        %v626 = vld [vmem:[%s504 + $0x1c] sm:$0xf]
        %v627 = vld [vmem:[%s504 + $0x20] sm:$0xf]
        %v628 = vld [vmem:[%s504 + $0x24] sm:$0xf]
        %v629 = vld [vmem:[%s504 + $0x28] sm:$0xf]
        %v630 = vld [vmem:[%s504 + $0x2c] sm:$0xf]
        %v631 = vld [vmem:[%s504 + $0x30] sm:$0xf]
        %v632 = vld [vmem:[%s504 + $0x34] sm:$0xf]
        %v633 = vld [vmem:[%s504 + $0x38] sm:$0xf]
        %v634 = vld [vmem:[%s504 + $0x3c] sm:$0xf]
        %v635 = vld [vmem:[%s511] sm:$0xf]
        %v636 = vld [vmem:[%s511 + $0x4] sm:$0xf]
        %v637 = vld [vmem:[%s511 + $0x8] sm:$0xf]
        %v638 = vld [vmem:[%s511 + $0xc] sm:$0xf]
        %v639 = vld [vmem:[%s511 + $0x10] sm:$0xf]
        %v640 = vld [vmem:[%s511 + $0x14] sm:$0xf]
        %v641 = vld [vmem:[%s511 + $0x18] sm:$0xf]
        %v642 = vld [vmem:[%s511 + $0x1c] sm:$0xf]
        %v643 = vld [vmem:[%s511 + $0x20] sm:$0xf]
        %v644 = vld [vmem:[%s511 + $0x24] sm:$0xf]
        %v645 = vld [vmem:[%s511 + $0x28] sm:$0xf]
        %v646 = vld [vmem:[%s511 + $0x2c] sm:$0xf]
        %v647 = vld [vmem:[%s511 + $0x30] sm:$0xf]
        %v648 = vld [vmem:[%s511 + $0x34] sm:$0xf]
        %v649 = vld [vmem:[%s511 + $0x38] sm:$0xf]
        %v650 = vld [vmem:[%s511 + $0x3c] sm:$0xf]
        %v651 = vld [vmem:[%s518] sm:$0xf]
        %v652 = vld [vmem:[%s518 + $0x4] sm:$0xf]
        %v653 = vld [vmem:[%s518 + $0x8] sm:$0xf]
        %v654 = vld [vmem:[%s518 + $0xc] sm:$0xf]
        %v655 = vld [vmem:[%s518 + $0x10] sm:$0xf]
        %v656 = vld [vmem:[%s518 + $0x14] sm:$0xf]
        %v657 = vld [vmem:[%s518 + $0x18] sm:$0xf]
        %v658 = vld [vmem:[%s518 + $0x1c] sm:$0xf]
        %v659 = vld [vmem:[%s518 + $0x20] sm:$0xf]
        %v660 = vld [vmem:[%s518 + $0x24] sm:$0xf]
        %v661 = vld [vmem:[%s518 + $0x28] sm:$0xf]
        %v662 = vld [vmem:[%s518 + $0x2c] sm:$0xf]
        %v663 = vld [vmem:[%s518 + $0x30] sm:$0xf]
        %v664 = vld [vmem:[%s518 + $0x34] sm:$0xf]
        %v665 = vld [vmem:[%s518 + $0x38] sm:$0xf]
        %v666 = vld [vmem:[%s518 + $0x3c] sm:$0xf]
        %v671 = vunpack.c.l.b16 %v619
        %v672 = vunpack.c.l.b16 %v620
        %v673 = vunpack.c.l.b16 %v621
        %v674 = vunpack.c.l.b16 %v622
        %v675 = vpack.c.b16 %v672, %v671
        %v676 = vpack.c.b16 %v674, %v673
        %v681 = vunpack.c.l.b16 %v635
        %v682 = vunpack.c.l.b16 %v636
        %v683 = vunpack.c.l.b16 %v637
        %v684 = vunpack.c.l.b16 %v638
        %v685 = vpack.c.b16 %v682, %v681
        %v686 = vpack.c.b16 %v684, %v683
        %vm687 = vcmask 261120
        %v689 = vsel %vm687, %v675, 0
        %v692 = vsel %vm687, %v676, 0
        %v695 = vsel %vm687, %v685, 0
        %v698 = vsel %vm687, %v686, 0
        %700 = vmatprep.subr.bf16.mxu0 0
        %701 = vmatpush1.bf16.xpose.msra.mxu0 %v695
        %702 = vmatprep.subr.bf16.mxu0 0
        %703 = vmatpush1.bf16.xpose.msra.mxu0 %v698
        %704 = vmatprep.subr.bf16.mxu0 0
        %705 = vmatpush1.bf16.xpose.msra.mxu0 0
        %706 = vmatprep.subr.bf16.mxu0 0
        %707 = vmatpush1.bf16.xpose.msra.mxu0 0
        %708 = vmatprep.subr.bf16.mxu0 0
        %709 = vmatpush1.bf16.xpose.msra.mxu0 0
        %710 = vmatprep.subr.bf16.mxu0 0
        %711 = vmatpush1.bf16.xpose.msra.mxu0 0
        %712 = vmatprep.subr.bf16.mxu0 0
        %713 = vmatpush1.bf16.xpose.msra.mxu0 0
        %714 = vmatprep.subr.bf16.mxu0 0
        %715 = vmatpush1.bf16.xpose.msra.mxu0 0
        %716 = vmatprep.subr.bf16.mxu0 0
        %717 = vmatpush1.bf16.xpose.msra.mxu0 0
        %718 = vmatprep.subr.bf16.mxu0 0
        %719 = vmatpush1.bf16.xpose.msra.mxu0 0
        %720 = vmatprep.subr.bf16.mxu0 0
        %721 = vmatpush1.bf16.xpose.msra.mxu0 0
        %722 = vmatprep.subr.bf16.mxu0 0
        %723 = vmatpush1.bf16.xpose.msra.mxu0 0
        %724 = vmatprep.subr.bf16.mxu0 0
        %725 = vmatpush1.bf16.xpose.msra.mxu0 0
        %726 = vmatprep.subr.bf16.mxu0 0
        %727 = vmatpush1.bf16.xpose.msra.mxu0 0
        %728 = vmatprep.subr.bf16.mxu0 0
        %729 = vmatpush1.bf16.xpose.msra.mxu0 0
        %730 = vmatprep.subr.bf16.mxu0 0
        %731 = vmatpush1.bf16.xpose.msra.mxu0 0
        %732 = vmatprep.mubr.bf16.mxu0 0
        %733 = vmatmul.mubr.bf16.gmra.mrb[0].mxu0 %v689
        %v734 = vpop.f32.mrb[0].mxu0
        %v735 = vadd.f32 0.0, %v734
        %v736 = vpop.f32.mrb[0].mxu0
        %v737 = vpop.f32.mrb[0].mxu0
        %v738 = vadd.f32 0.0, %v737
        %v739 = vpop.f32.mrb[0].mxu0
        %740 = vmatprep.mubr.bf16.mxu0 0
        %741 = vmatmul.mubr.bf16.gmra.mrb[0].mxu0 %v692
        %v742 = vpop.f32.mrb[0].mxu0
        %v743 = vadd.f32 0.0, %v742
        %v744 = vpop.f32.mrb[0].mxu0
        %v745 = vpop.f32.mrb[0].mxu0
        %v746 = vadd.f32 0.0, %v745
        %v747 = vpop.f32.mrb[0].mxu0
        %748 = vdwg.mxu0
        %v753 = vunpack.c.l.b16 %v623
        %v754 = vunpack.c.l.b16 %v624
        %v755 = vunpack.c.l.b16 %v625
        %v756 = vunpack.c.l.b16 %v626
        %v757 = vpack.c.b16 %v754, %v753
        %v758 = vpack.c.b16 %v756, %v755
        %v763 = vunpack.c.l.b16 %v639
        %v764 = vunpack.c.l.b16 %v640
        %v765 = vunpack.c.l.b16 %v641
        %v766 = vunpack.c.l.b16 %v642
        %v767 = vpack.c.b16 %v764, %v763
        %v768 = vpack.c.b16 %v766, %v765
        %v770 = vsel %vm687, %v757, 0
        %v773 = vsel %vm687, %v758, 0
        %v776 = vsel %vm687, %v767, 0
        %v779 = vsel %vm687, %v768, 0
        %781 = vmatprep.subr.bf16.mxu0 0
        %782 = vmatpush1.bf16.xpose.msra.mxu0 %v776
        %783 = vmatprep.subr.bf16.mxu0 0
        %784 = vmatpush1.bf16.xpose.msra.mxu0 %v779
        %785 = vmatprep.subr.bf16.mxu0 0
        %786 = vmatpush1.bf16.xpose.msra.mxu0 0
        %787 = vmatprep.subr.bf16.mxu0 0
        %788 = vmatpush1.bf16.xpose.msra.mxu0 0
        %789 = vmatprep.subr.bf16.mxu0 0
        %790 = vmatpush1.bf16.xpose.msra.mxu0 0
        %791 = vmatprep.subr.bf16.mxu0 0
        %792 = vmatpush1.bf16.xpose.msra.mxu0 0
        %793 = vmatprep.subr.bf16.mxu0 0
        %794 = vmatpush1.bf16.xpose.msra.mxu0 0
        %795 = vmatprep.subr.bf16.mxu0 0
        %796 = vmatpush1.bf16.xpose.msra.mxu0 0
        %797 = vmatprep.subr.bf16.mxu0 0
        %798 = vmatpush1.bf16.xpose.msra.mxu0 0
        %799 = vmatprep.subr.bf16.mxu0 0
        %800 = vmatpush1.bf16.xpose.msra.mxu0 0
        %801 = vmatprep.subr.bf16.mxu0 0
        %802 = vmatpush1.bf16.xpose.msra.mxu0 0
        %803 = vmatprep.subr.bf16.mxu0 0
        %804 = vmatpush1.bf16.xpose.msra.mxu0 0
        %805 = vmatprep.subr.bf16.mxu0 0
        %806 = vmatpush1.bf16.xpose.msra.mxu0 0
        %807 = vmatprep.subr.bf16.mxu0 0
        %808 = vmatpush1.bf16.xpose.msra.mxu0 0
        %809 = vmatprep.subr.bf16.mxu0 0
        %810 = vmatpush1.bf16.xpose.msra.mxu0 0
        %811 = vmatprep.subr.bf16.mxu0 0
        %812 = vmatpush1.bf16.xpose.msra.mxu0 0
        %813 = vmatprep.mubr.bf16.mxu0 0
        %814 = vmatmul.mubr.bf16.gmra.mrb[0].mxu0 %v770
        %v815 = vpop.f32.mrb[0].mxu0
        %v816 = vadd.f32 0.0, %v815
        %v817 = vpop.f32.mrb[0].mxu0
        %v818 = vpop.f32.mrb[0].mxu0
        %v819 = vadd.f32 0.0, %v818
        %v820 = vpop.f32.mrb[0].mxu0
        %821 = vmatprep.mubr.bf16.mxu0 0
        %822 = vmatmul.mubr.bf16.gmra.mrb[0].mxu0 %v773
        %v823 = vpop.f32.mrb[0].mxu0
        %v824 = vadd.f32 0.0, %v823
        %v825 = vpop.f32.mrb[0].mxu0
        %v826 = vpop.f32.mrb[0].mxu0
        %v827 = vadd.f32 0.0, %v826
        %v828 = vpop.f32.mrb[0].mxu0
        %829 = vdwg.mxu0
        %v834 = vunpack.c.l.b16 %v627
        %v835 = vunpack.c.l.b16 %v628
        %v836 = vunpack.c.l.b16 %v629
        %v837 = vunpack.c.l.b16 %v630
        %v838 = vpack.c.b16 %v835, %v834
        %v839 = vpack.c.b16 %v837, %v836
        %v844 = vunpack.c.l.b16 %v643
        %v845 = vunpack.c.l.b16 %v644
        %v846 = vunpack.c.l.b16 %v645
        %v847 = vunpack.c.l.b16 %v646
        %v848 = vpack.c.b16 %v845, %v844
        %v849 = vpack.c.b16 %v847, %v846
        %v851 = vsel %vm687, %v838, 0
        %v854 = vsel %vm687, %v839, 0
        %v857 = vsel %vm687, %v848, 0
        %v860 = vsel %vm687, %v849, 0
        %862 = vmatprep.subr.bf16.mxu0 0
        %863 = vmatpush1.bf16.xpose.msra.mxu0 %v857
        %864 = vmatprep.subr.bf16.mxu0 0
        %865 = vmatpush1.bf16.xpose.msra.mxu0 %v860
        %866 = vmatprep.subr.bf16.mxu0 0
        %867 = vmatpush1.bf16.xpose.msra.mxu0 0
        %868 = vmatprep.subr.bf16.mxu0 0
        %869 = vmatpush1.bf16.xpose.msra.mxu0 0
        %870 = vmatprep.subr.bf16.mxu0 0
        %871 = vmatpush1.bf16.xpose.msra.mxu0 0
        %872 = vmatprep.subr.bf16.mxu0 0
        %873 = vmatpush1.bf16.xpose.msra.mxu0 0
        %874 = vmatprep.subr.bf16.mxu0 0
        %875 = vmatpush1.bf16.xpose.msra.mxu0 0
        %876 = vmatprep.subr.bf16.mxu0 0
        %877 = vmatpush1.bf16.xpose.msra.mxu0 0
        %878 = vmatprep.subr.bf16.mxu0 0
        %879 = vmatpush1.bf16.xpose.msra.mxu0 0
        %880 = vmatprep.subr.bf16.mxu0 0
        %881 = vmatpush1.bf16.xpose.msra.mxu0 0
        %882 = vmatprep.subr.bf16.mxu0 0
        %883 = vmatpush1.bf16.xpose.msra.mxu0 0
        %884 = vmatprep.subr.bf16.mxu0 0
        %885 = vmatpush1.bf16.xpose.msra.mxu0 0
        %886 = vmatprep.subr.bf16.mxu0 0
        %887 = vmatpush1.bf16.xpose.msra.mxu0 0
        %888 = vmatprep.subr.bf16.mxu0 0
        %889 = vmatpush1.bf16.xpose.msra.mxu0 0
        %890 = vmatprep.subr.bf16.mxu0 0
        %891 = vmatpush1.bf16.xpose.msra.mxu0 0
        %892 = vmatprep.subr.bf16.mxu0 0
        %893 = vmatpush1.bf16.xpose.msra.mxu0 0
        %894 = vmatprep.mubr.bf16.mxu0 0
        %895 = vmatmul.mubr.bf16.gmra.mrb[0].mxu0 %v851
        %v896 = vpop.f32.mrb[0].mxu0
        %v897 = vadd.f32 0.0, %v896
        %v898 = vpop.f32.mrb[0].mxu0
        %v899 = vpop.f32.mrb[0].mxu0
        %v900 = vadd.f32 0.0, %v899
        %v901 = vpop.f32.mrb[0].mxu0
        %902 = vmatprep.mubr.bf16.mxu0 0
        %903 = vmatmul.mubr.bf16.gmra.mrb[0].mxu0 %v854
        %v904 = vpop.f32.mrb[0].mxu0
        %v905 = vadd.f32 0.0, %v904
        %v906 = vpop.f32.mrb[0].mxu0
        %v907 = vpop.f32.mrb[0].mxu0
        %v908 = vadd.f32 0.0, %v907
        %v909 = vpop.f32.mrb[0].mxu0
        %910 = vdwg.mxu0
        %v915 = vunpack.c.l.b16 %v631
        %v916 = vunpack.c.l.b16 %v632
        %v917 = vunpack.c.l.b16 %v633
        %v918 = vunpack.c.l.b16 %v634
        %v919 = vpack.c.b16 %v916, %v915
        %v920 = vpack.c.b16 %v918, %v917
        %v925 = vunpack.c.l.b16 %v647
        %v926 = vunpack.c.l.b16 %v648
        %v927 = vunpack.c.l.b16 %v649
        %v928 = vunpack.c.l.b16 %v650
        %v929 = vpack.c.b16 %v926, %v925
        %v930 = vpack.c.b16 %v928, %v927
        %v932 = vsel %vm687, %v919, 0
        %v935 = vsel %vm687, %v920, 0
        %v938 = vsel %vm687, %v929, 0
        %v941 = vsel %vm687, %v930, 0
        %943 = vmatprep.subr.bf16.mxu0 0
        %944 = vmatpush1.bf16.xpose.msra.mxu0 %v938
        %945 = vmatprep.subr.bf16.mxu0 0
        %946 = vmatpush1.bf16.xpose.msra.mxu0 %v941
        %947 = vmatprep.subr.bf16.mxu0 0
        %948 = vmatpush1.bf16.xpose.msra.mxu0 0
        %949 = vmatprep.subr.bf16.mxu0 0
        %950 = vmatpush1.bf16.xpose.msra.mxu0 0
        %951 = vmatprep.subr.bf16.mxu0 0
        %952 = vmatpush1.bf16.xpose.msra.mxu0 0
        %953 = vmatprep.subr.bf16.mxu0 0
        %954 = vmatpush1.bf16.xpose.msra.mxu0 0
        %955 = vmatprep.subr.bf16.mxu0 0
        %956 = vmatpush1.bf16.xpose.msra.mxu0 0
        %957 = vmatprep.subr.bf16.mxu0 0
        %958 = vmatpush1.bf16.xpose.msra.mxu0 0
        %959 = vmatprep.subr.bf16.mxu0 0
        %960 = vmatpush1.bf16.xpose.msra.mxu0 0
        %961 = vmatprep.subr.bf16.mxu0 0
        %962 = vmatpush1.bf16.xpose.msra.mxu0 0
        %963 = vmatprep.subr.bf16.mxu0 0
        %964 = vmatpush1.bf16.xpose.msra.mxu0 0
        %965 = vmatprep.subr.bf16.mxu0 0
        %966 = vmatpush1.bf16.xpose.msra.mxu0 0
        %967 = vmatprep.subr.bf16.mxu0 0
        %968 = vmatpush1.bf16.xpose.msra.mxu0 0
        %969 = vmatprep.subr.bf16.mxu0 0
        %970 = vmatpush1.bf16.xpose.msra.mxu0 0
        %971 = vmatprep.subr.bf16.mxu0 0
        %972 = vmatpush1.bf16.xpose.msra.mxu0 0
        %973 = vmatprep.subr.bf16.mxu0 0
        %974 = vmatpush1.bf16.xpose.msra.mxu0 0
        %975 = vmatprep.mubr.bf16.mxu0 0
        %976 = vmatmul.mubr.bf16.gmra.mrb[0].mxu0 %v932
        %v977 = vpop.f32.mrb[0].mxu0
        %v978 = vadd.f32 0.0, %v977
        %v979 = vpop.f32.mrb[0].mxu0
        %v980 = vpop.f32.mrb[0].mxu0
        %v981 = vadd.f32 0.0, %v980
        %v982 = vpop.f32.mrb[0].mxu0
        %983 = vmatprep.mubr.bf16.mxu0 0
        %984 = vmatmul.mubr.bf16.gmra.mrb[0].mxu0 %v935
        %v985 = vpop.f32.mrb[0].mxu0
        %v986 = vadd.f32 0.0, %v985
        %v987 = vpop.f32.mrb[0].mxu0
        %v988 = vpop.f32.mrb[0].mxu0
        %v989 = vadd.f32 0.0, %v988
        %v990 = vpop.f32.mrb[0].mxu0
        %991 = vdwg.mxu0
        %v992 = vld [vmem:[#allocation2] sm:$0xff]
        %v993 = vld [vmem:[#allocation2 + $0x8] sm:$0xff]
        %v994 = vld [vmem:[#allocation2 + $0x10] sm:$0xff]
        %v995 = vld [vmem:[#allocation2 + $0x18] sm:$0xff]
        %v996 = vld [vmem:[#allocation2 + $0x20] sm:$0xff]
        %v997 = vld [vmem:[#allocation2 + $0x28] sm:$0xff]
        %v998 = vld [vmem:[#allocation2 + $0x30] sm:$0xff]
        %v999 = vld [vmem:[#allocation2 + $0x38] sm:$0xff]
        %v1000 = vld [vmem:[#allocation2 + $0x40] sm:$0xff]
        %v1001 = vld [vmem:[#allocation2 + $0x48] sm:$0xff]
        %v1002 = vld [vmem:[#allocation2 + $0x50] sm:$0xff]
        %v1003 = vld [vmem:[#allocation2 + $0x58] sm:$0xff]
        %v1004 = vld [vmem:[#allocation2 + $0x60] sm:$0xff]
        %v1005 = vld [vmem:[#allocation2 + $0x68] sm:$0xff]
        %v1006 = vld [vmem:[#allocation2 + $0x70] sm:$0xff]
        %v1007 = vld [vmem:[#allocation2 + $0x78] sm:$0xff]
        %v1008 = vsel %vm687, %v735, -inf
        %1009 = vmax.xlane.f32.xlu0 %v1008
        %v1010 = vpop.xlane.xlu0 %1009
        %v1011 = vsel %vm687, %v738, -inf
        %1012 = vmax.xlane.f32.xlu0 %v1011
        %v1013 = vpop.xlane.xlu0 %1012
        %v1014 = vsel %vm687, %v743, -inf
        %1015 = vmax.xlane.f32.xlu0 %v1014
        %v1016 = vpop.xlane.xlu0 %1015
        %v1017 = vsel %vm687, %v746, -inf
        %1018 = vmax.xlane.f32.xlu0 %v1017
        %v1019 = vpop.xlane.xlu0 %1018
        %v1020 = vsel %vm687, %v816, -inf
        %1021 = vmax.xlane.f32.xlu0 %v1020
        %v1022 = vpop.xlane.xlu0 %1021
        %v1023 = vsel %vm687, %v819, -inf
        %1024 = vmax.xlane.f32.xlu0 %v1023
        %v1025 = vpop.xlane.xlu0 %1024
        %v1026 = vsel %vm687, %v824, -inf
        %1027 = vmax.xlane.f32.xlu0 %v1026
        %v1028 = vpop.xlane.xlu0 %1027
        %v1029 = vsel %vm687, %v827, -inf
        %1030 = vmax.xlane.f32.xlu0 %v1029
        %v1031 = vpop.xlane.xlu0 %1030
        %v1032 = vsel %vm687, %v897, -inf
        %1033 = vmax.xlane.f32.xlu0 %v1032
        %v1034 = vpop.xlane.xlu0 %1033
        %v1035 = vsel %vm687, %v900, -inf
        %1036 = vmax.xlane.f32.xlu0 %v1035
        %v1037 = vpop.xlane.xlu0 %1036
        %v1038 = vsel %vm687, %v905, -inf
        %1039 = vmax.xlane.f32.xlu0 %v1038
        %v1040 = vpop.xlane.xlu0 %1039
        %v1041 = vsel %vm687, %v908, -inf
        %1042 = vmax.xlane.f32.xlu0 %v1041
        %v1043 = vpop.xlane.xlu0 %1042
        %v1044 = vsel %vm687, %v978, -inf
        %1045 = vmax.xlane.f32.xlu0 %v1044
        %v1046 = vpop.xlane.xlu0 %1045
        %v1047 = vsel %vm687, %v981, -inf
        %1048 = vmax.xlane.f32.xlu0 %v1047
        %v1049 = vpop.xlane.xlu0 %1048
        %v1050 = vsel %vm687, %v986, -inf
        %1051 = vmax.xlane.f32.xlu0 %v1050
        %v1052 = vpop.xlane.xlu0 %1051
        %v1053 = vsel %vm687, %v989, -inf
        %1054 = vmax.xlane.f32.xlu0 %v1053
        %v1055 = vpop.xlane.xlu0 %1054
        %v1056 = vmax.f32 %v992, %v1010
        %v1057 = vmax.f32 %v993, %v1013
        %v1058 = vmax.f32 %v994, %v1016
        %v1059 = vmax.f32 %v995, %v1019
        %v1060 = vmax.f32 %v996, %v1022
        %v1061 = vmax.f32 %v997, %v1025
        %v1062 = vmax.f32 %v998, %v1028
        %v1063 = vmax.f32 %v999, %v1031
        %v1064 = vmax.f32 %v1000, %v1034
        %v1065 = vmax.f32 %v1001, %v1037
        %v1066 = vmax.f32 %v1002, %v1040
        %v1067 = vmax.f32 %v1003, %v1043
        %v1068 = vmax.f32 %v1004, %v1046
        %v1069 = vmax.f32 %v1005, %v1049
        %v1070 = vmax.f32 %v1006, %v1052
        %v1071 = vmax.f32 %v1007, %v1055
        %v1072 = vsub.f32 %v992, %v1056
        %v1073 = vsub.f32 %v993, %v1057
        %v1074 = vsub.f32 %v994, %v1058
        %v1075 = vsub.f32 %v995, %v1059
        %v1076 = vsub.f32 %v996, %v1060
        %v1077 = vsub.f32 %v997, %v1061
        %v1078 = vsub.f32 %v998, %v1062
        %v1079 = vsub.f32 %v999, %v1063
        %v1080 = vsub.f32 %v1000, %v1064
        %v1081 = vsub.f32 %v1001, %v1065
        %v1082 = vsub.f32 %v1002, %v1066
        %v1083 = vsub.f32 %v1003, %v1067
        %v1084 = vsub.f32 %v1004, %v1068
        %v1085 = vsub.f32 %v1005, %v1069
        %v1086 = vsub.f32 %v1006, %v1070
        %v1087 = vsub.f32 %v1007, %v1071
        %v1088 = vmul.f32 %v1072, 1.442695
        %v1089 = vpow.pop %v1088
        %v1090 = vmul.f32 %v1073, 1.442695
        %v1091 = vpow.pop %v1090
        %v1092 = vmul.f32 %v1074, 1.442695
        %v1093 = vpow.pop %v1092
        %v1094 = vmul.f32 %v1075, 1.442695
        %v1095 = vpow.pop %v1094
        %v1096 = vmul.f32 %v1076, 1.442695
        %v1097 = vpow.pop %v1096
        %v1098 = vmul.f32 %v1077, 1.442695
        %v1099 = vpow.pop %v1098
        %v1100 = vmul.f32 %v1078, 1.442695
        %v1101 = vpow.pop %v1100
        %v1102 = vmul.f32 %v1079, 1.442695
        %v1103 = vpow.pop %v1102
        %v1104 = vmul.f32 %v1080, 1.442695
        %v1105 = vpow.pop %v1104
        %v1106 = vmul.f32 %v1081, 1.442695
        %v1107 = vpow.pop %v1106
        %v1108 = vmul.f32 %v1082, 1.442695
        %v1109 = vpow.pop %v1108
        %v1110 = vmul.f32 %v1083, 1.442695
        %v1111 = vpow.pop %v1110
        %v1112 = vmul.f32 %v1084, 1.442695
        %v1113 = vpow.pop %v1112
        %v1114 = vmul.f32 %v1085, 1.442695
        %v1115 = vpow.pop %v1114
        %v1116 = vmul.f32 %v1086, 1.442695
        %v1117 = vpow.pop %v1116
        %v1118 = vmul.f32 %v1087, 1.442695
        %v1119 = vpow.pop %v1118
        %1121 = vset.pattern.permute.xlu0 0
        %1122 = vperm.xlu0 %1121, %v1056
        %v1123 = vpop.permute.xlu0 %1122
        %1126 = vset.pattern.permute.xlu0 0
        %1127 = vperm.xlu0 %1126, %v1057
        %v1128 = vpop.permute.xlu0 %1127
        %1131 = vset.pattern.permute.xlu0 0
        %1132 = vperm.xlu0 %1131, %v1058
        %v1133 = vpop.permute.xlu0 %1132
        %1136 = vset.pattern.permute.xlu0 0
        %1137 = vperm.xlu0 %1136, %v1059
        %v1138 = vpop.permute.xlu0 %1137
        %1141 = vset.pattern.permute.xlu0 0
        %1142 = vperm.xlu0 %1141, %v1060
        %v1143 = vpop.permute.xlu0 %1142
        %1146 = vset.pattern.permute.xlu0 0
        %1147 = vperm.xlu0 %1146, %v1061
        %v1148 = vpop.permute.xlu0 %1147
        %1151 = vset.pattern.permute.xlu0 0
        %1152 = vperm.xlu0 %1151, %v1062
        %v1153 = vpop.permute.xlu0 %1152
        %1156 = vset.pattern.permute.xlu0 0
        %1157 = vperm.xlu0 %1156, %v1063
        %v1158 = vpop.permute.xlu0 %1157
        %1161 = vset.pattern.permute.xlu0 0
        %1162 = vperm.xlu0 %1161, %v1064
        %v1163 = vpop.permute.xlu0 %1162
        %1166 = vset.pattern.permute.xlu0 0
        %1167 = vperm.xlu0 %1166, %v1065
        %v1168 = vpop.permute.xlu0 %1167
        %1171 = vset.pattern.permute.xlu0 0
        %1172 = vperm.xlu0 %1171, %v1066
        %v1173 = vpop.permute.xlu0 %1172
        %1176 = vset.pattern.permute.xlu0 0
        %1177 = vperm.xlu0 %1176, %v1067
        %v1178 = vpop.permute.xlu0 %1177
        %1181 = vset.pattern.permute.xlu0 0
        %1182 = vperm.xlu0 %1181, %v1068
        %v1183 = vpop.permute.xlu0 %1182
        %1186 = vset.pattern.permute.xlu0 0
        %1187 = vperm.xlu0 %1186, %v1069
        %v1188 = vpop.permute.xlu0 %1187
        %1191 = vset.pattern.permute.xlu0 0
        %1192 = vperm.xlu0 %1191, %v1070
        %v1193 = vpop.permute.xlu0 %1192
        %1196 = vset.pattern.permute.xlu0 0
        %1197 = vperm.xlu0 %1196, %v1071
        %v1198 = vpop.permute.xlu0 %1197
        %v1200 = vsub.f32 %v735, %v1123
        %v1201 = vsub.f32 %v738, %v1128
        %v1202 = vsub.f32 %v743, %v1133
        %v1203 = vsub.f32 %v746, %v1138
        %v1204 = vsub.f32 %v816, %v1143
        %v1205 = vsub.f32 %v819, %v1148
        %v1206 = vsub.f32 %v824, %v1153
        %v1207 = vsub.f32 %v827, %v1158
        %v1208 = vsub.f32 %v897, %v1163
        %v1209 = vsub.f32 %v900, %v1168
        %v1210 = vsub.f32 %v905, %v1173
        %v1211 = vsub.f32 %v908, %v1178
        %v1212 = vsub.f32 %v978, %v1183
        %v1213 = vsub.f32 %v981, %v1188
        %v1214 = vsub.f32 %v986, %v1193
        %v1215 = vsub.f32 %v989, %v1198
        %v1216 = vmul.f32 %v1200, 1.442695
        %v1217 = vpow.pop %v1216
        %v1218 = vmul.f32 %v1201, 1.442695
        %v1219 = vpow.pop %v1218
        %v1220 = vmul.f32 %v1202, 1.442695
        %v1221 = vpow.pop %v1220
        %v1222 = vmul.f32 %v1203, 1.442695
        %v1223 = vpow.pop %v1222
        %v1224 = vmul.f32 %v1204, 1.442695
        %v1225 = vpow.pop %v1224
        %v1226 = vmul.f32 %v1205, 1.442695
        %v1227 = vpow.pop %v1226
        %v1228 = vmul.f32 %v1206, 1.442695
        %v1229 = vpow.pop %v1228
        %v1230 = vmul.f32 %v1207, 1.442695
        %v1231 = vpow.pop %v1230
        %v1232 = vmul.f32 %v1208, 1.442695
        %v1233 = vpow.pop %v1232
        %v1234 = vmul.f32 %v1209, 1.442695
        %v1235 = vpow.pop %v1234
        %v1236 = vmul.f32 %v1210, 1.442695
        %v1237 = vpow.pop %v1236
        %v1238 = vmul.f32 %v1211, 1.442695
        %v1239 = vpow.pop %v1238
        %v1240 = vmul.f32 %v1212, 1.442695
        %v1241 = vpow.pop %v1240
        %v1242 = vmul.f32 %v1213, 1.442695
        %v1243 = vpow.pop %v1242
        %v1244 = vmul.f32 %v1214, 1.442695
        %v1245 = vpow.pop %v1244
        %v1246 = vmul.f32 %v1215, 1.442695
        %v1247 = vpow.pop %v1246
        %v1248 = vld [vmem:[#allocation3] sm:$0xff]
        %v1249 = vld [vmem:[#allocation3 + $0x8] sm:$0xff]
        %v1250 = vld [vmem:[#allocation3 + $0x10] sm:$0xff]
        %v1251 = vld [vmem:[#allocation3 + $0x18] sm:$0xff]
        %v1252 = vld [vmem:[#allocation3 + $0x20] sm:$0xff]
        %v1253 = vld [vmem:[#allocation3 + $0x28] sm:$0xff]
        %v1254 = vld [vmem:[#allocation3 + $0x30] sm:$0xff]
        %v1255 = vld [vmem:[#allocation3 + $0x38] sm:$0xff]
        %v1256 = vld [vmem:[#allocation3 + $0x40] sm:$0xff]
        %v1257 = vld [vmem:[#allocation3 + $0x48] sm:$0xff]
        %v1258 = vld [vmem:[#allocation3 + $0x50] sm:$0xff]
        %v1259 = vld [vmem:[#allocation3 + $0x58] sm:$0xff]
        %v1260 = vld [vmem:[#allocation3 + $0x60] sm:$0xff]
        %v1261 = vld [vmem:[#allocation3 + $0x68] sm:$0xff]
        %v1262 = vld [vmem:[#allocation3 + $0x70] sm:$0xff]
        %v1263 = vld [vmem:[#allocation3 + $0x78] sm:$0xff]
        %v1264 = vmul.f32 %v1089, %v1248
        %v1265 = vmul.f32 %v1091, %v1249
        %v1266 = vmul.f32 %v1093, %v1250
        %v1267 = vmul.f32 %v1095, %v1251
        %v1268 = vmul.f32 %v1097, %v1252
        %v1269 = vmul.f32 %v1099, %v1253
        %v1270 = vmul.f32 %v1101, %v1254
        %v1271 = vmul.f32 %v1103, %v1255
        %v1272 = vmul.f32 %v1105, %v1256
        %v1273 = vmul.f32 %v1107, %v1257
        %v1274 = vmul.f32 %v1109, %v1258
        %v1275 = vmul.f32 %v1111, %v1259
        %v1276 = vmul.f32 %v1113, %v1260
        %v1277 = vmul.f32 %v1115, %v1261
        %v1278 = vmul.f32 %v1117, %v1262
        %v1279 = vmul.f32 %v1119, %v1263
        %v1280 = vsel %vm687, %v1217, 0.0
        %1281 = vadd.xlane.f32.xlu0 %v1280
        %v1282 = vpop.xlane.xlu0 %1281
        %v1283 = vsel %vm687, %v1219, 0.0
        %1284 = vadd.xlane.f32.xlu0 %v1283
        %v1285 = vpop.xlane.xlu0 %1284
        %v1286 = vsel %vm687, %v1221, 0.0
        %1287 = vadd.xlane.f32.xlu0 %v1286
        %v1288 = vpop.xlane.xlu0 %1287
        %v1289 = vsel %vm687, %v1223, 0.0
        %1290 = vadd.xlane.f32.xlu0 %v1289
        %v1291 = vpop.xlane.xlu0 %1290
        %v1292 = vsel %vm687, %v1225, 0.0
        %1293 = vadd.xlane.f32.xlu0 %v1292
        %v1294 = vpop.xlane.xlu0 %1293
        %v1295 = vsel %vm687, %v1227, 0.0
        %1296 = vadd.xlane.f32.xlu0 %v1295
        %v1297 = vpop.xlane.xlu0 %1296
        %v1298 = vsel %vm687, %v1229, 0.0
        %1299 = vadd.xlane.f32.xlu0 %v1298
        %v1300 = vpop.xlane.xlu0 %1299
        %v1301 = vsel %vm687, %v1231, 0.0
        %1302 = vadd.xlane.f32.xlu0 %v1301
        %v1303 = vpop.xlane.xlu0 %1302
        %v1304 = vsel %vm687, %v1233, 0.0
        %1305 = vadd.xlane.f32.xlu0 %v1304
        %v1306 = vpop.xlane.xlu0 %1305
        %v1307 = vsel %vm687, %v1235, 0.0
        %1308 = vadd.xlane.f32.xlu0 %v1307
        %v1309 = vpop.xlane.xlu0 %1308
        %v1310 = vsel %vm687, %v1237, 0.0
        %1311 = vadd.xlane.f32.xlu0 %v1310
        %v1312 = vpop.xlane.xlu0 %1311
        %v1313 = vsel %vm687, %v1239, 0.0
        %1314 = vadd.xlane.f32.xlu0 %v1313
        %v1315 = vpop.xlane.xlu0 %1314
        %v1316 = vsel %vm687, %v1241, 0.0
        %1317 = vadd.xlane.f32.xlu0 %v1316
        %v1318 = vpop.xlane.xlu0 %1317
        %v1319 = vsel %vm687, %v1243, 0.0
        %1320 = vadd.xlane.f32.xlu0 %v1319
        %v1321 = vpop.xlane.xlu0 %1320
        %v1322 = vsel %vm687, %v1245, 0.0
        %1323 = vadd.xlane.f32.xlu0 %v1322
        %v1324 = vpop.xlane.xlu0 %1323
        %v1325 = vsel %vm687, %v1247, 0.0
        %1326 = vadd.xlane.f32.xlu0 %v1325
        %v1327 = vpop.xlane.xlu0 %1326
        %v1328 = vadd.f32 %v1264, %v1282
        %v1329 = vadd.f32 %v1265, %v1285
        %v1330 = vadd.f32 %v1266, %v1288
        %v1331 = vadd.f32 %v1267, %v1291
        %v1332 = vadd.f32 %v1268, %v1294
        %v1333 = vadd.f32 %v1269, %v1297
        %v1334 = vadd.f32 %v1270, %v1300
        %v1335 = vadd.f32 %v1271, %v1303
        %v1336 = vadd.f32 %v1272, %v1306
        %v1337 = vadd.f32 %v1273, %v1309
        %v1338 = vadd.f32 %v1274, %v1312
        %v1339 = vadd.f32 %v1275, %v1315
        %v1340 = vadd.f32 %v1276, %v1318
        %v1341 = vadd.f32 %v1277, %v1321
        %v1342 = vadd.f32 %v1278, %v1324
        %v1343 = vadd.f32 %v1279, %v1327
        %vm1344 = vcmask 7168
        %1345 = vst.msk [vmem:[#allocation3] sm:$0xff] %vm1344, %v1328
        %1346 = vst.msk [vmem:[#allocation3 + $0x8] sm:$0xff] %vm1344, %v1329
        %1347 = vst.msk [vmem:[#allocation3 + $0x10] sm:$0xff] %vm1344, %v1330
        %1348 = vst.msk [vmem:[#allocation3 + $0x18] sm:$0xff] %vm1344, %v1331
        %1349 = vst.msk [vmem:[#allocation3 + $0x20] sm:$0xff] %vm1344, %v1332
        %1350 = vst.msk [vmem:[#allocation3 + $0x28] sm:$0xff] %vm1344, %v1333
        %1351 = vst.msk [vmem:[#allocation3 + $0x30] sm:$0xff] %vm1344, %v1334
        %1352 = vst.msk [vmem:[#allocation3 + $0x38] sm:$0xff] %vm1344, %v1335
        %1353 = vst.msk [vmem:[#allocation3 + $0x40] sm:$0xff] %vm1344, %v1336
        %1354 = vst.msk [vmem:[#allocation3 + $0x48] sm:$0xff] %vm1344, %v1337
        %1355 = vst.msk [vmem:[#allocation3 + $0x50] sm:$0xff] %vm1344, %v1338
        %1356 = vst.msk [vmem:[#allocation3 + $0x58] sm:$0xff] %vm1344, %v1339
        %1357 = vst.msk [vmem:[#allocation3 + $0x60] sm:$0xff] %vm1344, %v1340
        %1358 = vst.msk [vmem:[#allocation3 + $0x68] sm:$0xff] %vm1344, %v1341
        %1359 = vst.msk [vmem:[#allocation3 + $0x70] sm:$0xff] %vm1344, %v1342
        %1360 = vst.msk [vmem:[#allocation3 + $0x78] sm:$0xff] %vm1344, %v1343
        %v1361 = vld [vmem:[#allocation4] sm:$0xff]
        %v1362 = vld [vmem:[#allocation4 + $0x8] sm:$0xff]
        %v1363 = vld [vmem:[#allocation4 + $0x10] sm:$0xff]
        %v1364 = vld [vmem:[#allocation4 + $0x18] sm:$0xff]
        %v1365 = vld [vmem:[#allocation4 + $0x20] sm:$0xff]
        %v1366 = vld [vmem:[#allocation4 + $0x28] sm:$0xff]
        %v1367 = vld [vmem:[#allocation4 + $0x30] sm:$0xff]
        %v1368 = vld [vmem:[#allocation4 + $0x38] sm:$0xff]
        %v1369 = vld [vmem:[#allocation4 + $0x40] sm:$0xff]
        %v1370 = vld [vmem:[#allocation4 + $0x48] sm:$0xff]
        %v1371 = vld [vmem:[#allocation4 + $0x50] sm:$0xff]
        %v1372 = vld [vmem:[#allocation4 + $0x58] sm:$0xff]
        %v1373 = vld [vmem:[#allocation4 + $0x60] sm:$0xff]
        %v1374 = vld [vmem:[#allocation4 + $0x68] sm:$0xff]
        %v1375 = vld [vmem:[#allocation4 + $0x70] sm:$0xff]
        %v1376 = vld [vmem:[#allocation4 + $0x78] sm:$0xff]
        %1378 = vset.pattern.permute.xlu0 0
        %1379 = vperm.xlu0 %1378, %v1089
        %v1380 = vpop.permute.xlu0 %1379
        %1383 = vset.pattern.permute.xlu0 0
        %1384 = vperm.xlu0 %1383, %v1091
        %v1385 = vpop.permute.xlu0 %1384
        %1388 = vset.pattern.permute.xlu0 0
        %1389 = vperm.xlu0 %1388, %v1093
        %v1390 = vpop.permute.xlu0 %1389
        %1393 = vset.pattern.permute.xlu0 0
        %1394 = vperm.xlu0 %1393, %v1095
        %v1395 = vpop.permute.xlu0 %1394
        %1398 = vset.pattern.permute.xlu0 0
        %1399 = vperm.xlu0 %1398, %v1097
        %v1400 = vpop.permute.xlu0 %1399
        %1403 = vset.pattern.permute.xlu0 0
        %1404 = vperm.xlu0 %1403, %v1099
        %v1405 = vpop.permute.xlu0 %1404
        %1408 = vset.pattern.permute.xlu0 0
        %1409 = vperm.xlu0 %1408, %v1101
        %v1410 = vpop.permute.xlu0 %1409
        %1413 = vset.pattern.permute.xlu0 0
        %1414 = vperm.xlu0 %1413, %v1103
        %v1415 = vpop.permute.xlu0 %1414
        %1418 = vset.pattern.permute.xlu0 0
        %1419 = vperm.xlu0 %1418, %v1105
        %v1420 = vpop.permute.xlu0 %1419
        %1423 = vset.pattern.permute.xlu0 0
        %1424 = vperm.xlu0 %1423, %v1107
        %v1425 = vpop.permute.xlu0 %1424
        %1428 = vset.pattern.permute.xlu0 0
        %1429 = vperm.xlu0 %1428, %v1109
        %v1430 = vpop.permute.xlu0 %1429
        %1433 = vset.pattern.permute.xlu0 0
        %1434 = vperm.xlu0 %1433, %v1111
        %v1435 = vpop.permute.xlu0 %1434
        %1438 = vset.pattern.permute.xlu0 0
        %1439 = vperm.xlu0 %1438, %v1113
        %v1440 = vpop.permute.xlu0 %1439
        %1443 = vset.pattern.permute.xlu0 0
        %1444 = vperm.xlu0 %1443, %v1115
        %v1445 = vpop.permute.xlu0 %1444
        %1448 = vset.pattern.permute.xlu0 0
        %1449 = vperm.xlu0 %1448, %v1117
        %v1450 = vpop.permute.xlu0 %1449
        %1453 = vset.pattern.permute.xlu0 0
        %1454 = vperm.xlu0 %1453, %v1119
        %v1455 = vpop.permute.xlu0 %1454
        %v1457 = vmul.f32 %v1380, %v1361
        %v1458 = vmul.f32 %v1385, %v1362
        %v1459 = vmul.f32 %v1390, %v1363
        %v1460 = vmul.f32 %v1395, %v1364
        %v1461 = vmul.f32 %v1400, %v1365
        %v1462 = vmul.f32 %v1405, %v1366
        %v1463 = vmul.f32 %v1410, %v1367
        %v1464 = vmul.f32 %v1415, %v1368
        %v1465 = vmul.f32 %v1420, %v1369
        %v1466 = vmul.f32 %v1425, %v1370
        %v1467 = vmul.f32 %v1430, %v1371
        %v1468 = vmul.f32 %v1435, %v1372
        %v1469 = vmul.f32 %v1440, %v1373
        %v1470 = vmul.f32 %v1445, %v1374
        %v1471 = vmul.f32 %v1450, %v1375
        %v1472 = vmul.f32 %v1455, %v1376
        %v1473 = vpack.c.bf16 %v1219, %v1217
        %v1474 = vpack.c.bf16 %v1223, %v1221
        %v1475 = vpack.c.bf16 %v1227, %v1225
        %v1476 = vpack.c.bf16 %v1231, %v1229
        %v1477 = vpack.c.bf16 %v1235, %v1233
        %v1478 = vpack.c.bf16 %v1239, %v1237
        %v1479 = vpack.c.bf16 %v1243, %v1241
        %v1480 = vpack.c.bf16 %v1247, %v1245
        %v1485 = vunpack.c.l.b16 %v651
        %v1486 = vunpack.c.l.b16 %v652
        %v1487 = vunpack.c.l.b16 %v653
        %v1488 = vunpack.c.l.b16 %v654
        %v1489 = vpack.c.b16 %v1486, %v1485
        %v1490 = vpack.c.b16 %v1488, %v1487
        %v1494 = vsel %vm687, %v1473, 0
        %v1497 = vsel %vm687, %v1474, 0
        %1499 = vmatprep.subr.bf16.mxu0 0
        %1500 = vmatpush1.bf16.msra.mxu0 %v1489
        %1501 = vmatprep.subr.bf16.mxu0 0
        %1502 = vmatpush1.bf16.msra.mxu0 %v1490
        %1503 = vmatprep.subr.bf16.mxu0 0
        %1504 = vmatpush1.bf16.msra.mxu0 0
        %1505 = vmatprep.subr.bf16.mxu0 0
        %1506 = vmatpush1.bf16.msra.mxu0 0
        %1507 = vmatprep.subr.bf16.mxu0 0
        %1508 = vmatpush1.bf16.msra.mxu0 0
        %1509 = vmatprep.subr.bf16.mxu0 0
        %1510 = vmatpush1.bf16.msra.mxu0 0
        %1511 = vmatprep.subr.bf16.mxu0 0
        %1512 = vmatpush1.bf16.msra.mxu0 0
        %1513 = vmatprep.subr.bf16.mxu0 0
        %1514 = vmatpush1.bf16.msra.mxu0 0
        %1515 = vmatprep.subr.bf16.mxu0 0
        %1516 = vmatpush1.bf16.msra.mxu0 0
        %1517 = vmatprep.subr.bf16.mxu0 0
        %1518 = vmatpush1.bf16.msra.mxu0 0
        %1519 = vmatprep.subr.bf16.mxu0 0
        %1520 = vmatpush1.bf16.msra.mxu0 0
        %1521 = vmatprep.subr.bf16.mxu0 0
        %1522 = vmatpush1.bf16.msra.mxu0 0
        %1523 = vmatprep.subr.bf16.mxu0 0
        %1524 = vmatpush1.bf16.msra.mxu0 0
        %1525 = vmatprep.subr.bf16.mxu0 0
        %1526 = vmatpush1.bf16.msra.mxu0 0
        %1527 = vmatprep.subr.bf16.mxu0 0
        %1528 = vmatpush1.bf16.msra.mxu0 0
        %1529 = vmatprep.subr.bf16.mxu0 0
        %1530 = vmatpush1.bf16.msra.mxu0 0
        %1531 = vmatprep.mubr.bf16.mxu0 0
        %1532 = vmatmul.mubr.bf16.gmra.mrb[0].mxu0 %v1494
        %v1533 = vpop.f32.mrb[0].mxu0
        %v1534 = vadd.f32 0.0, %v1533
        %v1535 = vpop.f32.mrb[0].mxu0
        %v1536 = vpop.f32.mrb[0].mxu0
        %v1537 = vadd.f32 0.0, %v1536
        %v1538 = vpop.f32.mrb[0].mxu0
        %1539 = vmatprep.mubr.bf16.mxu0 0
        %1540 = vmatmul.mubr.bf16.gmra.mrb[0].mxu0 %v1497
        %v1541 = vpop.f32.mrb[0].mxu0
        %v1542 = vadd.f32 0.0, %v1541
        %v1543 = vpop.f32.mrb[0].mxu0
        %v1544 = vpop.f32.mrb[0].mxu0
        %v1545 = vadd.f32 0.0, %v1544
        %v1546 = vpop.f32.mrb[0].mxu0
        %1547 = vdwg.mxu0
        %v1552 = vunpack.c.l.b16 %v655
        %v1553 = vunpack.c.l.b16 %v656
        %v1554 = vunpack.c.l.b16 %v657
        %v1555 = vunpack.c.l.b16 %v658
        %v1556 = vpack.c.b16 %v1553, %v1552
        %v1557 = vpack.c.b16 %v1555, %v1554
        %v1561 = vsel %vm687, %v1475, 0
        %v1564 = vsel %vm687, %v1476, 0
        %1566 = vmatprep.subr.bf16.mxu0 0
        %1567 = vmatpush1.bf16.msra.mxu0 %v1556
        %1568 = vmatprep.subr.bf16.mxu0 0
        %1569 = vmatpush1.bf16.msra.mxu0 %v1557
        %1570 = vmatprep.subr.bf16.mxu0 0
        %1571 = vmatpush1.bf16.msra.mxu0 0
        %1572 = vmatprep.subr.bf16.mxu0 0
        %1573 = vmatpush1.bf16.msra.mxu0 0
        %1574 = vmatprep.subr.bf16.mxu0 0
        %1575 = vmatpush1.bf16.msra.mxu0 0
        %1576 = vmatprep.subr.bf16.mxu0 0
        %1577 = vmatpush1.bf16.msra.mxu0 0
        %1578 = vmatprep.subr.bf16.mxu0 0
        %1579 = vmatpush1.bf16.msra.mxu0 0
        %1580 = vmatprep.subr.bf16.mxu0 0
        %1581 = vmatpush1.bf16.msra.mxu0 0
        %1582 = vmatprep.subr.bf16.mxu0 0
        %1583 = vmatpush1.bf16.msra.mxu0 0
        %1584 = vmatprep.subr.bf16.mxu0 0
        %1585 = vmatpush1.bf16.msra.mxu0 0
        %1586 = vmatprep.subr.bf16.mxu0 0
        %1587 = vmatpush1.bf16.msra.mxu0 0
        %1588 = vmatprep.subr.bf16.mxu0 0
        %1589 = vmatpush1.bf16.msra.mxu0 0
        %1590 = vmatprep.subr.bf16.mxu0 0
        %1591 = vmatpush1.bf16.msra.mxu0 0
        %1592 = vmatprep.subr.bf16.mxu0 0
        %1593 = vmatpush1.bf16.msra.mxu0 0
        %1594 = vmatprep.subr.bf16.mxu0 0
        %1595 = vmatpush1.bf16.msra.mxu0 0
        %1596 = vmatprep.subr.bf16.mxu0 0
        %1597 = vmatpush1.bf16.msra.mxu0 0
        %1598 = vmatprep.mubr.bf16.mxu0 0
        %1599 = vmatmul.mubr.bf16.gmra.mrb[0].mxu0 %v1561
        %v1600 = vpop.f32.mrb[0].mxu0
        %v1601 = vadd.f32 0.0, %v1600
        %v1602 = vpop.f32.mrb[0].mxu0
        %v1603 = vpop.f32.mrb[0].mxu0
        %v1604 = vadd.f32 0.0, %v1603
        %v1605 = vpop.f32.mrb[0].mxu0
        %1606 = vmatprep.mubr.bf16.mxu0 0
        %1607 = vmatmul.mubr.bf16.gmra.mrb[0].mxu0 %v1564
        %v1608 = vpop.f32.mrb[0].mxu0
        %v1609 = vadd.f32 0.0, %v1608
        %v1610 = vpop.f32.mrb[0].mxu0
        %v1611 = vpop.f32.mrb[0].mxu0
        %v1612 = vadd.f32 0.0, %v1611
        %v1613 = vpop.f32.mrb[0].mxu0
        %1614 = vdwg.mxu0
        %v1619 = vunpack.c.l.b16 %v659
        %v1620 = vunpack.c.l.b16 %v660
        %v1621 = vunpack.c.l.b16 %v661
        %v1622 = vunpack.c.l.b16 %v662
        %v1623 = vpack.c.b16 %v1620, %v1619
        %v1624 = vpack.c.b16 %v1622, %v1621
        %v1628 = vsel %vm687, %v1477, 0
        %v1631 = vsel %vm687, %v1478, 0
        %1633 = vmatprep.subr.bf16.mxu0 0
        %1634 = vmatpush1.bf16.msra.mxu0 %v1623
        %1635 = vmatprep.subr.bf16.mxu0 0
        %1636 = vmatpush1.bf16.msra.mxu0 %v1624
        %1637 = vmatprep.subr.bf16.mxu0 0
        %1638 = vmatpush1.bf16.msra.mxu0 0
        %1639 = vmatprep.subr.bf16.mxu0 0
        %1640 = vmatpush1.bf16.msra.mxu0 0
        %1641 = vmatprep.subr.bf16.mxu0 0
        %1642 = vmatpush1.bf16.msra.mxu0 0
        %1643 = vmatprep.subr.bf16.mxu0 0
        %1644 = vmatpush1.bf16.msra.mxu0 0
        %1645 = vmatprep.subr.bf16.mxu0 0
        %1646 = vmatpush1.bf16.msra.mxu0 0
        %1647 = vmatprep.subr.bf16.mxu0 0
        %1648 = vmatpush1.bf16.msra.mxu0 0
        %1649 = vmatprep.subr.bf16.mxu0 0
        %1650 = vmatpush1.bf16.msra.mxu0 0
        %1651 = vmatprep.subr.bf16.mxu0 0
        %1652 = vmatpush1.bf16.msra.mxu0 0
        %1653 = vmatprep.subr.bf16.mxu0 0
        %1654 = vmatpush1.bf16.msra.mxu0 0
        %1655 = vmatprep.subr.bf16.mxu0 0
        %1656 = vmatpush1.bf16.msra.mxu0 0
        %1657 = vmatprep.subr.bf16.mxu0 0
        %1658 = vmatpush1.bf16.msra.mxu0 0
        %1659 = vmatprep.subr.bf16.mxu0 0
        %1660 = vmatpush1.bf16.msra.mxu0 0
        %1661 = vmatprep.subr.bf16.mxu0 0
        %1662 = vmatpush1.bf16.msra.mxu0 0
        %1663 = vmatprep.subr.bf16.mxu0 0
        %1664 = vmatpush1.bf16.msra.mxu0 0
        %1665 = vmatprep.mubr.bf16.mxu0 0
        %1666 = vmatmul.mubr.bf16.gmra.mrb[0].mxu0 %v1628
        %v1667 = vpop.f32.mrb[0].mxu0
        %v1668 = vadd.f32 0.0, %v1667
        %v1669 = vpop.f32.mrb[0].mxu0
        %v1670 = vpop.f32.mrb[0].mxu0
        %v1671 = vadd.f32 0.0, %v1670
        %v1672 = vpop.f32.mrb[0].mxu0
        %1673 = vmatprep.mubr.bf16.mxu0 0
        %1674 = vmatmul.mubr.bf16.gmra.mrb[0].mxu0 %v1631
        %v1675 = vpop.f32.mrb[0].mxu0
        %v1676 = vadd.f32 0.0, %v1675
        %v1677 = vpop.f32.mrb[0].mxu0
        %v1678 = vpop.f32.mrb[0].mxu0
        %v1679 = vadd.f32 0.0, %v1678
        %v1680 = vpop.f32.mrb[0].mxu0
        %1681 = vdwg.mxu0
        %v1686 = vunpack.c.l.b16 %v663
        %v1687 = vunpack.c.l.b16 %v664
        %v1688 = vunpack.c.l.b16 %v665
        %v1689 = vunpack.c.l.b16 %v666
        %v1690 = vpack.c.b16 %v1687, %v1686
        %v1691 = vpack.c.b16 %v1689, %v1688
        %v1695 = vsel %vm687, %v1479, 0
        %v1698 = vsel %vm687, %v1480, 0
        %1700 = vmatprep.subr.bf16.mxu0 0
        %1701 = vmatpush1.bf16.msra.mxu0 %v1690
        %1702 = vmatprep.subr.bf16.mxu0 0
        %1703 = vmatpush1.bf16.msra.mxu0 %v1691
        %1704 = vmatprep.subr.bf16.mxu0 0
        %1705 = vmatpush1.bf16.msra.mxu0 0
        %1706 = vmatprep.subr.bf16.mxu0 0
        %1707 = vmatpush1.bf16.msra.mxu0 0
        %1708 = vmatprep.subr.bf16.mxu0 0
        %1709 = vmatpush1.bf16.msra.mxu0 0
        %1710 = vmatprep.subr.bf16.mxu0 0
        %1711 = vmatpush1.bf16.msra.mxu0 0
        %1712 = vmatprep.subr.bf16.mxu0 0
        %1713 = vmatpush1.bf16.msra.mxu0 0
        %1714 = vmatprep.subr.bf16.mxu0 0
        %1715 = vmatpush1.bf16.msra.mxu0 0
        %1716 = vmatprep.subr.bf16.mxu0 0
        %1717 = vmatpush1.bf16.msra.mxu0 0
        %1718 = vmatprep.subr.bf16.mxu0 0
        %1719 = vmatpush1.bf16.msra.mxu0 0
        %1720 = vmatprep.subr.bf16.mxu0 0
        %1721 = vmatpush1.bf16.msra.mxu0 0
        %1722 = vmatprep.subr.bf16.mxu0 0
        %1723 = vmatpush1.bf16.msra.mxu0 0
        %1724 = vmatprep.subr.bf16.mxu0 0
        %1725 = vmatpush1.bf16.msra.mxu0 0
        %1726 = vmatprep.subr.bf16.mxu0 0
        %1727 = vmatpush1.bf16.msra.mxu0 0
        %1728 = vmatprep.subr.bf16.mxu0 0
        %1729 = vmatpush1.bf16.msra.mxu0 0
        %1730 = vmatprep.subr.bf16.mxu0 0
        %1731 = vmatpush1.bf16.msra.mxu0 0
        %1732 = vmatprep.mubr.bf16.mxu0 0
        %1733 = vmatmul.mubr.bf16.gmra.mrb[0].mxu0 %v1695
        %v1734 = vpop.f32.mrb[0].mxu0
        %v1735 = vadd.f32 0.0, %v1734
        %v1736 = vpop.f32.mrb[0].mxu0
        %v1737 = vpop.f32.mrb[0].mxu0
        %v1738 = vadd.f32 0.0, %v1737
        %v1739 = vpop.f32.mrb[0].mxu0
        %1740 = vmatprep.mubr.bf16.mxu0 0
        %1741 = vmatmul.mubr.bf16.gmra.mrb[0].mxu0 %v1698
        %v1742 = vpop.f32.mrb[0].mxu0
        %v1743 = vadd.f32 0.0, %v1742
        %v1744 = vpop.f32.mrb[0].mxu0
        %v1745 = vpop.f32.mrb[0].mxu0
        %v1746 = vadd.f32 0.0, %v1745
        %v1747 = vpop.f32.mrb[0].mxu0
        %1748 = vdwg.mxu0
        %v1749 = vadd.f32 %v1457, %v1534
        %v1750 = vadd.f32 %v1458, %v1537
        %v1751 = vadd.f32 %v1459, %v1542
        %v1752 = vadd.f32 %v1460, %v1545
        %v1753 = vadd.f32 %v1461, %v1601
        %v1754 = vadd.f32 %v1462, %v1604
        %v1755 = vadd.f32 %v1463, %v1609
        %v1756 = vadd.f32 %v1464, %v1612
        %v1757 = vadd.f32 %v1465, %v1668
        %v1758 = vadd.f32 %v1466, %v1671
        %v1759 = vadd.f32 %v1467, %v1676
        %v1760 = vadd.f32 %v1468, %v1679
        %v1761 = vadd.f32 %v1469, %v1735
        %v1762 = vadd.f32 %v1470, %v1738
        %v1763 = vadd.f32 %v1471, %v1743
        %v1764 = vadd.f32 %v1472, %v1746
        %1765 = vst.msk [vmem:[#allocation4] sm:$0xff] %vm687, %v1749
        %1766 = vst.msk [vmem:[#allocation4 + $0x8] sm:$0xff] %vm687, %v1750
        %1767 = vst.msk [vmem:[#allocation4 + $0x10] sm:$0xff] %vm687, %v1751
        %1768 = vst.msk [vmem:[#allocation4 + $0x18] sm:$0xff] %vm687, %v1752
        %1769 = vst.msk [vmem:[#allocation4 + $0x20] sm:$0xff] %vm687, %v1753
        %1770 = vst.msk [vmem:[#allocation4 + $0x28] sm:$0xff] %vm687, %v1754
        %1771 = vst.msk [vmem:[#allocation4 + $0x30] sm:$0xff] %vm687, %v1755
        %1772 = vst.msk [vmem:[#allocation4 + $0x38] sm:$0xff] %vm687, %v1756
        %1773 = vst.msk [vmem:[#allocation4 + $0x40] sm:$0xff] %vm687, %v1757
        %1774 = vst.msk [vmem:[#allocation4 + $0x48] sm:$0xff] %vm687, %v1758
        %1775 = vst.msk [vmem:[#allocation4 + $0x50] sm:$0xff] %vm687, %v1759
        %1776 = vst.msk [vmem:[#allocation4 + $0x58] sm:$0xff] %vm687, %v1760
        %1777 = vst.msk [vmem:[#allocation4 + $0x60] sm:$0xff] %vm687, %v1761
        %1778 = vst.msk [vmem:[#allocation4 + $0x68] sm:$0xff] %vm687, %v1762
        %1779 = vst.msk [vmem:[#allocation4 + $0x70] sm:$0xff] %vm687, %v1763
        %1780 = vst.msk [vmem:[#allocation4 + $0x78] sm:$0xff] %vm687, %v1764
        %1781 = vst.msk [vmem:[#allocation2] sm:$0xff] %vm1344, %v1056
        %1782 = vst.msk [vmem:[#allocation2 + $0x8] sm:$0xff] %vm1344, %v1057
        %1783 = vst.msk [vmem:[#allocation2 + $0x10] sm:$0xff] %vm1344, %v1058
        %1784 = vst.msk [vmem:[#allocation2 + $0x18] sm:$0xff] %vm1344, %v1059
        %1785 = vst.msk [vmem:[#allocation2 + $0x20] sm:$0xff] %vm1344, %v1060
        %1786 = vst.msk [vmem:[#allocation2 + $0x28] sm:$0xff] %vm1344, %v1061
        %1787 = vst.msk [vmem:[#allocation2 + $0x30] sm:$0xff] %vm1344, %v1062
        %1788 = vst.msk [vmem:[#allocation2 + $0x38] sm:$0xff] %vm1344, %v1063
        %1789 = vst.msk [vmem:[#allocation2 + $0x40] sm:$0xff] %vm1344, %v1064
        %1790 = vst.msk [vmem:[#allocation2 + $0x48] sm:$0xff] %vm1344, %v1065
        %1791 = vst.msk [vmem:[#allocation2 + $0x50] sm:$0xff] %vm1344, %v1066
        %1792 = vst.msk [vmem:[#allocation2 + $0x58] sm:$0xff] %vm1344, %v1067
        %1793 = vst.msk [vmem:[#allocation2 + $0x60] sm:$0xff] %vm1344, %v1068
        %1794 = vst.msk [vmem:[#allocation2 + $0x68] sm:$0xff] %vm1344, %v1069
        %1795 = vst.msk [vmem:[#allocation2 + $0x70] sm:$0xff] %vm1344, %v1070
        %1796 = vst.msk [vmem:[#allocation2 + $0x78] sm:$0xff] %vm1344, %v1071
        // Predicated region
        $region160: #{sam_forward.63} parent=142 // pred_check
          %p1797 = pneg %p565
        $region161: #{sam_forward.63} parent=142 // pred_check_branch
          %1799 = sbr.rel (%p1797) target = $region163
        $region162: #{sam_forward.63} parent=142 // pred_region
          %v1800 = vld [vmem:[#allocation3] sm:$0xff]
          %v1801 = vld [vmem:[#allocation3 + $0x8] sm:$0xff]
          %v1802 = vld [vmem:[#allocation3 + $0x10] sm:$0xff]
          %v1803 = vld [vmem:[#allocation3 + $0x18] sm:$0xff]
          %v1804 = vld [vmem:[#allocation3 + $0x20] sm:$0xff]
          %v1805 = vld [vmem:[#allocation3 + $0x28] sm:$0xff]
          %v1806 = vld [vmem:[#allocation3 + $0x30] sm:$0xff]
          %v1807 = vld [vmem:[#allocation3 + $0x38] sm:$0xff]
          %v1808 = vld [vmem:[#allocation3 + $0x40] sm:$0xff]
          %v1809 = vld [vmem:[#allocation3 + $0x48] sm:$0xff]
          %v1810 = vld [vmem:[#allocation3 + $0x50] sm:$0xff]
          %v1811 = vld [vmem:[#allocation3 + $0x58] sm:$0xff]
          %v1812 = vld [vmem:[#allocation3 + $0x60] sm:$0xff]
          %v1813 = vld [vmem:[#allocation3 + $0x68] sm:$0xff]
          %v1814 = vld [vmem:[#allocation3 + $0x70] sm:$0xff]
          %v1815 = vld [vmem:[#allocation3 + $0x78] sm:$0xff]
          %v1816 = vrcp.pop %v1800
          %v1817 = vrcp.pop %v1801
          %v1818 = vrcp.pop %v1802
          %v1819 = vrcp.pop %v1803
          %v1820 = vrcp.pop %v1804
          %v1821 = vrcp.pop %v1805
          %v1822 = vrcp.pop %v1806
          %v1823 = vrcp.pop %v1807
          %v1824 = vrcp.pop %v1808
          %v1825 = vrcp.pop %v1809
          %v1826 = vrcp.pop %v1810
          %v1827 = vrcp.pop %v1811
          %v1828 = vrcp.pop %v1812
          %v1829 = vrcp.pop %v1813
          %v1830 = vrcp.pop %v1814
          %v1831 = vrcp.pop %v1815
          %v1832 = vld [vmem:[#allocation4] sm:$0xff]
          %v1833 = vld [vmem:[#allocation4 + $0x8] sm:$0xff]
          %v1834 = vld [vmem:[#allocation4 + $0x10] sm:$0xff]
          %v1835 = vld [vmem:[#allocation4 + $0x18] sm:$0xff]
          %v1836 = vld [vmem:[#allocation4 + $0x20] sm:$0xff]
          %v1837 = vld [vmem:[#allocation4 + $0x28] sm:$0xff]
          %v1838 = vld [vmem:[#allocation4 + $0x30] sm:$0xff]
          %v1839 = vld [vmem:[#allocation4 + $0x38] sm:$0xff]
          %v1840 = vld [vmem:[#allocation4 + $0x40] sm:$0xff]
          %v1841 = vld [vmem:[#allocation4 + $0x48] sm:$0xff]
          %v1842 = vld [vmem:[#allocation4 + $0x50] sm:$0xff]
          %v1843 = vld [vmem:[#allocation4 + $0x58] sm:$0xff]
          %v1844 = vld [vmem:[#allocation4 + $0x60] sm:$0xff]
          %v1845 = vld [vmem:[#allocation4 + $0x68] sm:$0xff]
          %v1846 = vld [vmem:[#allocation4 + $0x70] sm:$0xff]
          %v1847 = vld [vmem:[#allocation4 + $0x78] sm:$0xff]
          %1849 = vset.pattern.permute.xlu0 0
          %1850 = vperm.xlu0 %1849, %v1816
          %v1851 = vpop.permute.xlu0 %1850
          %1854 = vset.pattern.permute.xlu0 0
          %1855 = vperm.xlu0 %1854, %v1817
          %v1856 = vpop.permute.xlu0 %1855
          %1859 = vset.pattern.permute.xlu0 0
          %1860 = vperm.xlu0 %1859, %v1818
          %v1861 = vpop.permute.xlu0 %1860
          %1864 = vset.pattern.permute.xlu0 0
          %1865 = vperm.xlu0 %1864, %v1819
          %v1866 = vpop.permute.xlu0 %1865
          %1869 = vset.pattern.permute.xlu0 0
          %1870 = vperm.xlu0 %1869, %v1820
          %v1871 = vpop.permute.xlu0 %1870
          %1874 = vset.pattern.permute.xlu0 0
          %1875 = vperm.xlu0 %1874, %v1821
          %v1876 = vpop.permute.xlu0 %1875
          %1879 = vset.pattern.permute.xlu0 0
          %1880 = vperm.xlu0 %1879, %v1822
          %v1881 = vpop.permute.xlu0 %1880
          %1884 = vset.pattern.permute.xlu0 0
          %1885 = vperm.xlu0 %1884, %v1823
          %v1886 = vpop.permute.xlu0 %1885
          %1889 = vset.pattern.permute.xlu0 0
          %1890 = vperm.xlu0 %1889, %v1824
          %v1891 = vpop.permute.xlu0 %1890
          %1894 = vset.pattern.permute.xlu0 0
          %1895 = vperm.xlu0 %1894, %v1825
          %v1896 = vpop.permute.xlu0 %1895
          %1899 = vset.pattern.permute.xlu0 0
          %1900 = vperm.xlu0 %1899, %v1826
          %v1901 = vpop.permute.xlu0 %1900
          %1904 = vset.pattern.permute.xlu0 0
          %1905 = vperm.xlu0 %1904, %v1827
          %v1906 = vpop.permute.xlu0 %1905
          %1909 = vset.pattern.permute.xlu0 0
          %1910 = vperm.xlu0 %1909, %v1828
          %v1911 = vpop.permute.xlu0 %1910
          %1914 = vset.pattern.permute.xlu0 0
          %1915 = vperm.xlu0 %1914, %v1829
          %v1916 = vpop.permute.xlu0 %1915
          %1919 = vset.pattern.permute.xlu0 0
          %1920 = vperm.xlu0 %1919, %v1830
          %v1921 = vpop.permute.xlu0 %1920
          %1924 = vset.pattern.permute.xlu0 0
          %1925 = vperm.xlu0 %1924, %v1831
          %v1926 = vpop.permute.xlu0 %1925
          %v1928 = vmul.f32 %v1832, %v1851
          %v1929 = vmul.f32 %v1833, %v1856
          %v1930 = vmul.f32 %v1834, %v1861
          %v1931 = vmul.f32 %v1835, %v1866
          %v1932 = vmul.f32 %v1836, %v1871
          %v1933 = vmul.f32 %v1837, %v1876
          %v1934 = vmul.f32 %v1838, %v1881
          %v1935 = vmul.f32 %v1839, %v1886
          %v1936 = vmul.f32 %v1840, %v1891
          %v1937 = vmul.f32 %v1841, %v1896
          %v1938 = vmul.f32 %v1842, %v1901
          %v1939 = vmul.f32 %v1843, %v1906
          %v1940 = vmul.f32 %v1844, %v1911
          %v1941 = vmul.f32 %v1845, %v1916
          %v1942 = vmul.f32 %v1846, %v1921
          %v1943 = vmul.f32 %v1847, %v1926
          %v1944 = vpack.c.bf16 %v1929, %v1928
          %v1945 = vpack.c.bf16 %v1931, %v1930
          %v1948 = vunpack.c.l.b16 %v1944
          %v1949 = vunpack.c.h.b16 %v1944
          %v1950 = vunpack.c.l.b16 %v1945
          %v1951 = vunpack.c.h.b16 %v1945
          %v1952 = vpack.c.b16 %v1948, %v1948
          %v1953 = vpack.c.b16 %v1949, %v1949
          %v1954 = vpack.c.b16 %v1950, %v1950
          %v1955 = vpack.c.b16 %v1951, %v1951
          %vm1960 = vcmask 257024
          %1961 = vst.msk [vmem:[%s562] sm:$0xf] %vm1960, %v1952
          %1962 = vst.msk [vmem:[%s562 + $0x4] sm:$0xf] %vm1960, %v1953
          %1963 = vst.msk [vmem:[%s562 + $0x8] sm:$0xf] %vm1960, %v1954
          %1964 = vst.msk [vmem:[%s562 + $0xc] sm:$0xf] %vm1960, %v1955
          %v1965 = vpack.c.bf16 %v1933, %v1932
          %v1966 = vpack.c.bf16 %v1935, %v1934
          %v1969 = vunpack.c.l.b16 %v1965
          %v1970 = vunpack.c.h.b16 %v1965
          %v1971 = vunpack.c.l.b16 %v1966
          %v1972 = vunpack.c.h.b16 %v1966
          %v1973 = vpack.c.b16 %v1969, %v1969
          %v1974 = vpack.c.b16 %v1970, %v1970
          %v1975 = vpack.c.b16 %v1971, %v1971
          %v1976 = vpack.c.b16 %v1972, %v1972
          %1977 = vrot.lane.b32.xlu0 %v1973, 32
          %v1978 = vpop.permute.xlu0 %1977
          %1979 = vrot.lane.b32.xlu0 %v1974, 32
          %v1980 = vpop.permute.xlu0 %1979
          %1981 = vrot.lane.b32.xlu0 %v1975, 32
          %v1982 = vpop.permute.xlu0 %1981
          %1983 = vrot.lane.b32.xlu0 %v1976, 32
          %v1984 = vpop.permute.xlu0 %1983
          %vm1989 = vcmask 519424
          %1990 = vst.msk [vmem:[%s562] sm:$0xf] %vm1989, %v1978
          %1991 = vst.msk [vmem:[%s562 + $0x4] sm:$0xf] %vm1989, %v1980
          %1992 = vst.msk [vmem:[%s562 + $0x8] sm:$0xf] %vm1989, %v1982
          %1993 = vst.msk [vmem:[%s562 + $0xc] sm:$0xf] %vm1989, %v1984
          %v1994 = vpack.c.bf16 %v1937, %v1936
          %v1995 = vpack.c.bf16 %v1939, %v1938
          %v1998 = vunpack.c.l.b16 %v1994
          %v1999 = vunpack.c.h.b16 %v1994
          %v2000 = vunpack.c.l.b16 %v1995
          %v2001 = vunpack.c.h.b16 %v1995
          %v2002 = vpack.c.b16 %v1998, %v1998
          %v2003 = vpack.c.b16 %v1999, %v1999
          %v2004 = vpack.c.b16 %v2000, %v2000
          %v2005 = vpack.c.b16 %v2001, %v2001
          %2006 = vrot.lane.b32.xlu0 %v2002, 64
          %v2007 = vpop.permute.xlu0 %2006
          %2008 = vrot.lane.b32.xlu0 %v2003, 64
          %v2009 = vpop.permute.xlu0 %2008
          %2010 = vrot.lane.b32.xlu0 %v2004, 64
          %v2011 = vpop.permute.xlu0 %2010
          %2012 = vrot.lane.b32.xlu0 %v2005, 64
          %v2013 = vpop.permute.xlu0 %2012
          %vm2018 = vcmask 781824
          %2019 = vst.msk [vmem:[%s562] sm:$0xf] %vm2018, %v2007
          %2020 = vst.msk [vmem:[%s562 + $0x4] sm:$0xf] %vm2018, %v2009
          %2021 = vst.msk [vmem:[%s562 + $0x8] sm:$0xf] %vm2018, %v2011
          %2022 = vst.msk [vmem:[%s562 + $0xc] sm:$0xf] %vm2018, %v2013
          %v2023 = vpack.c.bf16 %v1941, %v1940
          %v2024 = vpack.c.bf16 %v1943, %v1942
          %v2027 = vunpack.c.l.b16 %v2023
          %v2028 = vunpack.c.h.b16 %v2023
          %v2029 = vunpack.c.l.b16 %v2024
          %v2030 = vunpack.c.h.b16 %v2024
          %v2031 = vpack.c.b16 %v2027, %v2027
          %v2032 = vpack.c.b16 %v2028, %v2028
          %v2033 = vpack.c.b16 %v2029, %v2029
          %v2034 = vpack.c.b16 %v2030, %v2030
          %2035 = vrot.lane.b32.xlu0 %v2031, 96
          %v2036 = vpop.permute.xlu0 %2035
          %2037 = vrot.lane.b32.xlu0 %v2032, 96
          %v2038 = vpop.permute.xlu0 %2037
          %2039 = vrot.lane.b32.xlu0 %v2033, 96
          %v2040 = vpop.permute.xlu0 %2039
          %2041 = vrot.lane.b32.xlu0 %v2034, 96
          %v2042 = vpop.permute.xlu0 %2041
          %vm2047 = vcmask 1044224
          %2048 = vst.msk [vmem:[%s562] sm:$0xf] %vm2047, %v2036
          %2049 = vst.msk [vmem:[%s562 + $0x4] sm:$0xf] %vm2047, %v2038
          %2050 = vst.msk [vmem:[%s562 + $0x8] sm:$0xf] %vm2047, %v2040
          %2051 = vst.msk [vmem:[%s562 + $0xc] sm:$0xf] %vm2047, %v2042
        $region163: #{sam_forward.63} parent=142 // pred_fallthru
          _
        %s2052 = smul.u32 4, %s20
        %p2053 = scmp.lt.s32.totalorder %s19, 1
        %s2054 = scalar_select %p2053, %s19, 1
        %p2055 = scmp.lt.s32.totalorder %s2052, 3
        %s2056 = scalar_select %p2055, %s2052, 3
        %s2057 = smul.addr %s2054, 4
        %s2058 = sadd.s32 %s2056, %s2057
        %s2059 = smul.addr %s2058, 4
        %s2060 = scalar_lea.vmem %s3, %s2059
        // Predicated region
        $region164: #{sam_forward.63} parent=142 // pred_check
          %p2061 = pneg %p137
        $region165: #{sam_forward.63} parent=142 // pred_check_branch
          %2063 = sbr.rel (%p2061) target = $region167
        $region166: #{sam_forward.63} parent=142 // pred_region
          %s2064 = smul.u32 4, %s20
        $region167: #{sam_forward.63} parent=142 // pred_fallthru
          _
      $region143: #{sam_forward.63} parent=5 // pred_fallthru
        _
      %p2065 = scmp.le.s32.totalorder 2, %s9
      // Predicated region
      $region168: #{sam_forward.63} parent=5 // pred_check
        %p2066 = pneg %p2065
      $region169: #{sam_forward.63} parent=5 // pred_check_branch
        %2068 = sbr.rel (%p2066) target = $region171
      $region170: #{sam_forward.63} parent=5 // pred_region
        %s2069 = ssub.s32 %s9, 2
        // Predicated region
        $region172: #{sam_forward.63} parent=170 // pred_check
          %p2070 = pneg %p143
        $region173: #{sam_forward.63} parent=170 // pred_check_branch
          %2072 = sbr.rel (%p2070) target = $region175
        $region174: #{sam_forward.63} parent=170 // pred_region
          %s2073 = smul.u32 4, %s23
          %p2074 = scmp.lt.s32.totalorder %s22, 1
          %s2075 = scalar_select %p2074, %s22, 1
          %p2076 = scmp.lt.s32.totalorder %s2073, 3
          %s2077 = scalar_select %p2076, %s2073, 3
          %s2078 = smul.addr %s2075, 4
          %s2079 = sadd.s32 %s2077, %s2078
          %s2080 = smul.addr %s2079, 4
          %s2081 = scalar_lea.vmem %s3, %s2080
        $region175: #{sam_forward.63} parent=170 // pred_fallthru
          _
      $region171: #{sam_forward.63} parent=5 // pred_fallthru
        _
    $region6: #{sam_forward.63} parent=1 // loop_footer
      %s13 = sadd.s32 1, %s9
    $region7: #{sam_forward.63} parent=1 // loop_footer_branch
      %8 = sbr.rel target = $region3
    $region8: #{sam_forward.63} parent=1 // loop_exit
      _

// kernel: sam_forward.65
$region0: #{sam_forward.65}
  #allocation0 [shape = 'u32[]', space=smem, size = 0x4, offset = 0x4, fixed_abs, tag = 'smem constant byte address 0x4 - core index']
  #allocation1 [shape = 'u32[144,128]{1,0:T(1,128)}', space=vmem, size = 0x12000, scoped, tag = 'internal scratch']
  %s0 = inlined_call_operand.vmem [shape: bf16[64,128], index: 0, kind: input, shape index: {}]
  %s1 = inlined_call_operand.vmem [shape: f32[1,128], index: 1, kind: input, shape index: {}]
  %s2 = inlined_call_operand.vmem [shape: f32[1,128], index: 2, kind: input, shape index: {}]
  %s3 = inlined_call_operand.vmem [shape: bf16[128,512], index: 3, kind: input, shape index: {}]
  %s4 = inlined_call_operand.vmem [shape: f32[1,512], index: 4, kind: input, shape index: {}]
  %s5 = inlined_call_operand.vmem [shape: bf16[64,512], index: 5, kind: output, shape index: {}]
  %s6 = sld [smem:[#allocation0]]
  $region30: #{sam_forward.65} parent=0
    _
  %s8 = ssub.s32 1, %s6
  %s9 = scalar_select 0, %s8, %s6
  // Predicated region
  $region2: #{sam_forward.65} parent=0 // pred_check
    _
  $region3: #{sam_forward.65} parent=0 // pred_check_branch
    %11 = sbr.rel (0) target = $region5
  $region4: #{sam_forward.65} parent=0 // pred_region
    _
  $region5: #{sam_forward.65} parent=0 // pred_fallthru
    _
  // Predicated region
  $region6: #{sam_forward.65} parent=0 // pred_check
    _
  $region7: #{sam_forward.65} parent=0 // pred_check_branch
    %13 = sbr.rel (0) target = $region9
  $region8: #{sam_forward.65} parent=0 // pred_region
    _
  $region9: #{sam_forward.65} parent=0 // pred_fallthru
    _
  // Predicated region
  $region10: #{sam_forward.65} parent=0 // pred_check
    _
  $region11: #{sam_forward.65} parent=0 // pred_check_branch
    %15 = sbr.rel (0) target = $region13
  $region12: #{sam_forward.65} parent=0 // pred_region
    _
  $region13: #{sam_forward.65} parent=0 // pred_fallthru
    _
  // Predicated region
  $region14: #{sam_forward.65} parent=0 // pred_check
    _
  $region15: #{sam_forward.65} parent=0 // pred_check_branch
    %17 = sbr.rel (0) target = $region17
  $region16: #{sam_forward.65} parent=0 // pred_region
    _
  $region17: #{sam_forward.65} parent=0 // pred_fallthru
    _
  // Predicated region
  $region18: #{sam_forward.65} parent=0 // pred_check
    _
  $region19: #{sam_forward.65} parent=0 // pred_check_branch
    %19 = sbr.rel (0) target = $region21
  $region20: #{sam_forward.65} parent=0 // pred_region
    _
  $region21: #{sam_forward.65} parent=0 // pred_fallthru
    _
  %v21 = vld [vmem:[%s0] sm:$0xf]
  %v22 = vld [vmem:[%s0 + $0x4] sm:$0xf]
  %v23 = vld [vmem:[%s0 + $0x8] sm:$0xf]
  %v24 = vld [vmem:[%s0 + $0xc] sm:$0xf]
  %v25 = vld [vmem:[%s0 + $0x10] sm:$0xf]
  %v26 = vld [vmem:[%s0 + $0x14] sm:$0xf]
  %v27 = vld [vmem:[%s0 + $0x18] sm:$0xf]
  %v28 = vld [vmem:[%s0 + $0x1c] sm:$0xf]
  %v29 = vunpack.c.l.bf16 %v21
  %v30 = vunpack.c.l.bf16 %v22
  %v31 = vunpack.c.l.bf16 %v23
  %v32 = vunpack.c.l.bf16 %v24
  %v33 = vunpack.c.l.bf16 %v25
  %v34 = vunpack.c.l.bf16 %v26
  %v35 = vunpack.c.l.bf16 %v27
  %v36 = vunpack.c.l.bf16 %v28
  %37 = vadd.xlane.f32.xlu0 %v29
  %v38 = vpop.xlane.xlu0 %37
  %39 = vadd.xlane.f32.xlu0 %v30
  %v40 = vpop.xlane.xlu0 %39
  %41 = vadd.xlane.f32.xlu0 %v31
  %v42 = vpop.xlane.xlu0 %41
  %43 = vadd.xlane.f32.xlu0 %v32
  %v44 = vpop.xlane.xlu0 %43
  %45 = vadd.xlane.f32.xlu0 %v33
  %v46 = vpop.xlane.xlu0 %45
  %47 = vadd.xlane.f32.xlu0 %v34
  %v48 = vpop.xlane.xlu0 %47
  %49 = vadd.xlane.f32.xlu0 %v35
  %v50 = vpop.xlane.xlu0 %49
  %51 = vadd.xlane.f32.xlu0 %v36
  %v52 = vpop.xlane.xlu0 %51
  %v53 = vrcp.pop 128.0
  %v54 = vmul.f32 %v38, %v53
  %v55 = vmul.f32 %v40, %v53
  %v56 = vmul.f32 %v42, %v53
  %v57 = vmul.f32 %v44, %v53
  %v58 = vmul.f32 %v46, %v53
  %v59 = vmul.f32 %v48, %v53
  %v60 = vmul.f32 %v50, %v53
  %v61 = vmul.f32 %v52, %v53
  %v62 = vsub.f32 %v29, %v54
  %v63 = vsub.f32 %v30, %v55
  %v64 = vsub.f32 %v31, %v56
  %v65 = vsub.f32 %v32, %v57
  %v66 = vsub.f32 %v33, %v58
  %v67 = vsub.f32 %v34, %v59
  %v68 = vsub.f32 %v35, %v60
  %v69 = vsub.f32 %v36, %v61
  %v70 = vmul.f32 %v62, %v62
  %v71 = vmul.f32 %v63, %v63
  %v72 = vmul.f32 %v64, %v64
  %v73 = vmul.f32 %v65, %v65
  %v74 = vmul.f32 %v66, %v66
  %v75 = vmul.f32 %v67, %v67
  %v76 = vmul.f32 %v68, %v68
  %v77 = vmul.f32 %v69, %v69
  %78 = vadd.xlane.f32.xlu0 %v70
  %v79 = vpop.xlane.xlu0 %78
  %80 = vadd.xlane.f32.xlu0 %v71
  %v81 = vpop.xlane.xlu0 %80
  %82 = vadd.xlane.f32.xlu0 %v72
  %v83 = vpop.xlane.xlu0 %82
  %84 = vadd.xlane.f32.xlu0 %v73
  %v85 = vpop.xlane.xlu0 %84
  %86 = vadd.xlane.f32.xlu0 %v74
  %v87 = vpop.xlane.xlu0 %86
  %88 = vadd.xlane.f32.xlu0 %v75
  %v89 = vpop.xlane.xlu0 %88
  %90 = vadd.xlane.f32.xlu0 %v76
  %v91 = vpop.xlane.xlu0 %90
  %92 = vadd.xlane.f32.xlu0 %v77
  %v93 = vpop.xlane.xlu0 %92
  %v94 = vmul.f32 %v79, %v53
  %v95 = vmul.f32 %v81, %v53
  %v96 = vmul.f32 %v83, %v53
  %v97 = vmul.f32 %v85, %v53
  %v98 = vmul.f32 %v87, %v53
  %v99 = vmul.f32 %v89, %v53
  %v100 = vmul.f32 %v91, %v53
  %v101 = vmul.f32 %v93, %v53
  %v102 = vadd.f32 %v94, 1e-06
  %v103 = vadd.f32 %v95, 1e-06
  %v104 = vadd.f32 %v96, 1e-06
  %v105 = vadd.f32 %v97, 1e-06
  %v106 = vadd.f32 %v98, 1e-06
  %v107 = vadd.f32 %v99, 1e-06
  %v108 = vadd.f32 %v100, 1e-06
  %v109 = vadd.f32 %v101, 1e-06
  %v110 = vrsqrt.pop %v102
  %v111 = vrsqrt.pop %v103
  %v112 = vrsqrt.pop %v104
  %v113 = vrsqrt.pop %v105
  %v114 = vrsqrt.pop %v106
  %v115 = vrsqrt.pop %v107
  %v116 = vrsqrt.pop %v108
  %v117 = vrsqrt.pop %v109
  %v118 = vmul.f32 %v62, %v110
  %v119 = vmul.f32 %v63, %v111
  %v120 = vmul.f32 %v64, %v112
  %v121 = vmul.f32 %v65, %v113
  %v122 = vmul.f32 %v66, %v114
  %v123 = vmul.f32 %v67, %v115
  %v124 = vmul.f32 %v68, %v116
  %v125 = vmul.f32 %v69, %v117
  %v126 = vld [vmem:[%s1] sm:$0x1]
  %v128 = vlaneseq
  %v129 = vshrl.u32 %v128, 7
  %v130 = vsub.s32 0, %v129
  %v131 = vrot.slane %v126, %v130
  %v133 = vmul.f32 %v118, %v131
  %v134 = vmul.f32 %v119, %v131
  %v135 = vmul.f32 %v120, %v131
  %v136 = vmul.f32 %v121, %v131
  %v137 = vmul.f32 %v122, %v131
  %v138 = vmul.f32 %v123, %v131
  %v139 = vmul.f32 %v124, %v131
  %v140 = vmul.f32 %v125, %v131
  %v141 = vld [vmem:[%s2] sm:$0x1]
  %v143 = vlaneseq
  %v144 = vshrl.u32 %v143, 7
  %v145 = vsub.s32 0, %v144
  %v146 = vrot.slane %v141, %v145
  %v148 = vadd.f32 %v133, %v146
  %v149 = vadd.f32 %v134, %v146
  %v150 = vadd.f32 %v135, %v146
  %v151 = vadd.f32 %v136, %v146
  %v152 = vadd.f32 %v137, %v146
  %v153 = vadd.f32 %v138, %v146
  %v154 = vadd.f32 %v139, %v146
  %v155 = vadd.f32 %v140, %v146
  %v156 = vpack.c.bf16 %v149, %v148
  %v157 = vpack.c.bf16 %v151, %v150
  %v158 = vpack.c.bf16 %v153, %v152
  %v159 = vpack.c.bf16 %v155, %v154
  %v160 = vld [vmem:[%s3] sm:$0xff]
  %v161 = vld [vmem:[%s3 + $0x8] sm:$0xff]
  %v162 = vld [vmem:[%s3 + $0x10] sm:$0xff]
  %v163 = vld [vmem:[%s3 + $0x18] sm:$0xff]
  %v164 = vld [vmem:[%s3 + $0x20] sm:$0xff]
  %v165 = vld [vmem:[%s3 + $0x28] sm:$0xff]
  %v166 = vld [vmem:[%s3 + $0x30] sm:$0xff]
  %v167 = vld [vmem:[%s3 + $0x38] sm:$0xff]
  %v168 = vld [vmem:[%s3 + $0x40] sm:$0xff]
  %v169 = vld [vmem:[%s3 + $0x48] sm:$0xff]
  %v170 = vld [vmem:[%s3 + $0x50] sm:$0xff]
  %v171 = vld [vmem:[%s3 + $0x58] sm:$0xff]
  %v172 = vld [vmem:[%s3 + $0x60] sm:$0xff]
  %v173 = vld [vmem:[%s3 + $0x68] sm:$0xff]
  %v174 = vld [vmem:[%s3 + $0x70] sm:$0xff]
  %v175 = vld [vmem:[%s3 + $0x78] sm:$0xff]
  %v176 = vld [vmem:[%s3 + $0x80] sm:$0xff]
  %v177 = vld [vmem:[%s3 + $0x88] sm:$0xff]
  %v178 = vld [vmem:[%s3 + $0x90] sm:$0xff]
  %v179 = vld [vmem:[%s3 + $0x98] sm:$0xff]
  %v180 = vld [vmem:[%s3 + $0xa0] sm:$0xff]
  %v181 = vld [vmem:[%s3 + $0xa8] sm:$0xff]
  %v182 = vld [vmem:[%s3 + $0xb0] sm:$0xff]
  %v183 = vld [vmem:[%s3 + $0xb8] sm:$0xff]
  %v184 = vld [vmem:[%s3 + $0xc0] sm:$0xff]
  %v185 = vld [vmem:[%s3 + $0xc8] sm:$0xff]
  %v186 = vld [vmem:[%s3 + $0xd0] sm:$0xff]
  %v187 = vld [vmem:[%s3 + $0xd8] sm:$0xff]
  %v188 = vld [vmem:[%s3 + $0xe0] sm:$0xff]
  %v189 = vld [vmem:[%s3 + $0xe8] sm:$0xff]
  %v190 = vld [vmem:[%s3 + $0xf0] sm:$0xff]
  %v191 = vld [vmem:[%s3 + $0xf8] sm:$0xff]
  %v192 = vld [vmem:[%s4] sm:$0xf]
  %v194 = vlaneseq
  %v195 = vshrl.u32 %v194, 7
  %v196 = vsub.s32 0, %v195
  %v197 = vrot.slane %v192, %v196
  %v198 = vlaneseq
  %v199 = vshrl.u32 %v198, 7
  %v200 = vsub.s32 1, %v199
  %v201 = vrot.slane %v192, %v200
  %v202 = vlaneseq
  %v203 = vshrl.u32 %v202, 7
  %v204 = vsub.s32 2, %v203
  %v205 = vrot.slane %v192, %v204
  %v206 = vlaneseq
  %v207 = vshrl.u32 %v206, 7
  %v208 = vsub.s32 3, %v207
  %v209 = vrot.slane %v192, %v208
  %v246 = vunpack.c.l.b16 %v160
  %v247 = vunpack.c.h.b16 %v160
  %v248 = vunpack.c.l.b16 %v161
  %v249 = vunpack.c.h.b16 %v161
  %v250 = vunpack.c.l.b16 %v162
  %v251 = vunpack.c.h.b16 %v162
  %v252 = vunpack.c.l.b16 %v163
  %v253 = vunpack.c.h.b16 %v163
  %v254 = vunpack.c.l.b16 %v164
  %v255 = vunpack.c.h.b16 %v164
  %v256 = vunpack.c.l.b16 %v165
  %v257 = vunpack.c.h.b16 %v165
  %v258 = vunpack.c.l.b16 %v166
  %v259 = vunpack.c.h.b16 %v166
  %v260 = vunpack.c.l.b16 %v167
  %v261 = vunpack.c.h.b16 %v167
  %v262 = vunpack.c.l.b16 %v168
  %v263 = vunpack.c.h.b16 %v168
  %v264 = vunpack.c.l.b16 %v169
  %v265 = vunpack.c.h.b16 %v169
  %v266 = vunpack.c.l.b16 %v170
  %v267 = vunpack.c.h.b16 %v170
  %v268 = vunpack.c.l.b16 %v171
  %v269 = vunpack.c.h.b16 %v171
  %v270 = vunpack.c.l.b16 %v172
  %v271 = vunpack.c.h.b16 %v172
  %v272 = vunpack.c.l.b16 %v173
  %v273 = vunpack.c.h.b16 %v173
  %v274 = vunpack.c.l.b16 %v174
  %v275 = vunpack.c.h.b16 %v174
  %v276 = vunpack.c.l.b16 %v175
  %v277 = vunpack.c.h.b16 %v175
  %v278 = vunpack.c.l.b16 %v176
  %v279 = vunpack.c.h.b16 %v176
  %v280 = vunpack.c.l.b16 %v177
  %v281 = vunpack.c.h.b16 %v177
  %v282 = vunpack.c.l.b16 %v178
  %v283 = vunpack.c.h.b16 %v178
  %v284 = vunpack.c.l.b16 %v179
  %v285 = vunpack.c.h.b16 %v179
  %v286 = vunpack.c.l.b16 %v180
  %v287 = vunpack.c.h.b16 %v180
  %v288 = vunpack.c.l.b16 %v181
  %v289 = vunpack.c.h.b16 %v181
  %v290 = vunpack.c.l.b16 %v182
  %v291 = vunpack.c.h.b16 %v182
  %v292 = vunpack.c.l.b16 %v183
  %v293 = vunpack.c.h.b16 %v183
  %v294 = vunpack.c.l.b16 %v184
  %v295 = vunpack.c.h.b16 %v184
  %v296 = vunpack.c.l.b16 %v185
  %v297 = vunpack.c.h.b16 %v185
  %v298 = vunpack.c.l.b16 %v186
  %v299 = vunpack.c.h.b16 %v186
  %v300 = vunpack.c.l.b16 %v187
  %v301 = vunpack.c.h.b16 %v187
  %v302 = vunpack.c.l.b16 %v188
  %v303 = vunpack.c.h.b16 %v188
  %v304 = vunpack.c.l.b16 %v189
  %v305 = vunpack.c.h.b16 %v189
  %v306 = vunpack.c.l.b16 %v190
  %v307 = vunpack.c.h.b16 %v190
  %v308 = vunpack.c.l.b16 %v191
  %v309 = vunpack.c.h.b16 %v191
  %v310 = vpack.c.b16 %v250, %v246
  %v311 = vpack.c.b16 %v251, %v247
  %v312 = vpack.c.b16 %v252, %v248
  %v313 = vpack.c.b16 %v253, %v249
  %v314 = vpack.c.b16 %v258, %v254
  %v315 = vpack.c.b16 %v259, %v255
  %v316 = vpack.c.b16 %v260, %v256
  %v317 = vpack.c.b16 %v261, %v257
  %v318 = vpack.c.b16 %v266, %v262
  %v319 = vpack.c.b16 %v267, %v263
  %v320 = vpack.c.b16 %v268, %v264
  %v321 = vpack.c.b16 %v269, %v265
  %v322 = vpack.c.b16 %v274, %v270
  %v323 = vpack.c.b16 %v275, %v271
  %v324 = vpack.c.b16 %v276, %v272
  %v325 = vpack.c.b16 %v277, %v273
  %v326 = vpack.c.b16 %v282, %v278
  %v327 = vpack.c.b16 %v283, %v279
  %v328 = vpack.c.b16 %v284, %v280
  %v329 = vpack.c.b16 %v285, %v281
  %v330 = vpack.c.b16 %v290, %v286
  %v331 = vpack.c.b16 %v291, %v287
  %v332 = vpack.c.b16 %v292, %v288
  %v333 = vpack.c.b16 %v293, %v289
  %v334 = vpack.c.b16 %v298, %v294
  %v335 = vpack.c.b16 %v299, %v295
  %v336 = vpack.c.b16 %v300, %v296
  %v337 = vpack.c.b16 %v301, %v297
  %v338 = vpack.c.b16 %v306, %v302
  %v339 = vpack.c.b16 %v307, %v303
  %v340 = vpack.c.b16 %v308, %v304
  %v341 = vpack.c.b16 %v309, %v305
  %374 = vmatprep.subr.bf16.mxu0 %v311
  %375 = vmatpush1.bf16.msra.mxu0 %v310
  %376 = vmatprep.subr.bf16.mxu0 %v315
  %377 = vmatpush1.bf16.msra.mxu0 %v314
  %378 = vmatprep.subr.bf16.mxu0 %v319
  %379 = vmatpush1.bf16.msra.mxu0 %v318
  %380 = vmatprep.subr.bf16.mxu0 %v323
  %381 = vmatpush1.bf16.msra.mxu0 %v322
  %382 = vmatprep.subr.bf16.mxu0 %v327
  %383 = vmatpush1.bf16.msra.mxu0 %v326
  %384 = vmatprep.subr.bf16.mxu0 %v331
  %385 = vmatpush1.bf16.msra.mxu0 %v330
  %386 = vmatprep.subr.bf16.mxu0 %v335
  %387 = vmatpush1.bf16.msra.mxu0 %v334
  %388 = vmatprep.subr.bf16.mxu0 %v339
  %389 = vmatpush1.bf16.msra.mxu0 %v338
  %390 = vmatprep.subr.bf16.mxu0 0
  %391 = vmatpush1.bf16.msra.mxu0 0
  %392 = vmatprep.subr.bf16.mxu0 0
  %393 = vmatpush1.bf16.msra.mxu0 0
  %394 = vmatprep.subr.bf16.mxu0 0
  %395 = vmatpush1.bf16.msra.mxu0 0
  %396 = vmatprep.subr.bf16.mxu0 0
  %397 = vmatpush1.bf16.msra.mxu0 0
  %398 = vmatprep.subr.bf16.mxu0 0
  %399 = vmatpush1.bf16.msra.mxu0 0
  %400 = vmatprep.subr.bf16.mxu0 0
  %401 = vmatpush1.bf16.msra.mxu0 0
  %402 = vmatprep.subr.bf16.mxu0 0
  %403 = vmatpush1.bf16.msra.mxu0 0
  %404 = vmatprep.subr.bf16.mxu0 0
  %405 = vmatpush1.bf16.msra.mxu0 0
  %406 = vmatprep.mubr.bf16.mxu0 0
  %407 = vmatmul.mubr.bf16.gmra.mrb[0].mxu0 %v156
  %v408 = vpop.f32.mrb[0].mxu0
  %v409 = vadd.f32 %v197, %v408
  %v410 = vpop.f32.mrb[0].mxu0
  %v411 = vadd.f32 %v201, %v410
  %v412 = vpop.f32.mrb[0].mxu0
  %v413 = vadd.f32 %v197, %v412
  %v414 = vpop.f32.mrb[0].mxu0
  %v415 = vadd.f32 %v201, %v414
  %416 = vmatprep.mubr.bf16.mxu0 0
  %417 = vmatmul.mubr.bf16.gmra.mrb[0].mxu0 %v157
  %v418 = vpop.f32.mrb[0].mxu0
  %v419 = vadd.f32 %v197, %v418
  %v420 = vpop.f32.mrb[0].mxu0
  %v421 = vadd.f32 %v201, %v420
  %v422 = vpop.f32.mrb[0].mxu0
  %v423 = vadd.f32 %v197, %v422
  %v424 = vpop.f32.mrb[0].mxu0
  %v425 = vadd.f32 %v201, %v424
  %426 = vmatprep.mubr.bf16.mxu0 0
  %427 = vmatmul.mubr.bf16.gmra.mrb[0].mxu0 %v158
  %v428 = vpop.f32.mrb[0].mxu0
  %v429 = vadd.f32 %v197, %v428
  %v430 = vpop.f32.mrb[0].mxu0
  %v431 = vadd.f32 %v201, %v430
  %v432 = vpop.f32.mrb[0].mxu0
  %v433 = vadd.f32 %v197, %v432
  %v434 = vpop.f32.mrb[0].mxu0
  %v435 = vadd.f32 %v201, %v434
  %436 = vmatprep.mubr.bf16.mxu0 0
  %437 = vmatmul.mubr.bf16.gmra.mrb[0].mxu0 %v159
  %v438 = vpop.f32.mrb[0].mxu0
  %v439 = vadd.f32 %v197, %v438
  %v440 = vpop.f32.mrb[0].mxu0
  %v441 = vadd.f32 %v201, %v440
  %v442 = vpop.f32.mrb[0].mxu0
  %v443 = vadd.f32 %v197, %v442
  %v444 = vpop.f32.mrb[0].mxu0
  %v445 = vadd.f32 %v201, %v444
  %446 = vdwg.mxu0
  %447 = vmatprep.subr.bf16.mxu0 %v313
  %448 = vmatpush1.bf16.msra.mxu0 %v312
  %449 = vmatprep.subr.bf16.mxu0 %v317
  %450 = vmatpush1.bf16.msra.mxu0 %v316
  %451 = vmatprep.subr.bf16.mxu0 %v321
  %452 = vmatpush1.bf16.msra.mxu0 %v320
  %453 = vmatprep.subr.bf16.mxu0 %v325
  %454 = vmatpush1.bf16.msra.mxu0 %v324
  %455 = vmatprep.subr.bf16.mxu0 %v329
  %456 = vmatpush1.bf16.msra.mxu0 %v328
  %457 = vmatprep.subr.bf16.mxu0 %v333
  %458 = vmatpush1.bf16.msra.mxu0 %v332
  %459 = vmatprep.subr.bf16.mxu0 %v337
  %460 = vmatpush1.bf16.msra.mxu0 %v336
  %461 = vmatprep.subr.bf16.mxu0 %v341
  %462 = vmatpush1.bf16.msra.mxu0 %v340
  %463 = vmatprep.subr.bf16.mxu0 0
  %464 = vmatpush1.bf16.msra.mxu0 0
  %465 = vmatprep.subr.bf16.mxu0 0
  %466 = vmatpush1.bf16.msra.mxu0 0
  %467 = vmatprep.subr.bf16.mxu0 0
  %468 = vmatpush1.bf16.msra.mxu0 0
  %469 = vmatprep.subr.bf16.mxu0 0
  %470 = vmatpush1.bf16.msra.mxu0 0
  %471 = vmatprep.subr.bf16.mxu0 0
  %472 = vmatpush1.bf16.msra.mxu0 0
  %473 = vmatprep.subr.bf16.mxu0 0
  %474 = vmatpush1.bf16.msra.mxu0 0
  %475 = vmatprep.subr.bf16.mxu0 0
  %476 = vmatpush1.bf16.msra.mxu0 0
  %477 = vmatprep.subr.bf16.mxu0 0
  %478 = vmatpush1.bf16.msra.mxu0 0
  %479 = vmatprep.mubr.bf16.mxu0 0
  %480 = vmatmul.mubr.bf16.gmra.mrb[0].mxu0 %v156
  %v481 = vpop.f32.mrb[0].mxu0
  %v482 = vadd.f32 %v205, %v481
  %v483 = vpop.f32.mrb[0].mxu0
  %v484 = vadd.f32 %v209, %v483
  %v485 = vpop.f32.mrb[0].mxu0
  %v486 = vadd.f32 %v205, %v485
  %v487 = vpop.f32.mrb[0].mxu0
  %v488 = vadd.f32 %v209, %v487
  %489 = vmatprep.mubr.bf16.mxu0 0
  %490 = vmatmul.mubr.bf16.gmra.mrb[0].mxu0 %v157
  %v491 = vpop.f32.mrb[0].mxu0
  %v492 = vadd.f32 %v205, %v491
  %v493 = vpop.f32.mrb[0].mxu0
  %v494 = vadd.f32 %v209, %v493
  %v495 = vpop.f32.mrb[0].mxu0
  %v496 = vadd.f32 %v205, %v495
  %v497 = vpop.f32.mrb[0].mxu0
  %v498 = vadd.f32 %v209, %v497
  %499 = vmatprep.mubr.bf16.mxu0 0
  %500 = vmatmul.mubr.bf16.gmra.mrb[0].mxu0 %v158
  %v501 = vpop.f32.mrb[0].mxu0
  %v502 = vadd.f32 %v205, %v501
  %v503 = vpop.f32.mrb[0].mxu0
  %v504 = vadd.f32 %v209, %v503
  %v505 = vpop.f32.mrb[0].mxu0
  %v506 = vadd.f32 %v205, %v505
  %v507 = vpop.f32.mrb[0].mxu0
  %v508 = vadd.f32 %v209, %v507
  %509 = vmatprep.mubr.bf16.mxu0 0
  %510 = vmatmul.mubr.bf16.gmra.mrb[0].mxu0 %v159
  %v511 = vpop.f32.mrb[0].mxu0
  %v512 = vadd.f32 %v205, %v511
  %v513 = vpop.f32.mrb[0].mxu0
  %v514 = vadd.f32 %v209, %v513
  %v515 = vpop.f32.mrb[0].mxu0
  %v516 = vadd.f32 %v205, %v515
  %v517 = vpop.f32.mrb[0].mxu0
  %v518 = vadd.f32 %v209, %v517
  %519 = vdwg.mxu0
  %v520 = vmul.f32 %v409, %v409
  %v521 = vmul.f32 %v411, %v411
  %v522 = vmul.f32 %v482, %v482
  %v523 = vmul.f32 %v484, %v484
  %v524 = vmul.f32 %v413, %v413
  %v525 = vmul.f32 %v415, %v415
  %v526 = vmul.f32 %v486, %v486
  %v527 = vmul.f32 %v488, %v488
  %v528 = vmul.f32 %v419, %v419
  %v529 = vmul.f32 %v421, %v421
  %v530 = vmul.f32 %v492, %v492
  %v531 = vmul.f32 %v494, %v494
  %v532 = vmul.f32 %v423, %v423
  %v533 = vmul.f32 %v425, %v425
  %v534 = vmul.f32 %v496, %v496
  %v535 = vmul.f32 %v498, %v498
  %v536 = vmul.f32 %v429, %v429
  %v537 = vmul.f32 %v431, %v431
  %v538 = vmul.f32 %v502, %v502
  %v539 = vmul.f32 %v504, %v504
  %v540 = vmul.f32 %v433, %v433
  %v541 = vmul.f32 %v435, %v435
  %v542 = vmul.f32 %v506, %v506
  %v543 = vmul.f32 %v508, %v508
  %v544 = vmul.f32 %v439, %v439
  %v545 = vmul.f32 %v441, %v441
  %v546 = vmul.f32 %v512, %v512
  %v547 = vmul.f32 %v514, %v514
  %v548 = vmul.f32 %v443, %v443
  %v549 = vmul.f32 %v445, %v445
  %v550 = vmul.f32 %v516, %v516
  %v551 = vmul.f32 %v518, %v518
  %v552 = vmul.f32 %v409, %v520
  %v553 = vmul.f32 %v411, %v521
  %v554 = vmul.f32 %v482, %v522
  %v555 = vmul.f32 %v484, %v523
  %v556 = vmul.f32 %v413, %v524
  %v557 = vmul.f32 %v415, %v525
  %v558 = vmul.f32 %v486, %v526
  %v559 = vmul.f32 %v488, %v527
  %v560 = vmul.f32 %v419, %v528
  %v561 = vmul.f32 %v421, %v529
  %v562 = vmul.f32 %v492, %v530
  %v563 = vmul.f32 %v494, %v531
  %v564 = vmul.f32 %v423, %v532
  %v565 = vmul.f32 %v425, %v533
  %v566 = vmul.f32 %v496, %v534
  %v567 = vmul.f32 %v498, %v535
  %v568 = vmul.f32 %v429, %v536
  %v569 = vmul.f32 %v431, %v537
  %v570 = vmul.f32 %v502, %v538
  %v571 = vmul.f32 %v504, %v539
  %v572 = vmul.f32 %v433, %v540
  %v573 = vmul.f32 %v435, %v541
  %v574 = vmul.f32 %v506, %v542
  %v575 = vmul.f32 %v508, %v543
  %v576 = vmul.f32 %v439, %v544
  %v577 = vmul.f32 %v441, %v545
  %v578 = vmul.f32 %v512, %v546
  %v579 = vmul.f32 %v514, %v547
  %v580 = vmul.f32 %v443, %v548
  %v581 = vmul.f32 %v445, %v549
  %v582 = vmul.f32 %v516, %v550
  %v583 = vmul.f32 %v518, %v551
  %v584 = vmul.f32 %v552, 0.044715
  %v585 = vmul.f32 %v553, 0.044715
  %v586 = vmul.f32 %v554, 0.044715
  %v587 = vmul.f32 %v555, 0.044715
  %v588 = vmul.f32 %v556, 0.044715
  %v589 = vmul.f32 %v557, 0.044715
  %v590 = vmul.f32 %v558, 0.044715
  %v591 = vmul.f32 %v559, 0.044715
  %v592 = vmul.f32 %v560, 0.044715
  %v593 = vmul.f32 %v561, 0.044715
  %v594 = vmul.f32 %v562, 0.044715
  %v595 = vmul.f32 %v563, 0.044715
  %v596 = vmul.f32 %v564, 0.044715
  %v597 = vmul.f32 %v565, 0.044715
  %v598 = vmul.f32 %v566, 0.044715
  %v599 = vmul.f32 %v567, 0.044715
  %v600 = vmul.f32 %v568, 0.044715
  %v601 = vmul.f32 %v569, 0.044715
  %v602 = vmul.f32 %v570, 0.044715
  %v603 = vmul.f32 %v571, 0.044715
  %v604 = vmul.f32 %v572, 0.044715
  %v605 = vmul.f32 %v573, 0.044715
  %v606 = vmul.f32 %v574, 0.044715
  %v607 = vmul.f32 %v575, 0.044715
  %v608 = vmul.f32 %v576, 0.044715
  %v609 = vmul.f32 %v577, 0.044715
  %v610 = vmul.f32 %v578, 0.044715
  %v611 = vmul.f32 %v579, 0.044715
  %v612 = vmul.f32 %v580, 0.044715
  %v613 = vmul.f32 %v581, 0.044715
  %v614 = vmul.f32 %v582, 0.044715
  %v615 = vmul.f32 %v583, 0.044715
  %v616 = vadd.f32 %v409, %v584
  %v617 = vadd.f32 %v411, %v585
  %v618 = vadd.f32 %v482, %v586
  %v619 = vadd.f32 %v484, %v587
  %v620 = vadd.f32 %v413, %v588
  %v621 = vadd.f32 %v415, %v589
  %v622 = vadd.f32 %v486, %v590
  %v623 = vadd.f32 %v488, %v591
  %v624 = vadd.f32 %v419, %v592
  %v625 = vadd.f32 %v421, %v593
  %v626 = vadd.f32 %v492, %v594
  %v627 = vadd.f32 %v494, %v595
  %v628 = vadd.f32 %v423, %v596
  %v629 = vadd.f32 %v425, %v597
  %v630 = vadd.f32 %v496, %v598
  %v631 = vadd.f32 %v498, %v599
  %v632 = vadd.f32 %v429, %v600
  %v633 = vadd.f32 %v431, %v601
  %v634 = vadd.f32 %v502, %v602
  %v635 = vadd.f32 %v504, %v603
  %v636 = vadd.f32 %v433, %v604
  %v637 = vadd.f32 %v435, %v605
  %v638 = vadd.f32 %v506, %v606
  %v639 = vadd.f32 %v508, %v607
  %v640 = vadd.f32 %v439, %v608
  %v641 = vadd.f32 %v441, %v609
  %v642 = vadd.f32 %v512, %v610
  %v643 = vadd.f32 %v514, %v611
  %v644 = vadd.f32 %v443, %v612
  %v645 = vadd.f32 %v445, %v613
  %v646 = vadd.f32 %v516, %v614
  %v647 = vadd.f32 %v518, %v615
  %v648 = vmul.f32 %v616, 0.7978846
  %v649 = vmul.f32 %v617, 0.7978846
  %v650 = vmul.f32 %v618, 0.7978846
  %v651 = vmul.f32 %v619, 0.7978846
  %v652 = vmul.f32 %v620, 0.7978846
  %v653 = vmul.f32 %v621, 0.7978846
  %v654 = vmul.f32 %v622, 0.7978846
  %v655 = vmul.f32 %v623, 0.7978846
  %v656 = vmul.f32 %v624, 0.7978846
  %v657 = vmul.f32 %v625, 0.7978846
  %v658 = vmul.f32 %v626, 0.7978846
  %v659 = vmul.f32 %v627, 0.7978846
  %v660 = vmul.f32 %v628, 0.7978846
  %v661 = vmul.f32 %v629, 0.7978846
  %v662 = vmul.f32 %v630, 0.7978846
  %v663 = vmul.f32 %v631, 0.7978846
  %v664 = vmul.f32 %v632, 0.7978846
  %v665 = vmul.f32 %v633, 0.7978846
  %v666 = vmul.f32 %v634, 0.7978846
  %v667 = vmul.f32 %v635, 0.7978846
  %v668 = vmul.f32 %v636, 0.7978846
  %v669 = vmul.f32 %v637, 0.7978846
  %v670 = vmul.f32 %v638, 0.7978846
  %v671 = vmul.f32 %v639, 0.7978846
  %v672 = vmul.f32 %v640, 0.7978846
  %v673 = vmul.f32 %v641, 0.7978846
  %v674 = vmul.f32 %v642, 0.7978846
  %v675 = vmul.f32 %v643, 0.7978846
  %v676 = vmul.f32 %v644, 0.7978846
  %v677 = vmul.f32 %v645, 0.7978846
  %v678 = vmul.f32 %v646, 0.7978846
  %v679 = vmul.f32 %v647, 0.7978846
  %v680 = vtanh.pop %v648
  %v681 = vtanh.pop %v649
  %v682 = vtanh.pop %v650
  %v683 = vtanh.pop %v651
  %v684 = vtanh.pop %v652
  %v685 = vtanh.pop %v653
  %v686 = vtanh.pop %v654
  %v687 = vtanh.pop %v655
  %v688 = vtanh.pop %v656
  %v689 = vtanh.pop %v657
  %v690 = vtanh.pop %v658
  %v691 = vtanh.pop %v659
  %v692 = vtanh.pop %v660
  %v693 = vtanh.pop %v661
  %v694 = vtanh.pop %v662
  %v695 = vtanh.pop %v663
  %v696 = vtanh.pop %v664
  %v697 = vtanh.pop %v665
  %v698 = vtanh.pop %v666
  %v699 = vtanh.pop %v667
  %v700 = vtanh.pop %v668
  %v701 = vtanh.pop %v669
  %v702 = vtanh.pop %v670
  %v703 = vtanh.pop %v671
  %v704 = vtanh.pop %v672
  %v705 = vtanh.pop %v673
  %v706 = vtanh.pop %v674
  %v707 = vtanh.pop %v675
  %v708 = vtanh.pop %v676
  %v709 = vtanh.pop %v677
  %v710 = vtanh.pop %v678
  %v711 = vtanh.pop %v679
  %v712 = vadd.f32 %v680, 1.0
  %v713 = vadd.f32 %v681, 1.0
  %v714 = vadd.f32 %v682, 1.0
  %v715 = vadd.f32 %v683, 1.0
  %v716 = vadd.f32 %v684, 1.0
  %v717 = vadd.f32 %v685, 1.0
  %v718 = vadd.f32 %v686, 1.0
  %v719 = vadd.f32 %v687, 1.0
  %v720 = vadd.f32 %v688, 1.0
  %v721 = vadd.f32 %v689, 1.0
  %v722 = vadd.f32 %v690, 1.0
  %v723 = vadd.f32 %v691, 1.0
  %v724 = vadd.f32 %v692, 1.0
  %v725 = vadd.f32 %v693, 1.0
  %v726 = vadd.f32 %v694, 1.0
  %v727 = vadd.f32 %v695, 1.0
  %v728 = vadd.f32 %v696, 1.0
  %v729 = vadd.f32 %v697, 1.0
  %v730 = vadd.f32 %v698, 1.0
  %v731 = vadd.f32 %v699, 1.0
  %v732 = vadd.f32 %v700, 1.0
  %v733 = vadd.f32 %v701, 1.0
  %v734 = vadd.f32 %v702, 1.0
  %v735 = vadd.f32 %v703, 1.0
  %v736 = vadd.f32 %v704, 1.0
  %v737 = vadd.f32 %v705, 1.0
  %v738 = vadd.f32 %v706, 1.0
  %v739 = vadd.f32 %v707, 1.0
  %v740 = vadd.f32 %v708, 1.0
  %v741 = vadd.f32 %v709, 1.0
  %v742 = vadd.f32 %v710, 1.0
  %v743 = vadd.f32 %v711, 1.0
  %v744 = vmul.f32 %v712, 0.5
  %v745 = vmul.f32 %v713, 0.5
  %v746 = vmul.f32 %v714, 0.5
  %v747 = vmul.f32 %v715, 0.5
  %v748 = vmul.f32 %v716, 0.5
  %v749 = vmul.f32 %v717, 0.5
  %v750 = vmul.f32 %v718, 0.5
  %v751 = vmul.f32 %v719, 0.5
  %v752 = vmul.f32 %v720, 0.5
  %v753 = vmul.f32 %v721, 0.5
  %v754 = vmul.f32 %v722, 0.5
  %v755 = vmul.f32 %v723, 0.5
  %v756 = vmul.f32 %v724, 0.5
  %v757 = vmul.f32 %v725, 0.5
  %v758 = vmul.f32 %v726, 0.5
  %v759 = vmul.f32 %v727, 0.5
  %v760 = vmul.f32 %v728, 0.5
  %v761 = vmul.f32 %v729, 0.5
  %v762 = vmul.f32 %v730, 0.5
  %v763 = vmul.f32 %v731, 0.5
  %v764 = vmul.f32 %v732, 0.5
  %v765 = vmul.f32 %v733, 0.5
  %v766 = vmul.f32 %v734, 0.5
  %v767 = vmul.f32 %v735, 0.5
  %v768 = vmul.f32 %v736, 0.5
  %v769 = vmul.f32 %v737, 0.5
  %v770 = vmul.f32 %v738, 0.5
  %v771 = vmul.f32 %v739, 0.5
  %v772 = vmul.f32 %v740, 0.5
  %v773 = vmul.f32 %v741, 0.5
  %v774 = vmul.f32 %v742, 0.5
  %v775 = vmul.f32 %v743, 0.5
  %v776 = vmul.f32 %v409, %v744
  %v777 = vmul.f32 %v411, %v745
  %v778 = vmul.f32 %v482, %v746
  %v779 = vmul.f32 %v484, %v747
  %v780 = vmul.f32 %v413, %v748
  %v781 = vmul.f32 %v415, %v749
  %v782 = vmul.f32 %v486, %v750
  %v783 = vmul.f32 %v488, %v751
  %v784 = vmul.f32 %v419, %v752
  %v785 = vmul.f32 %v421, %v753
  %v786 = vmul.f32 %v492, %v754
  %v787 = vmul.f32 %v494, %v755
  %v788 = vmul.f32 %v423, %v756
  %v789 = vmul.f32 %v425, %v757
  %v790 = vmul.f32 %v496, %v758
  %v791 = vmul.f32 %v498, %v759
  %v792 = vmul.f32 %v429, %v760
  %v793 = vmul.f32 %v431, %v761
  %v794 = vmul.f32 %v502, %v762
  %v795 = vmul.f32 %v504, %v763
  %v796 = vmul.f32 %v433, %v764
  %v797 = vmul.f32 %v435, %v765
  %v798 = vmul.f32 %v506, %v766
  %v799 = vmul.f32 %v508, %v767
  %v800 = vmul.f32 %v439, %v768
  %v801 = vmul.f32 %v441, %v769
  %v802 = vmul.f32 %v512, %v770
  %v803 = vmul.f32 %v514, %v771
  %v804 = vmul.f32 %v443, %v772
  %v805 = vmul.f32 %v445, %v773
  %v806 = vmul.f32 %v516, %v774
  %v807 = vmul.f32 %v518, %v775
  %v808 = vpack.c.bf16 %v780, %v776
  %v809 = vpack.c.bf16 %v781, %v777
  %v810 = vpack.c.bf16 %v782, %v778
  %v811 = vpack.c.bf16 %v783, %v779
  %v812 = vpack.c.bf16 %v788, %v784
  %v813 = vpack.c.bf16 %v789, %v785
  %v814 = vpack.c.bf16 %v790, %v786
  %v815 = vpack.c.bf16 %v791, %v787
  %v816 = vpack.c.bf16 %v796, %v792
  %v817 = vpack.c.bf16 %v797, %v793
  %v818 = vpack.c.bf16 %v798, %v794
  %v819 = vpack.c.bf16 %v799, %v795
  %v820 = vpack.c.bf16 %v804, %v800
  %v821 = vpack.c.bf16 %v805, %v801
  %v822 = vpack.c.bf16 %v806, %v802
  %v823 = vpack.c.bf16 %v807, %v803
  %v840 = vunpack.c.l.b16 %v808
  %v841 = vunpack.c.l.b16 %v809
  %v842 = vunpack.c.l.b16 %v810
  %v843 = vunpack.c.l.b16 %v811
  %v844 = vunpack.c.h.b16 %v808
  %v845 = vunpack.c.h.b16 %v809
  %v846 = vunpack.c.h.b16 %v810
  %v847 = vunpack.c.h.b16 %v811
  %v848 = vunpack.c.l.b16 %v812
  %v849 = vunpack.c.l.b16 %v813
  %v850 = vunpack.c.l.b16 %v814
  %v851 = vunpack.c.l.b16 %v815
  %v852 = vunpack.c.h.b16 %v812
  %v853 = vunpack.c.h.b16 %v813
  %v854 = vunpack.c.h.b16 %v814
  %v855 = vunpack.c.h.b16 %v815
  %v856 = vunpack.c.l.b16 %v816
  %v857 = vunpack.c.l.b16 %v817
  %v858 = vunpack.c.l.b16 %v818
  %v859 = vunpack.c.l.b16 %v819
  %v860 = vunpack.c.h.b16 %v816
  %v861 = vunpack.c.h.b16 %v817
  %v862 = vunpack.c.h.b16 %v818
  %v863 = vunpack.c.h.b16 %v819
  %v864 = vunpack.c.l.b16 %v820
  %v865 = vunpack.c.l.b16 %v821
  %v866 = vunpack.c.l.b16 %v822
  %v867 = vunpack.c.l.b16 %v823
  %v868 = vunpack.c.h.b16 %v820
  %v869 = vunpack.c.h.b16 %v821
  %v870 = vunpack.c.h.b16 %v822
  %v871 = vunpack.c.h.b16 %v823
  %v872 = vpack.c.b16 %v841, %v840
  %v873 = vpack.c.b16 %v843, %v842
  %v874 = vpack.c.b16 %v845, %v844
  %v875 = vpack.c.b16 %v847, %v846
  %v876 = vpack.c.b16 %v849, %v848
  %v877 = vpack.c.b16 %v851, %v850
  %v878 = vpack.c.b16 %v853, %v852
  %v879 = vpack.c.b16 %v855, %v854
  %v880 = vpack.c.b16 %v857, %v856
  %v881 = vpack.c.b16 %v859, %v858
  %v882 = vpack.c.b16 %v861, %v860
  %v883 = vpack.c.b16 %v863, %v862
  %v884 = vpack.c.b16 %v865, %v864
  %v885 = vpack.c.b16 %v867, %v866
  %v886 = vpack.c.b16 %v869, %v868
  %v887 = vpack.c.b16 %v871, %v870
  %904 = vst [vmem:[%s5] sm:$0xff] %v872
  %905 = vst [vmem:[%s5 + $0x8] sm:$0xff] %v873
  %906 = vst [vmem:[%s5 + $0x10] sm:$0xff] %v874
  %907 = vst [vmem:[%s5 + $0x18] sm:$0xff] %v875
  %908 = vst [vmem:[%s5 + $0x20] sm:$0xff] %v876
  %909 = vst [vmem:[%s5 + $0x28] sm:$0xff] %v877
  %910 = vst [vmem:[%s5 + $0x30] sm:$0xff] %v878
  %911 = vst [vmem:[%s5 + $0x38] sm:$0xff] %v879
  %912 = vst [vmem:[%s5 + $0x40] sm:$0xff] %v880
  %913 = vst [vmem:[%s5 + $0x48] sm:$0xff] %v881
  %914 = vst [vmem:[%s5 + $0x50] sm:$0xff] %v882
  %915 = vst [vmem:[%s5 + $0x58] sm:$0xff] %v883
  %916 = vst [vmem:[%s5 + $0x60] sm:$0xff] %v884
  %917 = vst [vmem:[%s5 + $0x68] sm:$0xff] %v885
  %918 = vst [vmem:[%s5 + $0x70] sm:$0xff] %v886
  %919 = vst [vmem:[%s5 + $0x78] sm:$0xff] %v887
  // Predicated region
  $region22: #{sam_forward.65} parent=0 // pred_check
    _
  $region23: #{sam_forward.65} parent=0 // pred_check_branch
    %921 = sbr.rel (0) target = $region25
  $region24: #{sam_forward.65} parent=0 // pred_region
    _
  $region25: #{sam_forward.65} parent=0 // pred_fallthru
    _
  // Predicated region
  $region26: #{sam_forward.65} parent=0 // pred_check
    _
  $region27: #{sam_forward.65} parent=0 // pred_check_branch
    %923 = sbr.rel (0) target = $region29
  $region28: #{sam_forward.65} parent=0 // pred_region
    _
  $region29: #{sam_forward.65} parent=0 // pred_fallthru
    _

// kernel: sam_forward.66
$region0: #{sam_forward.66}
  #allocation0 [shape = 'u32[]', space=smem, size = 0x4, offset = 0x4, fixed_abs, tag = 'smem constant byte address 0x4 - core index']
  #allocation1 [shape = 'u32[144,128]{1,0:T(1,128)}', space=vmem, size = 0x12000, scoped, tag = 'internal scratch']
  #allocation2 [shape = 'f32[64,128]{1,0:T(8,128)}', space=vmem, size = 0x8000, scoped, tag = 'scratch operand']
  %s0 = inlined_call_operand.vmem [shape: bf16[64,512], index: 0, kind: input, shape index: {}]
  %s1 = inlined_call_operand.vmem [shape: bf16[512,128], index: 1, kind: input, shape index: {}]
  %s2 = inlined_call_operand.vmem [shape: f32[1,128], index: 2, kind: input, shape index: {}]
  %s3 = inlined_call_operand.vmem [shape: bf16[64,128], index: 3, kind: input, shape index: {}]
  %s4 = inlined_call_operand.vmem [shape: bf16[64,128], index: 4, kind: output, shape index: {}]
  %s5 = sld [smem:[#allocation0]]
  $region34: #{sam_forward.66} parent=0
    _
  %s7 = ssub.s32 1, %s5
  %s8 = scalar_select 0, %s7, %s5
  // Predicated region
  $region2: #{sam_forward.66} parent=0 // pred_check
    _
  $region3: #{sam_forward.66} parent=0 // pred_check_branch
    %10 = sbr.rel (0) target = $region5
  $region4: #{sam_forward.66} parent=0 // pred_region
    _
  $region5: #{sam_forward.66} parent=0 // pred_fallthru
    _
  // Predicated region
  $region6: #{sam_forward.66} parent=0 // pred_check
    _
  $region7: #{sam_forward.66} parent=0 // pred_check_branch
    %12 = sbr.rel (0) target = $region9
  $region8: #{sam_forward.66} parent=0 // pred_region
    _
  $region9: #{sam_forward.66} parent=0 // pred_fallthru
    _
  // Predicated region
  $region10: #{sam_forward.66} parent=0 // pred_check
    _
  $region11: #{sam_forward.66} parent=0 // pred_check_branch
    %14 = sbr.rel (0) target = $region13
  $region12: #{sam_forward.66} parent=0 // pred_region
    _
  $region13: #{sam_forward.66} parent=0 // pred_fallthru
    _
  // Predicated region
  $region14: #{sam_forward.66} parent=0 // pred_check
    _
  $region15: #{sam_forward.66} parent=0 // pred_check_branch
    %16 = sbr.rel (0) target = $region17
  $region16: #{sam_forward.66} parent=0 // pred_region
    _
  $region17: #{sam_forward.66} parent=0 // pred_fallthru
    _
  %p18 = scmp.eq.s32.totalorder 0, 0
  // Predicated region
  $region18: #{sam_forward.66} parent=0 // pred_check
    %p19 = pneg %p18
  $region19: #{sam_forward.66} parent=0 // pred_check_branch
    %21 = sbr.rel (%p19) target = $region21
  $region20: #{sam_forward.66} parent=0 // pred_region
    %22 = vst [vmem:[#allocation2] sm:$0xff] 0.0
    %23 = vst [vmem:[#allocation2 + $0x8] sm:$0xff] 0.0
    %24 = vst [vmem:[#allocation2 + $0x10] sm:$0xff] 0.0
    %25 = vst [vmem:[#allocation2 + $0x18] sm:$0xff] 0.0
    %26 = vst [vmem:[#allocation2 + $0x20] sm:$0xff] 0.0
    %27 = vst [vmem:[#allocation2 + $0x28] sm:$0xff] 0.0
    %28 = vst [vmem:[#allocation2 + $0x30] sm:$0xff] 0.0
    %29 = vst [vmem:[#allocation2 + $0x38] sm:$0xff] 0.0
  $region21: #{sam_forward.66} parent=0 // pred_fallthru
    _
  %v30 = vld [vmem:[#allocation2] sm:$0xff]
  %v31 = vld [vmem:[#allocation2 + $0x8] sm:$0xff]
  %v32 = vld [vmem:[#allocation2 + $0x10] sm:$0xff]
  %v33 = vld [vmem:[#allocation2 + $0x18] sm:$0xff]
  %v34 = vld [vmem:[#allocation2 + $0x20] sm:$0xff]
  %v35 = vld [vmem:[#allocation2 + $0x28] sm:$0xff]
  %v36 = vld [vmem:[#allocation2 + $0x30] sm:$0xff]
  %v37 = vld [vmem:[#allocation2 + $0x38] sm:$0xff]
  %v38 = vld [vmem:[%s0] sm:$0xff]
  %v39 = vld [vmem:[%s0 + $0x8] sm:$0xff]
  %v40 = vld [vmem:[%s0 + $0x10] sm:$0xff]
  %v41 = vld [vmem:[%s0 + $0x18] sm:$0xff]
  %v42 = vld [vmem:[%s0 + $0x20] sm:$0xff]
  %v43 = vld [vmem:[%s0 + $0x28] sm:$0xff]
  %v44 = vld [vmem:[%s0 + $0x30] sm:$0xff]
  %v45 = vld [vmem:[%s0 + $0x38] sm:$0xff]
  %v46 = vld [vmem:[%s0 + $0x40] sm:$0xff]
  %v47 = vld [vmem:[%s0 + $0x48] sm:$0xff]
  %v48 = vld [vmem:[%s0 + $0x50] sm:$0xff]
  %v49 = vld [vmem:[%s0 + $0x58] sm:$0xff]
  %v50 = vld [vmem:[%s0 + $0x60] sm:$0xff]
  %v51 = vld [vmem:[%s0 + $0x68] sm:$0xff]
  %v52 = vld [vmem:[%s0 + $0x70] sm:$0xff]
  %v53 = vld [vmem:[%s0 + $0x78] sm:$0xff]
  %v54 = vld [vmem:[%s1] sm:$0xf]
  %v55 = vld [vmem:[%s1 + $0x4] sm:$0xf]
  %v56 = vld [vmem:[%s1 + $0x8] sm:$0xf]
  %v57 = vld [vmem:[%s1 + $0xc] sm:$0xf]
  %v58 = vld [vmem:[%s1 + $0x10] sm:$0xf]
  %v59 = vld [vmem:[%s1 + $0x14] sm:$0xf]
  %v60 = vld [vmem:[%s1 + $0x18] sm:$0xf]
  %v61 = vld [vmem:[%s1 + $0x1c] sm:$0xf]
  %v62 = vld [vmem:[%s1 + $0x20] sm:$0xf]
  %v63 = vld [vmem:[%s1 + $0x24] sm:$0xf]
  %v64 = vld [vmem:[%s1 + $0x28] sm:$0xf]
  %v65 = vld [vmem:[%s1 + $0x2c] sm:$0xf]
  %v66 = vld [vmem:[%s1 + $0x30] sm:$0xf]
  %v67 = vld [vmem:[%s1 + $0x34] sm:$0xf]
  %v68 = vld [vmem:[%s1 + $0x38] sm:$0xf]
  %v69 = vld [vmem:[%s1 + $0x3c] sm:$0xf]
  %v70 = vld [vmem:[%s1 + $0x40] sm:$0xf]
  %v71 = vld [vmem:[%s1 + $0x44] sm:$0xf]
  %v72 = vld [vmem:[%s1 + $0x48] sm:$0xf]
  %v73 = vld [vmem:[%s1 + $0x4c] sm:$0xf]
  %v74 = vld [vmem:[%s1 + $0x50] sm:$0xf]
  %v75 = vld [vmem:[%s1 + $0x54] sm:$0xf]
  %v76 = vld [vmem:[%s1 + $0x58] sm:$0xf]
  %v77 = vld [vmem:[%s1 + $0x5c] sm:$0xf]
  %v78 = vld [vmem:[%s1 + $0x60] sm:$0xf]
  %v79 = vld [vmem:[%s1 + $0x64] sm:$0xf]
  %v80 = vld [vmem:[%s1 + $0x68] sm:$0xf]
  %v81 = vld [vmem:[%s1 + $0x6c] sm:$0xf]
  %v82 = vld [vmem:[%s1 + $0x70] sm:$0xf]
  %v83 = vld [vmem:[%s1 + $0x74] sm:$0xf]
  %v84 = vld [vmem:[%s1 + $0x78] sm:$0xf]
  %v85 = vld [vmem:[%s1 + $0x7c] sm:$0xf]
  %v86 = vld [vmem:[%s1 + $0x80] sm:$0xf]
  %v87 = vld [vmem:[%s1 + $0x84] sm:$0xf]
  %v88 = vld [vmem:[%s1 + $0x88] sm:$0xf]
  %v89 = vld [vmem:[%s1 + $0x8c] sm:$0xf]
  %v90 = vld [vmem:[%s1 + $0x90] sm:$0xf]
  %v91 = vld [vmem:[%s1 + $0x94] sm:$0xf]
  %v92 = vld [vmem:[%s1 + $0x98] sm:$0xf]
  %v93 = vld [vmem:[%s1 + $0x9c] sm:$0xf]
  %v94 = vld [vmem:[%s1 + $0xa0] sm:$0xf]
  %v95 = vld [vmem:[%s1 + $0xa4] sm:$0xf]
  %v96 = vld [vmem:[%s1 + $0xa8] sm:$0xf]
  %v97 = vld [vmem:[%s1 + $0xac] sm:$0xf]
  %v98 = vld [vmem:[%s1 + $0xb0] sm:$0xf]
  %v99 = vld [vmem:[%s1 + $0xb4] sm:$0xf]
  %v100 = vld [vmem:[%s1 + $0xb8] sm:$0xf]
  %v101 = vld [vmem:[%s1 + $0xbc] sm:$0xf]
  %v102 = vld [vmem:[%s1 + $0xc0] sm:$0xf]
  %v103 = vld [vmem:[%s1 + $0xc4] sm:$0xf]
  %v104 = vld [vmem:[%s1 + $0xc8] sm:$0xf]
  %v105 = vld [vmem:[%s1 + $0xcc] sm:$0xf]
  %v106 = vld [vmem:[%s1 + $0xd0] sm:$0xf]
  %v107 = vld [vmem:[%s1 + $0xd4] sm:$0xf]
  %v108 = vld [vmem:[%s1 + $0xd8] sm:$0xf]
  %v109 = vld [vmem:[%s1 + $0xdc] sm:$0xf]
  %v110 = vld [vmem:[%s1 + $0xe0] sm:$0xf]
  %v111 = vld [vmem:[%s1 + $0xe4] sm:$0xf]
  %v112 = vld [vmem:[%s1 + $0xe8] sm:$0xf]
  %v113 = vld [vmem:[%s1 + $0xec] sm:$0xf]
  %v114 = vld [vmem:[%s1 + $0xf0] sm:$0xf]
  %v115 = vld [vmem:[%s1 + $0xf4] sm:$0xf]
  %v116 = vld [vmem:[%s1 + $0xf8] sm:$0xf]
  %v117 = vld [vmem:[%s1 + $0xfc] sm:$0xf]
  %v134 = vunpack.c.l.b16 %v38
  %v135 = vunpack.c.h.b16 %v38
  %v136 = vunpack.c.l.b16 %v39
  %v137 = vunpack.c.h.b16 %v39
  %v138 = vunpack.c.l.b16 %v40
  %v139 = vunpack.c.h.b16 %v40
  %v140 = vunpack.c.l.b16 %v41
  %v141 = vunpack.c.h.b16 %v41
  %v142 = vunpack.c.l.b16 %v42
  %v143 = vunpack.c.h.b16 %v42
  %v144 = vunpack.c.l.b16 %v43
  %v145 = vunpack.c.h.b16 %v43
  %v146 = vunpack.c.l.b16 %v44
  %v147 = vunpack.c.h.b16 %v44
  %v148 = vunpack.c.l.b16 %v45
  %v149 = vunpack.c.h.b16 %v45
  %v150 = vunpack.c.l.b16 %v46
  %v151 = vunpack.c.h.b16 %v46
  %v152 = vunpack.c.l.b16 %v47
  %v153 = vunpack.c.h.b16 %v47
  %v154 = vunpack.c.l.b16 %v48
  %v155 = vunpack.c.h.b16 %v48
  %v156 = vunpack.c.l.b16 %v49
  %v157 = vunpack.c.h.b16 %v49
  %v158 = vunpack.c.l.b16 %v50
  %v159 = vunpack.c.h.b16 %v50
  %v160 = vunpack.c.l.b16 %v51
  %v161 = vunpack.c.h.b16 %v51
  %v162 = vunpack.c.l.b16 %v52
  %v163 = vunpack.c.h.b16 %v52
  %v164 = vunpack.c.l.b16 %v53
  %v165 = vunpack.c.h.b16 %v53
  %v166 = vpack.c.b16 %v138, %v134
  %v167 = vpack.c.b16 %v139, %v135
  %v168 = vpack.c.b16 %v140, %v136
  %v169 = vpack.c.b16 %v141, %v137
  %v170 = vpack.c.b16 %v146, %v142
  %v171 = vpack.c.b16 %v147, %v143
  %v172 = vpack.c.b16 %v148, %v144
  %v173 = vpack.c.b16 %v149, %v145
  %v174 = vpack.c.b16 %v154, %v150
  %v175 = vpack.c.b16 %v155, %v151
  %v176 = vpack.c.b16 %v156, %v152
  %v177 = vpack.c.b16 %v157, %v153
  %v178 = vpack.c.b16 %v162, %v158
  %v179 = vpack.c.b16 %v163, %v159
  %v180 = vpack.c.b16 %v164, %v160
  %v181 = vpack.c.b16 %v165, %v161
  %v262 = vunpack.c.l.b16 %v54
  %v263 = vunpack.c.l.b16 %v55
  %v264 = vunpack.c.l.b16 %v56
  %v265 = vunpack.c.l.b16 %v57
  %v266 = vunpack.c.l.b16 %v58
  %v267 = vunpack.c.l.b16 %v59
  %v268 = vunpack.c.l.b16 %v60
  %v269 = vunpack.c.l.b16 %v61
  %v270 = vunpack.c.l.b16 %v62
  %v271 = vunpack.c.l.b16 %v63
  %v272 = vunpack.c.l.b16 %v64
  %v273 = vunpack.c.l.b16 %v65
  %v274 = vunpack.c.l.b16 %v66
  %v275 = vunpack.c.l.b16 %v67
  %v276 = vunpack.c.l.b16 %v68
  %v277 = vunpack.c.l.b16 %v69
  %v278 = vunpack.c.l.b16 %v70
  %v279 = vunpack.c.l.b16 %v71
  %v280 = vunpack.c.l.b16 %v72
  %v281 = vunpack.c.l.b16 %v73
  %v282 = vunpack.c.l.b16 %v74
  %v283 = vunpack.c.l.b16 %v75
  %v284 = vunpack.c.l.b16 %v76
  %v285 = vunpack.c.l.b16 %v77
  %v286 = vunpack.c.l.b16 %v78
  %v287 = vunpack.c.l.b16 %v79
  %v288 = vunpack.c.l.b16 %v80
  %v289 = vunpack.c.l.b16 %v81
  %v290 = vunpack.c.l.b16 %v82
  %v291 = vunpack.c.l.b16 %v83
  %v292 = vunpack.c.l.b16 %v84
  %v293 = vunpack.c.l.b16 %v85
  %v294 = vunpack.c.l.b16 %v86
  %v295 = vunpack.c.l.b16 %v87
  %v296 = vunpack.c.l.b16 %v88
  %v297 = vunpack.c.l.b16 %v89
  %v298 = vunpack.c.l.b16 %v90
  %v299 = vunpack.c.l.b16 %v91
  %v300 = vunpack.c.l.b16 %v92
  %v301 = vunpack.c.l.b16 %v93
  %v302 = vunpack.c.l.b16 %v94
  %v303 = vunpack.c.l.b16 %v95
  %v304 = vunpack.c.l.b16 %v96
  %v305 = vunpack.c.l.b16 %v97
  %v306 = vunpack.c.l.b16 %v98
  %v307 = vunpack.c.l.b16 %v99
  %v308 = vunpack.c.l.b16 %v100
  %v309 = vunpack.c.l.b16 %v101
  %v310 = vunpack.c.l.b16 %v102
  %v311 = vunpack.c.l.b16 %v103
  %v312 = vunpack.c.l.b16 %v104
  %v313 = vunpack.c.l.b16 %v105
  %v314 = vunpack.c.l.b16 %v106
  %v315 = vunpack.c.l.b16 %v107
  %v316 = vunpack.c.l.b16 %v108
  %v317 = vunpack.c.l.b16 %v109
  %v318 = vunpack.c.l.b16 %v110
  %v319 = vunpack.c.l.b16 %v111
  %v320 = vunpack.c.l.b16 %v112
  %v321 = vunpack.c.l.b16 %v113
  %v322 = vunpack.c.l.b16 %v114
  %v323 = vunpack.c.l.b16 %v115
  %v324 = vunpack.c.l.b16 %v116
  %v325 = vunpack.c.l.b16 %v117
  %v326 = vpack.c.b16 %v263, %v262
  %v327 = vpack.c.b16 %v265, %v264
  %v328 = vpack.c.b16 %v267, %v266
  %v329 = vpack.c.b16 %v269, %v268
  %v330 = vpack.c.b16 %v271, %v270
  %v331 = vpack.c.b16 %v273, %v272
  %v332 = vpack.c.b16 %v275, %v274
  %v333 = vpack.c.b16 %v277, %v276
  %v334 = vpack.c.b16 %v279, %v278
  %v335 = vpack.c.b16 %v281, %v280
  %v336 = vpack.c.b16 %v283, %v282
  %v337 = vpack.c.b16 %v285, %v284
  %v338 = vpack.c.b16 %v287, %v286
  %v339 = vpack.c.b16 %v289, %v288
  %v340 = vpack.c.b16 %v291, %v290
  %v341 = vpack.c.b16 %v293, %v292
  %v342 = vpack.c.b16 %v295, %v294
  %v343 = vpack.c.b16 %v297, %v296
  %v344 = vpack.c.b16 %v299, %v298
  %v345 = vpack.c.b16 %v301, %v300
  %v346 = vpack.c.b16 %v303, %v302
  %v347 = vpack.c.b16 %v305, %v304
  %v348 = vpack.c.b16 %v307, %v306
  %v349 = vpack.c.b16 %v309, %v308
  %v350 = vpack.c.b16 %v311, %v310
  %v351 = vpack.c.b16 %v313, %v312
  %v352 = vpack.c.b16 %v315, %v314
  %v353 = vpack.c.b16 %v317, %v316
  %v354 = vpack.c.b16 %v319, %v318
  %v355 = vpack.c.b16 %v321, %v320
  %v356 = vpack.c.b16 %v323, %v322
  %v357 = vpack.c.b16 %v325, %v324
  %390 = vmatprep.subr.bf16.mxu0 0
  %391 = vmatpush1.bf16.msra.mxu0 %v326
  %392 = vmatprep.subr.bf16.mxu0 0
  %393 = vmatpush1.bf16.msra.mxu0 %v327
  %394 = vmatprep.subr.bf16.mxu0 0
  %395 = vmatpush1.bf16.msra.mxu0 %v328
  %396 = vmatprep.subr.bf16.mxu0 0
  %397 = vmatpush1.bf16.msra.mxu0 %v329
  %398 = vmatprep.subr.bf16.mxu0 0
  %399 = vmatpush1.bf16.msra.mxu0 %v330
  %400 = vmatprep.subr.bf16.mxu0 0
  %401 = vmatpush1.bf16.msra.mxu0 %v331
  %402 = vmatprep.subr.bf16.mxu0 0
  %403 = vmatpush1.bf16.msra.mxu0 %v332
  %404 = vmatprep.subr.bf16.mxu0 0
  %405 = vmatpush1.bf16.msra.mxu0 %v333
  %406 = vmatprep.subr.bf16.mxu0 0
  %407 = vmatpush1.bf16.msra.mxu0 %v334
  %408 = vmatprep.subr.bf16.mxu0 0
  %409 = vmatpush1.bf16.msra.mxu0 %v335
  %410 = vmatprep.subr.bf16.mxu0 0
  %411 = vmatpush1.bf16.msra.mxu0 %v336
  %412 = vmatprep.subr.bf16.mxu0 0
  %413 = vmatpush1.bf16.msra.mxu0 %v337
  %414 = vmatprep.subr.bf16.mxu0 0
  %415 = vmatpush1.bf16.msra.mxu0 %v338
  %416 = vmatprep.subr.bf16.mxu0 0
  %417 = vmatpush1.bf16.msra.mxu0 %v339
  %418 = vmatprep.subr.bf16.mxu0 0
  %419 = vmatpush1.bf16.msra.mxu0 %v340
  %420 = vmatprep.subr.bf16.mxu0 0
  %421 = vmatpush1.bf16.msra.mxu0 %v341
  %422 = vmatprep.mubr.bf16.mxu0 %v167
  %423 = vmatmul.mubr.bf16.gmra.mrb[0].mxu0 %v166
  %v424 = vpop.f32.mrb[0].mxu0
  %v425 = vadd.f32 0.0, %v424
  %v426 = vpop.f32.mrb[0].mxu0
  %v427 = vpop.f32.mrb[0].mxu0
  %v428 = vadd.f32 0.0, %v427
  %v429 = vpop.f32.mrb[0].mxu0
  %430 = vmatprep.mubr.bf16.mxu0 %v171
  %431 = vmatmul.mubr.bf16.gmra.mrb[0].mxu0 %v170
  %v432 = vpop.f32.mrb[0].mxu0
  %v433 = vadd.f32 0.0, %v432
  %v434 = vpop.f32.mrb[0].mxu0
  %v435 = vpop.f32.mrb[0].mxu0
  %v436 = vadd.f32 0.0, %v435
  %v437 = vpop.f32.mrb[0].mxu0
  %438 = vmatprep.mubr.bf16.mxu0 %v175
  %439 = vmatmul.mubr.bf16.gmra.mrb[0].mxu0 %v174
  %v440 = vpop.f32.mrb[0].mxu0
  %v441 = vadd.f32 0.0, %v440
  %v442 = vpop.f32.mrb[0].mxu0
  %v443 = vpop.f32.mrb[0].mxu0
  %v444 = vadd.f32 0.0, %v443
  %v445 = vpop.f32.mrb[0].mxu0
  %446 = vmatprep.mubr.bf16.mxu0 %v179
  %447 = vmatmul.mubr.bf16.gmra.mrb[0].mxu0 %v178
  %v448 = vpop.f32.mrb[0].mxu0
  %v449 = vadd.f32 0.0, %v448
  %v450 = vpop.f32.mrb[0].mxu0
  %v451 = vpop.f32.mrb[0].mxu0
  %v452 = vadd.f32 0.0, %v451
  %v453 = vpop.f32.mrb[0].mxu0
  %454 = vdwg.mxu0
  %455 = vmatprep.subr.bf16.mxu0 0
  %456 = vmatpush1.bf16.msra.mxu0 %v342
  %457 = vmatprep.subr.bf16.mxu0 0
  %458 = vmatpush1.bf16.msra.mxu0 %v343
  %459 = vmatprep.subr.bf16.mxu0 0
  %460 = vmatpush1.bf16.msra.mxu0 %v344
  %461 = vmatprep.subr.bf16.mxu0 0
  %462 = vmatpush1.bf16.msra.mxu0 %v345
  %463 = vmatprep.subr.bf16.mxu0 0
  %464 = vmatpush1.bf16.msra.mxu0 %v346
  %465 = vmatprep.subr.bf16.mxu0 0
  %466 = vmatpush1.bf16.msra.mxu0 %v347
  %467 = vmatprep.subr.bf16.mxu0 0
  %468 = vmatpush1.bf16.msra.mxu0 %v348
  %469 = vmatprep.subr.bf16.mxu0 0
  %470 = vmatpush1.bf16.msra.mxu0 %v349
  %471 = vmatprep.subr.bf16.mxu0 0
  %472 = vmatpush1.bf16.msra.mxu0 %v350
  %473 = vmatprep.subr.bf16.mxu0 0
  %474 = vmatpush1.bf16.msra.mxu0 %v351
  %475 = vmatprep.subr.bf16.mxu0 0
  %476 = vmatpush1.bf16.msra.mxu0 %v352
  %477 = vmatprep.subr.bf16.mxu0 0
  %478 = vmatpush1.bf16.msra.mxu0 %v353
  %479 = vmatprep.subr.bf16.mxu0 0
  %480 = vmatpush1.bf16.msra.mxu0 %v354
  %481 = vmatprep.subr.bf16.mxu0 0
  %482 = vmatpush1.bf16.msra.mxu0 %v355
  %483 = vmatprep.subr.bf16.mxu0 0
  %484 = vmatpush1.bf16.msra.mxu0 %v356
  %485 = vmatprep.subr.bf16.mxu0 0
  %486 = vmatpush1.bf16.msra.mxu0 %v357
  %487 = vmatprep.mubr.bf16.mxu0 %v169
  %488 = vmatmul.mubr.bf16.gmra.mrb[0].mxu0 %v168
  %v489 = vpop.f32.mrb[0].mxu0
  %v490 = vadd.f32 %v425, %v489
  %v491 = vpop.f32.mrb[0].mxu0
  %v492 = vpop.f32.mrb[0].mxu0
  %v493 = vadd.f32 %v428, %v492
  %v494 = vpop.f32.mrb[0].mxu0
  %495 = vmatprep.mubr.bf16.mxu0 %v173
  %496 = vmatmul.mubr.bf16.gmra.mrb[0].mxu0 %v172
  %v497 = vpop.f32.mrb[0].mxu0
  %v498 = vadd.f32 %v433, %v497
  %v499 = vpop.f32.mrb[0].mxu0
  %v500 = vpop.f32.mrb[0].mxu0
  %v501 = vadd.f32 %v436, %v500
  %v502 = vpop.f32.mrb[0].mxu0
  %503 = vmatprep.mubr.bf16.mxu0 %v177
  %504 = vmatmul.mubr.bf16.gmra.mrb[0].mxu0 %v176
  %v505 = vpop.f32.mrb[0].mxu0
  %v506 = vadd.f32 %v441, %v505
  %v507 = vpop.f32.mrb[0].mxu0
  %v508 = vpop.f32.mrb[0].mxu0
  %v509 = vadd.f32 %v444, %v508
  %v510 = vpop.f32.mrb[0].mxu0
  %511 = vmatprep.mubr.bf16.mxu0 %v181
  %512 = vmatmul.mubr.bf16.gmra.mrb[0].mxu0 %v180
  %v513 = vpop.f32.mrb[0].mxu0
  %v514 = vadd.f32 %v449, %v513
  %v515 = vpop.f32.mrb[0].mxu0
  %v516 = vpop.f32.mrb[0].mxu0
  %v517 = vadd.f32 %v452, %v516
  %v518 = vpop.f32.mrb[0].mxu0
  %519 = vdwg.mxu0
  %v520 = vadd.f32 %v30, %v490
  %v521 = vadd.f32 %v31, %v493
  %v522 = vadd.f32 %v32, %v498
  %v523 = vadd.f32 %v33, %v501
  %v524 = vadd.f32 %v34, %v506
  %v525 = vadd.f32 %v35, %v509
  %v526 = vadd.f32 %v36, %v514
  %v527 = vadd.f32 %v37, %v517
  %528 = vst [vmem:[#allocation2] sm:$0xff] %v520
  %529 = vst [vmem:[#allocation2 + $0x8] sm:$0xff] %v521
  %530 = vst [vmem:[#allocation2 + $0x10] sm:$0xff] %v522
  %531 = vst [vmem:[#allocation2 + $0x18] sm:$0xff] %v523
  %532 = vst [vmem:[#allocation2 + $0x20] sm:$0xff] %v524
  %533 = vst [vmem:[#allocation2 + $0x28] sm:$0xff] %v525
  %534 = vst [vmem:[#allocation2 + $0x30] sm:$0xff] %v526
  %535 = vst [vmem:[#allocation2 + $0x38] sm:$0xff] %v527
  // Predicated region
  $region22: #{sam_forward.66} parent=0 // pred_check
    %p536 = pneg %p18
  $region23: #{sam_forward.66} parent=0 // pred_check_branch
    %538 = sbr.rel (%p536) target = $region25
  $region24: #{sam_forward.66} parent=0 // pred_region
    %v539 = vld [vmem:[#allocation2] sm:$0xff]
    %v540 = vld [vmem:[#allocation2 + $0x8] sm:$0xff]
    %v541 = vld [vmem:[#allocation2 + $0x10] sm:$0xff]
    %v542 = vld [vmem:[#allocation2 + $0x18] sm:$0xff]
    %v543 = vld [vmem:[#allocation2 + $0x20] sm:$0xff]
    %v544 = vld [vmem:[#allocation2 + $0x28] sm:$0xff]
    %v545 = vld [vmem:[#allocation2 + $0x30] sm:$0xff]
    %v546 = vld [vmem:[#allocation2 + $0x38] sm:$0xff]
    %v547 = vld [vmem:[%s2] sm:$0x1]
    %v549 = vlaneseq
    %v550 = vshrl.u32 %v549, 7
    %v551 = vsub.s32 0, %v550
    %v552 = vrot.slane %v547, %v551
    %v554 = vadd.f32 %v539, %v552
    %v555 = vadd.f32 %v540, %v552
    %v556 = vadd.f32 %v541, %v552
    %v557 = vadd.f32 %v542, %v552
    %v558 = vadd.f32 %v543, %v552
    %v559 = vadd.f32 %v544, %v552
    %v560 = vadd.f32 %v545, %v552
    %v561 = vadd.f32 %v546, %v552
    %v562 = vld [vmem:[%s3] sm:$0xf]
    %v563 = vld [vmem:[%s3 + $0x4] sm:$0xf]
    %v564 = vld [vmem:[%s3 + $0x8] sm:$0xf]
    %v565 = vld [vmem:[%s3 + $0xc] sm:$0xf]
    %v566 = vld [vmem:[%s3 + $0x10] sm:$0xf]
    %v567 = vld [vmem:[%s3 + $0x14] sm:$0xf]
    %v568 = vld [vmem:[%s3 + $0x18] sm:$0xf]
    %v569 = vld [vmem:[%s3 + $0x1c] sm:$0xf]
    %v570 = vunpack.c.l.bf16 %v562
    %v571 = vunpack.c.l.bf16 %v563
    %v572 = vunpack.c.l.bf16 %v564
    %v573 = vunpack.c.l.bf16 %v565
    %v574 = vunpack.c.l.bf16 %v566
    %v575 = vunpack.c.l.bf16 %v567
    %v576 = vunpack.c.l.bf16 %v568
    %v577 = vunpack.c.l.bf16 %v569
    %v578 = vadd.f32 %v554, %v570
    %v579 = vadd.f32 %v555, %v571
    %v580 = vadd.f32 %v556, %v572
    %v581 = vadd.f32 %v557, %v573
    %v582 = vadd.f32 %v558, %v574
    %v583 = vadd.f32 %v559, %v575
    %v584 = vadd.f32 %v560, %v576
    %v585 = vadd.f32 %v561, %v577
    %v586 = vpack.c.bf16 %v579, %v578
    %v587 = vpack.c.bf16 %v581, %v580
    %v588 = vpack.c.bf16 %v583, %v582
    %v589 = vpack.c.bf16 %v585, %v584
    %v594 = vunpack.c.l.b16 %v586
    %v595 = vunpack.c.h.b16 %v586
    %v596 = vunpack.c.l.b16 %v587
    %v597 = vunpack.c.h.b16 %v587
    %v598 = vunpack.c.l.b16 %v588
    %v599 = vunpack.c.h.b16 %v588
    %v600 = vunpack.c.l.b16 %v589
    %v601 = vunpack.c.h.b16 %v589
    %v602 = vpack.c.b16 %v594, %v594
    %v603 = vpack.c.b16 %v595, %v595
    %v604 = vpack.c.b16 %v596, %v596
    %v605 = vpack.c.b16 %v597, %v597
    %v606 = vpack.c.b16 %v598, %v598
    %v607 = vpack.c.b16 %v599, %v599
    %v608 = vpack.c.b16 %v600, %v600
    %v609 = vpack.c.b16 %v601, %v601
    %618 = vst [vmem:[%s4] sm:$0xf] %v602
    %619 = vst [vmem:[%s4 + $0x4] sm:$0xf] %v603
    %620 = vst [vmem:[%s4 + $0x8] sm:$0xf] %v604
    %621 = vst [vmem:[%s4 + $0xc] sm:$0xf] %v605
    %622 = vst [vmem:[%s4 + $0x10] sm:$0xf] %v606
    %623 = vst [vmem:[%s4 + $0x14] sm:$0xf] %v607
    %624 = vst [vmem:[%s4 + $0x18] sm:$0xf] %v608
    %625 = vst [vmem:[%s4 + $0x1c] sm:$0xf] %v609
  $region25: #{sam_forward.66} parent=0 // pred_fallthru
    _
  // Predicated region
  $region26: #{sam_forward.66} parent=0 // pred_check
    _
  $region27: #{sam_forward.66} parent=0 // pred_check_branch
    %627 = sbr.rel (0) target = $region29
  $region28: #{sam_forward.66} parent=0 // pred_region
    _
  $region29: #{sam_forward.66} parent=0 // pred_fallthru
    _
  // Predicated region
  $region30: #{sam_forward.66} parent=0 // pred_check
    _
  $region31: #{sam_forward.66} parent=0 // pred_check_branch
    %629 = sbr.rel (0) target = $region33
  $region32: #{sam_forward.66} parent=0 // pred_region
    _
  $region33: #{sam_forward.66} parent=0 // pred_fallthru
    _

</llo_original>
